<compile_context>
chip_gen: v7x
topology: tpu7x:2x2x1
jax: 0.10.0
libtpu: 0.0.40
codegen_flags: <defaults>
</compile_context>

<pallas_src>
import functools

import jax
import jax.numpy as jnp
from jax.experimental import pallas as pl
from jax.experimental.pallas import tpu as pltpu

D_MODEL = 32
D_STATE = 16                     # Mamba default
D_CONV = 4                       # Mamba default
EXPAND = 2                       # Mamba default
D_INNER = EXPAND * D_MODEL       # 64
DT_RANK = (D_MODEL + 15) // 16   # ceil(d_model/16) = 2
NUM_LEVELS = 8
LN_EPS = 1e-5
OUT_PAD = 128                    # lane-dense out_proj width (zero-padded)


def _level_math(x, shift_taps, ln, in_w, conv_w, vec, wx, a_neg_t, out_w_pad,
                *, bn, sl):
  """One NetworkLayer mixer, time-major layout: Mamba(LayerNorm(x)).

    x         : (B*L, D) f32, rows ordered t*B + b (time-major)
    shift_taps: (D_CONV-1, B*L, B*L) bf16  precomputed causal shift matrices
    ln        : (2, D)                 LayerNorm weight / bias
    in_w      : (D, 2*I)     bf16      in_proj (pre-transposed)
    conv_w    : (D_CONV, I)  f32       depthwise conv taps (pre-transposed)
    vec       : (3, I)       f32       conv bias, dt bias, D skip
    wx        : (I, I+2*S)   bf16      fused [x_proj_dt @ dt_proj | W_B | W_C]
    a_neg_t   : (S, I)       f32       A = -exp(A_log), transposed
    out_w_pad : (I, 128)     bf16      out_proj zero-padded to 128 lanes
  Returns (B*L, 128) f32 (columns >= D_MODEL are zero).
  """
  ln_w, ln_b = ln[0:1, :], ln[1:2, :]
  conv_b, dt_b, d_skip = vec[0:1, :], vec[1:2, :], vec[2:3, :]

  # fused add-norm with residual=None: residual = x, h = LayerNorm(x)
  mean = jnp.mean(x, axis=-1, keepdims=True)
  var = jnp.mean(jnp.square(x - mean), axis=-1, keepdims=True)
  h = (x - mean) * jax.lax.rsqrt(var + LN_EPS) * ln_w + ln_b

  # in_proj (bias=False): bf16 operands, f32 accumulation.
  xz = jnp.dot(h.astype(in_w.dtype), in_w, preferred_element_type=jnp.float32)
  xi = xz[:, :D_INNER]
  z = xz[:, D_INNER:]

  # depthwise causal conv1d (kernel D_CONV, left zero-pad, truncated to L)
  # + SiLU, via precomputed bf16 shift-matrix matmuls (single MXU pass each).
  xi_bf = xi.astype(jnp.bfloat16)
  xc = xi * conv_w[D_CONV - 1:D_CONV, :] + conv_b
  for k in range(D_CONV - 1):
    xc = xc + jnp.dot(shift_taps[k], xi_bf,
                      preferred_element_type=jnp.float32) * conv_w[k:k + 1, :]
  x_act = xc * jax.nn.sigmoid(xc)                              # SiLU

  # fused x_proj + dt_proj: one (BL, I) @ (I, I + 2*S) matmul.
  x_dbl = jnp.dot(x_act.astype(wx.dtype), wx,
                  preferred_element_type=jnp.float32)
  delta = jax.nn.softplus(x_dbl[:, :D_INNER] + dt_b)           # (BL, I)
  bm = x_dbl[:, D_INNER:D_INNER + D_STATE]                     # (BL, S)
  cm = x_dbl[:, D_INNER + D_STATE:]                            # (BL, S)
  du = delta * x_act

  # Selective scan; state layout (B, d_state, d_inner) keeps d_inner on lanes.
  # Time-major rows make each step a contiguous (B, .) sublane slice and the
  # per-step outputs concatenate back with no interleave / transpose.
  a_bc = jnp.broadcast_to(a_neg_t[None, :, :], (bn, D_STATE, D_INNER))  # hoisted
  state = jnp.zeros((bn, D_STATE, D_INNER), jnp.float32)
  ys = []
  for t in range(sl):                 # L static & small
    r0 = t * bn
    d_t = delta[r0:r0 + bn, :]
    du_t = du[r0:r0 + bn, :]
    b_t = bm[r0:r0 + bn, :]
    c_t = cm[r0:r0 + bn, :]
    da = jnp.exp(d_t[:, None, :] * a_bc)
    state = da * state + du_t[:, None, :] * b_t[:, :, None]
    ys.append(jnp.sum(state * c_t[:, :, None], axis=1))        # (B, I)
  y = jnp.concatenate(ys, axis=0)                              # (B*L, I)

  y = y + x_act * d_skip
  y = y * (z * jax.nn.sigmoid(z))                              # gate: SiLU(z)
  return jnp.dot(y.astype(out_w_pad.dtype), out_w_pad,
                 preferred_element_type=jnp.float32)           # (B*L, 128)


def _parallel_layers_kernel(x_ref, shift_ref, ln_ref, in_w_ref, conv_w_ref,
                            vec_ref, wx_ref, a_ref, out_w_ref, o_ref,
                            *, lps, bn, sl):
  shift_taps = shift_ref[...]          # loaded once per grid step
  for j in range(lps):                 # static unroll; levels are independent
    o_ref[j] = _level_math(x_ref[j], shift_taps, ln_ref[j], in_w_ref[j],
                           conv_w_ref[j], vec_ref[j], wx_ref[j], a_ref[j],
                           out_w_ref[j], bn=bn, sl=sl)


def _shift_masks_time_major(bn, sl):
  """(D_CONV-1, B*L, B*L) bf16 causal shift matrices for time-major rows."""
  bl = bn * sl
  r = jnp.arange(bl)[:, None]
  q = jnp.arange(bl)[None, :]
  t = r // bn
  mats = []
  for k in range(D_CONV - 1):
    s = D_CONV - 1 - k
    mats.append(jnp.logical_and(q == r - s * bn, t >= s))
  return jnp.stack(mats, axis=0).astype(jnp.bfloat16)


def parallel_transformer_layers(embeddings_per_lod, params):
  """Pallas implementation of ParallelTransformerLayers.forward."""
  xs = jnp.stack(embeddings_per_lod, axis=0).astype(jnp.float32)  # (NL,B,L,D)
  nl, bn, sl, dm = xs.shape
  bl = bn * sl

  # time-major, 2-D per-level blocks: (NL, L*B, D); kernel never reshapes x.
  xs_tm = jnp.transpose(xs, (0, 2, 1, 3)).reshape(nl, bl, dm)
  shift = _shift_masks_time_major(bn, sl)

  grid_n = 2 if nl % 2 == 0 else 1      # 2 grid steps -> v7x 2-TC split
  lps = nl // grid_n                    # levels unrolled per grid step

  def lvl_spec(arr):
    nrest = arr.ndim - 1
    return pl.BlockSpec((lps,) + tuple(arr.shape[1:]),
                        lambda i, _n=nrest: (i,) + (0,) * _n)

  grid_spec = pltpu.PrefetchScalarGridSpec(
      num_scalar_prefetch=0,
      grid=(grid_n,),
      in_specs=[
          lvl_spec(xs_tm),                                       # x (per step)
          pl.BlockSpec(tuple(shift.shape), lambda i: (0, 0, 0)),  # shift masks
          lvl_spec(params["ln"]),
          lvl_spec(params["in_w"]),
          lvl_spec(params["conv_w"]),
          lvl_spec(params["vec"]),
          lvl_spec(params["wx"]),
          lvl_spec(params["a_neg_t"]),
          lvl_spec(params["out_w"]),
      ],
      out_specs=pl.BlockSpec((lps, bl, OUT_PAD), lambda i: (i, 0, 0)),
  )

  flops = nl * (2 * bl * dm * 2 * D_INNER                       # in_proj
                + 2 * (D_CONV - 1) * bl * bl * D_INNER          # conv shifts
                + 2 * bl * D_INNER * (D_INNER + 2 * D_STATE)    # fused x_proj
                + 12 * sl * bn * D_STATE * D_INNER              # scan
                + 2 * bl * D_INNER * OUT_PAD)                   # out_proj
  transcendentals = nl * (sl * bn * D_STATE * D_INNER + 6 * bl * D_INNER)
  bytes_accessed = (int(xs_tm.size) * 4 + nl * bl * OUT_PAD * 4
                    + int(shift.size) * 2
                    + sum(int(v.size) * v.dtype.itemsize
                          for v in params.values()))

  mixer_tm = pl.pallas_call(
      functools.partial(_parallel_layers_kernel, lps=lps, bn=bn, sl=sl),
      out_shape=jax.ShapeDtypeStruct((nl, bl, OUT_PAD), jnp.float32),
      grid_spec=grid_spec,
      compiler_params=pltpu.CompilerParams(
          dimension_semantics=("parallel",)),
      cost_estimate=pl.CostEstimate(flops=flops,
                                    transcendentals=transcendentals,
                                    bytes_accessed=bytes_accessed),
  )(xs_tm, shift, params["ln"], params["in_w"], params["conv_w"],
    params["vec"], params["wx"], params["a_neg_t"], params["out_w"])

  # back to (NL, B, L, D); padded lanes dropped outside the kernel.
  mixer = jnp.transpose(mixer_tm.reshape(nl, sl, bn, OUT_PAD),
                        (0, 2, 1, 3))[..., :dm]

  # residual prefix-sum stays outside the kernel (exclusive cumsum of inputs).
  prev = jnp.concatenate(
      [jnp.zeros((1, bn, sl, dm), xs.dtype), jnp.cumsum(xs, axis=0)[:-1]],
      axis=0)
  outs = mixer + prev
  return [outs[i] for i in range(nl)]


def init_params(key):
  keys = jax.random.split(key, 7)

  def nrm(k, shape, scale=0.1):
    return scale * jax.random.normal(k, shape, dtype=jnp.float32)

  ln = jnp.stack([jnp.ones((NUM_LEVELS, D_MODEL), jnp.float32),
                  jnp.zeros((NUM_LEVELS, D_MODEL), jnp.float32)], axis=1)
  in_w = nrm(keys[0], (NUM_LEVELS, D_MODEL, 2 * D_INNER))
  conv_w = nrm(keys[1], (NUM_LEVELS, D_CONV, D_INNER))   # (taps, channels)
  conv_b = nrm(keys[2], (NUM_LEVELS, D_INNER))
  xproj = nrm(keys[3], (NUM_LEVELS, D_INNER, DT_RANK + 2 * D_STATE))
  dtproj_w = nrm(keys[4], (NUM_LEVELS, DT_RANK, D_INNER), scale=0.5)
  dtproj_b = nrm(keys[5], (NUM_LEVELS, D_INNER), scale=0.5)
  d_skip = jnp.ones((NUM_LEVELS, D_INNER), jnp.float32)
  out_w = nrm(keys[6], (NUM_LEVELS, D_INNER, D_MODEL))

  # fuse dt_proj into x_proj: delta_pre = x_act @ (W_xproj_dt @ W_dtproj)
  w_delta = jnp.einsum("nik,nkj->nij", xproj[:, :, :DT_RANK], dtproj_w)
  wx = jnp.concatenate([w_delta, xproj[:, :, DT_RANK:]], axis=-1)  # (NL,64,96)

  # Mamba S4D-real default: A = -exp(A_log), A_log = log(1..d_state);
  # stored pre-negated/exponentiated and transposed to (d_state, d_inner).
  a_row = -jnp.arange(1, D_STATE + 1, dtype=jnp.float32)
  a_neg_t = jnp.broadcast_to(a_row[None, :, None],
                             (NUM_LEVELS, D_STATE, D_INNER)).astype(jnp.float32)

  # zero-pad out_proj to 128 lanes -> lane-dense (unmasked) output stores.
  out_w_pad = jnp.pad(out_w, ((0, 0), (0, 0), (0, OUT_PAD - D_MODEL)))

  return {
      "ln": ln,                                               # (NL, 2, D)
      "in_w": in_w.astype(jnp.bfloat16),                      # (NL, D, 2*I)
      "conv_w": conv_w,                                       # (NL, K, I)
      "vec": jnp.stack([conv_b, dtproj_b, d_skip], axis=1),   # (NL, 3, I)
      "wx": wx.astype(jnp.bfloat16),                          # (NL, I, I+2*S)
      "a_neg_t": a_neg_t,                                     # (NL, S, I)
      "out_w": out_w_pad.astype(jnp.bfloat16),                # (NL, I, 128)
  }


def _reference_level(x, ln, in_w, conv_w, vec, wx, a_neg_t, out_w_pad):
  """Independent f32 reference: batch-major, zero-pad conv, lax.scan."""
  bn, sl, dm = x.shape
  in_w = in_w.astype(jnp.float32)
  wx = wx.astype(jnp.float32)
  out_w = out_w_pad.astype(jnp.float32)[:, :dm]
  conv_b, dt_b, d_skip = vec[0], vec[1], vec[2]

  mean = x.mean(-1, keepdims=True)
  var = ((x - mean) ** 2).mean(-1, keepdims=True)
  h = (x - mean) / jnp.sqrt(var + LN_EPS) * ln[0] + ln[1]

  xz = jnp.einsum("bld,de->ble", h, in_w)
  xi, z = xz[..., :D_INNER], xz[..., D_INNER:]

  xpad = jnp.pad(xi, ((0, 0), (D_CONV - 1, 0), (0, 0)))
  xc = conv_b + sum(conv_w[k] * xpad[:, k:k + sl, :] for k in range(D_CONV))
  x_act = xc * jax.nn.sigmoid(xc)

  x_dbl = jnp.einsum("bli,ij->blj", x_act, wx)
  delta = jax.nn.softplus(x_dbl[..., :D_INNER] + dt_b)
  bm = x_dbl[..., D_INNER:D_INNER + D_STATE]
  cm = x_dbl[..., D_INNER + D_STATE:]

  a = a_neg_t.T                                            # (I, S)

  def step(state, inp):
    d_t, u_t, b_t, c_t = inp                               # (B,I)(B,I)(B,S)(B,S)
    state = (jnp.exp(d_t[..., None] * a[None]) * state
             + (d_t * u_t)[..., None] * b_t[:, None, :])   # (B, I, S)
    return state, jnp.einsum("bis,bs->bi", state, c_t)

  state0 = jnp.zeros((bn, D_INNER, D_STATE), jnp.float32)
  _, ys = jax.lax.scan(step, state0,
                       (jnp.moveaxis(delta, 1, 0), jnp.moveaxis(x_act, 1, 0),
                        jnp.moveaxis(bm, 1, 0), jnp.moveaxis(cm, 1, 0)))
  y = jnp.moveaxis(ys, 0, 1)                               # (B, L, I)

  y = (y + x_act * d_skip) * (z * jax.nn.sigmoid(z))
  return jnp.einsum("bli,id->bld", y, out_w)


def reference_forward(xs, p):
  """Pure-JAX (XLA) reference of the same forward."""
  nl = xs.shape[0]
  outs = []
  prev = jnp.zeros(xs.shape[1:], jnp.float32)
  for i in range(nl):
    mix = _reference_level(xs[i], p["ln"][i], p["in_w"][i], p["conv_w"][i],
                           p["vec"][i], p["wx"][i], p["a_neg_t"][i],
                           p["out_w"][i])
    outs.append(mix + prev)
    prev = prev + xs[i]          # Block residual == its input
  return jnp.stack(outs, axis=0)


if __name__ == "__main__":
  key = jax.random.PRNGKey(0)
  pkey, xkey = jax.random.split(key)
  params = init_params(pkey)

  B, L = 2, 8
  embeddings_per_lod = [
      jax.random.normal(k, (B, L, D_MODEL), dtype=jnp.float32)
      for k in jax.random.split(xkey, NUM_LEVELS)
  ]

  outs = parallel_transformer_layers(embeddings_per_lod, params)
  outs = [jax.block_until_ready(o) for o in outs]

  ref = reference_forward(jnp.stack(embeddings_per_lod, axis=0), params)
  err = float(jnp.max(jnp.abs(jnp.stack(outs, axis=0) - ref)))
  assert err < 1e-2, f"max abs error vs reference: {err}"

  print("KERNEL_OK")
</pallas_src>

<mosaic_0001>
module attributes {stable_mosaic.version = 11 : i64} {
  func.func @_parallel_layers_kernel(%arg0: i32, %arg1: memref<4x16x32xf32, #tpu.memory_space<vmem>>, %arg2: memref<3x16x16xbf16, #tpu.memory_space<vmem>>, %arg3: memref<4x2x32xf32, #tpu.memory_space<vmem>>, %arg4: memref<4x32x128xbf16, #tpu.memory_space<vmem>>, %arg5: memref<4x4x64xf32, #tpu.memory_space<vmem>>, %arg6: memref<4x3x64xf32, #tpu.memory_space<vmem>>, %arg7: memref<4x64x96xbf16, #tpu.memory_space<vmem>>, %arg8: memref<4x16x64xf32, #tpu.memory_space<vmem>>, %arg9: memref<4x64x128xbf16, #tpu.memory_space<vmem>>, %arg10: memref<4x16x128xf32, #tpu.memory_space<vmem>>) attributes {dimension_semantics = [#tpu.dimension_semantics<parallel>], iteration_bounds = array<i64: 2>, scalar_prefetch = 0 : i64, scratch_operands = 0 : i64, tpu.core_type = #tpu.core_type<tc>, window_params = [{transform_indices = @transform_0, window_bounds = array<i64: 4, 16, 32>}, {pipeline_mode = #tpu.pipeline_mode<synchronous>, transform_indices = @transform_1, window_bounds = array<i64: 3, 16, 16>}, {transform_indices = @transform_2, window_bounds = array<i64: 4, 2, 32>}, {transform_indices = @transform_3, window_bounds = array<i64: 4, 32, 128>}, {transform_indices = @transform_4, window_bounds = array<i64: 4, 4, 64>}, {transform_indices = @transform_5, window_bounds = array<i64: 4, 3, 64>}, {transform_indices = @transform_6, window_bounds = array<i64: 4, 64, 96>}, {transform_indices = @transform_7, window_bounds = array<i64: 4, 16, 64>}, {transform_indices = @transform_8, window_bounds = array<i64: 4, 64, 128>}, {transform_indices = @transform_9, window_bounds = array<i64: 4, 16, 128>}]} {
    %c0 = arith.constant 0 : index
    %c0_0 = arith.constant 0 : index
    %c0_1 = arith.constant 0 : index
    %0 = vector.load %arg2[%c0, %c0_0, %c0_1] : memref<3x16x16xbf16, #tpu.memory_space<vmem>>, vector<3x16x16xbf16>
    %c0_2 = arith.constant 0 : index
    %c0_3 = arith.constant 0 : index
    %c0_4 = arith.constant 0 : index
    %1 = vector.load %arg1[%c0_2, %c0_3, %c0_4] : memref<4x16x32xf32, #tpu.memory_space<vmem>>, vector<1x16x32xf32>
    %2 = vector.shape_cast %1 : vector<1x16x32xf32> to vector<16x32xf32>
    %c0_5 = arith.constant 0 : index
    %c0_6 = arith.constant 0 : index
    %c0_7 = arith.constant 0 : index
    %3 = vector.load %arg3[%c0_5, %c0_6, %c0_7] : memref<4x2x32xf32, #tpu.memory_space<vmem>>, vector<1x2x32xf32>
    %4 = vector.shape_cast %3 : vector<1x2x32xf32> to vector<2x32xf32>
    %c0_8 = arith.constant 0 : index
    %c0_9 = arith.constant 0 : index
    %c0_10 = arith.constant 0 : index
    %5 = vector.load %arg4[%c0_8, %c0_9, %c0_10] : memref<4x32x128xbf16, #tpu.memory_space<vmem>>, vector<1x32x128xbf16>
    %6 = vector.shape_cast %5 : vector<1x32x128xbf16> to vector<32x128xbf16>
    %c0_11 = arith.constant 0 : index
    %c0_12 = arith.constant 0 : index
    %c0_13 = arith.constant 0 : index
    %7 = vector.load %arg5[%c0_11, %c0_12, %c0_13] : memref<4x4x64xf32, #tpu.memory_space<vmem>>, vector<1x4x64xf32>
    %8 = vector.shape_cast %7 : vector<1x4x64xf32> to vector<4x64xf32>
    %c0_14 = arith.constant 0 : index
    %c0_15 = arith.constant 0 : index
    %c0_16 = arith.constant 0 : index
    %9 = vector.load %arg6[%c0_14, %c0_15, %c0_16] : memref<4x3x64xf32, #tpu.memory_space<vmem>>, vector<1x3x64xf32>
    %10 = vector.shape_cast %9 : vector<1x3x64xf32> to vector<3x64xf32>
    %c0_17 = arith.constant 0 : index
    %c0_18 = arith.constant 0 : index
    %c0_19 = arith.constant 0 : index
    %11 = vector.load %arg7[%c0_17, %c0_18, %c0_19] : memref<4x64x96xbf16, #tpu.memory_space<vmem>>, vector<1x64x96xbf16>
    %12 = vector.shape_cast %11 : vector<1x64x96xbf16> to vector<64x96xbf16>
    %c0_20 = arith.constant 0 : index
    %c0_21 = arith.constant 0 : index
    %c0_22 = arith.constant 0 : index
    %13 = vector.load %arg8[%c0_20, %c0_21, %c0_22] : memref<4x16x64xf32, #tpu.memory_space<vmem>>, vector<1x16x64xf32>
    %14 = vector.shape_cast %13 : vector<1x16x64xf32> to vector<16x64xf32>
    %c0_23 = arith.constant 0 : index
    %c0_24 = arith.constant 0 : index
    %c0_25 = arith.constant 0 : index
    %15 = vector.load %arg9[%c0_23, %c0_24, %c0_25] : memref<4x64x128xbf16, #tpu.memory_space<vmem>>, vector<1x64x128xbf16>
    %16 = vector.shape_cast %15 : vector<1x64x128xbf16> to vector<64x128xbf16>
    %17 = vector.extract_strided_slice %4 {offsets = [0, 0], sizes = [1, 32], strides = [1, 1]} : vector<2x32xf32> to vector<1x32xf32>
    %18 = vector.extract_strided_slice %4 {offsets = [1, 0], sizes = [1, 32], strides = [1, 1]} : vector<2x32xf32> to vector<1x32xf32>
    %19 = vector.extract_strided_slice %10 {offsets = [0, 0], sizes = [1, 64], strides = [1, 1]} : vector<3x64xf32> to vector<1x64xf32>
    %20 = vector.extract_strided_slice %10 {offsets = [1, 0], sizes = [1, 64], strides = [1, 1]} : vector<3x64xf32> to vector<1x64xf32>
    %21 = vector.extract_strided_slice %10 {offsets = [2, 0], sizes = [1, 64], strides = [1, 1]} : vector<3x64xf32> to vector<1x64xf32>
    %cst = arith.constant dense<0.000000e+00> : vector<16xf32>
    %22 = vector.multi_reduction <add>, %2, %cst [1] : vector<16x32xf32> to vector<16xf32>
    %23 = vector.shape_cast %22 : vector<16xf32> to vector<16x1xf32>
    %cst_26 = arith.constant 3.200000e+01 : f32
    %24 = vector.broadcast %cst_26 : f32 to vector<16x1xf32>
    %25 = arith.divf %23, %24 : vector<16x1xf32>
    %26 = vector.broadcast %25 : vector<16x1xf32> to vector<16x32xf32>
    %27 = arith.subf %2, %26 : vector<16x32xf32>
    %28 = arith.mulf %27, %27 : vector<16x32xf32>
    %cst_27 = arith.constant dense<0.000000e+00> : vector<16xf32>
    %29 = vector.multi_reduction <add>, %28, %cst_27 [1] : vector<16x32xf32> to vector<16xf32>
    %30 = vector.shape_cast %29 : vector<16xf32> to vector<16x1xf32>
    %cst_28 = arith.constant 3.200000e+01 : f32
    %31 = vector.broadcast %cst_28 : f32 to vector<16x1xf32>
    %32 = arith.divf %30, %31 : vector<16x1xf32>
    %33 = vector.broadcast %25 : vector<16x1xf32> to vector<16x32xf32>
    %34 = arith.subf %2, %33 : vector<16x32xf32>
    %cst_29 = arith.constant 9.99999974E-6 : f32
    %35 = vector.broadcast %cst_29 : f32 to vector<16x1xf32>
    %36 = arith.addf %32, %35 : vector<16x1xf32>
    %37 = math.rsqrt %36 : vector<16x1xf32>
    %38 = vector.broadcast %37 : vector<16x1xf32> to vector<16x32xf32>
    %39 = arith.mulf %34, %38 : vector<16x32xf32>
    %40 = vector.broadcast %17 : vector<1x32xf32> to vector<16x32xf32>
    %41 = arith.mulf %39, %40 : vector<16x32xf32>
    %42 = vector.broadcast %18 : vector<1x32xf32> to vector<16x32xf32>
    %43 = arith.addf %41, %42 : vector<16x32xf32>
    %44 = arith.truncf %43 : vector<16x32xf32> to vector<16x32xbf16>
    %cst_30 = arith.constant dense<0.000000e+00> : vector<16x128xf32>
    %45 = tpu.matmul %44, %6, %cst_30 {dimension_numbers = #tpu.dot_dimension_numbers<[1], [0], [0], [1], [0, 0, 1, 1], [], []>} : vector<16x32xbf16>, vector<32x128xbf16>, vector<16x128xf32> -> vector<16x128xf32>
    %46 = vector.extract_strided_slice %45 {offsets = [0, 0], sizes = [16, 64], strides = [1, 1]} : vector<16x128xf32> to vector<16x64xf32>
    %47 = vector.extract_strided_slice %45 {offsets = [0, 64], sizes = [16, 64], strides = [1, 1]} : vector<16x128xf32> to vector<16x64xf32>
    %48 = arith.truncf %46 : vector<16x64xf32> to vector<16x64xbf16>
    %49 = vector.extract_strided_slice %8 {offsets = [3, 0], sizes = [1, 64], strides = [1, 1]} : vector<4x64xf32> to vector<1x64xf32>
    %50 = vector.broadcast %49 : vector<1x64xf32> to vector<16x64xf32>
    %51 = arith.mulf %46, %50 : vector<16x64xf32>
    %52 = vector.broadcast %19 : vector<1x64xf32> to vector<16x64xf32>
    %53 = arith.addf %51, %52 : vector<16x64xf32>
    %54 = vector.extract_strided_slice %0 {offsets = [0, 0, 0], sizes = [1, 16, 16], strides = [1, 1, 1]} : vector<3x16x16xbf16> to vector<1x16x16xbf16>
    %55 = vector.shape_cast %54 : vector<1x16x16xbf16> to vector<16x16xbf16>
    %cst_31 = arith.constant dense<0.000000e+00> : vector<16x64xf32>
    %56 = tpu.matmul %55, %48, %cst_31 {dimension_numbers = #tpu.dot_dimension_numbers<[1], [0], [0], [1], [0, 0, 1, 1], [], []>} : vector<16x16xbf16>, vector<16x64xbf16>, vector<16x64xf32> -> vector<16x64xf32>
    %57 = vector.extract_strided_slice %8 {offsets = [0, 0], sizes = [1, 64], strides = [1, 1]} : vector<4x64xf32> to vector<1x64xf32>
    %58 = vector.broadcast %57 : vector<1x64xf32> to vector<16x64xf32>
    %59 = arith.mulf %56, %58 : vector<16x64xf32>
    %60 = arith.addf %53, %59 : vector<16x64xf32>
    %61 = vector.extract_strided_slice %0 {offsets = [1, 0, 0], sizes = [1, 16, 16], strides = [1, 1, 1]} : vector<3x16x16xbf16> to vector<1x16x16xbf16>
    %62 = vector.shape_cast %61 : vector<1x16x16xbf16> to vector<16x16xbf16>
    %cst_32 = arith.constant dense<0.000000e+00> : vector<16x64xf32>
    %63 = tpu.matmul %62, %48, %cst_32 {dimension_numbers = #tpu.dot_dimension_numbers<[1], [0], [0], [1], [0, 0, 1, 1], [], []>} : vector<16x16xbf16>, vector<16x64xbf16>, vector<16x64xf32> -> vector<16x64xf32>
    %64 = vector.extract_strided_slice %8 {offsets = [1, 0], sizes = [1, 64], strides = [1, 1]} : vector<4x64xf32> to vector<1x64xf32>
    %65 = vector.broadcast %64 : vector<1x64xf32> to vector<16x64xf32>
    %66 = arith.mulf %63, %65 : vector<16x64xf32>
    %67 = arith.addf %60, %66 : vector<16x64xf32>
    %68 = vector.extract_strided_slice %0 {offsets = [2, 0, 0], sizes = [1, 16, 16], strides = [1, 1, 1]} : vector<3x16x16xbf16> to vector<1x16x16xbf16>
    %69 = vector.shape_cast %68 : vector<1x16x16xbf16> to vector<16x16xbf16>
    %cst_33 = arith.constant dense<0.000000e+00> : vector<16x64xf32>
    %70 = tpu.matmul %69, %48, %cst_33 {dimension_numbers = #tpu.dot_dimension_numbers<[1], [0], [0], [1], [0, 0, 1, 1], [], []>} : vector<16x16xbf16>, vector<16x64xbf16>, vector<16x64xf32> -> vector<16x64xf32>
    %71 = vector.extract_strided_slice %8 {offsets = [2, 0], sizes = [1, 64], strides = [1, 1]} : vector<4x64xf32> to vector<1x64xf32>
    %72 = vector.broadcast %71 : vector<1x64xf32> to vector<16x64xf32>
    %73 = arith.mulf %70, %72 : vector<16x64xf32>
    %74 = arith.addf %67, %73 : vector<16x64xf32>
    %75 = arith.negf %74 : vector<16x64xf32>
    %76 = math.exp %75 : vector<16x64xf32>
    %cst_34 = arith.constant 1.000000e+00 : f32
    %77 = vector.broadcast %cst_34 : f32 to vector<16x64xf32>
    %78 = arith.addf %77, %76 : vector<16x64xf32>
    %79 = arith.divf %77, %78 : vector<16x64xf32>
    %80 = arith.mulf %74, %79 : vector<16x64xf32>
    %81 = arith.truncf %80 : vector<16x64xf32> to vector<16x64xbf16>
    %cst_35 = arith.constant dense<0.000000e+00> : vector<16x96xf32>
    %82 = tpu.matmul %81, %12, %cst_35 {dimension_numbers = #tpu.dot_dimension_numbers<[1], [0], [0], [1], [0, 0, 1, 1], [], []>} : vector<16x64xbf16>, vector<64x96xbf16>, vector<16x96xf32> -> vector<16x96xf32>
    %83 = vector.extract_strided_slice %82 {offsets = [0, 0], sizes = [16, 64], strides = [1, 1]} : vector<16x96xf32> to vector<16x64xf32>
    %84 = vector.broadcast %20 : vector<1x64xf32> to vector<16x64xf32>
    %85 = arith.addf %83, %84 : vector<16x64xf32>
    %cst_36 = arith.constant 0.000000e+00 : f32
    %86 = vector.broadcast %cst_36 : f32 to vector<16x64xf32>
    %87 = arith.maximumf %85, %86 : vector<16x64xf32>
    %88 = vector.broadcast %cst_36 : f32 to vector<16x64xf32>
    %89 = arith.subf %85, %88 : vector<16x64xf32>
    %90 = arith.cmpf one, %89, %89 : vector<16x64xf32>
    %91 = vector.broadcast %cst_36 : f32 to vector<16x64xf32>
    %92 = arith.addf %85, %91 : vector<16x64xf32>
    %93 = math.absf %89 : vector<16x64xf32>
    %cst_37 = arith.constant 0.000000e+00 : f32
    %94 = vector.broadcast %cst_37 : f32 to vector<16x64xf32>
    %95 = arith.subf %94, %93 : vector<16x64xf32>
    %96 = math.exp %95 : vector<16x64xf32>
    %97 = math.log1p %96 : vector<16x64xf32>
    %98 = arith.addf %87, %97 : vector<16x64xf32>
    %99 = arith.select %90, %92, %98 : vector<16x64xi1>, vector<16x64xf32>
    %100 = vector.extract_strided_slice %82 {offsets = [0, 64], sizes = [16, 16], strides = [1, 1]} : vector<16x96xf32> to vector<16x16xf32>
    %101 = vector.extract_strided_slice %82 {offsets = [0, 80], sizes = [16, 16], strides = [1, 1]} : vector<16x96xf32> to vector<16x16xf32>
    %102 = arith.mulf %99, %80 : vector<16x64xf32>
    %103 = vector.shape_cast %14 : vector<16x64xf32> to vector<1x16x64xf32>
    %104 = vector.shape_cast %103 : vector<1x16x64xf32> to vector<1x16x64xf32>
    %105 = vector.broadcast %104 : vector<1x16x64xf32> to vector<2x16x64xf32>
    %cst_38 = arith.constant 0.000000e+00 : f32
    %106 = vector.broadcast %cst_38 : f32 to vector<2x16x64xf32>
    %107 = vector.extract_strided_slice %99 {offsets = [0, 0], sizes = [2, 64], strides = [1, 1]} : vector<16x64xf32> to vector<2x64xf32>
    %108 = vector.extract_strided_slice %102 {offsets = [0, 0], sizes = [2, 64], strides = [1, 1]} : vector<16x64xf32> to vector<2x64xf32>
    %109 = vector.extract_strided_slice %100 {offsets = [0, 0], sizes = [2, 16], strides = [1, 1]} : vector<16x16xf32> to vector<2x16xf32>
    %110 = vector.extract_strided_slice %101 {offsets = [0, 0], sizes = [2, 16], strides = [1, 1]} : vector<16x16xf32> to vector<2x16xf32>
    %111 = vector.shape_cast %107 : vector<2x64xf32> to vector<2x1x64xf32>
    %112 = vector.broadcast %111 : vector<2x1x64xf32> to vector<2x16x64xf32>
    %113 = arith.mulf %112, %105 : vector<2x16x64xf32>
    %114 = math.exp %113 : vector<2x16x64xf32>
    %115 = arith.mulf %114, %106 : vector<2x16x64xf32>
    %116 = vector.shape_cast %108 : vector<2x64xf32> to vector<2x1x64xf32>
    %117 = vector.shape_cast %109 : vector<2x16xf32> to vector<2x16x1xf32>
    %118 = vector.broadcast %116 : vector<2x1x64xf32> to vector<2x16x64xf32>
    %119 = vector.broadcast %117 : vector<2x16x1xf32> to vector<2x16x64xf32>
    %120 = arith.mulf %118, %119 : vector<2x16x64xf32>
    %121 = arith.addf %115, %120 : vector<2x16x64xf32>
    %122 = vector.shape_cast %110 : vector<2x16xf32> to vector<2x16x1xf32>
    %123 = vector.broadcast %122 : vector<2x16x1xf32> to vector<2x16x64xf32>
    %124 = arith.mulf %121, %123 : vector<2x16x64xf32>
    %cst_39 = arith.constant dense<0.000000e+00> : vector<2x64xf32>
    %125 = vector.multi_reduction <add>, %124, %cst_39 [1] : vector<2x16x64xf32> to vector<2x64xf32>
    %126 = vector.extract_strided_slice %99 {offsets = [2, 0], sizes = [2, 64], strides = [1, 1]} : vector<16x64xf32> to vector<2x64xf32>
    %127 = vector.extract_strided_slice %102 {offsets = [2, 0], sizes = [2, 64], strides = [1, 1]} : vector<16x64xf32> to vector<2x64xf32>
    %128 = vector.extract_strided_slice %100 {offsets = [2, 0], sizes = [2, 16], strides = [1, 1]} : vector<16x16xf32> to vector<2x16xf32>
    %129 = vector.extract_strided_slice %101 {offsets = [2, 0], sizes = [2, 16], strides = [1, 1]} : vector<16x16xf32> to vector<2x16xf32>
    %130 = vector.shape_cast %126 : vector<2x64xf32> to vector<2x1x64xf32>
    %131 = vector.broadcast %130 : vector<2x1x64xf32> to vector<2x16x64xf32>
    %132 = arith.mulf %131, %105 : vector<2x16x64xf32>
    %133 = math.exp %132 : vector<2x16x64xf32>
    %134 = arith.mulf %133, %121 : vector<2x16x64xf32>
    %135 = vector.shape_cast %127 : vector<2x64xf32> to vector<2x1x64xf32>
    %136 = vector.shape_cast %128 : vector<2x16xf32> to vector<2x16x1xf32>
    %137 = vector.broadcast %135 : vector<2x1x64xf32> to vector<2x16x64xf32>
    %138 = vector.broadcast %136 : vector<2x16x1xf32> to vector<2x16x64xf32>
    %139 = arith.mulf %137, %138 : vector<2x16x64xf32>
    %140 = arith.addf %134, %139 : vector<2x16x64xf32>
    %141 = vector.shape_cast %129 : vector<2x16xf32> to vector<2x16x1xf32>
    %142 = vector.broadcast %141 : vector<2x16x1xf32> to vector<2x16x64xf32>
    %143 = arith.mulf %140, %142 : vector<2x16x64xf32>
    %cst_40 = arith.constant dense<0.000000e+00> : vector<2x64xf32>
    %144 = vector.multi_reduction <add>, %143, %cst_40 [1] : vector<2x16x64xf32> to vector<2x64xf32>
    %145 = vector.extract_strided_slice %99 {offsets = [4, 0], sizes = [2, 64], strides = [1, 1]} : vector<16x64xf32> to vector<2x64xf32>
    %146 = vector.extract_strided_slice %102 {offsets = [4, 0], sizes = [2, 64], strides = [1, 1]} : vector<16x64xf32> to vector<2x64xf32>
    %147 = vector.extract_strided_slice %100 {offsets = [4, 0], sizes = [2, 16], strides = [1, 1]} : vector<16x16xf32> to vector<2x16xf32>
    %148 = vector.extract_strided_slice %101 {offsets = [4, 0], sizes = [2, 16], strides = [1, 1]} : vector<16x16xf32> to vector<2x16xf32>
    %149 = vector.shape_cast %145 : vector<2x64xf32> to vector<2x1x64xf32>
    %150 = vector.broadcast %149 : vector<2x1x64xf32> to vector<2x16x64xf32>
    %151 = arith.mulf %150, %105 : vector<2x16x64xf32>
    %152 = math.exp %151 : vector<2x16x64xf32>
    %153 = arith.mulf %152, %140 : vector<2x16x64xf32>
    %154 = vector.shape_cast %146 : vector<2x64xf32> to vector<2x1x64xf32>
    %155 = vector.shape_cast %147 : vector<2x16xf32> to vector<2x16x1xf32>
    %156 = vector.broadcast %154 : vector<2x1x64xf32> to vector<2x16x64xf32>
    %157 = vector.broadcast %155 : vector<2x16x1xf32> to vector<2x16x64xf32>
    %158 = arith.mulf %156, %157 : vector<2x16x64xf32>
    %159 = arith.addf %153, %158 : vector<2x16x64xf32>
    %160 = vector.shape_cast %148 : vector<2x16xf32> to vector<2x16x1xf32>
    %161 = vector.broadcast %160 : vector<2x16x1xf32> to vector<2x16x64xf32>
    %162 = arith.mulf %159, %161 : vector<2x16x64xf32>
    %cst_41 = arith.constant dense<0.000000e+00> : vector<2x64xf32>
    %163 = vector.multi_reduction <add>, %162, %cst_41 [1] : vector<2x16x64xf32> to vector<2x64xf32>
    %164 = vector.extract_strided_slice %99 {offsets = [6, 0], sizes = [2, 64], strides = [1, 1]} : vector<16x64xf32> to vector<2x64xf32>
    %165 = vector.extract_strided_slice %102 {offsets = [6, 0], sizes = [2, 64], strides = [1, 1]} : vector<16x64xf32> to vector<2x64xf32>
    %166 = vector.extract_strided_slice %100 {offsets = [6, 0], sizes = [2, 16], strides = [1, 1]} : vector<16x16xf32> to vector<2x16xf32>
    %167 = vector.extract_strided_slice %101 {offsets = [6, 0], sizes = [2, 16], strides = [1, 1]} : vector<16x16xf32> to vector<2x16xf32>
    %168 = vector.shape_cast %164 : vector<2x64xf32> to vector<2x1x64xf32>
    %169 = vector.broadcast %168 : vector<2x1x64xf32> to vector<2x16x64xf32>
    %170 = arith.mulf %169, %105 : vector<2x16x64xf32>
    %171 = math.exp %170 : vector<2x16x64xf32>
    %172 = arith.mulf %171, %159 : vector<2x16x64xf32>
    %173 = vector.shape_cast %165 : vector<2x64xf32> to vector<2x1x64xf32>
    %174 = vector.shape_cast %166 : vector<2x16xf32> to vector<2x16x1xf32>
    %175 = vector.broadcast %173 : vector<2x1x64xf32> to vector<2x16x64xf32>
    %176 = vector.broadcast %174 : vector<2x16x1xf32> to vector<2x16x64xf32>
    %177 = arith.mulf %175, %176 : vector<2x16x64xf32>
    %178 = arith.addf %172, %177 : vector<2x16x64xf32>
    %179 = vector.shape_cast %167 : vector<2x16xf32> to vector<2x16x1xf32>
    %180 = vector.broadcast %179 : vector<2x16x1xf32> to vector<2x16x64xf32>
    %181 = arith.mulf %178, %180 : vector<2x16x64xf32>
    %cst_42 = arith.constant dense<0.000000e+00> : vector<2x64xf32>
    %182 = vector.multi_reduction <add>, %181, %cst_42 [1] : vector<2x16x64xf32> to vector<2x64xf32>
    %183 = vector.extract_strided_slice %99 {offsets = [8, 0], sizes = [2, 64], strides = [1, 1]} : vector<16x64xf32> to vector<2x64xf32>
    %184 = vector.extract_strided_slice %102 {offsets = [8, 0], sizes = [2, 64], strides = [1, 1]} : vector<16x64xf32> to vector<2x64xf32>
    %185 = vector.extract_strided_slice %100 {offsets = [8, 0], sizes = [2, 16], strides = [1, 1]} : vector<16x16xf32> to vector<2x16xf32>
    %186 = vector.extract_strided_slice %101 {offsets = [8, 0], sizes = [2, 16], strides = [1, 1]} : vector<16x16xf32> to vector<2x16xf32>
    %187 = vector.shape_cast %183 : vector<2x64xf32> to vector<2x1x64xf32>
    %188 = vector.broadcast %187 : vector<2x1x64xf32> to vector<2x16x64xf32>
    %189 = arith.mulf %188, %105 : vector<2x16x64xf32>
    %190 = math.exp %189 : vector<2x16x64xf32>
    %191 = arith.mulf %190, %178 : vector<2x16x64xf32>
    %192 = vector.shape_cast %184 : vector<2x64xf32> to vector<2x1x64xf32>
    %193 = vector.shape_cast %185 : vector<2x16xf32> to vector<2x16x1xf32>
    %194 = vector.broadcast %192 : vector<2x1x64xf32> to vector<2x16x64xf32>
    %195 = vector.broadcast %193 : vector<2x16x1xf32> to vector<2x16x64xf32>
    %196 = arith.mulf %194, %195 : vector<2x16x64xf32>
    %197 = arith.addf %191, %196 : vector<2x16x64xf32>
    %198 = vector.shape_cast %186 : vector<2x16xf32> to vector<2x16x1xf32>
    %199 = vector.broadcast %198 : vector<2x16x1xf32> to vector<2x16x64xf32>
    %200 = arith.mulf %197, %199 : vector<2x16x64xf32>
    %cst_43 = arith.constant dense<0.000000e+00> : vector<2x64xf32>
    %201 = vector.multi_reduction <add>, %200, %cst_43 [1] : vector<2x16x64xf32> to vector<2x64xf32>
    %202 = vector.extract_strided_slice %99 {offsets = [10, 0], sizes = [2, 64], strides = [1, 1]} : vector<16x64xf32> to vector<2x64xf32>
    %203 = vector.extract_strided_slice %102 {offsets = [10, 0], sizes = [2, 64], strides = [1, 1]} : vector<16x64xf32> to vector<2x64xf32>
    %204 = vector.extract_strided_slice %100 {offsets = [10, 0], sizes = [2, 16], strides = [1, 1]} : vector<16x16xf32> to vector<2x16xf32>
    %205 = vector.extract_strided_slice %101 {offsets = [10, 0], sizes = [2, 16], strides = [1, 1]} : vector<16x16xf32> to vector<2x16xf32>
    %206 = vector.shape_cast %202 : vector<2x64xf32> to vector<2x1x64xf32>
    %207 = vector.broadcast %206 : vector<2x1x64xf32> to vector<2x16x64xf32>
    %208 = arith.mulf %207, %105 : vector<2x16x64xf32>
    %209 = math.exp %208 : vector<2x16x64xf32>
    %210 = arith.mulf %209, %197 : vector<2x16x64xf32>
    %211 = vector.shape_cast %203 : vector<2x64xf32> to vector<2x1x64xf32>
    %212 = vector.shape_cast %204 : vector<2x16xf32> to vector<2x16x1xf32>
    %213 = vector.broadcast %211 : vector<2x1x64xf32> to vector<2x16x64xf32>
    %214 = vector.broadcast %212 : vector<2x16x1xf32> to vector<2x16x64xf32>
    %215 = arith.mulf %213, %214 : vector<2x16x64xf32>
    %216 = arith.addf %210, %215 : vector<2x16x64xf32>
    %217 = vector.shape_cast %205 : vector<2x16xf32> to vector<2x16x1xf32>
    %218 = vector.broadcast %217 : vector<2x16x1xf32> to vector<2x16x64xf32>
    %219 = arith.mulf %216, %218 : vector<2x16x64xf32>
    %cst_44 = arith.constant dense<0.000000e+00> : vector<2x64xf32>
    %220 = vector.multi_reduction <add>, %219, %cst_44 [1] : vector<2x16x64xf32> to vector<2x64xf32>
    %221 = vector.extract_strided_slice %99 {offsets = [12, 0], sizes = [2, 64], strides = [1, 1]} : vector<16x64xf32> to vector<2x64xf32>
    %222 = vector.extract_strided_slice %102 {offsets = [12, 0], sizes = [2, 64], strides = [1, 1]} : vector<16x64xf32> to vector<2x64xf32>
    %223 = vector.extract_strided_slice %100 {offsets = [12, 0], sizes = [2, 16], strides = [1, 1]} : vector<16x16xf32> to vector<2x16xf32>
    %224 = vector.extract_strided_slice %101 {offsets = [12, 0], sizes = [2, 16], strides = [1, 1]} : vector<16x16xf32> to vector<2x16xf32>
    %225 = vector.shape_cast %221 : vector<2x64xf32> to vector<2x1x64xf32>
    %226 = vector.broadcast %225 : vector<2x1x64xf32> to vector<2x16x64xf32>
    %227 = arith.mulf %226, %105 : vector<2x16x64xf32>
    %228 = math.exp %227 : vector<2x16x64xf32>
    %229 = arith.mulf %228, %216 : vector<2x16x64xf32>
    %230 = vector.shape_cast %222 : vector<2x64xf32> to vector<2x1x64xf32>
    %231 = vector.shape_cast %223 : vector<2x16xf32> to vector<2x16x1xf32>
    %232 = vector.broadcast %230 : vector<2x1x64xf32> to vector<2x16x64xf32>
    %233 = vector.broadcast %231 : vector<2x16x1xf32> to vector<2x16x64xf32>
    %234 = arith.mulf %232, %233 : vector<2x16x64xf32>
    %235 = arith.addf %229, %234 : vector<2x16x64xf32>
    %236 = vector.shape_cast %224 : vector<2x16xf32> to vector<2x16x1xf32>
    %237 = vector.broadcast %236 : vector<2x16x1xf32> to vector<2x16x64xf32>
    %238 = arith.mulf %235, %237 : vector<2x16x64xf32>
    %cst_45 = arith.constant dense<0.000000e+00> : vector<2x64xf32>
    %239 = vector.multi_reduction <add>, %238, %cst_45 [1] : vector<2x16x64xf32> to vector<2x64xf32>
    %240 = vector.extract_strided_slice %99 {offsets = [14, 0], sizes = [2, 64], strides = [1, 1]} : vector<16x64xf32> to vector<2x64xf32>
    %241 = vector.extract_strided_slice %102 {offsets = [14, 0], sizes = [2, 64], strides = [1, 1]} : vector<16x64xf32> to vector<2x64xf32>
    %242 = vector.extract_strided_slice %100 {offsets = [14, 0], sizes = [2, 16], strides = [1, 1]} : vector<16x16xf32> to vector<2x16xf32>
    %243 = vector.extract_strided_slice %101 {offsets = [14, 0], sizes = [2, 16], strides = [1, 1]} : vector<16x16xf32> to vector<2x16xf32>
    %244 = vector.shape_cast %240 : vector<2x64xf32> to vector<2x1x64xf32>
    %245 = vector.broadcast %244 : vector<2x1x64xf32> to vector<2x16x64xf32>
    %246 = arith.mulf %245, %105 : vector<2x16x64xf32>
    %247 = math.exp %246 : vector<2x16x64xf32>
    %248 = arith.mulf %247, %235 : vector<2x16x64xf32>
    %249 = vector.shape_cast %241 : vector<2x64xf32> to vector<2x1x64xf32>
    %250 = vector.shape_cast %242 : vector<2x16xf32> to vector<2x16x1xf32>
    %251 = vector.broadcast %249 : vector<2x1x64xf32> to vector<2x16x64xf32>
    %252 = vector.broadcast %250 : vector<2x16x1xf32> to vector<2x16x64xf32>
    %253 = arith.mulf %251, %252 : vector<2x16x64xf32>
    %254 = arith.addf %248, %253 : vector<2x16x64xf32>
    %255 = vector.shape_cast %243 : vector<2x16xf32> to vector<2x16x1xf32>
    %256 = vector.broadcast %255 : vector<2x16x1xf32> to vector<2x16x64xf32>
    %257 = arith.mulf %254, %256 : vector<2x16x64xf32>
    %cst_46 = arith.constant dense<0.000000e+00> : vector<2x64xf32>
    %258 = vector.multi_reduction <add>, %257, %cst_46 [1] : vector<2x16x64xf32> to vector<2x64xf32>
    %259 = tpu.concatenate %125, %144, %163, %182, %201, %220, %239, %258 in 0 : vector<2x64xf32>, vector<2x64xf32>, vector<2x64xf32>, vector<2x64xf32>, vector<2x64xf32>, vector<2x64xf32>, vector<2x64xf32>, vector<2x64xf32> -> vector<16x64xf32>
    %260 = vector.broadcast %21 : vector<1x64xf32> to vector<16x64xf32>
    %261 = arith.mulf %80, %260 : vector<16x64xf32>
    %262 = arith.addf %259, %261 : vector<16x64xf32>
    %263 = arith.negf %47 : vector<16x64xf32>
    %264 = math.exp %263 : vector<16x64xf32>
    %cst_47 = arith.constant 1.000000e+00 : f32
    %265 = vector.broadcast %cst_47 : f32 to vector<16x64xf32>
    %266 = arith.addf %265, %264 : vector<16x64xf32>
    %267 = arith.divf %265, %266 : vector<16x64xf32>
    %268 = arith.mulf %47, %267 : vector<16x64xf32>
    %269 = arith.mulf %262, %268 : vector<16x64xf32>
    %270 = arith.truncf %269 : vector<16x64xf32> to vector<16x64xbf16>
    %cst_48 = arith.constant dense<0.000000e+00> : vector<16x128xf32>
    %271 = tpu.matmul %270, %16, %cst_48 {dimension_numbers = #tpu.dot_dimension_numbers<[1], [0], [0], [1], [0, 0, 1, 1], [], []>} : vector<16x64xbf16>, vector<64x128xbf16>, vector<16x128xf32> -> vector<16x128xf32>
    %c0_49 = arith.constant 0 : index
    %c0_50 = arith.constant 0 : index
    %c0_51 = arith.constant 0 : index
    %272 = vector.load %arg10[%c0_49, %c0_50, %c0_51] : memref<4x16x128xf32, #tpu.memory_space<vmem>>, vector<1x16x128xf32>
    %273 = vector.shape_cast %272 : vector<1x16x128xf32> to vector<16x128xf32>
    %274 = vector.shape_cast %271 : vector<16x128xf32> to vector<1x16x128xf32>
    tpu.vector_store %arg10[%c0_49, %c0_50, %c0_51], %274 {strides = array<i32>} : memref<4x16x128xf32, #tpu.memory_space<vmem>>, vector<1x16x128xf32>,
    %c1 = arith.constant 1 : index
    %c0_52 = arith.constant 0 : index
    %c0_53 = arith.constant 0 : index
    %275 = vector.load %arg1[%c1, %c0_52, %c0_53] : memref<4x16x32xf32, #tpu.memory_space<vmem>>, vector<1x16x32xf32>
    %276 = vector.shape_cast %275 : vector<1x16x32xf32> to vector<16x32xf32>
    %c1_54 = arith.constant 1 : index
    %c0_55 = arith.constant 0 : index
    %c0_56 = arith.constant 0 : index
    %277 = vector.load %arg3[%c1_54, %c0_55, %c0_56] : memref<4x2x32xf32, #tpu.memory_space<vmem>>, vector<1x2x32xf32>
    %278 = vector.shape_cast %277 : vector<1x2x32xf32> to vector<2x32xf32>
    %c1_57 = arith.constant 1 : index
    %c0_58 = arith.constant 0 : index
    %c0_59 = arith.constant 0 : index
    %279 = vector.load %arg4[%c1_57, %c0_58, %c0_59] : memref<4x32x128xbf16, #tpu.memory_space<vmem>>, vector<1x32x128xbf16>
    %280 = vector.shape_cast %279 : vector<1x32x128xbf16> to vector<32x128xbf16>
    %c1_60 = arith.constant 1 : index
    %c0_61 = arith.constant 0 : index
    %c0_62 = arith.constant 0 : index
    %281 = vector.load %arg5[%c1_60, %c0_61, %c0_62] : memref<4x4x64xf32, #tpu.memory_space<vmem>>, vector<1x4x64xf32>
    %282 = vector.shape_cast %281 : vector<1x4x64xf32> to vector<4x64xf32>
    %c1_63 = arith.constant 1 : index
    %c0_64 = arith.constant 0 : index
    %c0_65 = arith.constant 0 : index
    %283 = vector.load %arg6[%c1_63, %c0_64, %c0_65] : memref<4x3x64xf32, #tpu.memory_space<vmem>>, vector<1x3x64xf32>
    %284 = vector.shape_cast %283 : vector<1x3x64xf32> to vector<3x64xf32>
    %c1_66 = arith.constant 1 : index
    %c0_67 = arith.constant 0 : index
    %c0_68 = arith.constant 0 : index
    %285 = vector.load %arg7[%c1_66, %c0_67, %c0_68] : memref<4x64x96xbf16, #tpu.memory_space<vmem>>, vector<1x64x96xbf16>
    %286 = vector.shape_cast %285 : vector<1x64x96xbf16> to vector<64x96xbf16>
    %c1_69 = arith.constant 1 : index
    %c0_70 = arith.constant 0 : index
    %c0_71 = arith.constant 0 : index
    %287 = vector.load %arg8[%c1_69, %c0_70, %c0_71] : memref<4x16x64xf32, #tpu.memory_space<vmem>>, vector<1x16x64xf32>
    %288 = vector.shape_cast %287 : vector<1x16x64xf32> to vector<16x64xf32>
    %c1_72 = arith.constant 1 : index
    %c0_73 = arith.constant 0 : index
    %c0_74 = arith.constant 0 : index
    %289 = vector.load %arg9[%c1_72, %c0_73, %c0_74] : memref<4x64x128xbf16, #tpu.memory_space<vmem>>, vector<1x64x128xbf16>
    %290 = vector.shape_cast %289 : vector<1x64x128xbf16> to vector<64x128xbf16>
    %291 = vector.extract_strided_slice %278 {offsets = [0, 0], sizes = [1, 32], strides = [1, 1]} : vector<2x32xf32> to vector<1x32xf32>
    %292 = vector.extract_strided_slice %278 {offsets = [1, 0], sizes = [1, 32], strides = [1, 1]} : vector<2x32xf32> to vector<1x32xf32>
    %293 = vector.extract_strided_slice %284 {offsets = [0, 0], sizes = [1, 64], strides = [1, 1]} : vector<3x64xf32> to vector<1x64xf32>
    %294 = vector.extract_strided_slice %284 {offsets = [1, 0], sizes = [1, 64], strides = [1, 1]} : vector<3x64xf32> to vector<1x64xf32>
    %295 = vector.extract_strided_slice %284 {offsets = [2, 0], sizes = [1, 64], strides = [1, 1]} : vector<3x64xf32> to vector<1x64xf32>
    %cst_75 = arith.constant dense<0.000000e+00> : vector<16xf32>
    %296 = vector.multi_reduction <add>, %276, %cst_75 [1] : vector<16x32xf32> to vector<16xf32>
    %297 = vector.shape_cast %296 : vector<16xf32> to vector<16x1xf32>
    %cst_76 = arith.constant 3.200000e+01 : f32
    %298 = vector.broadcast %cst_76 : f32 to vector<16x1xf32>
    %299 = arith.divf %297, %298 : vector<16x1xf32>
    %300 = vector.broadcast %299 : vector<16x1xf32> to vector<16x32xf32>
    %301 = arith.subf %276, %300 : vector<16x32xf32>
    %302 = arith.mulf %301, %301 : vector<16x32xf32>
    %cst_77 = arith.constant dense<0.000000e+00> : vector<16xf32>
    %303 = vector.multi_reduction <add>, %302, %cst_77 [1] : vector<16x32xf32> to vector<16xf32>
    %304 = vector.shape_cast %303 : vector<16xf32> to vector<16x1xf32>
    %cst_78 = arith.constant 3.200000e+01 : f32
    %305 = vector.broadcast %cst_78 : f32 to vector<16x1xf32>
    %306 = arith.divf %304, %305 : vector<16x1xf32>
    %307 = vector.broadcast %299 : vector<16x1xf32> to vector<16x32xf32>
    %308 = arith.subf %276, %307 : vector<16x32xf32>
    %cst_79 = arith.constant 9.99999974E-6 : f32
    %309 = vector.broadcast %cst_79 : f32 to vector<16x1xf32>
    %310 = arith.addf %306, %309 : vector<16x1xf32>
    %311 = math.rsqrt %310 : vector<16x1xf32>
    %312 = vector.broadcast %311 : vector<16x1xf32> to vector<16x32xf32>
    %313 = arith.mulf %308, %312 : vector<16x32xf32>
    %314 = vector.broadcast %291 : vector<1x32xf32> to vector<16x32xf32>
    %315 = arith.mulf %313, %314 : vector<16x32xf32>
    %316 = vector.broadcast %292 : vector<1x32xf32> to vector<16x32xf32>
    %317 = arith.addf %315, %316 : vector<16x32xf32>
    %318 = arith.truncf %317 : vector<16x32xf32> to vector<16x32xbf16>
    %cst_80 = arith.constant dense<0.000000e+00> : vector<16x128xf32>
    %319 = tpu.matmul %318, %280, %cst_80 {dimension_numbers = #tpu.dot_dimension_numbers<[1], [0], [0], [1], [0, 0, 1, 1], [], []>} : vector<16x32xbf16>, vector<32x128xbf16>, vector<16x128xf32> -> vector<16x128xf32>
    %320 = vector.extract_strided_slice %319 {offsets = [0, 0], sizes = [16, 64], strides = [1, 1]} : vector<16x128xf32> to vector<16x64xf32>
    %321 = vector.extract_strided_slice %319 {offsets = [0, 64], sizes = [16, 64], strides = [1, 1]} : vector<16x128xf32> to vector<16x64xf32>
    %322 = arith.truncf %320 : vector<16x64xf32> to vector<16x64xbf16>
    %323 = vector.extract_strided_slice %282 {offsets = [3, 0], sizes = [1, 64], strides = [1, 1]} : vector<4x64xf32> to vector<1x64xf32>
    %324 = vector.broadcast %323 : vector<1x64xf32> to vector<16x64xf32>
    %325 = arith.mulf %320, %324 : vector<16x64xf32>
    %326 = vector.broadcast %293 : vector<1x64xf32> to vector<16x64xf32>
    %327 = arith.addf %325, %326 : vector<16x64xf32>
    %328 = vector.extract_strided_slice %0 {offsets = [0, 0, 0], sizes = [1, 16, 16], strides = [1, 1, 1]} : vector<3x16x16xbf16> to vector<1x16x16xbf16>
    %329 = vector.shape_cast %328 : vector<1x16x16xbf16> to vector<16x16xbf16>
    %cst_81 = arith.constant dense<0.000000e+00> : vector<16x64xf32>
    %330 = tpu.matmul %329, %322, %cst_81 {dimension_numbers = #tpu.dot_dimension_numbers<[1], [0], [0], [1], [0, 0, 1, 1], [], []>} : vector<16x16xbf16>, vector<16x64xbf16>, vector<16x64xf32> -> vector<16x64xf32>
    %331 = vector.extract_strided_slice %282 {offsets = [0, 0], sizes = [1, 64], strides = [1, 1]} : vector<4x64xf32> to vector<1x64xf32>
    %332 = vector.broadcast %331 : vector<1x64xf32> to vector<16x64xf32>
    %333 = arith.mulf %330, %332 : vector<16x64xf32>
    %334 = arith.addf %327, %333 : vector<16x64xf32>
    %335 = vector.extract_strided_slice %0 {offsets = [1, 0, 0], sizes = [1, 16, 16], strides = [1, 1, 1]} : vector<3x16x16xbf16> to vector<1x16x16xbf16>
    %336 = vector.shape_cast %335 : vector<1x16x16xbf16> to vector<16x16xbf16>
    %cst_82 = arith.constant dense<0.000000e+00> : vector<16x64xf32>
    %337 = tpu.matmul %336, %322, %cst_82 {dimension_numbers = #tpu.dot_dimension_numbers<[1], [0], [0], [1], [0, 0, 1, 1], [], []>} : vector<16x16xbf16>, vector<16x64xbf16>, vector<16x64xf32> -> vector<16x64xf32>
    %338 = vector.extract_strided_slice %282 {offsets = [1, 0], sizes = [1, 64], strides = [1, 1]} : vector<4x64xf32> to vector<1x64xf32>
    %339 = vector.broadcast %338 : vector<1x64xf32> to vector<16x64xf32>
    %340 = arith.mulf %337, %339 : vector<16x64xf32>
    %341 = arith.addf %334, %340 : vector<16x64xf32>
    %342 = vector.extract_strided_slice %0 {offsets = [2, 0, 0], sizes = [1, 16, 16], strides = [1, 1, 1]} : vector<3x16x16xbf16> to vector<1x16x16xbf16>
    %343 = vector.shape_cast %342 : vector<1x16x16xbf16> to vector<16x16xbf16>
    %cst_83 = arith.constant dense<0.000000e+00> : vector<16x64xf32>
    %344 = tpu.matmul %343, %322, %cst_83 {dimension_numbers = #tpu.dot_dimension_numbers<[1], [0], [0], [1], [0, 0, 1, 1], [], []>} : vector<16x16xbf16>, vector<16x64xbf16>, vector<16x64xf32> -> vector<16x64xf32>
    %345 = vector.extract_strided_slice %282 {offsets = [2, 0], sizes = [1, 64], strides = [1, 1]} : vector<4x64xf32> to vector<1x64xf32>
    %346 = vector.broadcast %345 : vector<1x64xf32> to vector<16x64xf32>
    %347 = arith.mulf %344, %346 : vector<16x64xf32>
    %348 = arith.addf %341, %347 : vector<16x64xf32>
    %349 = arith.negf %348 : vector<16x64xf32>
    %350 = math.exp %349 : vector<16x64xf32>
    %cst_84 = arith.constant 1.000000e+00 : f32
    %351 = vector.broadcast %cst_84 : f32 to vector<16x64xf32>
    %352 = arith.addf %351, %350 : vector<16x64xf32>
    %353 = arith.divf %351, %352 : vector<16x64xf32>
    %354 = arith.mulf %348, %353 : vector<16x64xf32>
    %355 = arith.truncf %354 : vector<16x64xf32> to vector<16x64xbf16>
    %cst_85 = arith.constant dense<0.000000e+00> : vector<16x96xf32>
    %356 = tpu.matmul %355, %286, %cst_85 {dimension_numbers = #tpu.dot_dimension_numbers<[1], [0], [0], [1], [0, 0, 1, 1], [], []>} : vector<16x64xbf16>, vector<64x96xbf16>, vector<16x96xf32> -> vector<16x96xf32>
    %357 = vector.extract_strided_slice %356 {offsets = [0, 0], sizes = [16, 64], strides = [1, 1]} : vector<16x96xf32> to vector<16x64xf32>
    %358 = vector.broadcast %294 : vector<1x64xf32> to vector<16x64xf32>
    %359 = arith.addf %357, %358 : vector<16x64xf32>
    %cst_86 = arith.constant 0.000000e+00 : f32
    %360 = vector.broadcast %cst_86 : f32 to vector<16x64xf32>
    %361 = arith.maximumf %359, %360 : vector<16x64xf32>
    %362 = vector.broadcast %cst_86 : f32 to vector<16x64xf32>
    %363 = arith.subf %359, %362 : vector<16x64xf32>
    %364 = arith.cmpf one, %363, %363 : vector<16x64xf32>
    %365 = vector.broadcast %cst_86 : f32 to vector<16x64xf32>
    %366 = arith.addf %359, %365 : vector<16x64xf32>
    %367 = math.absf %363 : vector<16x64xf32>
    %cst_87 = arith.constant 0.000000e+00 : f32
    %368 = vector.broadcast %cst_87 : f32 to vector<16x64xf32>
    %369 = arith.subf %368, %367 : vector<16x64xf32>
    %370 = math.exp %369 : vector<16x64xf32>
    %371 = math.log1p %370 : vector<16x64xf32>
    %372 = arith.addf %361, %371 : vector<16x64xf32>
    %373 = arith.select %364, %366, %372 : vector<16x64xi1>, vector<16x64xf32>
    %374 = vector.extract_strided_slice %356 {offsets = [0, 64], sizes = [16, 16], strides = [1, 1]} : vector<16x96xf32> to vector<16x16xf32>
    %375 = vector.extract_strided_slice %356 {offsets = [0, 80], sizes = [16, 16], strides = [1, 1]} : vector<16x96xf32> to vector<16x16xf32>
    %376 = arith.mulf %373, %354 : vector<16x64xf32>
    %377 = vector.shape_cast %288 : vector<16x64xf32> to vector<1x16x64xf32>
    %378 = vector.shape_cast %377 : vector<1x16x64xf32> to vector<1x16x64xf32>
    %379 = vector.broadcast %378 : vector<1x16x64xf32> to vector<2x16x64xf32>
    %cst_88 = arith.constant 0.000000e+00 : f32
    %380 = vector.broadcast %cst_88 : f32 to vector<2x16x64xf32>
    %381 = vector.extract_strided_slice %373 {offsets = [0, 0], sizes = [2, 64], strides = [1, 1]} : vector<16x64xf32> to vector<2x64xf32>
    %382 = vector.extract_strided_slice %376 {offsets = [0, 0], sizes = [2, 64], strides = [1, 1]} : vector<16x64xf32> to vector<2x64xf32>
    %383 = vector.extract_strided_slice %374 {offsets = [0, 0], sizes = [2, 16], strides = [1, 1]} : vector<16x16xf32> to vector<2x16xf32>
    %384 = vector.extract_strided_slice %375 {offsets = [0, 0], sizes = [2, 16], strides = [1, 1]} : vector<16x16xf32> to vector<2x16xf32>
    %385 = vector.shape_cast %381 : vector<2x64xf32> to vector<2x1x64xf32>
    %386 = vector.broadcast %385 : vector<2x1x64xf32> to vector<2x16x64xf32>
    %387 = arith.mulf %386, %379 : vector<2x16x64xf32>
    %388 = math.exp %387 : vector<2x16x64xf32>
    %389 = arith.mulf %388, %380 : vector<2x16x64xf32>
    %390 = vector.shape_cast %382 : vector<2x64xf32> to vector<2x1x64xf32>
    %391 = vector.shape_cast %383 : vector<2x16xf32> to vector<2x16x1xf32>
    %392 = vector.broadcast %390 : vector<2x1x64xf32> to vector<2x16x64xf32>
    %393 = vector.broadcast %391 : vector<2x16x1xf32> to vector<2x16x64xf32>
    %394 = arith.mulf %392, %393 : vector<2x16x64xf32>
    %395 = arith.addf %389, %394 : vector<2x16x64xf32>
    %396 = vector.shape_cast %384 : vector<2x16xf32> to vector<2x16x1xf32>
    %397 = vector.broadcast %396 : vector<2x16x1xf32> to vector<2x16x64xf32>
    %398 = arith.mulf %395, %397 : vector<2x16x64xf32>
    %cst_89 = arith.constant dense<0.000000e+00> : vector<2x64xf32>
    %399 = vector.multi_reduction <add>, %398, %cst_89 [1] : vector<2x16x64xf32> to vector<2x64xf32>
    %400 = vector.extract_strided_slice %373 {offsets = [2, 0], sizes = [2, 64], strides = [1, 1]} : vector<16x64xf32> to vector<2x64xf32>
    %401 = vector.extract_strided_slice %376 {offsets = [2, 0], sizes = [2, 64], strides = [1, 1]} : vector<16x64xf32> to vector<2x64xf32>
    %402 = vector.extract_strided_slice %374 {offsets = [2, 0], sizes = [2, 16], strides = [1, 1]} : vector<16x16xf32> to vector<2x16xf32>
    %403 = vector.extract_strided_slice %375 {offsets = [2, 0], sizes = [2, 16], strides = [1, 1]} : vector<16x16xf32> to vector<2x16xf32>
    %404 = vector.shape_cast %400 : vector<2x64xf32> to vector<2x1x64xf32>
    %405 = vector.broadcast %404 : vector<2x1x64xf32> to vector<2x16x64xf32>
    %406 = arith.mulf %405, %379 : vector<2x16x64xf32>
    %407 = math.exp %406 : vector<2x16x64xf32>
    %408 = arith.mulf %407, %395 : vector<2x16x64xf32>
    %409 = vector.shape_cast %401 : vector<2x64xf32> to vector<2x1x64xf32>
    %410 = vector.shape_cast %402 : vector<2x16xf32> to vector<2x16x1xf32>
    %411 = vector.broadcast %409 : vector<2x1x64xf32> to vector<2x16x64xf32>
    %412 = vector.broadcast %410 : vector<2x16x1xf32> to vector<2x16x64xf32>
    %413 = arith.mulf %411, %412 : vector<2x16x64xf32>
    %414 = arith.addf %408, %413 : vector<2x16x64xf32>
    %415 = vector.shape_cast %403 : vector<2x16xf32> to vector<2x16x1xf32>
    %416 = vector.broadcast %415 : vector<2x16x1xf32> to vector<2x16x64xf32>
    %417 = arith.mulf %414, %416 : vector<2x16x64xf32>
    %cst_90 = arith.constant dense<0.000000e+00> : vector<2x64xf32>
    %418 = vector.multi_reduction <add>, %417, %cst_90 [1] : vector<2x16x64xf32> to vector<2x64xf32>
    %419 = vector.extract_strided_slice %373 {offsets = [4, 0], sizes = [2, 64], strides = [1, 1]} : vector<16x64xf32> to vector<2x64xf32>
    %420 = vector.extract_strided_slice %376 {offsets = [4, 0], sizes = [2, 64], strides = [1, 1]} : vector<16x64xf32> to vector<2x64xf32>
    %421 = vector.extract_strided_slice %374 {offsets = [4, 0], sizes = [2, 16], strides = [1, 1]} : vector<16x16xf32> to vector<2x16xf32>
    %422 = vector.extract_strided_slice %375 {offsets = [4, 0], sizes = [2, 16], strides = [1, 1]} : vector<16x16xf32> to vector<2x16xf32>
    %423 = vector.shape_cast %419 : vector<2x64xf32> to vector<2x1x64xf32>
    %424 = vector.broadcast %423 : vector<2x1x64xf32> to vector<2x16x64xf32>
    %425 = arith.mulf %424, %379 : vector<2x16x64xf32>
    %426 = math.exp %425 : vector<2x16x64xf32>
    %427 = arith.mulf %426, %414 : vector<2x16x64xf32>
    %428 = vector.shape_cast %420 : vector<2x64xf32> to vector<2x1x64xf32>
    %429 = vector.shape_cast %421 : vector<2x16xf32> to vector<2x16x1xf32>
    %430 = vector.broadcast %428 : vector<2x1x64xf32> to vector<2x16x64xf32>
    %431 = vector.broadcast %429 : vector<2x16x1xf32> to vector<2x16x64xf32>
    %432 = arith.mulf %430, %431 : vector<2x16x64xf32>
    %433 = arith.addf %427, %432 : vector<2x16x64xf32>
    %434 = vector.shape_cast %422 : vector<2x16xf32> to vector<2x16x1xf32>
    %435 = vector.broadcast %434 : vector<2x16x1xf32> to vector<2x16x64xf32>
    %436 = arith.mulf %433, %435 : vector<2x16x64xf32>
    %cst_91 = arith.constant dense<0.000000e+00> : vector<2x64xf32>
    %437 = vector.multi_reduction <add>, %436, %cst_91 [1] : vector<2x16x64xf32> to vector<2x64xf32>
    %438 = vector.extract_strided_slice %373 {offsets = [6, 0], sizes = [2, 64], strides = [1, 1]} : vector<16x64xf32> to vector<2x64xf32>
    %439 = vector.extract_strided_slice %376 {offsets = [6, 0], sizes = [2, 64], strides = [1, 1]} : vector<16x64xf32> to vector<2x64xf32>
    %440 = vector.extract_strided_slice %374 {offsets = [6, 0], sizes = [2, 16], strides = [1, 1]} : vector<16x16xf32> to vector<2x16xf32>
    %441 = vector.extract_strided_slice %375 {offsets = [6, 0], sizes = [2, 16], strides = [1, 1]} : vector<16x16xf32> to vector<2x16xf32>
    %442 = vector.shape_cast %438 : vector<2x64xf32> to vector<2x1x64xf32>
    %443 = vector.broadcast %442 : vector<2x1x64xf32> to vector<2x16x64xf32>
    %444 = arith.mulf %443, %379 : vector<2x16x64xf32>
    %445 = math.exp %444 : vector<2x16x64xf32>
    %446 = arith.mulf %445, %433 : vector<2x16x64xf32>
    %447 = vector.shape_cast %439 : vector<2x64xf32> to vector<2x1x64xf32>
    %448 = vector.shape_cast %440 : vector<2x16xf32> to vector<2x16x1xf32>
    %449 = vector.broadcast %447 : vector<2x1x64xf32> to vector<2x16x64xf32>
    %450 = vector.broadcast %448 : vector<2x16x1xf32> to vector<2x16x64xf32>
    %451 = arith.mulf %449, %450 : vector<2x16x64xf32>
    %452 = arith.addf %446, %451 : vector<2x16x64xf32>
    %453 = vector.shape_cast %441 : vector<2x16xf32> to vector<2x16x1xf32>
    %454 = vector.broadcast %453 : vector<2x16x1xf32> to vector<2x16x64xf32>
    %455 = arith.mulf %452, %454 : vector<2x16x64xf32>
    %cst_92 = arith.constant dense<0.000000e+00> : vector<2x64xf32>
    %456 = vector.multi_reduction <add>, %455, %cst_92 [1] : vector<2x16x64xf32> to vector<2x64xf32>
    %457 = vector.extract_strided_slice %373 {offsets = [8, 0], sizes = [2, 64], strides = [1, 1]} : vector<16x64xf32> to vector<2x64xf32>
    %458 = vector.extract_strided_slice %376 {offsets = [8, 0], sizes = [2, 64], strides = [1, 1]} : vector<16x64xf32> to vector<2x64xf32>
    %459 = vector.extract_strided_slice %374 {offsets = [8, 0], sizes = [2, 16], strides = [1, 1]} : vector<16x16xf32> to vector<2x16xf32>
    %460 = vector.extract_strided_slice %375 {offsets = [8, 0], sizes = [2, 16], strides = [1, 1]} : vector<16x16xf32> to vector<2x16xf32>
    %461 = vector.shape_cast %457 : vector<2x64xf32> to vector<2x1x64xf32>
    %462 = vector.broadcast %461 : vector<2x1x64xf32> to vector<2x16x64xf32>
    %463 = arith.mulf %462, %379 : vector<2x16x64xf32>
    %464 = math.exp %463 : vector<2x16x64xf32>
    %465 = arith.mulf %464, %452 : vector<2x16x64xf32>
    %466 = vector.shape_cast %458 : vector<2x64xf32> to vector<2x1x64xf32>
    %467 = vector.shape_cast %459 : vector<2x16xf32> to vector<2x16x1xf32>
    %468 = vector.broadcast %466 : vector<2x1x64xf32> to vector<2x16x64xf32>
    %469 = vector.broadcast %467 : vector<2x16x1xf32> to vector<2x16x64xf32>
    %470 = arith.mulf %468, %469 : vector<2x16x64xf32>
    %471 = arith.addf %465, %470 : vector<2x16x64xf32>
    %472 = vector.shape_cast %460 : vector<2x16xf32> to vector<2x16x1xf32>
    %473 = vector.broadcast %472 : vector<2x16x1xf32> to vector<2x16x64xf32>
    %474 = arith.mulf %471, %473 : vector<2x16x64xf32>
    %cst_93 = arith.constant dense<0.000000e+00> : vector<2x64xf32>
    %475 = vector.multi_reduction <add>, %474, %cst_93 [1] : vector<2x16x64xf32> to vector<2x64xf32>
    %476 = vector.extract_strided_slice %373 {offsets = [10, 0], sizes = [2, 64], strides = [1, 1]} : vector<16x64xf32> to vector<2x64xf32>
    %477 = vector.extract_strided_slice %376 {offsets = [10, 0], sizes = [2, 64], strides = [1, 1]} : vector<16x64xf32> to vector<2x64xf32>
    %478 = vector.extract_strided_slice %374 {offsets = [10, 0], sizes = [2, 16], strides = [1, 1]} : vector<16x16xf32> to vector<2x16xf32>
    %479 = vector.extract_strided_slice %375 {offsets = [10, 0], sizes = [2, 16], strides = [1, 1]} : vector<16x16xf32> to vector<2x16xf32>
    %480 = vector.shape_cast %476 : vector<2x64xf32> to vector<2x1x64xf32>
    %481 = vector.broadcast %480 : vector<2x1x64xf32> to vector<2x16x64xf32>
    %482 = arith.mulf %481, %379 : vector<2x16x64xf32>
    %483 = math.exp %482 : vector<2x16x64xf32>
    %484 = arith.mulf %483, %471 : vector<2x16x64xf32>
    %485 = vector.shape_cast %477 : vector<2x64xf32> to vector<2x1x64xf32>
    %486 = vector.shape_cast %478 : vector<2x16xf32> to vector<2x16x1xf32>
    %487 = vector.broadcast %485 : vector<2x1x64xf32> to vector<2x16x64xf32>
    %488 = vector.broadcast %486 : vector<2x16x1xf32> to vector<2x16x64xf32>
    %489 = arith.mulf %487, %488 : vector<2x16x64xf32>
    %490 = arith.addf %484, %489 : vector<2x16x64xf32>
    %491 = vector.shape_cast %479 : vector<2x16xf32> to vector<2x16x1xf32>
    %492 = vector.broadcast %491 : vector<2x16x1xf32> to vector<2x16x64xf32>
    %493 = arith.mulf %490, %492 : vector<2x16x64xf32>
    %cst_94 = arith.constant dense<0.000000e+00> : vector<2x64xf32>
    %494 = vector.multi_reduction <add>, %493, %cst_94 [1] : vector<2x16x64xf32> to vector<2x64xf32>
    %495 = vector.extract_strided_slice %373 {offsets = [12, 0], sizes = [2, 64], strides = [1, 1]} : vector<16x64xf32> to vector<2x64xf32>
    %496 = vector.extract_strided_slice %376 {offsets = [12, 0], sizes = [2, 64], strides = [1, 1]} : vector<16x64xf32> to vector<2x64xf32>
    %497 = vector.extract_strided_slice %374 {offsets = [12, 0], sizes = [2, 16], strides = [1, 1]} : vector<16x16xf32> to vector<2x16xf32>
    %498 = vector.extract_strided_slice %375 {offsets = [12, 0], sizes = [2, 16], strides = [1, 1]} : vector<16x16xf32> to vector<2x16xf32>
    %499 = vector.shape_cast %495 : vector<2x64xf32> to vector<2x1x64xf32>
    %500 = vector.broadcast %499 : vector<2x1x64xf32> to vector<2x16x64xf32>
    %501 = arith.mulf %500, %379 : vector<2x16x64xf32>
    %502 = math.exp %501 : vector<2x16x64xf32>
    %503 = arith.mulf %502, %490 : vector<2x16x64xf32>
    %504 = vector.shape_cast %496 : vector<2x64xf32> to vector<2x1x64xf32>
    %505 = vector.shape_cast %497 : vector<2x16xf32> to vector<2x16x1xf32>
    %506 = vector.broadcast %504 : vector<2x1x64xf32> to vector<2x16x64xf32>
    %507 = vector.broadcast %505 : vector<2x16x1xf32> to vector<2x16x64xf32>
    %508 = arith.mulf %506, %507 : vector<2x16x64xf32>
    %509 = arith.addf %503, %508 : vector<2x16x64xf32>
    %510 = vector.shape_cast %498 : vector<2x16xf32> to vector<2x16x1xf32>
    %511 = vector.broadcast %510 : vector<2x16x1xf32> to vector<2x16x64xf32>
    %512 = arith.mulf %509, %511 : vector<2x16x64xf32>
    %cst_95 = arith.constant dense<0.000000e+00> : vector<2x64xf32>
    %513 = vector.multi_reduction <add>, %512, %cst_95 [1] : vector<2x16x64xf32> to vector<2x64xf32>
    %514 = vector.extract_strided_slice %373 {offsets = [14, 0], sizes = [2, 64], strides = [1, 1]} : vector<16x64xf32> to vector<2x64xf32>
    %515 = vector.extract_strided_slice %376 {offsets = [14, 0], sizes = [2, 64], strides = [1, 1]} : vector<16x64xf32> to vector<2x64xf32>
    %516 = vector.extract_strided_slice %374 {offsets = [14, 0], sizes = [2, 16], strides = [1, 1]} : vector<16x16xf32> to vector<2x16xf32>
    %517 = vector.extract_strided_slice %375 {offsets = [14, 0], sizes = [2, 16], strides = [1, 1]} : vector<16x16xf32> to vector<2x16xf32>
    %518 = vector.shape_cast %514 : vector<2x64xf32> to vector<2x1x64xf32>
    %519 = vector.broadcast %518 : vector<2x1x64xf32> to vector<2x16x64xf32>
    %520 = arith.mulf %519, %379 : vector<2x16x64xf32>
    %521 = math.exp %520 : vector<2x16x64xf32>
    %522 = arith.mulf %521, %509 : vector<2x16x64xf32>
    %523 = vector.shape_cast %515 : vector<2x64xf32> to vector<2x1x64xf32>
    %524 = vector.shape_cast %516 : vector<2x16xf32> to vector<2x16x1xf32>
    %525 = vector.broadcast %523 : vector<2x1x64xf32> to vector<2x16x64xf32>
    %526 = vector.broadcast %524 : vector<2x16x1xf32> to vector<2x16x64xf32>
    %527 = arith.mulf %525, %526 : vector<2x16x64xf32>
    %528 = arith.addf %522, %527 : vector<2x16x64xf32>
    %529 = vector.shape_cast %517 : vector<2x16xf32> to vector<2x16x1xf32>
    %530 = vector.broadcast %529 : vector<2x16x1xf32> to vector<2x16x64xf32>
    %531 = arith.mulf %528, %530 : vector<2x16x64xf32>
    %cst_96 = arith.constant dense<0.000000e+00> : vector<2x64xf32>
    %532 = vector.multi_reduction <add>, %531, %cst_96 [1] : vector<2x16x64xf32> to vector<2x64xf32>
    %533 = tpu.concatenate %399, %418, %437, %456, %475, %494, %513, %532 in 0 : vector<2x64xf32>, vector<2x64xf32>, vector<2x64xf32>, vector<2x64xf32>, vector<2x64xf32>, vector<2x64xf32>, vector<2x64xf32>, vector<2x64xf32> -> vector<16x64xf32>
    %534 = vector.broadcast %295 : vector<1x64xf32> to vector<16x64xf32>
    %535 = arith.mulf %354, %534 : vector<16x64xf32>
    %536 = arith.addf %533, %535 : vector<16x64xf32>
    %537 = arith.negf %321 : vector<16x64xf32>
    %538 = math.exp %537 : vector<16x64xf32>
    %cst_97 = arith.constant 1.000000e+00 : f32
    %539 = vector.broadcast %cst_97 : f32 to vector<16x64xf32>
    %540 = arith.addf %539, %538 : vector<16x64xf32>
    %541 = arith.divf %539, %540 : vector<16x64xf32>
    %542 = arith.mulf %321, %541 : vector<16x64xf32>
    %543 = arith.mulf %536, %542 : vector<16x64xf32>
    %544 = arith.truncf %543 : vector<16x64xf32> to vector<16x64xbf16>
    %cst_98 = arith.constant dense<0.000000e+00> : vector<16x128xf32>
    %545 = tpu.matmul %544, %290, %cst_98 {dimension_numbers = #tpu.dot_dimension_numbers<[1], [0], [0], [1], [0, 0, 1, 1], [], []>} : vector<16x64xbf16>, vector<64x128xbf16>, vector<16x128xf32> -> vector<16x128xf32>
    %c1_99 = arith.constant 1 : index
    %c0_100 = arith.constant 0 : index
    %c0_101 = arith.constant 0 : index
    %546 = vector.load %arg10[%c1_99, %c0_100, %c0_101] : memref<4x16x128xf32, #tpu.memory_space<vmem>>, vector<1x16x128xf32>
    %547 = vector.shape_cast %546 : vector<1x16x128xf32> to vector<16x128xf32>
    %548 = vector.shape_cast %545 : vector<16x128xf32> to vector<1x16x128xf32>
    tpu.vector_store %arg10[%c1_99, %c0_100, %c0_101], %548 {strides = array<i32>} : memref<4x16x128xf32, #tpu.memory_space<vmem>>, vector<1x16x128xf32>,
    %c2 = arith.constant 2 : index
    %c0_102 = arith.constant 0 : index
    %c0_103 = arith.constant 0 : index
    %549 = vector.load %arg1[%c2, %c0_102, %c0_103] : memref<4x16x32xf32, #tpu.memory_space<vmem>>, vector<1x16x32xf32>
    %550 = vector.shape_cast %549 : vector<1x16x32xf32> to vector<16x32xf32>
    %c2_104 = arith.constant 2 : index
    %c0_105 = arith.constant 0 : index
    %c0_106 = arith.constant 0 : index
    %551 = vector.load %arg3[%c2_104, %c0_105, %c0_106] : memref<4x2x32xf32, #tpu.memory_space<vmem>>, vector<1x2x32xf32>
    %552 = vector.shape_cast %551 : vector<1x2x32xf32> to vector<2x32xf32>
    %c2_107 = arith.constant 2 : index
    %c0_108 = arith.constant 0 : index
    %c0_109 = arith.constant 0 : index
    %553 = vector.load %arg4[%c2_107, %c0_108, %c0_109] : memref<4x32x128xbf16, #tpu.memory_space<vmem>>, vector<1x32x128xbf16>
    %554 = vector.shape_cast %553 : vector<1x32x128xbf16> to vector<32x128xbf16>
    %c2_110 = arith.constant 2 : index
    %c0_111 = arith.constant 0 : index
    %c0_112 = arith.constant 0 : index
    %555 = vector.load %arg5[%c2_110, %c0_111, %c0_112] : memref<4x4x64xf32, #tpu.memory_space<vmem>>, vector<1x4x64xf32>
    %556 = vector.shape_cast %555 : vector<1x4x64xf32> to vector<4x64xf32>
    %c2_113 = arith.constant 2 : index
    %c0_114 = arith.constant 0 : index
    %c0_115 = arith.constant 0 : index
    %557 = vector.load %arg6[%c2_113, %c0_114, %c0_115] : memref<4x3x64xf32, #tpu.memory_space<vmem>>, vector<1x3x64xf32>
    %558 = vector.shape_cast %557 : vector<1x3x64xf32> to vector<3x64xf32>
    %c2_116 = arith.constant 2 : index
    %c0_117 = arith.constant 0 : index
    %c0_118 = arith.constant 0 : index
    %559 = vector.load %arg7[%c2_116, %c0_117, %c0_118] : memref<4x64x96xbf16, #tpu.memory_space<vmem>>, vector<1x64x96xbf16>
    %560 = vector.shape_cast %559 : vector<1x64x96xbf16> to vector<64x96xbf16>
    %c2_119 = arith.constant 2 : index
    %c0_120 = arith.constant 0 : index
    %c0_121 = arith.constant 0 : index
    %561 = vector.load %arg8[%c2_119, %c0_120, %c0_121] : memref<4x16x64xf32, #tpu.memory_space<vmem>>, vector<1x16x64xf32>
    %562 = vector.shape_cast %561 : vector<1x16x64xf32> to vector<16x64xf32>
    %c2_122 = arith.constant 2 : index
    %c0_123 = arith.constant 0 : index
    %c0_124 = arith.constant 0 : index
    %563 = vector.load %arg9[%c2_122, %c0_123, %c0_124] : memref<4x64x128xbf16, #tpu.memory_space<vmem>>, vector<1x64x128xbf16>
    %564 = vector.shape_cast %563 : vector<1x64x128xbf16> to vector<64x128xbf16>
    %565 = vector.extract_strided_slice %552 {offsets = [0, 0], sizes = [1, 32], strides = [1, 1]} : vector<2x32xf32> to vector<1x32xf32>
    %566 = vector.extract_strided_slice %552 {offsets = [1, 0], sizes = [1, 32], strides = [1, 1]} : vector<2x32xf32> to vector<1x32xf32>
    %567 = vector.extract_strided_slice %558 {offsets = [0, 0], sizes = [1, 64], strides = [1, 1]} : vector<3x64xf32> to vector<1x64xf32>
    %568 = vector.extract_strided_slice %558 {offsets = [1, 0], sizes = [1, 64], strides = [1, 1]} : vector<3x64xf32> to vector<1x64xf32>
    %569 = vector.extract_strided_slice %558 {offsets = [2, 0], sizes = [1, 64], strides = [1, 1]} : vector<3x64xf32> to vector<1x64xf32>
    %cst_125 = arith.constant dense<0.000000e+00> : vector<16xf32>
    %570 = vector.multi_reduction <add>, %550, %cst_125 [1] : vector<16x32xf32> to vector<16xf32>
    %571 = vector.shape_cast %570 : vector<16xf32> to vector<16x1xf32>
    %cst_126 = arith.constant 3.200000e+01 : f32
    %572 = vector.broadcast %cst_126 : f32 to vector<16x1xf32>
    %573 = arith.divf %571, %572 : vector<16x1xf32>
    %574 = vector.broadcast %573 : vector<16x1xf32> to vector<16x32xf32>
    %575 = arith.subf %550, %574 : vector<16x32xf32>
    %576 = arith.mulf %575, %575 : vector<16x32xf32>
    %cst_127 = arith.constant dense<0.000000e+00> : vector<16xf32>
    %577 = vector.multi_reduction <add>, %576, %cst_127 [1] : vector<16x32xf32> to vector<16xf32>
    %578 = vector.shape_cast %577 : vector<16xf32> to vector<16x1xf32>
    %cst_128 = arith.constant 3.200000e+01 : f32
    %579 = vector.broadcast %cst_128 : f32 to vector<16x1xf32>
    %580 = arith.divf %578, %579 : vector<16x1xf32>
    %581 = vector.broadcast %573 : vector<16x1xf32> to vector<16x32xf32>
    %582 = arith.subf %550, %581 : vector<16x32xf32>
    %cst_129 = arith.constant 9.99999974E-6 : f32
    %583 = vector.broadcast %cst_129 : f32 to vector<16x1xf32>
    %584 = arith.addf %580, %583 : vector<16x1xf32>
    %585 = math.rsqrt %584 : vector<16x1xf32>
    %586 = vector.broadcast %585 : vector<16x1xf32> to vector<16x32xf32>
    %587 = arith.mulf %582, %586 : vector<16x32xf32>
    %588 = vector.broadcast %565 : vector<1x32xf32> to vector<16x32xf32>
    %589 = arith.mulf %587, %588 : vector<16x32xf32>
    %590 = vector.broadcast %566 : vector<1x32xf32> to vector<16x32xf32>
    %591 = arith.addf %589, %590 : vector<16x32xf32>
    %592 = arith.truncf %591 : vector<16x32xf32> to vector<16x32xbf16>
    %cst_130 = arith.constant dense<0.000000e+00> : vector<16x128xf32>
    %593 = tpu.matmul %592, %554, %cst_130 {dimension_numbers = #tpu.dot_dimension_numbers<[1], [0], [0], [1], [0, 0, 1, 1], [], []>} : vector<16x32xbf16>, vector<32x128xbf16>, vector<16x128xf32> -> vector<16x128xf32>
    %594 = vector.extract_strided_slice %593 {offsets = [0, 0], sizes = [16, 64], strides = [1, 1]} : vector<16x128xf32> to vector<16x64xf32>
    %595 = vector.extract_strided_slice %593 {offsets = [0, 64], sizes = [16, 64], strides = [1, 1]} : vector<16x128xf32> to vector<16x64xf32>
    %596 = arith.truncf %594 : vector<16x64xf32> to vector<16x64xbf16>
    %597 = vector.extract_strided_slice %556 {offsets = [3, 0], sizes = [1, 64], strides = [1, 1]} : vector<4x64xf32> to vector<1x64xf32>
    %598 = vector.broadcast %597 : vector<1x64xf32> to vector<16x64xf32>
    %599 = arith.mulf %594, %598 : vector<16x64xf32>
    %600 = vector.broadcast %567 : vector<1x64xf32> to vector<16x64xf32>
    %601 = arith.addf %599, %600 : vector<16x64xf32>
    %602 = vector.extract_strided_slice %0 {offsets = [0, 0, 0], sizes = [1, 16, 16], strides = [1, 1, 1]} : vector<3x16x16xbf16> to vector<1x16x16xbf16>
    %603 = vector.shape_cast %602 : vector<1x16x16xbf16> to vector<16x16xbf16>
    %cst_131 = arith.constant dense<0.000000e+00> : vector<16x64xf32>
    %604 = tpu.matmul %603, %596, %cst_131 {dimension_numbers = #tpu.dot_dimension_numbers<[1], [0], [0], [1], [0, 0, 1, 1], [], []>} : vector<16x16xbf16>, vector<16x64xbf16>, vector<16x64xf32> -> vector<16x64xf32>
    %605 = vector.extract_strided_slice %556 {offsets = [0, 0], sizes = [1, 64], strides = [1, 1]} : vector<4x64xf32> to vector<1x64xf32>
    %606 = vector.broadcast %605 : vector<1x64xf32> to vector<16x64xf32>
    %607 = arith.mulf %604, %606 : vector<16x64xf32>
    %608 = arith.addf %601, %607 : vector<16x64xf32>
    %609 = vector.extract_strided_slice %0 {offsets = [1, 0, 0], sizes = [1, 16, 16], strides = [1, 1, 1]} : vector<3x16x16xbf16> to vector<1x16x16xbf16>
    %610 = vector.shape_cast %609 : vector<1x16x16xbf16> to vector<16x16xbf16>
    %cst_132 = arith.constant dense<0.000000e+00> : vector<16x64xf32>
    %611 = tpu.matmul %610, %596, %cst_132 {dimension_numbers = #tpu.dot_dimension_numbers<[1], [0], [0], [1], [0, 0, 1, 1], [], []>} : vector<16x16xbf16>, vector<16x64xbf16>, vector<16x64xf32> -> vector<16x64xf32>
    %612 = vector.extract_strided_slice %556 {offsets = [1, 0], sizes = [1, 64], strides = [1, 1]} : vector<4x64xf32> to vector<1x64xf32>
    %613 = vector.broadcast %612 : vector<1x64xf32> to vector<16x64xf32>
    %614 = arith.mulf %611, %613 : vector<16x64xf32>
    %615 = arith.addf %608, %614 : vector<16x64xf32>
    %616 = vector.extract_strided_slice %0 {offsets = [2, 0, 0], sizes = [1, 16, 16], strides = [1, 1, 1]} : vector<3x16x16xbf16> to vector<1x16x16xbf16>
    %617 = vector.shape_cast %616 : vector<1x16x16xbf16> to vector<16x16xbf16>
    %cst_133 = arith.constant dense<0.000000e+00> : vector<16x64xf32>
    %618 = tpu.matmul %617, %596, %cst_133 {dimension_numbers = #tpu.dot_dimension_numbers<[1], [0], [0], [1], [0, 0, 1, 1], [], []>} : vector<16x16xbf16>, vector<16x64xbf16>, vector<16x64xf32> -> vector<16x64xf32>
    %619 = vector.extract_strided_slice %556 {offsets = [2, 0], sizes = [1, 64], strides = [1, 1]} : vector<4x64xf32> to vector<1x64xf32>
    %620 = vector.broadcast %619 : vector<1x64xf32> to vector<16x64xf32>
    %621 = arith.mulf %618, %620 : vector<16x64xf32>
    %622 = arith.addf %615, %621 : vector<16x64xf32>
    %623 = arith.negf %622 : vector<16x64xf32>
    %624 = math.exp %623 : vector<16x64xf32>
    %cst_134 = arith.constant 1.000000e+00 : f32
    %625 = vector.broadcast %cst_134 : f32 to vector<16x64xf32>
    %626 = arith.addf %625, %624 : vector<16x64xf32>
    %627 = arith.divf %625, %626 : vector<16x64xf32>
    %628 = arith.mulf %622, %627 : vector<16x64xf32>
    %629 = arith.truncf %628 : vector<16x64xf32> to vector<16x64xbf16>
    %cst_135 = arith.constant dense<0.000000e+00> : vector<16x96xf32>
    %630 = tpu.matmul %629, %560, %cst_135 {dimension_numbers = #tpu.dot_dimension_numbers<[1], [0], [0], [1], [0, 0, 1, 1], [], []>} : vector<16x64xbf16>, vector<64x96xbf16>, vector<16x96xf32> -> vector<16x96xf32>
    %631 = vector.extract_strided_slice %630 {offsets = [0, 0], sizes = [16, 64], strides = [1, 1]} : vector<16x96xf32> to vector<16x64xf32>
    %632 = vector.broadcast %568 : vector<1x64xf32> to vector<16x64xf32>
    %633 = arith.addf %631, %632 : vector<16x64xf32>
    %cst_136 = arith.constant 0.000000e+00 : f32
    %634 = vector.broadcast %cst_136 : f32 to vector<16x64xf32>
    %635 = arith.maximumf %633, %634 : vector<16x64xf32>
    %636 = vector.broadcast %cst_136 : f32 to vector<16x64xf32>
    %637 = arith.subf %633, %636 : vector<16x64xf32>
    %638 = arith.cmpf one, %637, %637 : vector<16x64xf32>
    %639 = vector.broadcast %cst_136 : f32 to vector<16x64xf32>
    %640 = arith.addf %633, %639 : vector<16x64xf32>
    %641 = math.absf %637 : vector<16x64xf32>
    %cst_137 = arith.constant 0.000000e+00 : f32
    %642 = vector.broadcast %cst_137 : f32 to vector<16x64xf32>
    %643 = arith.subf %642, %641 : vector<16x64xf32>
    %644 = math.exp %643 : vector<16x64xf32>
    %645 = math.log1p %644 : vector<16x64xf32>
    %646 = arith.addf %635, %645 : vector<16x64xf32>
    %647 = arith.select %638, %640, %646 : vector<16x64xi1>, vector<16x64xf32>
    %648 = vector.extract_strided_slice %630 {offsets = [0, 64], sizes = [16, 16], strides = [1, 1]} : vector<16x96xf32> to vector<16x16xf32>
    %649 = vector.extract_strided_slice %630 {offsets = [0, 80], sizes = [16, 16], strides = [1, 1]} : vector<16x96xf32> to vector<16x16xf32>
    %650 = arith.mulf %647, %628 : vector<16x64xf32>
    %651 = vector.shape_cast %562 : vector<16x64xf32> to vector<1x16x64xf32>
    %652 = vector.shape_cast %651 : vector<1x16x64xf32> to vector<1x16x64xf32>
    %653 = vector.broadcast %652 : vector<1x16x64xf32> to vector<2x16x64xf32>
    %cst_138 = arith.constant 0.000000e+00 : f32
    %654 = vector.broadcast %cst_138 : f32 to vector<2x16x64xf32>
    %655 = vector.extract_strided_slice %647 {offsets = [0, 0], sizes = [2, 64], strides = [1, 1]} : vector<16x64xf32> to vector<2x64xf32>
    %656 = vector.extract_strided_slice %650 {offsets = [0, 0], sizes = [2, 64], strides = [1, 1]} : vector<16x64xf32> to vector<2x64xf32>
    %657 = vector.extract_strided_slice %648 {offsets = [0, 0], sizes = [2, 16], strides = [1, 1]} : vector<16x16xf32> to vector<2x16xf32>
    %658 = vector.extract_strided_slice %649 {offsets = [0, 0], sizes = [2, 16], strides = [1, 1]} : vector<16x16xf32> to vector<2x16xf32>
    %659 = vector.shape_cast %655 : vector<2x64xf32> to vector<2x1x64xf32>
    %660 = vector.broadcast %659 : vector<2x1x64xf32> to vector<2x16x64xf32>
    %661 = arith.mulf %660, %653 : vector<2x16x64xf32>
    %662 = math.exp %661 : vector<2x16x64xf32>
    %663 = arith.mulf %662, %654 : vector<2x16x64xf32>
    %664 = vector.shape_cast %656 : vector<2x64xf32> to vector<2x1x64xf32>
    %665 = vector.shape_cast %657 : vector<2x16xf32> to vector<2x16x1xf32>
    %666 = vector.broadcast %664 : vector<2x1x64xf32> to vector<2x16x64xf32>
    %667 = vector.broadcast %665 : vector<2x16x1xf32> to vector<2x16x64xf32>
    %668 = arith.mulf %666, %667 : vector<2x16x64xf32>
    %669 = arith.addf %663, %668 : vector<2x16x64xf32>
    %670 = vector.shape_cast %658 : vector<2x16xf32> to vector<2x16x1xf32>
    %671 = vector.broadcast %670 : vector<2x16x1xf32> to vector<2x16x64xf32>
    %672 = arith.mulf %669, %671 : vector<2x16x64xf32>
    %cst_139 = arith.constant dense<0.000000e+00> : vector<2x64xf32>
    %673 = vector.multi_reduction <add>, %672, %cst_139 [1] : vector<2x16x64xf32> to vector<2x64xf32>
    %674 = vector.extract_strided_slice %647 {offsets = [2, 0], sizes = [2, 64], strides = [1, 1]} : vector<16x64xf32> to vector<2x64xf32>
    %675 = vector.extract_strided_slice %650 {offsets = [2, 0], sizes = [2, 64], strides = [1, 1]} : vector<16x64xf32> to vector<2x64xf32>
    %676 = vector.extract_strided_slice %648 {offsets = [2, 0], sizes = [2, 16], strides = [1, 1]} : vector<16x16xf32> to vector<2x16xf32>
    %677 = vector.extract_strided_slice %649 {offsets = [2, 0], sizes = [2, 16], strides = [1, 1]} : vector<16x16xf32> to vector<2x16xf32>
    %678 = vector.shape_cast %674 : vector<2x64xf32> to vector<2x1x64xf32>
    %679 = vector.broadcast %678 : vector<2x1x64xf32> to vector<2x16x64xf32>
    %680 = arith.mulf %679, %653 : vector<2x16x64xf32>
    %681 = math.exp %680 : vector<2x16x64xf32>
    %682 = arith.mulf %681, %669 : vector<2x16x64xf32>
    %683 = vector.shape_cast %675 : vector<2x64xf32> to vector<2x1x64xf32>
    %684 = vector.shape_cast %676 : vector<2x16xf32> to vector<2x16x1xf32>
    %685 = vector.broadcast %683 : vector<2x1x64xf32> to vector<2x16x64xf32>
    %686 = vector.broadcast %684 : vector<2x16x1xf32> to vector<2x16x64xf32>
    %687 = arith.mulf %685, %686 : vector<2x16x64xf32>
    %688 = arith.addf %682, %687 : vector<2x16x64xf32>
    %689 = vector.shape_cast %677 : vector<2x16xf32> to vector<2x16x1xf32>
    %690 = vector.broadcast %689 : vector<2x16x1xf32> to vector<2x16x64xf32>
    %691 = arith.mulf %688, %690 : vector<2x16x64xf32>
    %cst_140 = arith.constant dense<0.000000e+00> : vector<2x64xf32>
    %692 = vector.multi_reduction <add>, %691, %cst_140 [1] : vector<2x16x64xf32> to vector<2x64xf32>
    %693 = vector.extract_strided_slice %647 {offsets = [4, 0], sizes = [2, 64], strides = [1, 1]} : vector<16x64xf32> to vector<2x64xf32>
    %694 = vector.extract_strided_slice %650 {offsets = [4, 0], sizes = [2, 64], strides = [1, 1]} : vector<16x64xf32> to vector<2x64xf32>
    %695 = vector.extract_strided_slice %648 {offsets = [4, 0], sizes = [2, 16], strides = [1, 1]} : vector<16x16xf32> to vector<2x16xf32>
    %696 = vector.extract_strided_slice %649 {offsets = [4, 0], sizes = [2, 16], strides = [1, 1]} : vector<16x16xf32> to vector<2x16xf32>
    %697 = vector.shape_cast %693 : vector<2x64xf32> to vector<2x1x64xf32>
    %698 = vector.broadcast %697 : vector<2x1x64xf32> to vector<2x16x64xf32>
    %699 = arith.mulf %698, %653 : vector<2x16x64xf32>
    %700 = math.exp %699 : vector<2x16x64xf32>
    %701 = arith.mulf %700, %688 : vector<2x16x64xf32>
    %702 = vector.shape_cast %694 : vector<2x64xf32> to vector<2x1x64xf32>
    %703 = vector.shape_cast %695 : vector<2x16xf32> to vector<2x16x1xf32>
    %704 = vector.broadcast %702 : vector<2x1x64xf32> to vector<2x16x64xf32>
    %705 = vector.broadcast %703 : vector<2x16x1xf32> to vector<2x16x64xf32>
    %706 = arith.mulf %704, %705 : vector<2x16x64xf32>
    %707 = arith.addf %701, %706 : vector<2x16x64xf32>
    %708 = vector.shape_cast %696 : vector<2x16xf32> to vector<2x16x1xf32>
    %709 = vector.broadcast %708 : vector<2x16x1xf32> to vector<2x16x64xf32>
    %710 = arith.mulf %707, %709 : vector<2x16x64xf32>
    %cst_141 = arith.constant dense<0.000000e+00> : vector<2x64xf32>
    %711 = vector.multi_reduction <add>, %710, %cst_141 [1] : vector<2x16x64xf32> to vector<2x64xf32>
    %712 = vector.extract_strided_slice %647 {offsets = [6, 0], sizes = [2, 64], strides = [1, 1]} : vector<16x64xf32> to vector<2x64xf32>
    %713 = vector.extract_strided_slice %650 {offsets = [6, 0], sizes = [2, 64], strides = [1, 1]} : vector<16x64xf32> to vector<2x64xf32>
    %714 = vector.extract_strided_slice %648 {offsets = [6, 0], sizes = [2, 16], strides = [1, 1]} : vector<16x16xf32> to vector<2x16xf32>
    %715 = vector.extract_strided_slice %649 {offsets = [6, 0], sizes = [2, 16], strides = [1, 1]} : vector<16x16xf32> to vector<2x16xf32>
    %716 = vector.shape_cast %712 : vector<2x64xf32> to vector<2x1x64xf32>
    %717 = vector.broadcast %716 : vector<2x1x64xf32> to vector<2x16x64xf32>
    %718 = arith.mulf %717, %653 : vector<2x16x64xf32>
    %719 = math.exp %718 : vector<2x16x64xf32>
    %720 = arith.mulf %719, %707 : vector<2x16x64xf32>
    %721 = vector.shape_cast %713 : vector<2x64xf32> to vector<2x1x64xf32>
    %722 = vector.shape_cast %714 : vector<2x16xf32> to vector<2x16x1xf32>
    %723 = vector.broadcast %721 : vector<2x1x64xf32> to vector<2x16x64xf32>
    %724 = vector.broadcast %722 : vector<2x16x1xf32> to vector<2x16x64xf32>
    %725 = arith.mulf %723, %724 : vector<2x16x64xf32>
    %726 = arith.addf %720, %725 : vector<2x16x64xf32>
    %727 = vector.shape_cast %715 : vector<2x16xf32> to vector<2x16x1xf32>
    %728 = vector.broadcast %727 : vector<2x16x1xf32> to vector<2x16x64xf32>
    %729 = arith.mulf %726, %728 : vector<2x16x64xf32>
    %cst_142 = arith.constant dense<0.000000e+00> : vector<2x64xf32>
    %730 = vector.multi_reduction <add>, %729, %cst_142 [1] : vector<2x16x64xf32> to vector<2x64xf32>
    %731 = vector.extract_strided_slice %647 {offsets = [8, 0], sizes = [2, 64], strides = [1, 1]} : vector<16x64xf32> to vector<2x64xf32>
    %732 = vector.extract_strided_slice %650 {offsets = [8, 0], sizes = [2, 64], strides = [1, 1]} : vector<16x64xf32> to vector<2x64xf32>
    %733 = vector.extract_strided_slice %648 {offsets = [8, 0], sizes = [2, 16], strides = [1, 1]} : vector<16x16xf32> to vector<2x16xf32>
    %734 = vector.extract_strided_slice %649 {offsets = [8, 0], sizes = [2, 16], strides = [1, 1]} : vector<16x16xf32> to vector<2x16xf32>
    %735 = vector.shape_cast %731 : vector<2x64xf32> to vector<2x1x64xf32>
    %736 = vector.broadcast %735 : vector<2x1x64xf32> to vector<2x16x64xf32>
    %737 = arith.mulf %736, %653 : vector<2x16x64xf32>
    %738 = math.exp %737 : vector<2x16x64xf32>
    %739 = arith.mulf %738, %726 : vector<2x16x64xf32>
    %740 = vector.shape_cast %732 : vector<2x64xf32> to vector<2x1x64xf32>
    %741 = vector.shape_cast %733 : vector<2x16xf32> to vector<2x16x1xf32>
    %742 = vector.broadcast %740 : vector<2x1x64xf32> to vector<2x16x64xf32>
    %743 = vector.broadcast %741 : vector<2x16x1xf32> to vector<2x16x64xf32>
    %744 = arith.mulf %742, %743 : vector<2x16x64xf32>
    %745 = arith.addf %739, %744 : vector<2x16x64xf32>
    %746 = vector.shape_cast %734 : vector<2x16xf32> to vector<2x16x1xf32>
    %747 = vector.broadcast %746 : vector<2x16x1xf32> to vector<2x16x64xf32>
    %748 = arith.mulf %745, %747 : vector<2x16x64xf32>
    %cst_143 = arith.constant dense<0.000000e+00> : vector<2x64xf32>
    %749 = vector.multi_reduction <add>, %748, %cst_143 [1] : vector<2x16x64xf32> to vector<2x64xf32>
    %750 = vector.extract_strided_slice %647 {offsets = [10, 0], sizes = [2, 64], strides = [1, 1]} : vector<16x64xf32> to vector<2x64xf32>
    %751 = vector.extract_strided_slice %650 {offsets = [10, 0], sizes = [2, 64], strides = [1, 1]} : vector<16x64xf32> to vector<2x64xf32>
    %752 = vector.extract_strided_slice %648 {offsets = [10, 0], sizes = [2, 16], strides = [1, 1]} : vector<16x16xf32> to vector<2x16xf32>
    %753 = vector.extract_strided_slice %649 {offsets = [10, 0], sizes = [2, 16], strides = [1, 1]} : vector<16x16xf32> to vector<2x16xf32>
    %754 = vector.shape_cast %750 : vector<2x64xf32> to vector<2x1x64xf32>
    %755 = vector.broadcast %754 : vector<2x1x64xf32> to vector<2x16x64xf32>
    %756 = arith.mulf %755, %653 : vector<2x16x64xf32>
    %757 = math.exp %756 : vector<2x16x64xf32>
    %758 = arith.mulf %757, %745 : vector<2x16x64xf32>
    %759 = vector.shape_cast %751 : vector<2x64xf32> to vector<2x1x64xf32>
    %760 = vector.shape_cast %752 : vector<2x16xf32> to vector<2x16x1xf32>
    %761 = vector.broadcast %759 : vector<2x1x64xf32> to vector<2x16x64xf32>
    %762 = vector.broadcast %760 : vector<2x16x1xf32> to vector<2x16x64xf32>
    %763 = arith.mulf %761, %762 : vector<2x16x64xf32>
    %764 = arith.addf %758, %763 : vector<2x16x64xf32>
    %765 = vector.shape_cast %753 : vector<2x16xf32> to vector<2x16x1xf32>
    %766 = vector.broadcast %765 : vector<2x16x1xf32> to vector<2x16x64xf32>
    %767 = arith.mulf %764, %766 : vector<2x16x64xf32>
    %cst_144 = arith.constant dense<0.000000e+00> : vector<2x64xf32>
    %768 = vector.multi_reduction <add>, %767, %cst_144 [1] : vector<2x16x64xf32> to vector<2x64xf32>
    %769 = vector.extract_strided_slice %647 {offsets = [12, 0], sizes = [2, 64], strides = [1, 1]} : vector<16x64xf32> to vector<2x64xf32>
    %770 = vector.extract_strided_slice %650 {offsets = [12, 0], sizes = [2, 64], strides = [1, 1]} : vector<16x64xf32> to vector<2x64xf32>
    %771 = vector.extract_strided_slice %648 {offsets = [12, 0], sizes = [2, 16], strides = [1, 1]} : vector<16x16xf32> to vector<2x16xf32>
    %772 = vector.extract_strided_slice %649 {offsets = [12, 0], sizes = [2, 16], strides = [1, 1]} : vector<16x16xf32> to vector<2x16xf32>
    %773 = vector.shape_cast %769 : vector<2x64xf32> to vector<2x1x64xf32>
    %774 = vector.broadcast %773 : vector<2x1x64xf32> to vector<2x16x64xf32>
    %775 = arith.mulf %774, %653 : vector<2x16x64xf32>
    %776 = math.exp %775 : vector<2x16x64xf32>
    %777 = arith.mulf %776, %764 : vector<2x16x64xf32>
    %778 = vector.shape_cast %770 : vector<2x64xf32> to vector<2x1x64xf32>
    %779 = vector.shape_cast %771 : vector<2x16xf32> to vector<2x16x1xf32>
    %780 = vector.broadcast %778 : vector<2x1x64xf32> to vector<2x16x64xf32>
    %781 = vector.broadcast %779 : vector<2x16x1xf32> to vector<2x16x64xf32>
    %782 = arith.mulf %780, %781 : vector<2x16x64xf32>
    %783 = arith.addf %777, %782 : vector<2x16x64xf32>
    %784 = vector.shape_cast %772 : vector<2x16xf32> to vector<2x16x1xf32>
    %785 = vector.broadcast %784 : vector<2x16x1xf32> to vector<2x16x64xf32>
    %786 = arith.mulf %783, %785 : vector<2x16x64xf32>
    %cst_145 = arith.constant dense<0.000000e+00> : vector<2x64xf32>
    %787 = vector.multi_reduction <add>, %786, %cst_145 [1] : vector<2x16x64xf32> to vector<2x64xf32>
    %788 = vector.extract_strided_slice %647 {offsets = [14, 0], sizes = [2, 64], strides = [1, 1]} : vector<16x64xf32> to vector<2x64xf32>
    %789 = vector.extract_strided_slice %650 {offsets = [14, 0], sizes = [2, 64], strides = [1, 1]} : vector<16x64xf32> to vector<2x64xf32>
    %790 = vector.extract_strided_slice %648 {offsets = [14, 0], sizes = [2, 16], strides = [1, 1]} : vector<16x16xf32> to vector<2x16xf32>
    %791 = vector.extract_strided_slice %649 {offsets = [14, 0], sizes = [2, 16], strides = [1, 1]} : vector<16x16xf32> to vector<2x16xf32>
    %792 = vector.shape_cast %788 : vector<2x64xf32> to vector<2x1x64xf32>
    %793 = vector.broadcast %792 : vector<2x1x64xf32> to vector<2x16x64xf32>
    %794 = arith.mulf %793, %653 : vector<2x16x64xf32>
    %795 = math.exp %794 : vector<2x16x64xf32>
    %796 = arith.mulf %795, %783 : vector<2x16x64xf32>
    %797 = vector.shape_cast %789 : vector<2x64xf32> to vector<2x1x64xf32>
    %798 = vector.shape_cast %790 : vector<2x16xf32> to vector<2x16x1xf32>
    %799 = vector.broadcast %797 : vector<2x1x64xf32> to vector<2x16x64xf32>
    %800 = vector.broadcast %798 : vector<2x16x1xf32> to vector<2x16x64xf32>
    %801 = arith.mulf %799, %800 : vector<2x16x64xf32>
    %802 = arith.addf %796, %801 : vector<2x16x64xf32>
    %803 = vector.shape_cast %791 : vector<2x16xf32> to vector<2x16x1xf32>
    %804 = vector.broadcast %803 : vector<2x16x1xf32> to vector<2x16x64xf32>
    %805 = arith.mulf %802, %804 : vector<2x16x64xf32>
    %cst_146 = arith.constant dense<0.000000e+00> : vector<2x64xf32>
    %806 = vector.multi_reduction <add>, %805, %cst_146 [1] : vector<2x16x64xf32> to vector<2x64xf32>
    %807 = tpu.concatenate %673, %692, %711, %730, %749, %768, %787, %806 in 0 : vector<2x64xf32>, vector<2x64xf32>, vector<2x64xf32>, vector<2x64xf32>, vector<2x64xf32>, vector<2x64xf32>, vector<2x64xf32>, vector<2x64xf32> -> vector<16x64xf32>
    %808 = vector.broadcast %569 : vector<1x64xf32> to vector<16x64xf32>
    %809 = arith.mulf %628, %808 : vector<16x64xf32>
    %810 = arith.addf %807, %809 : vector<16x64xf32>
    %811 = arith.negf %595 : vector<16x64xf32>
    %812 = math.exp %811 : vector<16x64xf32>
    %cst_147 = arith.constant 1.000000e+00 : f32
    %813 = vector.broadcast %cst_147 : f32 to vector<16x64xf32>
    %814 = arith.addf %813, %812 : vector<16x64xf32>
    %815 = arith.divf %813, %814 : vector<16x64xf32>
    %816 = arith.mulf %595, %815 : vector<16x64xf32>
    %817 = arith.mulf %810, %816 : vector<16x64xf32>
    %818 = arith.truncf %817 : vector<16x64xf32> to vector<16x64xbf16>
    %cst_148 = arith.constant dense<0.000000e+00> : vector<16x128xf32>
    %819 = tpu.matmul %818, %564, %cst_148 {dimension_numbers = #tpu.dot_dimension_numbers<[1], [0], [0], [1], [0, 0, 1, 1], [], []>} : vector<16x64xbf16>, vector<64x128xbf16>, vector<16x128xf32> -> vector<16x128xf32>
    %c2_149 = arith.constant 2 : index
    %c0_150 = arith.constant 0 : index
    %c0_151 = arith.constant 0 : index
    %820 = vector.load %arg10[%c2_149, %c0_150, %c0_151] : memref<4x16x128xf32, #tpu.memory_space<vmem>>, vector<1x16x128xf32>
    %821 = vector.shape_cast %820 : vector<1x16x128xf32> to vector<16x128xf32>
    %822 = vector.shape_cast %819 : vector<16x128xf32> to vector<1x16x128xf32>
    tpu.vector_store %arg10[%c2_149, %c0_150, %c0_151], %822 {strides = array<i32>} : memref<4x16x128xf32, #tpu.memory_space<vmem>>, vector<1x16x128xf32>,
    %c3 = arith.constant 3 : index
    %c0_152 = arith.constant 0 : index
    %c0_153 = arith.constant 0 : index
    %823 = vector.load %arg1[%c3, %c0_152, %c0_153] : memref<4x16x32xf32, #tpu.memory_space<vmem>>, vector<1x16x32xf32>
    %824 = vector.shape_cast %823 : vector<1x16x32xf32> to vector<16x32xf32>
    %c3_154 = arith.constant 3 : index
    %c0_155 = arith.constant 0 : index
    %c0_156 = arith.constant 0 : index
    %825 = vector.load %arg3[%c3_154, %c0_155, %c0_156] : memref<4x2x32xf32, #tpu.memory_space<vmem>>, vector<1x2x32xf32>
    %826 = vector.shape_cast %825 : vector<1x2x32xf32> to vector<2x32xf32>
    %c3_157 = arith.constant 3 : index
    %c0_158 = arith.constant 0 : index
    %c0_159 = arith.constant 0 : index
    %827 = vector.load %arg4[%c3_157, %c0_158, %c0_159] : memref<4x32x128xbf16, #tpu.memory_space<vmem>>, vector<1x32x128xbf16>
    %828 = vector.shape_cast %827 : vector<1x32x128xbf16> to vector<32x128xbf16>
    %c3_160 = arith.constant 3 : index
    %c0_161 = arith.constant 0 : index
    %c0_162 = arith.constant 0 : index
    %829 = vector.load %arg5[%c3_160, %c0_161, %c0_162] : memref<4x4x64xf32, #tpu.memory_space<vmem>>, vector<1x4x64xf32>
    %830 = vector.shape_cast %829 : vector<1x4x64xf32> to vector<4x64xf32>
    %c3_163 = arith.constant 3 : index
    %c0_164 = arith.constant 0 : index
    %c0_165 = arith.constant 0 : index
    %831 = vector.load %arg6[%c3_163, %c0_164, %c0_165] : memref<4x3x64xf32, #tpu.memory_space<vmem>>, vector<1x3x64xf32>
    %832 = vector.shape_cast %831 : vector<1x3x64xf32> to vector<3x64xf32>
    %c3_166 = arith.constant 3 : index
    %c0_167 = arith.constant 0 : index
    %c0_168 = arith.constant 0 : index
    %833 = vector.load %arg7[%c3_166, %c0_167, %c0_168] : memref<4x64x96xbf16, #tpu.memory_space<vmem>>, vector<1x64x96xbf16>
    %834 = vector.shape_cast %833 : vector<1x64x96xbf16> to vector<64x96xbf16>
    %c3_169 = arith.constant 3 : index
    %c0_170 = arith.constant 0 : index
    %c0_171 = arith.constant 0 : index
    %835 = vector.load %arg8[%c3_169, %c0_170, %c0_171] : memref<4x16x64xf32, #tpu.memory_space<vmem>>, vector<1x16x64xf32>
    %836 = vector.shape_cast %835 : vector<1x16x64xf32> to vector<16x64xf32>
    %c3_172 = arith.constant 3 : index
    %c0_173 = arith.constant 0 : index
    %c0_174 = arith.constant 0 : index
    %837 = vector.load %arg9[%c3_172, %c0_173, %c0_174] : memref<4x64x128xbf16, #tpu.memory_space<vmem>>, vector<1x64x128xbf16>
    %838 = vector.shape_cast %837 : vector<1x64x128xbf16> to vector<64x128xbf16>
    %839 = vector.extract_strided_slice %826 {offsets = [0, 0], sizes = [1, 32], strides = [1, 1]} : vector<2x32xf32> to vector<1x32xf32>
    %840 = vector.extract_strided_slice %826 {offsets = [1, 0], sizes = [1, 32], strides = [1, 1]} : vector<2x32xf32> to vector<1x32xf32>
    %841 = vector.extract_strided_slice %832 {offsets = [0, 0], sizes = [1, 64], strides = [1, 1]} : vector<3x64xf32> to vector<1x64xf32>
    %842 = vector.extract_strided_slice %832 {offsets = [1, 0], sizes = [1, 64], strides = [1, 1]} : vector<3x64xf32> to vector<1x64xf32>
    %843 = vector.extract_strided_slice %832 {offsets = [2, 0], sizes = [1, 64], strides = [1, 1]} : vector<3x64xf32> to vector<1x64xf32>
    %cst_175 = arith.constant dense<0.000000e+00> : vector<16xf32>
    %844 = vector.multi_reduction <add>, %824, %cst_175 [1] : vector<16x32xf32> to vector<16xf32>
    %845 = vector.shape_cast %844 : vector<16xf32> to vector<16x1xf32>
    %cst_176 = arith.constant 3.200000e+01 : f32
    %846 = vector.broadcast %cst_176 : f32 to vector<16x1xf32>
    %847 = arith.divf %845, %846 : vector<16x1xf32>
    %848 = vector.broadcast %847 : vector<16x1xf32> to vector<16x32xf32>
    %849 = arith.subf %824, %848 : vector<16x32xf32>
    %850 = arith.mulf %849, %849 : vector<16x32xf32>
    %cst_177 = arith.constant dense<0.000000e+00> : vector<16xf32>
    %851 = vector.multi_reduction <add>, %850, %cst_177 [1] : vector<16x32xf32> to vector<16xf32>
    %852 = vector.shape_cast %851 : vector<16xf32> to vector<16x1xf32>
    %cst_178 = arith.constant 3.200000e+01 : f32
    %853 = vector.broadcast %cst_178 : f32 to vector<16x1xf32>
    %854 = arith.divf %852, %853 : vector<16x1xf32>
    %855 = vector.broadcast %847 : vector<16x1xf32> to vector<16x32xf32>
    %856 = arith.subf %824, %855 : vector<16x32xf32>
    %cst_179 = arith.constant 9.99999974E-6 : f32
    %857 = vector.broadcast %cst_179 : f32 to vector<16x1xf32>
    %858 = arith.addf %854, %857 : vector<16x1xf32>
    %859 = math.rsqrt %858 : vector<16x1xf32>
    %860 = vector.broadcast %859 : vector<16x1xf32> to vector<16x32xf32>
    %861 = arith.mulf %856, %860 : vector<16x32xf32>
    %862 = vector.broadcast %839 : vector<1x32xf32> to vector<16x32xf32>
    %863 = arith.mulf %861, %862 : vector<16x32xf32>
    %864 = vector.broadcast %840 : vector<1x32xf32> to vector<16x32xf32>
    %865 = arith.addf %863, %864 : vector<16x32xf32>
    %866 = arith.truncf %865 : vector<16x32xf32> to vector<16x32xbf16>
    %cst_180 = arith.constant dense<0.000000e+00> : vector<16x128xf32>
    %867 = tpu.matmul %866, %828, %cst_180 {dimension_numbers = #tpu.dot_dimension_numbers<[1], [0], [0], [1], [0, 0, 1, 1], [], []>} : vector<16x32xbf16>, vector<32x128xbf16>, vector<16x128xf32> -> vector<16x128xf32>
    %868 = vector.extract_strided_slice %867 {offsets = [0, 0], sizes = [16, 64], strides = [1, 1]} : vector<16x128xf32> to vector<16x64xf32>
    %869 = vector.extract_strided_slice %867 {offsets = [0, 64], sizes = [16, 64], strides = [1, 1]} : vector<16x128xf32> to vector<16x64xf32>
    %870 = arith.truncf %868 : vector<16x64xf32> to vector<16x64xbf16>
    %871 = vector.extract_strided_slice %830 {offsets = [3, 0], sizes = [1, 64], strides = [1, 1]} : vector<4x64xf32> to vector<1x64xf32>
    %872 = vector.broadcast %871 : vector<1x64xf32> to vector<16x64xf32>
    %873 = arith.mulf %868, %872 : vector<16x64xf32>
    %874 = vector.broadcast %841 : vector<1x64xf32> to vector<16x64xf32>
    %875 = arith.addf %873, %874 : vector<16x64xf32>
    %876 = vector.extract_strided_slice %0 {offsets = [0, 0, 0], sizes = [1, 16, 16], strides = [1, 1, 1]} : vector<3x16x16xbf16> to vector<1x16x16xbf16>
    %877 = vector.shape_cast %876 : vector<1x16x16xbf16> to vector<16x16xbf16>
    %cst_181 = arith.constant dense<0.000000e+00> : vector<16x64xf32>
    %878 = tpu.matmul %877, %870, %cst_181 {dimension_numbers = #tpu.dot_dimension_numbers<[1], [0], [0], [1], [0, 0, 1, 1], [], []>} : vector<16x16xbf16>, vector<16x64xbf16>, vector<16x64xf32> -> vector<16x64xf32>
    %879 = vector.extract_strided_slice %830 {offsets = [0, 0], sizes = [1, 64], strides = [1, 1]} : vector<4x64xf32> to vector<1x64xf32>
    %880 = vector.broadcast %879 : vector<1x64xf32> to vector<16x64xf32>
    %881 = arith.mulf %878, %880 : vector<16x64xf32>
    %882 = arith.addf %875, %881 : vector<16x64xf32>
    %883 = vector.extract_strided_slice %0 {offsets = [1, 0, 0], sizes = [1, 16, 16], strides = [1, 1, 1]} : vector<3x16x16xbf16> to vector<1x16x16xbf16>
    %884 = vector.shape_cast %883 : vector<1x16x16xbf16> to vector<16x16xbf16>
    %cst_182 = arith.constant dense<0.000000e+00> : vector<16x64xf32>
    %885 = tpu.matmul %884, %870, %cst_182 {dimension_numbers = #tpu.dot_dimension_numbers<[1], [0], [0], [1], [0, 0, 1, 1], [], []>} : vector<16x16xbf16>, vector<16x64xbf16>, vector<16x64xf32> -> vector<16x64xf32>
    %886 = vector.extract_strided_slice %830 {offsets = [1, 0], sizes = [1, 64], strides = [1, 1]} : vector<4x64xf32> to vector<1x64xf32>
    %887 = vector.broadcast %886 : vector<1x64xf32> to vector<16x64xf32>
    %888 = arith.mulf %885, %887 : vector<16x64xf32>
    %889 = arith.addf %882, %888 : vector<16x64xf32>
    %890 = vector.extract_strided_slice %0 {offsets = [2, 0, 0], sizes = [1, 16, 16], strides = [1, 1, 1]} : vector<3x16x16xbf16> to vector<1x16x16xbf16>
    %891 = vector.shape_cast %890 : vector<1x16x16xbf16> to vector<16x16xbf16>
    %cst_183 = arith.constant dense<0.000000e+00> : vector<16x64xf32>
    %892 = tpu.matmul %891, %870, %cst_183 {dimension_numbers = #tpu.dot_dimension_numbers<[1], [0], [0], [1], [0, 0, 1, 1], [], []>} : vector<16x16xbf16>, vector<16x64xbf16>, vector<16x64xf32> -> vector<16x64xf32>
    %893 = vector.extract_strided_slice %830 {offsets = [2, 0], sizes = [1, 64], strides = [1, 1]} : vector<4x64xf32> to vector<1x64xf32>
    %894 = vector.broadcast %893 : vector<1x64xf32> to vector<16x64xf32>
    %895 = arith.mulf %892, %894 : vector<16x64xf32>
    %896 = arith.addf %889, %895 : vector<16x64xf32>
    %897 = arith.negf %896 : vector<16x64xf32>
    %898 = math.exp %897 : vector<16x64xf32>
    %cst_184 = arith.constant 1.000000e+00 : f32
    %899 = vector.broadcast %cst_184 : f32 to vector<16x64xf32>
    %900 = arith.addf %899, %898 : vector<16x64xf32>
    %901 = arith.divf %899, %900 : vector<16x64xf32>
    %902 = arith.mulf %896, %901 : vector<16x64xf32>
    %903 = arith.truncf %902 : vector<16x64xf32> to vector<16x64xbf16>
    %cst_185 = arith.constant dense<0.000000e+00> : vector<16x96xf32>
    %904 = tpu.matmul %903, %834, %cst_185 {dimension_numbers = #tpu.dot_dimension_numbers<[1], [0], [0], [1], [0, 0, 1, 1], [], []>} : vector<16x64xbf16>, vector<64x96xbf16>, vector<16x96xf32> -> vector<16x96xf32>
    %905 = vector.extract_strided_slice %904 {offsets = [0, 0], sizes = [16, 64], strides = [1, 1]} : vector<16x96xf32> to vector<16x64xf32>
    %906 = vector.broadcast %842 : vector<1x64xf32> to vector<16x64xf32>
    %907 = arith.addf %905, %906 : vector<16x64xf32>
    %cst_186 = arith.constant 0.000000e+00 : f32
    %908 = vector.broadcast %cst_186 : f32 to vector<16x64xf32>
    %909 = arith.maximumf %907, %908 : vector<16x64xf32>
    %910 = vector.broadcast %cst_186 : f32 to vector<16x64xf32>
    %911 = arith.subf %907, %910 : vector<16x64xf32>
    %912 = arith.cmpf one, %911, %911 : vector<16x64xf32>
    %913 = vector.broadcast %cst_186 : f32 to vector<16x64xf32>
    %914 = arith.addf %907, %913 : vector<16x64xf32>
    %915 = math.absf %911 : vector<16x64xf32>
    %cst_187 = arith.constant 0.000000e+00 : f32
    %916 = vector.broadcast %cst_187 : f32 to vector<16x64xf32>
    %917 = arith.subf %916, %915 : vector<16x64xf32>
    %918 = math.exp %917 : vector<16x64xf32>
    %919 = math.log1p %918 : vector<16x64xf32>
    %920 = arith.addf %909, %919 : vector<16x64xf32>
    %921 = arith.select %912, %914, %920 : vector<16x64xi1>, vector<16x64xf32>
    %922 = vector.extract_strided_slice %904 {offsets = [0, 64], sizes = [16, 16], strides = [1, 1]} : vector<16x96xf32> to vector<16x16xf32>
    %923 = vector.extract_strided_slice %904 {offsets = [0, 80], sizes = [16, 16], strides = [1, 1]} : vector<16x96xf32> to vector<16x16xf32>
    %924 = arith.mulf %921, %902 : vector<16x64xf32>
    %925 = vector.shape_cast %836 : vector<16x64xf32> to vector<1x16x64xf32>
    %926 = vector.shape_cast %925 : vector<1x16x64xf32> to vector<1x16x64xf32>
    %927 = vector.broadcast %926 : vector<1x16x64xf32> to vector<2x16x64xf32>
    %cst_188 = arith.constant 0.000000e+00 : f32
    %928 = vector.broadcast %cst_188 : f32 to vector<2x16x64xf32>
    %929 = vector.extract_strided_slice %921 {offsets = [0, 0], sizes = [2, 64], strides = [1, 1]} : vector<16x64xf32> to vector<2x64xf32>
    %930 = vector.extract_strided_slice %924 {offsets = [0, 0], sizes = [2, 64], strides = [1, 1]} : vector<16x64xf32> to vector<2x64xf32>
    %931 = vector.extract_strided_slice %922 {offsets = [0, 0], sizes = [2, 16], strides = [1, 1]} : vector<16x16xf32> to vector<2x16xf32>
    %932 = vector.extract_strided_slice %923 {offsets = [0, 0], sizes = [2, 16], strides = [1, 1]} : vector<16x16xf32> to vector<2x16xf32>
    %933 = vector.shape_cast %929 : vector<2x64xf32> to vector<2x1x64xf32>
    %934 = vector.broadcast %933 : vector<2x1x64xf32> to vector<2x16x64xf32>
    %935 = arith.mulf %934, %927 : vector<2x16x64xf32>
    %936 = math.exp %935 : vector<2x16x64xf32>
    %937 = arith.mulf %936, %928 : vector<2x16x64xf32>
    %938 = vector.shape_cast %930 : vector<2x64xf32> to vector<2x1x64xf32>
    %939 = vector.shape_cast %931 : vector<2x16xf32> to vector<2x16x1xf32>
    %940 = vector.broadcast %938 : vector<2x1x64xf32> to vector<2x16x64xf32>
    %941 = vector.broadcast %939 : vector<2x16x1xf32> to vector<2x16x64xf32>
    %942 = arith.mulf %940, %941 : vector<2x16x64xf32>
    %943 = arith.addf %937, %942 : vector<2x16x64xf32>
    %944 = vector.shape_cast %932 : vector<2x16xf32> to vector<2x16x1xf32>
    %945 = vector.broadcast %944 : vector<2x16x1xf32> to vector<2x16x64xf32>
    %946 = arith.mulf %943, %945 : vector<2x16x64xf32>
    %cst_189 = arith.constant dense<0.000000e+00> : vector<2x64xf32>
    %947 = vector.multi_reduction <add>, %946, %cst_189 [1] : vector<2x16x64xf32> to vector<2x64xf32>
    %948 = vector.extract_strided_slice %921 {offsets = [2, 0], sizes = [2, 64], strides = [1, 1]} : vector<16x64xf32> to vector<2x64xf32>
    %949 = vector.extract_strided_slice %924 {offsets = [2, 0], sizes = [2, 64], strides = [1, 1]} : vector<16x64xf32> to vector<2x64xf32>
    %950 = vector.extract_strided_slice %922 {offsets = [2, 0], sizes = [2, 16], strides = [1, 1]} : vector<16x16xf32> to vector<2x16xf32>
    %951 = vector.extract_strided_slice %923 {offsets = [2, 0], sizes = [2, 16], strides = [1, 1]} : vector<16x16xf32> to vector<2x16xf32>
    %952 = vector.shape_cast %948 : vector<2x64xf32> to vector<2x1x64xf32>
    %953 = vector.broadcast %952 : vector<2x1x64xf32> to vector<2x16x64xf32>
    %954 = arith.mulf %953, %927 : vector<2x16x64xf32>
    %955 = math.exp %954 : vector<2x16x64xf32>
    %956 = arith.mulf %955, %943 : vector<2x16x64xf32>
    %957 = vector.shape_cast %949 : vector<2x64xf32> to vector<2x1x64xf32>
    %958 = vector.shape_cast %950 : vector<2x16xf32> to vector<2x16x1xf32>
    %959 = vector.broadcast %957 : vector<2x1x64xf32> to vector<2x16x64xf32>
    %960 = vector.broadcast %958 : vector<2x16x1xf32> to vector<2x16x64xf32>
    %961 = arith.mulf %959, %960 : vector<2x16x64xf32>
    %962 = arith.addf %956, %961 : vector<2x16x64xf32>
    %963 = vector.shape_cast %951 : vector<2x16xf32> to vector<2x16x1xf32>
    %964 = vector.broadcast %963 : vector<2x16x1xf32> to vector<2x16x64xf32>
    %965 = arith.mulf %962, %964 : vector<2x16x64xf32>
    %cst_190 = arith.constant dense<0.000000e+00> : vector<2x64xf32>
    %966 = vector.multi_reduction <add>, %965, %cst_190 [1] : vector<2x16x64xf32> to vector<2x64xf32>
    %967 = vector.extract_strided_slice %921 {offsets = [4, 0], sizes = [2, 64], strides = [1, 1]} : vector<16x64xf32> to vector<2x64xf32>
    %968 = vector.extract_strided_slice %924 {offsets = [4, 0], sizes = [2, 64], strides = [1, 1]} : vector<16x64xf32> to vector<2x64xf32>
    %969 = vector.extract_strided_slice %922 {offsets = [4, 0], sizes = [2, 16], strides = [1, 1]} : vector<16x16xf32> to vector<2x16xf32>
    %970 = vector.extract_strided_slice %923 {offsets = [4, 0], sizes = [2, 16], strides = [1, 1]} : vector<16x16xf32> to vector<2x16xf32>
    %971 = vector.shape_cast %967 : vector<2x64xf32> to vector<2x1x64xf32>
    %972 = vector.broadcast %971 : vector<2x1x64xf32> to vector<2x16x64xf32>
    %973 = arith.mulf %972, %927 : vector<2x16x64xf32>
    %974 = math.exp %973 : vector<2x16x64xf32>
    %975 = arith.mulf %974, %962 : vector<2x16x64xf32>
    %976 = vector.shape_cast %968 : vector<2x64xf32> to vector<2x1x64xf32>
    %977 = vector.shape_cast %969 : vector<2x16xf32> to vector<2x16x1xf32>
    %978 = vector.broadcast %976 : vector<2x1x64xf32> to vector<2x16x64xf32>
    %979 = vector.broadcast %977 : vector<2x16x1xf32> to vector<2x16x64xf32>
    %980 = arith.mulf %978, %979 : vector<2x16x64xf32>
    %981 = arith.addf %975, %980 : vector<2x16x64xf32>
    %982 = vector.shape_cast %970 : vector<2x16xf32> to vector<2x16x1xf32>
    %983 = vector.broadcast %982 : vector<2x16x1xf32> to vector<2x16x64xf32>
    %984 = arith.mulf %981, %983 : vector<2x16x64xf32>
    %cst_191 = arith.constant dense<0.000000e+00> : vector<2x64xf32>
    %985 = vector.multi_reduction <add>, %984, %cst_191 [1] : vector<2x16x64xf32> to vector<2x64xf32>
    %986 = vector.extract_strided_slice %921 {offsets = [6, 0], sizes = [2, 64], strides = [1, 1]} : vector<16x64xf32> to vector<2x64xf32>
    %987 = vector.extract_strided_slice %924 {offsets = [6, 0], sizes = [2, 64], strides = [1, 1]} : vector<16x64xf32> to vector<2x64xf32>
    %988 = vector.extract_strided_slice %922 {offsets = [6, 0], sizes = [2, 16], strides = [1, 1]} : vector<16x16xf32> to vector<2x16xf32>
    %989 = vector.extract_strided_slice %923 {offsets = [6, 0], sizes = [2, 16], strides = [1, 1]} : vector<16x16xf32> to vector<2x16xf32>
    %990 = vector.shape_cast %986 : vector<2x64xf32> to vector<2x1x64xf32>
    %991 = vector.broadcast %990 : vector<2x1x64xf32> to vector<2x16x64xf32>
    %992 = arith.mulf %991, %927 : vector<2x16x64xf32>
    %993 = math.exp %992 : vector<2x16x64xf32>
    %994 = arith.mulf %993, %981 : vector<2x16x64xf32>
    %995 = vector.shape_cast %987 : vector<2x64xf32> to vector<2x1x64xf32>
    %996 = vector.shape_cast %988 : vector<2x16xf32> to vector<2x16x1xf32>
    %997 = vector.broadcast %995 : vector<2x1x64xf32> to vector<2x16x64xf32>
    %998 = vector.broadcast %996 : vector<2x16x1xf32> to vector<2x16x64xf32>
    %999 = arith.mulf %997, %998 : vector<2x16x64xf32>
    %1000 = arith.addf %994, %999 : vector<2x16x64xf32>
    %1001 = vector.shape_cast %989 : vector<2x16xf32> to vector<2x16x1xf32>
    %1002 = vector.broadcast %1001 : vector<2x16x1xf32> to vector<2x16x64xf32>
    %1003 = arith.mulf %1000, %1002 : vector<2x16x64xf32>
    %cst_192 = arith.constant dense<0.000000e+00> : vector<2x64xf32>
    %1004 = vector.multi_reduction <add>, %1003, %cst_192 [1] : vector<2x16x64xf32> to vector<2x64xf32>
    %1005 = vector.extract_strided_slice %921 {offsets = [8, 0], sizes = [2, 64], strides = [1, 1]} : vector<16x64xf32> to vector<2x64xf32>
    %1006 = vector.extract_strided_slice %924 {offsets = [8, 0], sizes = [2, 64], strides = [1, 1]} : vector<16x64xf32> to vector<2x64xf32>
    %1007 = vector.extract_strided_slice %922 {offsets = [8, 0], sizes = [2, 16], strides = [1, 1]} : vector<16x16xf32> to vector<2x16xf32>
    %1008 = vector.extract_strided_slice %923 {offsets = [8, 0], sizes = [2, 16], strides = [1, 1]} : vector<16x16xf32> to vector<2x16xf32>
    %1009 = vector.shape_cast %1005 : vector<2x64xf32> to vector<2x1x64xf32>
    %1010 = vector.broadcast %1009 : vector<2x1x64xf32> to vector<2x16x64xf32>
    %1011 = arith.mulf %1010, %927 : vector<2x16x64xf32>
    %1012 = math.exp %1011 : vector<2x16x64xf32>
    %1013 = arith.mulf %1012, %1000 : vector<2x16x64xf32>
    %1014 = vector.shape_cast %1006 : vector<2x64xf32> to vector<2x1x64xf32>
    %1015 = vector.shape_cast %1007 : vector<2x16xf32> to vector<2x16x1xf32>
    %1016 = vector.broadcast %1014 : vector<2x1x64xf32> to vector<2x16x64xf32>
    %1017 = vector.broadcast %1015 : vector<2x16x1xf32> to vector<2x16x64xf32>
    %1018 = arith.mulf %1016, %1017 : vector<2x16x64xf32>
    %1019 = arith.addf %1013, %1018 : vector<2x16x64xf32>
    %1020 = vector.shape_cast %1008 : vector<2x16xf32> to vector<2x16x1xf32>
    %1021 = vector.broadcast %1020 : vector<2x16x1xf32> to vector<2x16x64xf32>
    %1022 = arith.mulf %1019, %1021 : vector<2x16x64xf32>
    %cst_193 = arith.constant dense<0.000000e+00> : vector<2x64xf32>
    %1023 = vector.multi_reduction <add>, %1022, %cst_193 [1] : vector<2x16x64xf32> to vector<2x64xf32>
    %1024 = vector.extract_strided_slice %921 {offsets = [10, 0], sizes = [2, 64], strides = [1, 1]} : vector<16x64xf32> to vector<2x64xf32>
    %1025 = vector.extract_strided_slice %924 {offsets = [10, 0], sizes = [2, 64], strides = [1, 1]} : vector<16x64xf32> to vector<2x64xf32>
    %1026 = vector.extract_strided_slice %922 {offsets = [10, 0], sizes = [2, 16], strides = [1, 1]} : vector<16x16xf32> to vector<2x16xf32>
    %1027 = vector.extract_strided_slice %923 {offsets = [10, 0], sizes = [2, 16], strides = [1, 1]} : vector<16x16xf32> to vector<2x16xf32>
    %1028 = vector.shape_cast %1024 : vector<2x64xf32> to vector<2x1x64xf32>
    %1029 = vector.broadcast %1028 : vector<2x1x64xf32> to vector<2x16x64xf32>
    %1030 = arith.mulf %1029, %927 : vector<2x16x64xf32>
    %1031 = math.exp %1030 : vector<2x16x64xf32>
    %1032 = arith.mulf %1031, %1019 : vector<2x16x64xf32>
    %1033 = vector.shape_cast %1025 : vector<2x64xf32> to vector<2x1x64xf32>
    %1034 = vector.shape_cast %1026 : vector<2x16xf32> to vector<2x16x1xf32>
    %1035 = vector.broadcast %1033 : vector<2x1x64xf32> to vector<2x16x64xf32>
    %1036 = vector.broadcast %1034 : vector<2x16x1xf32> to vector<2x16x64xf32>
    %1037 = arith.mulf %1035, %1036 : vector<2x16x64xf32>
    %1038 = arith.addf %1032, %1037 : vector<2x16x64xf32>
    %1039 = vector.shape_cast %1027 : vector<2x16xf32> to vector<2x16x1xf32>
    %1040 = vector.broadcast %1039 : vector<2x16x1xf32> to vector<2x16x64xf32>
    %1041 = arith.mulf %1038, %1040 : vector<2x16x64xf32>
    %cst_194 = arith.constant dense<0.000000e+00> : vector<2x64xf32>
    %1042 = vector.multi_reduction <add>, %1041, %cst_194 [1] : vector<2x16x64xf32> to vector<2x64xf32>
    %1043 = vector.extract_strided_slice %921 {offsets = [12, 0], sizes = [2, 64], strides = [1, 1]} : vector<16x64xf32> to vector<2x64xf32>
    %1044 = vector.extract_strided_slice %924 {offsets = [12, 0], sizes = [2, 64], strides = [1, 1]} : vector<16x64xf32> to vector<2x64xf32>
    %1045 = vector.extract_strided_slice %922 {offsets = [12, 0], sizes = [2, 16], strides = [1, 1]} : vector<16x16xf32> to vector<2x16xf32>
    %1046 = vector.extract_strided_slice %923 {offsets = [12, 0], sizes = [2, 16], strides = [1, 1]} : vector<16x16xf32> to vector<2x16xf32>
    %1047 = vector.shape_cast %1043 : vector<2x64xf32> to vector<2x1x64xf32>
    %1048 = vector.broadcast %1047 : vector<2x1x64xf32> to vector<2x16x64xf32>
    %1049 = arith.mulf %1048, %927 : vector<2x16x64xf32>
    %1050 = math.exp %1049 : vector<2x16x64xf32>
    %1051 = arith.mulf %1050, %1038 : vector<2x16x64xf32>
    %1052 = vector.shape_cast %1044 : vector<2x64xf32> to vector<2x1x64xf32>
    %1053 = vector.shape_cast %1045 : vector<2x16xf32> to vector<2x16x1xf32>
    %1054 = vector.broadcast %1052 : vector<2x1x64xf32> to vector<2x16x64xf32>
    %1055 = vector.broadcast %1053 : vector<2x16x1xf32> to vector<2x16x64xf32>
    %1056 = arith.mulf %1054, %1055 : vector<2x16x64xf32>
    %1057 = arith.addf %1051, %1056 : vector<2x16x64xf32>
    %1058 = vector.shape_cast %1046 : vector<2x16xf32> to vector<2x16x1xf32>
    %1059 = vector.broadcast %1058 : vector<2x16x1xf32> to vector<2x16x64xf32>
    %1060 = arith.mulf %1057, %1059 : vector<2x16x64xf32>
    %cst_195 = arith.constant dense<0.000000e+00> : vector<2x64xf32>
    %1061 = vector.multi_reduction <add>, %1060, %cst_195 [1] : vector<2x16x64xf32> to vector<2x64xf32>
    %1062 = vector.extract_strided_slice %921 {offsets = [14, 0], sizes = [2, 64], strides = [1, 1]} : vector<16x64xf32> to vector<2x64xf32>
    %1063 = vector.extract_strided_slice %924 {offsets = [14, 0], sizes = [2, 64], strides = [1, 1]} : vector<16x64xf32> to vector<2x64xf32>
    %1064 = vector.extract_strided_slice %922 {offsets = [14, 0], sizes = [2, 16], strides = [1, 1]} : vector<16x16xf32> to vector<2x16xf32>
    %1065 = vector.extract_strided_slice %923 {offsets = [14, 0], sizes = [2, 16], strides = [1, 1]} : vector<16x16xf32> to vector<2x16xf32>
    %1066 = vector.shape_cast %1062 : vector<2x64xf32> to vector<2x1x64xf32>
    %1067 = vector.broadcast %1066 : vector<2x1x64xf32> to vector<2x16x64xf32>
    %1068 = arith.mulf %1067, %927 : vector<2x16x64xf32>
    %1069 = math.exp %1068 : vector<2x16x64xf32>
    %1070 = arith.mulf %1069, %1057 : vector<2x16x64xf32>
    %1071 = vector.shape_cast %1063 : vector<2x64xf32> to vector<2x1x64xf32>
    %1072 = vector.shape_cast %1064 : vector<2x16xf32> to vector<2x16x1xf32>
    %1073 = vector.broadcast %1071 : vector<2x1x64xf32> to vector<2x16x64xf32>
    %1074 = vector.broadcast %1072 : vector<2x16x1xf32> to vector<2x16x64xf32>
    %1075 = arith.mulf %1073, %1074 : vector<2x16x64xf32>
    %1076 = arith.addf %1070, %1075 : vector<2x16x64xf32>
    %1077 = vector.shape_cast %1065 : vector<2x16xf32> to vector<2x16x1xf32>
    %1078 = vector.broadcast %1077 : vector<2x16x1xf32> to vector<2x16x64xf32>
    %1079 = arith.mulf %1076, %1078 : vector<2x16x64xf32>
    %cst_196 = arith.constant dense<0.000000e+00> : vector<2x64xf32>
    %1080 = vector.multi_reduction <add>, %1079, %cst_196 [1] : vector<2x16x64xf32> to vector<2x64xf32>
    %1081 = tpu.concatenate %947, %966, %985, %1004, %1023, %1042, %1061, %1080 in 0 : vector<2x64xf32>, vector<2x64xf32>, vector<2x64xf32>, vector<2x64xf32>, vector<2x64xf32>, vector<2x64xf32>, vector<2x64xf32>, vector<2x64xf32> -> vector<16x64xf32>
    %1082 = vector.broadcast %843 : vector<1x64xf32> to vector<16x64xf32>
    %1083 = arith.mulf %902, %1082 : vector<16x64xf32>
    %1084 = arith.addf %1081, %1083 : vector<16x64xf32>
    %1085 = arith.negf %869 : vector<16x64xf32>
    %1086 = math.exp %1085 : vector<16x64xf32>
    %cst_197 = arith.constant 1.000000e+00 : f32
    %1087 = vector.broadcast %cst_197 : f32 to vector<16x64xf32>
    %1088 = arith.addf %1087, %1086 : vector<16x64xf32>
    %1089 = arith.divf %1087, %1088 : vector<16x64xf32>
    %1090 = arith.mulf %869, %1089 : vector<16x64xf32>
    %1091 = arith.mulf %1084, %1090 : vector<16x64xf32>
    %1092 = arith.truncf %1091 : vector<16x64xf32> to vector<16x64xbf16>
    %cst_198 = arith.constant dense<0.000000e+00> : vector<16x128xf32>
    %1093 = tpu.matmul %1092, %838, %cst_198 {dimension_numbers = #tpu.dot_dimension_numbers<[1], [0], [0], [1], [0, 0, 1, 1], [], []>} : vector<16x64xbf16>, vector<64x128xbf16>, vector<16x128xf32> -> vector<16x128xf32>
    %c3_199 = arith.constant 3 : index
    %c0_200 = arith.constant 0 : index
    %c0_201 = arith.constant 0 : index
    %1094 = vector.load %arg10[%c3_199, %c0_200, %c0_201] : memref<4x16x128xf32, #tpu.memory_space<vmem>>, vector<1x16x128xf32>
    %1095 = vector.shape_cast %1094 : vector<1x16x128xf32> to vector<16x128xf32>
    %1096 = vector.shape_cast %1093 : vector<16x128xf32> to vector<1x16x128xf32>
    tpu.vector_store %arg10[%c3_199, %c0_200, %c0_201], %1096 {strides = array<i32>} : memref<4x16x128xf32, #tpu.memory_space<vmem>>, vector<1x16x128xf32>,
    return
  }
  func.func @transform_0(%arg0: i32) -> (i32, i32, i32) {
    %c0_i32 = arith.constant 0 : i32
    %c0_i32_0 = arith.constant 0 : i32
    %c0_i32_1 = arith.constant 0 : i32
    return %arg0, %c0_i32, %c0_i32_0 : i32, i32, i32
  }
  func.func @transform_1(%arg0: i32) -> (i32, i32, i32) {
    %c0_i32 = arith.constant 0 : i32
    %c0_i32_0 = arith.constant 0 : i32
    %c0_i32_1 = arith.constant 0 : i32
    %c0_i32_2 = arith.constant 0 : i32
    return %c0_i32, %c0_i32_0, %c0_i32_1 : i32, i32, i32
  }
  func.func @transform_2(%arg0: i32) -> (i32, i32, i32) {
    %c0_i32 = arith.constant 0 : i32
    %c0_i32_0 = arith.constant 0 : i32
    %c0_i32_1 = arith.constant 0 : i32
    return %arg0, %c0_i32, %c0_i32_0 : i32, i32, i32
  }
  func.func @transform_3(%arg0: i32) -> (i32, i32, i32) {
    %c0_i32 = arith.constant 0 : i32
    %c0_i32_0 = arith.constant 0 : i32
    %c0_i32_1 = arith.constant 0 : i32
    return %arg0, %c0_i32, %c0_i32_0 : i32, i32, i32
  }
  func.func @transform_4(%arg0: i32) -> (i32, i32, i32) {
    %c0_i32 = arith.constant 0 : i32
    %c0_i32_0 = arith.constant 0 : i32
    %c0_i32_1 = arith.constant 0 : i32
    return %arg0, %c0_i32, %c0_i32_0 : i32, i32, i32
  }
  func.func @transform_5(%arg0: i32) -> (i32, i32, i32) {
    %c0_i32 = arith.constant 0 : i32
    %c0_i32_0 = arith.constant 0 : i32
    %c0_i32_1 = arith.constant 0 : i32
    return %arg0, %c0_i32, %c0_i32_0 : i32, i32, i32
  }
  func.func @transform_6(%arg0: i32) -> (i32, i32, i32) {
    %c0_i32 = arith.constant 0 : i32
    %c0_i32_0 = arith.constant 0 : i32
    %c0_i32_1 = arith.constant 0 : i32
    return %arg0, %c0_i32, %c0_i32_0 : i32, i32, i32
  }
  func.func @transform_7(%arg0: i32) -> (i32, i32, i32) {
    %c0_i32 = arith.constant 0 : i32
    %c0_i32_0 = arith.constant 0 : i32
    %c0_i32_1 = arith.constant 0 : i32
    return %arg0, %c0_i32, %c0_i32_0 : i32, i32, i32
  }
  func.func @transform_8(%arg0: i32) -> (i32, i32, i32) {
    %c0_i32 = arith.constant 0 : i32
    %c0_i32_0 = arith.constant 0 : i32
    %c0_i32_1 = arith.constant 0 : i32
    return %arg0, %c0_i32, %c0_i32_0 : i32, i32, i32
  }
  func.func @transform_9(%arg0: i32) -> (i32, i32, i32) {
    %c0_i32 = arith.constant 0 : i32
    %c0_i32_0 = arith.constant 0 : i32
    %c0_i32_1 = arith.constant 0 : i32
    return %arg0, %c0_i32, %c0_i32_0 : i32, i32, i32
  }
}

</mosaic_0001>

<llo_original>
// kernel: tpu_custom_call.1
$region0: #{tpu_custom_call.1}
  #allocation0 [shape = 'u32[]', space=smem, size = 0x4, offset = 0x4, fixed_abs, tag = 'smem constant byte address 0x4 - core index']
  #allocation1 [shape = 'u32[144,128]{1,0:T(1,128)}', space=vmem, size = 0x12000, scoped, tag = 'internal scratch']
  %s0 = inlined_call_operand.hbm [shape: f32[8,16,32], index: 0, kind: input, shape index: {}]
  %s1 = inlined_call_operand.vmem [shape: bf16[3,16,16], index: 1, kind: input, shape index: {}]
  %s2 = inlined_call_operand.hbm [shape: f32[8,2,32], index: 2, kind: input, shape index: {}]
  %s3 = inlined_call_operand.hbm [shape: bf16[8,32,128], index: 3, kind: input, shape index: {}]
  %s4 = inlined_call_operand.vmem [shape: f32[8,4,64], index: 4, kind: input, shape index: {}]
  %s5 = inlined_call_operand.vmem [shape: f32[8,3,64], index: 5, kind: input, shape index: {}]
  %s6 = inlined_call_operand.hbm [shape: bf16[8,64,96], index: 6, kind: input, shape index: {}]
  %s7 = inlined_call_operand.hbm [shape: f32[8,16,64], index: 7, kind: input, shape index: {}]
  %s8 = inlined_call_operand.hbm [shape: bf16[8,64,128], index: 8, kind: input, shape index: {}]
  %s9 = inlined_call_operand.hbm [shape: f32[8,16,128], index: 9, kind: output, shape index: {}]
  %s10 = sld [smem:[#allocation0]]
  $region93: #{tpu_custom_call.1} parent=0
    _
  %s12 = ssub.s32 1, %s10
  %s13 = scalar_select 0, %s12, %s10
  $region1: #{tpu_custom_call.1} parent=0
    #allocation2 [shape = 'u8[65536]{0}', space=vmem, size = 0x10000, scoped, tag = 'input window, operand 0']
    #allocation3 [shape = 's32[2]{0}', space=sflag, size = 0x8, scoped, tag = 'scoped memory for tpu_custom_call.1']
    #allocation4 [shape = 's32[2]{0}', space=sflag, size = 0x8, scoped, tag = 'scoped memory for tpu_custom_call.1']
    #allocation5 [shape = 'u8[8192]{0}', space=vmem, size = 0x2000, scoped, tag = 'input window, operand 2']
    #allocation6 [shape = 's32[2]{0}', space=sflag, size = 0x8, scoped, tag = 'scoped memory for tpu_custom_call.1']
    #allocation7 [shape = 'u8[65536]{0}', space=vmem, size = 0x10000, scoped, tag = 'input window, operand 3']
    #allocation8 [shape = 'u8[131072]{0}', space=vmem, size = 0x20000, scoped, tag = 'input window, operand 6']
    #allocation9 [shape = 's32[2]{0}', space=sflag, size = 0x8, scoped, tag = 'scoped memory for tpu_custom_call.1']
    #allocation10 [shape = 'u8[65536]{0}', space=vmem, size = 0x10000, scoped, tag = 'input window, operand 7']
    #allocation11 [shape = 'u8[131072]{0}', space=vmem, size = 0x20000, scoped, tag = 'input window, operand 8']
    #allocation12 [shape = 's32[2]{0}', space=sflag, size = 0x8, scoped, tag = 'scoped memory for tpu_custom_call.1']
    #allocation13 [shape = 'u8[65536]{0}', space=vmem, size = 0x10000, scoped, tag = 'output window, operand 0']
    %14 = vsyncpa [#allocation3], 0
    %s15 = scalar_lea.sflag [#allocation3], 1
    %16 = vsyncpa %s15, 0
    %17 = vsyncpa [#allocation6], 0
    %s18 = scalar_lea.sflag [#allocation6], 1
    %19 = vsyncpa %s18, 0
    %20 = vsyncpa [#allocation9], 0
    %s21 = scalar_lea.sflag [#allocation9], 1
    %22 = vsyncpa %s21, 0
    %23 = vsyncpa [#allocation12], 0
    %s24 = scalar_lea.sflag [#allocation12], 1
    %25 = vsyncpa %s24, 0
    %26 = vsyncpa [#allocation4], 0
    %s27 = scalar_lea.sflag [#allocation4], 1
    %28 = vsyncpa %s27, 0
    loop: start=0, step=1, limit=4
    $region2: #{tpu_custom_call.1} parent=1 // loop_pre_header
      _
    $region3: #{tpu_custom_call.1} parent=1 // loop_header
      %s30 = sphi 0, %s34
      %p31 = scmp.ge.s32.totalorder %s30, 4
      %s40 = sphi 0, %s42
      %s43 = sphi 0, %s40
      %s44 = sphi 0, %s43
      %s60 = sphi 0, %s44
      %s64 = sphi 0, %s64
      %s66 = sphi 0, %s64
      %s67 = sphi 0, %s66
      %s81 = sphi 0, %s67
      %s87 = sphi 0, %s89
      %s90 = sphi 0, %s87
      %s91 = sphi 0, %s90
      %s107 = sphi 0, %s91
      %s113 = sphi 0, %s115
      %s116 = sphi 0, %s113
      %s117 = sphi 0, %s116
      %s133 = sphi 0, %s117
      %s139 = sphi 0, %s141
      %s142 = sphi 0, %s139
      %s143 = sphi 0, %s142
      %s159 = sphi 0, %s143
      %s165 = sphi 0, %s167
      %s168 = sphi 0, %s165
      %s169 = sphi 0, %s168
      %s185 = sphi 0, %s169
      %s191 = sphi 0, %s193
      %s194 = sphi 0, %s191
      %s195 = sphi 0, %s194
      %s211 = sphi 0, %s195
      %s217 = sphi 0, %s219
      %s220 = sphi 0, %s217
      %s221 = sphi 0, %s220
      %s237 = sphi 0, %s221
      %s243 = sphi 0, %s245
      %s246 = sphi 0, %s243
      %s247 = sphi 0, %s246
      %s263 = sphi 0, %s247
      %s269 = sphi 0, %s271
      %s272 = sphi 0, %s269
      %s273 = sphi 0, %s272
      %s289 = sphi 0, %s273
    $region4: #{tpu_custom_call.1} parent=1 // loop_header_branch
      %33 = sbr.rel (%p31) target = $region8
    $region5: #{tpu_custom_call.1} parent=1 // loop_body
      %s35 = ssub.s32 %s30, 1
      %s36 = ssub.s32 %s30, 2
      %s37 = sadd.s32 %s30, 1
      %s38 = ssub.s32 %s30, %s37
      %p39 = scmp.eq.s32.totalorder %s38, 0
      %s41 = sadd.s32 %s40, 1
      %s42 = scalar_select %p39, %s40, %s41
      %p45 = pneg %p39
      %p46 = scmp.eq.s32.totalorder %s30, 1
      %p47 = por %p45, %p46
      %p48 = scmp.ne.s32.totalorder %s40, %s43
      %p49 = scmp.eq.s32.totalorder %s30, 0
      %p50 = por %p48, %p49
      %p51 = scmp.ne.s32.totalorder %s40, %s43
      %p52 = scmp.eq.s32.totalorder %s35, 1
      %p53 = por %p51, %p52
      %p54 = scmp.ne.s32.totalorder %s43, %s44
      %p55 = scmp.eq.s32.totalorder %s35, 0
      %p56 = por %p54, %p55
      %p57 = scmp.ne.s32.totalorder %s43, %s44
      %p58 = scmp.eq.s32.totalorder %s36, 1
      %p59 = por %p57, %p58
      %p61 = scmp.ne.s32.totalorder %s44, %s60
      %p62 = scmp.eq.s32.totalorder %s36, 0
      %p63 = por %p61, %p62
      %s65 = sadd.s32 %s64, 1
      %p68 = scmp.eq.s32.totalorder %s30, 1
      %p69 = scmp.ne.s32.totalorder %s64, %s66
      %p70 = scmp.eq.s32.totalorder %s30, 0
      %p71 = por %p69, %p70
      %p72 = scmp.ne.s32.totalorder %s64, %s66
      %p73 = scmp.eq.s32.totalorder %s35, 1
      %p74 = por %p72, %p73
      %p75 = scmp.ne.s32.totalorder %s66, %s67
      %p76 = scmp.eq.s32.totalorder %s35, 0
      %p77 = por %p75, %p76
      %p78 = scmp.ne.s32.totalorder %s66, %s67
      %p79 = scmp.eq.s32.totalorder %s36, 1
      %p80 = por %p78, %p79
      %p82 = scmp.ne.s32.totalorder %s67, %s81
      %p83 = scmp.eq.s32.totalorder %s36, 0
      %p84 = por %p82, %p83
      %s85 = ssub.s32 %s30, %s37
      %p86 = scmp.eq.s32.totalorder %s85, 0
      %s88 = sadd.s32 %s87, 1
      %s89 = scalar_select %p86, %s87, %s88
      %p92 = pneg %p86
      %p93 = scmp.eq.s32.totalorder %s30, 1
      %p94 = por %p92, %p93
      %p95 = scmp.ne.s32.totalorder %s87, %s90
      %p96 = scmp.eq.s32.totalorder %s30, 0
      %p97 = por %p95, %p96
      %p98 = scmp.ne.s32.totalorder %s87, %s90
      %p99 = scmp.eq.s32.totalorder %s35, 1
      %p100 = por %p98, %p99
      %p101 = scmp.ne.s32.totalorder %s90, %s91
      %p102 = scmp.eq.s32.totalorder %s35, 0
      %p103 = por %p101, %p102
      %p104 = scmp.ne.s32.totalorder %s90, %s91
      %p105 = scmp.eq.s32.totalorder %s36, 1
      %p106 = por %p104, %p105
      %p108 = scmp.ne.s32.totalorder %s91, %s107
      %p109 = scmp.eq.s32.totalorder %s36, 0
      %p110 = por %p108, %p109
      %s111 = ssub.s32 %s30, %s37
      %p112 = scmp.eq.s32.totalorder %s111, 0
      %s114 = sadd.s32 %s113, 1
      %s115 = scalar_select %p112, %s113, %s114
      %p118 = pneg %p112
      %p119 = scmp.eq.s32.totalorder %s30, 1
      %p120 = por %p118, %p119
      %p121 = scmp.ne.s32.totalorder %s113, %s116
      %p122 = scmp.eq.s32.totalorder %s30, 0
      %p123 = por %p121, %p122
      %p124 = scmp.ne.s32.totalorder %s113, %s116
      %p125 = scmp.eq.s32.totalorder %s35, 1
      %p126 = por %p124, %p125
      %p127 = scmp.ne.s32.totalorder %s116, %s117
      %p128 = scmp.eq.s32.totalorder %s35, 0
      %p129 = por %p127, %p128
      %p130 = scmp.ne.s32.totalorder %s116, %s117
      %p131 = scmp.eq.s32.totalorder %s36, 1
      %p132 = por %p130, %p131
      %p134 = scmp.ne.s32.totalorder %s117, %s133
      %p135 = scmp.eq.s32.totalorder %s36, 0
      %p136 = por %p134, %p135
      %s137 = ssub.s32 %s30, %s37
      %p138 = scmp.eq.s32.totalorder %s137, 0
      %s140 = sadd.s32 %s139, 1
      %s141 = scalar_select %p138, %s139, %s140
      %p144 = pneg %p138
      %p145 = scmp.eq.s32.totalorder %s30, 1
      %p146 = por %p144, %p145
      %p147 = scmp.ne.s32.totalorder %s139, %s142
      %p148 = scmp.eq.s32.totalorder %s30, 0
      %p149 = por %p147, %p148
      %p150 = scmp.ne.s32.totalorder %s139, %s142
      %p151 = scmp.eq.s32.totalorder %s35, 1
      %p152 = por %p150, %p151
      %p153 = scmp.ne.s32.totalorder %s142, %s143
      %p154 = scmp.eq.s32.totalorder %s35, 0
      %p155 = por %p153, %p154
      %p156 = scmp.ne.s32.totalorder %s142, %s143
      %p157 = scmp.eq.s32.totalorder %s36, 1
      %p158 = por %p156, %p157
      %p160 = scmp.ne.s32.totalorder %s143, %s159
      %p161 = scmp.eq.s32.totalorder %s36, 0
      %p162 = por %p160, %p161
      %s163 = ssub.s32 %s30, %s37
      %p164 = scmp.eq.s32.totalorder %s163, 0
      %s166 = sadd.s32 %s165, 1
      %s167 = scalar_select %p164, %s165, %s166
      %p170 = pneg %p164
      %p171 = scmp.eq.s32.totalorder %s30, 1
      %p172 = por %p170, %p171
      %p173 = scmp.ne.s32.totalorder %s165, %s168
      %p174 = scmp.eq.s32.totalorder %s30, 0
      %p175 = por %p173, %p174
      %p176 = scmp.ne.s32.totalorder %s165, %s168
      %p177 = scmp.eq.s32.totalorder %s35, 1
      %p178 = por %p176, %p177
      %p179 = scmp.ne.s32.totalorder %s168, %s169
      %p180 = scmp.eq.s32.totalorder %s35, 0
      %p181 = por %p179, %p180
      %p182 = scmp.ne.s32.totalorder %s168, %s169
      %p183 = scmp.eq.s32.totalorder %s36, 1
      %p184 = por %p182, %p183
      %p186 = scmp.ne.s32.totalorder %s169, %s185
      %p187 = scmp.eq.s32.totalorder %s36, 0
      %p188 = por %p186, %p187
      %s189 = ssub.s32 %s30, %s37
      %p190 = scmp.eq.s32.totalorder %s189, 0
      %s192 = sadd.s32 %s191, 1
      %s193 = scalar_select %p190, %s191, %s192
      %p196 = pneg %p190
      %p197 = scmp.eq.s32.totalorder %s30, 1
      %p198 = por %p196, %p197
      %p199 = scmp.ne.s32.totalorder %s191, %s194
      %p200 = scmp.eq.s32.totalorder %s30, 0
      %p201 = por %p199, %p200
      %p202 = scmp.ne.s32.totalorder %s191, %s194
      %p203 = scmp.eq.s32.totalorder %s35, 1
      %p204 = por %p202, %p203
      %p205 = scmp.ne.s32.totalorder %s194, %s195
      %p206 = scmp.eq.s32.totalorder %s35, 0
      %p207 = por %p205, %p206
      %p208 = scmp.ne.s32.totalorder %s194, %s195
      %p209 = scmp.eq.s32.totalorder %s36, 1
      %p210 = por %p208, %p209
      %p212 = scmp.ne.s32.totalorder %s195, %s211
      %p213 = scmp.eq.s32.totalorder %s36, 0
      %p214 = por %p212, %p213
      %s215 = ssub.s32 %s30, %s37
      %p216 = scmp.eq.s32.totalorder %s215, 0
      %s218 = sadd.s32 %s217, 1
      %s219 = scalar_select %p216, %s217, %s218
      %p222 = pneg %p216
      %p223 = scmp.eq.s32.totalorder %s30, 1
      %p224 = por %p222, %p223
      %p225 = scmp.ne.s32.totalorder %s217, %s220
      %p226 = scmp.eq.s32.totalorder %s30, 0
      %p227 = por %p225, %p226
      %p228 = scmp.ne.s32.totalorder %s217, %s220
      %p229 = scmp.eq.s32.totalorder %s35, 1
      %p230 = por %p228, %p229
      %p231 = scmp.ne.s32.totalorder %s220, %s221
      %p232 = scmp.eq.s32.totalorder %s35, 0
      %p233 = por %p231, %p232
      %p234 = scmp.ne.s32.totalorder %s220, %s221
      %p235 = scmp.eq.s32.totalorder %s36, 1
      %p236 = por %p234, %p235
      %p238 = scmp.ne.s32.totalorder %s221, %s237
      %p239 = scmp.eq.s32.totalorder %s36, 0
      %p240 = por %p238, %p239
      %s241 = ssub.s32 %s30, %s37
      %p242 = scmp.eq.s32.totalorder %s241, 0
      %s244 = sadd.s32 %s243, 1
      %s245 = scalar_select %p242, %s243, %s244
      %p248 = pneg %p242
      %p249 = scmp.eq.s32.totalorder %s30, 1
      %p250 = por %p248, %p249
      %p251 = scmp.ne.s32.totalorder %s243, %s246
      %p252 = scmp.eq.s32.totalorder %s30, 0
      %p253 = por %p251, %p252
      %p254 = scmp.ne.s32.totalorder %s243, %s246
      %p255 = scmp.eq.s32.totalorder %s35, 1
      %p256 = por %p254, %p255
      %p257 = scmp.ne.s32.totalorder %s246, %s247
      %p258 = scmp.eq.s32.totalorder %s35, 0
      %p259 = por %p257, %p258
      %p260 = scmp.ne.s32.totalorder %s246, %s247
      %p261 = scmp.eq.s32.totalorder %s36, 1
      %p262 = por %p260, %p261
      %p264 = scmp.ne.s32.totalorder %s247, %s263
      %p265 = scmp.eq.s32.totalorder %s36, 0
      %p266 = por %p264, %p265
      %s267 = ssub.s32 %s30, %s37
      %p268 = scmp.eq.s32.totalorder %s267, 0
      %s270 = sadd.s32 %s269, 1
      %s271 = scalar_select %p268, %s269, %s270
      %p274 = pneg %p268
      %p275 = scmp.eq.s32.totalorder %s30, 1
      %p276 = por %p274, %p275
      %p277 = scmp.ne.s32.totalorder %s269, %s272
      %p278 = scmp.eq.s32.totalorder %s30, 0
      %p279 = por %p277, %p278
      %p280 = scmp.ne.s32.totalorder %s269, %s272
      %p281 = scmp.eq.s32.totalorder %s35, 1
      %p282 = por %p280, %p281
      %p283 = scmp.ne.s32.totalorder %s272, %s273
      %p284 = scmp.eq.s32.totalorder %s35, 0
      %p285 = por %p283, %p284
      %p286 = scmp.ne.s32.totalorder %s272, %s273
      %p287 = scmp.eq.s32.totalorder %s36, 1
      %p288 = por %p286, %p287
      %p290 = scmp.ne.s32.totalorder %s273, %s289
      %p291 = scmp.eq.s32.totalorder %s36, 0
      %p292 = por %p290, %p291
      %p293 = scmp.le.s32.totalorder 1, %s30
      %p294 = scmp.lt.s32.totalorder %s30, 3
      %p295 = pnand %p293, %p294
      %p296 = pneg %p295
      // Predicated region
      $region9: #{tpu_custom_call.1} parent=5 // pred_check
        _
      $region10: #{tpu_custom_call.1} parent=5 // pred_check_branch
        %298 = sbr.rel (%p295) target = $region12
      $region11: #{tpu_custom_call.1} parent=5 // pred_region
        %s299 = ssub.s32 %s30, 1
        // Predicated region
        $region13: #{tpu_custom_call.1} parent=11 // pred_check
          %p300 = pneg %p77
        $region14: #{tpu_custom_call.1} parent=11 // pred_check_branch
          %302 = sbr.rel (%p300) target = $region16
        $region15: #{tpu_custom_call.1} parent=11 // pred_region
          _
        $region16: #{tpu_custom_call.1} parent=11 // pred_fallthru
          _
      $region12: #{tpu_custom_call.1} parent=5 // pred_fallthru
        _
      %p303 = scmp.lt.s32.totalorder %s30, 2
      // Predicated region
      $region17: #{tpu_custom_call.1} parent=5 // pred_check
        %p304 = pneg %p303
      $region18: #{tpu_custom_call.1} parent=5 // pred_check_branch
        %306 = sbr.rel (%p304) target = $region20
      $region19: #{tpu_custom_call.1} parent=5 // pred_region
        // Predicated region
        $region21: #{tpu_custom_call.1} parent=19 // pred_check
          %p307 = pneg %p50
        $region22: #{tpu_custom_call.1} parent=19 // pred_check_branch
          %309 = sbr.rel (%p307) target = $region24
        $region23: #{tpu_custom_call.1} parent=19 // pred_region
          %s310 = sand.u32 %s40, 1
          %s311 = scalar_lea.sflag [#allocation3], %s310
          %s312 = sand.u32 %s40, 1
          %s313 = smul.addr %s312, 64
          %s314 = scalar_lea.vmem [#allocation2], %s313
          %s315 = smul.u32 4, %s30
          %s317 = ssub.s32 1024, 1024
          %318 = vsyncadd %s311, %s317
          %s319 = smul.addr %s315, 2
          %s320 = smul.addr %s319, 128
          %s321 = scalar_lea.hbm %s0, %s320
          %s322 = sshll.u32 %s314, 4
          %s323 = int_to_ptr.vmem [resolvable:$true] %s322
          %328 = dma.hbm_to_vmem [thread:$0]  %s321, 1024, %s323, %s311, 128, 128, 8
        $region24: #{tpu_custom_call.1} parent=19 // pred_fallthru
          _
        // Predicated region
        $region25: #{tpu_custom_call.1} parent=19 // pred_check
          %p329 = pneg %p97
        $region26: #{tpu_custom_call.1} parent=19 // pred_check_branch
          %331 = sbr.rel (%p329) target = $region28
        $region27: #{tpu_custom_call.1} parent=19 // pred_region
          %s332 = sand.u32 %s30, 1
          %s333 = scalar_lea.sflag [#allocation6], %s332
          %s334 = sand.u32 %s87, 1
          %s335 = smul.addr %s334, 8
          %s336 = scalar_lea.vmem [#allocation5], %s335
          %s337 = smul.u32 4, %s30
          %s339 = ssub.s32 128, 128
          %340 = vsyncadd %s333, %s339
          %s341 = smul.addr %s337, 32
          %s342 = scalar_lea.hbm %s2, %s341
          %s343 = sshll.u32 %s336, 4
          %s344 = int_to_ptr.vmem [resolvable:$true] %s343
          %349 = dma.hbm_to_vmem [thread:$0]  %s342, 128, %s344, %s333, 32, 32, 2
        $region28: #{tpu_custom_call.1} parent=19 // pred_fallthru
          _
        // Predicated region
        $region29: #{tpu_custom_call.1} parent=19 // pred_check
          %p350 = pneg %p123
        $region30: #{tpu_custom_call.1} parent=19 // pred_check_branch
          %352 = sbr.rel (%p350) target = $region32
        $region31: #{tpu_custom_call.1} parent=19 // pred_region
          %s353 = sand.u32 %s30, 1
          %s354 = scalar_lea.sflag [#allocation6], %s353
          %s355 = sand.u32 %s113, 1
          %s356 = smul.addr %s355, 64
          %s357 = scalar_lea.vmem [#allocation7], %s356
          %s358 = smul.u32 4, %s30
          %s360 = ssub.s32 1024, 1024
          %361 = vsyncadd %s354, %s360
          %s362 = smul.addr %s358, 4
          %s363 = smul.addr %s362, 64
          %s364 = scalar_lea.hbm %s3, %s363
          %s365 = sshll.u32 %s357, 4
          %s366 = int_to_ptr.vmem [resolvable:$true] %s365
          %371 = dma.hbm_to_vmem [thread:$0]  %s364, 1024, %s366, %s354, 64, 64, 4
        $region32: #{tpu_custom_call.1} parent=19 // pred_fallthru
          _
        // Predicated region
        $region33: #{tpu_custom_call.1} parent=19 // pred_check
          %p372 = pneg %p149
        $region34: #{tpu_custom_call.1} parent=19 // pred_check_branch
          %374 = sbr.rel (%p372) target = $region36
        $region35: #{tpu_custom_call.1} parent=19 // pred_region
          %s375 = smul.u32 4, %s30
          %p376 = scmp.lt.s32.totalorder %s375, 7
          %s377 = scalar_select %p376, %s375, 7
          %s378 = smul.addr %s377, 4
          %s379 = scalar_lea.vmem %s4, %s378
          %s380 = smul.u32 4, %s30
        $region36: #{tpu_custom_call.1} parent=19 // pred_fallthru
          _
        // Predicated region
        $region37: #{tpu_custom_call.1} parent=19 // pred_check
          %p381 = pneg %p175
        $region38: #{tpu_custom_call.1} parent=19 // pred_check_branch
          %383 = sbr.rel (%p381) target = $region40
        $region39: #{tpu_custom_call.1} parent=19 // pred_region
          %s384 = smul.u32 4, %s30
          %p385 = scmp.lt.s32.totalorder %s384, 7
          %s386 = scalar_select %p385, %s384, 7
          %s387 = smul.addr %s386, 4
          %s388 = scalar_lea.vmem %s5, %s387
          %s389 = smul.u32 4, %s30
        $region40: #{tpu_custom_call.1} parent=19 // pred_fallthru
          _
        // Predicated region
        $region41: #{tpu_custom_call.1} parent=19 // pred_check
          %p390 = pneg %p201
        $region42: #{tpu_custom_call.1} parent=19 // pred_check_branch
          %392 = sbr.rel (%p390) target = $region44
        $region43: #{tpu_custom_call.1} parent=19 // pred_region
          %s393 = sand.u32 %s30, 1
          %s394 = scalar_lea.sflag [#allocation9], %s393
          %s395 = sand.u32 %s191, 1
          %s396 = smul.addr %s395, 128
          %s397 = scalar_lea.vmem [#allocation8], %s396
          %s398 = smul.u32 4, %s30
          %s400 = ssub.s32 2048, 2048
          %401 = vsyncadd %s394, %s400
          %s402 = smul.addr %s398, 8
          %s403 = smul.addr %s402, 64
          %s404 = scalar_lea.hbm %s6, %s403
          %s405 = sshll.u32 %s397, 4
          %s406 = int_to_ptr.vmem [resolvable:$true] %s405
          %411 = dma.hbm_to_vmem [thread:$0]  %s404, 2048, %s406, %s394, 64, 64, 4
        $region44: #{tpu_custom_call.1} parent=19 // pred_fallthru
          _
        // Predicated region
        $region45: #{tpu_custom_call.1} parent=19 // pred_check
          %p412 = pneg %p227
        $region46: #{tpu_custom_call.1} parent=19 // pred_check_branch
          %414 = sbr.rel (%p412) target = $region48
        $region47: #{tpu_custom_call.1} parent=19 // pred_region
          %s415 = sand.u32 %s30, 1
          %s416 = scalar_lea.sflag [#allocation9], %s415
          %s417 = sand.u32 %s217, 1
          %s418 = smul.addr %s417, 64
          %s419 = scalar_lea.vmem [#allocation10], %s418
          %s420 = smul.u32 4, %s30
          %s422 = ssub.s32 1024, 1024
          %423 = vsyncadd %s416, %s422
          %s424 = smul.addr %s420, 2
          %s425 = smul.addr %s424, 128
          %s426 = scalar_lea.hbm %s7, %s425
          %s427 = sshll.u32 %s419, 4
          %s428 = int_to_ptr.vmem [resolvable:$true] %s427
          %433 = dma.hbm_to_vmem [thread:$0]  %s426, 1024, %s428, %s416, 128, 128, 8
        $region48: #{tpu_custom_call.1} parent=19 // pred_fallthru
          _
        // Predicated region
        $region49: #{tpu_custom_call.1} parent=19 // pred_check
          %p434 = pneg %p253
        $region50: #{tpu_custom_call.1} parent=19 // pred_check_branch
          %436 = sbr.rel (%p434) target = $region52
        $region51: #{tpu_custom_call.1} parent=19 // pred_region
          %s437 = sand.u32 %s243, 1
          %s438 = scalar_lea.sflag [#allocation12], %s437
          %s439 = sand.u32 %s243, 1
          %s440 = smul.addr %s439, 128
          %s441 = scalar_lea.vmem [#allocation11], %s440
          %s442 = smul.u32 4, %s30
          %s444 = ssub.s32 2048, 2048
          %445 = vsyncadd %s438, %s444
          %s446 = smul.addr %s442, 8
          %s447 = smul.addr %s446, 64
          %s448 = scalar_lea.hbm %s8, %s447
          %s449 = sshll.u32 %s441, 4
          %s450 = int_to_ptr.vmem [resolvable:$true] %s449
          %455 = dma.hbm_to_vmem [thread:$0]  %s448, 2048, %s450, %s438, 64, 64, 4
        $region52: #{tpu_custom_call.1} parent=19 // pred_fallthru
          _
      $region20: #{tpu_custom_call.1} parent=5 // pred_fallthru
        _
      %p456 = scmp.le.s32.totalorder 1, %s30
      %p457 = scmp.lt.s32.totalorder %s30, 3
      %p458 = pnand %p456, %p457
      %p459 = pneg %p458
      // Predicated region
      $region53: #{tpu_custom_call.1} parent=5 // pred_check
        _
      $region54: #{tpu_custom_call.1} parent=5 // pred_check_branch
        %461 = sbr.rel (%p458) target = $region56
      $region55: #{tpu_custom_call.1} parent=5 // pred_region
        %s462 = ssub.s32 %s30, 1
        %s463 = sand.u32 %s43, 1
        %s464 = scalar_lea.sflag [#allocation3], %s463
        %s465 = sand.u32 %s43, 1
        %s466 = smul.addr %s465, 64
        %s467 = scalar_lea.vmem [#allocation2], %s466
        // Predicated region
        $region57: #{tpu_custom_call.1} parent=55 // pred_check
          %p468 = pneg %p56
        $region58: #{tpu_custom_call.1} parent=55 // pred_check_branch
          %470 = sbr.rel (%p468) target = $region60
        $region59: #{tpu_custom_call.1} parent=55 // pred_region
          %471 = dma.done %s464, 1024
        $region60: #{tpu_custom_call.1} parent=55 // pred_fallthru
          _
        %s472 = sand.u32 %s35, 1
        %s473 = scalar_lea.sflag [#allocation6], %s472
        %s474 = sand.u32 %s90, 1
        %s475 = smul.addr %s474, 8
        %s476 = scalar_lea.vmem [#allocation5], %s475
        // Predicated region
        $region61: #{tpu_custom_call.1} parent=55 // pred_check
          %p477 = pneg %p103
        $region62: #{tpu_custom_call.1} parent=55 // pred_check_branch
          %479 = sbr.rel (%p477) target = $region64
        $region63: #{tpu_custom_call.1} parent=55 // pred_region
          %480 = dma.done %s473, 128
        $region64: #{tpu_custom_call.1} parent=55 // pred_fallthru
          _
        %s481 = sand.u32 %s35, 1
        %s482 = scalar_lea.sflag [#allocation6], %s481
        %s483 = sand.u32 %s116, 1
        %s484 = smul.addr %s483, 64
        %s485 = scalar_lea.vmem [#allocation7], %s484
        // Predicated region
        $region65: #{tpu_custom_call.1} parent=55 // pred_check
          %p486 = pneg %p129
        $region66: #{tpu_custom_call.1} parent=55 // pred_check_branch
          %488 = sbr.rel (%p486) target = $region68
        $region67: #{tpu_custom_call.1} parent=55 // pred_region
          %489 = dma.done %s482, 1024
        $region68: #{tpu_custom_call.1} parent=55 // pred_fallthru
          _
        %s490 = sand.u32 %s35, 1
        %s491 = scalar_lea.sflag [#allocation9], %s490
        %s492 = sand.u32 %s194, 1
        %s493 = smul.addr %s492, 128
        %s494 = scalar_lea.vmem [#allocation8], %s493
        // Predicated region
        $region69: #{tpu_custom_call.1} parent=55 // pred_check
          %p495 = pneg %p207
        $region70: #{tpu_custom_call.1} parent=55 // pred_check_branch
          %497 = sbr.rel (%p495) target = $region72
        $region71: #{tpu_custom_call.1} parent=55 // pred_region
          %498 = dma.done %s491, 2048
        $region72: #{tpu_custom_call.1} parent=55 // pred_fallthru
          _
        %s499 = sand.u32 %s35, 1
        %s500 = scalar_lea.sflag [#allocation9], %s499
        %s501 = sand.u32 %s220, 1
        %s502 = smul.addr %s501, 64
        %s503 = scalar_lea.vmem [#allocation10], %s502
        // Predicated region
        $region73: #{tpu_custom_call.1} parent=55 // pred_check
          %p504 = pneg %p233
        $region74: #{tpu_custom_call.1} parent=55 // pred_check_branch
          %506 = sbr.rel (%p504) target = $region76
        $region75: #{tpu_custom_call.1} parent=55 // pred_region
          %507 = dma.done %s500, 1024
        $region76: #{tpu_custom_call.1} parent=55 // pred_fallthru
          _
        %s508 = sand.u32 %s246, 1
        %s509 = scalar_lea.sflag [#allocation12], %s508
        %s510 = sand.u32 %s246, 1
        %s511 = smul.addr %s510, 128
        %s512 = scalar_lea.vmem [#allocation11], %s511
        // Predicated region
        $region77: #{tpu_custom_call.1} parent=55 // pred_check
          %p513 = pneg %p259
        $region78: #{tpu_custom_call.1} parent=55 // pred_check_branch
          %515 = sbr.rel (%p513) target = $region80
        $region79: #{tpu_custom_call.1} parent=55 // pred_region
          %516 = dma.done %s509, 2048
        $region80: #{tpu_custom_call.1} parent=55 // pred_fallthru
          _
        %s517 = sand.u32 %s43, 1
        %s518 = scalar_lea.sflag [#allocation3], %s517
        %s519 = sand.u32 %s43, 1
        %s520 = smul.addr %s519, 64
        %s521 = scalar_lea.vmem [#allocation2], %s520
        %p522 = pneg %p56
        %p523 = pneg %p53
        %p524 = pneg %p77
        %p525 = pneg %p74
        %s526 = sand.u32 %s35, 1
        %s527 = scalar_lea.sflag [#allocation6], %s526
        %s528 = sand.u32 %s90, 1
        %s529 = smul.addr %s528, 8
        %s530 = scalar_lea.vmem [#allocation5], %s529
        %p531 = pneg %p103
        %p532 = pneg %p100
        %s533 = sand.u32 %s35, 1
        %s534 = scalar_lea.sflag [#allocation6], %s533
        %s535 = sand.u32 %s116, 1
        %s536 = smul.addr %s535, 64
        %s537 = scalar_lea.vmem [#allocation7], %s536
        %p538 = pneg %p129
        %p539 = pneg %p126
        %s540 = smul.u32 4, %s35
        %p541 = scmp.lt.s32.totalorder %s540, 7
        %s542 = scalar_select %p541, %s540, 7
        %s543 = smul.addr %s542, 4
        %s544 = scalar_lea.vmem %s4, %s543
        %p545 = pneg %p155
        %p546 = pneg %p152
        %s547 = smul.u32 4, %s35
        %p548 = scmp.lt.s32.totalorder %s547, 7
        %s549 = scalar_select %p548, %s547, 7
        %s550 = smul.addr %s549, 4
        %s551 = scalar_lea.vmem %s5, %s550
        %p552 = pneg %p181
        %p553 = pneg %p178
        %s554 = sand.u32 %s35, 1
        %s555 = scalar_lea.sflag [#allocation9], %s554
        %s556 = sand.u32 %s194, 1
        %s557 = smul.addr %s556, 128
        %s558 = scalar_lea.vmem [#allocation8], %s557
        %p559 = pneg %p207
        %p560 = pneg %p204
        %s561 = sand.u32 %s35, 1
        %s562 = scalar_lea.sflag [#allocation9], %s561
        %s563 = sand.u32 %s220, 1
        %s564 = smul.addr %s563, 64
        %s565 = scalar_lea.vmem [#allocation10], %s564
        %p566 = pneg %p233
        %p567 = pneg %p230
        %s568 = sand.u32 %s246, 1
        %s569 = scalar_lea.sflag [#allocation12], %s568
        %s570 = sand.u32 %s246, 1
        %s571 = smul.addr %s570, 128
        %s572 = scalar_lea.vmem [#allocation11], %s571
        %p573 = pneg %p259
        %p574 = pneg %p256
        %p575 = pneg %p285
        %p576 = pneg %p282
        %s577 = sand.u32 %s272, 1
        %s578 = scalar_lea.sflag [#allocation4], %s577
        %s579 = sand.u32 %s272, 1
        %s580 = smul.addr %s579, 64
        %s581 = scalar_lea.vmem [#allocation13], %s580
        %s582 = smul.u32 4, %s35
        %s583 = smul.u32 4, %s35
        %s584 = smul.u32 4, %s35
        %s585 = smul.u32 4, %s35
        %p586 = scmp.lt.s32.totalorder %s585, 7
        %s587 = scalar_select %p586, %s585, 7
        %s588 = smul.addr %s587, 4
        %s589 = scalar_lea.vmem %s4, %s588
        %s590 = smul.u32 4, %s35
        %s591 = smul.u32 4, %s35
        %p592 = scmp.lt.s32.totalorder %s591, 7
        %s593 = scalar_select %p592, %s591, 7
        %s594 = smul.addr %s593, 4
        %s595 = scalar_lea.vmem %s5, %s594
        %s596 = smul.u32 4, %s35
        %s597 = smul.u32 4, %s35
        %s598 = smul.u32 4, %s35
        %s599 = smul.u32 4, %s35
        %s600 = smul.u32 4, %s35
        %v602 = vld [vmem:[%s1] sm:$0xf]
        %v603 = vld [vmem:[%s1 + $0x4] sm:$0xf]
        %v604 = vld [vmem:[%s1 + $0x8] sm:$0xf]
        %v605 = vld [vmem:[%s1 + $0xc] sm:$0xf]
        %v606 = vld [vmem:[%s1 + $0x10] sm:$0xf]
        %v607 = vld [vmem:[%s1 + $0x14] sm:$0xf]
        %v608 = vld [vmem:[%s467] sm:$0xff]
        %v609 = vld [vmem:[%s467 + $0x8] sm:$0xff]
        %v610 = vld [vmem:[%s476] sm:$0x3]
        %v611 = vld [vmem:[%s485] sm:$0xf]
        %v612 = vld [vmem:[%s485 + $0x4] sm:$0xf]
        %v613 = vld [vmem:[%s485 + $0x8] sm:$0xf]
        %v614 = vld [vmem:[%s485 + $0xc] sm:$0xf]
        %v615 = vld [vmem:[%s589] sm:$0xf]
        %v616 = vld [vmem:[%s595] sm:$0x7]
        %v617 = vld [vmem:[%s494] sm:$0xf]
        %v618 = vld [vmem:[%s494 + $0x4] sm:$0xf]
        %v619 = vld [vmem:[%s494 + $0x8] sm:$0xf]
        %v620 = vld [vmem:[%s494 + $0xc] sm:$0xf]
        %v621 = vld [vmem:[%s494 + $0x10] sm:$0xf]
        %v622 = vld [vmem:[%s494 + $0x14] sm:$0xf]
        %v623 = vld [vmem:[%s494 + $0x18] sm:$0xf]
        %v624 = vld [vmem:[%s494 + $0x1c] sm:$0xf]
        %v625 = vld [vmem:[%s503] sm:$0xff]
        %v626 = vld [vmem:[%s503 + $0x8] sm:$0xff]
        %v627 = vld [vmem:[%s512] sm:$0xf]
        %v628 = vld [vmem:[%s512 + $0x4] sm:$0xf]
        %v629 = vld [vmem:[%s512 + $0x8] sm:$0xf]
        %v630 = vld [vmem:[%s512 + $0xc] sm:$0xf]
        %v631 = vld [vmem:[%s512 + $0x10] sm:$0xf]
        %v632 = vld [vmem:[%s512 + $0x14] sm:$0xf]
        %v633 = vld [vmem:[%s512 + $0x18] sm:$0xf]
        %v634 = vld [vmem:[%s512 + $0x1c] sm:$0xf]
        %vm635 = vcmask 261120
        %v636 = vsel %vm635, %v608, 0.0
        %637 = vadd.xlane.f32.xlu0 %v636
        %v638 = vpop.xlane.xlu0 %637
        %v639 = vsel %vm635, %v609, 0.0
        %640 = vadd.xlane.f32.xlu0 %v639
        %v641 = vpop.xlane.xlu0 %640
        %v642 = vrcp.pop 32.0
        %v643 = vmul.f32 %v638, %v642
        %v644 = vmul.f32 %v641, %v642
        %v645 = vsub.f32 %v608, %v643
        %v646 = vsub.f32 %v609, %v644
        %v647 = vmul.f32 %v645, %v645
        %v648 = vmul.f32 %v646, %v646
        %v649 = vsel %vm635, %v647, 0.0
        %650 = vadd.xlane.f32.xlu0 %v649
        %v651 = vpop.xlane.xlu0 %650
        %v652 = vsel %vm635, %v648, 0.0
        %653 = vadd.xlane.f32.xlu0 %v652
        %v654 = vpop.xlane.xlu0 %653
        %v655 = vmul.f32 %v651, %v642
        %v656 = vmul.f32 %v654, %v642
        %v657 = vadd.f32 %v655, 1e-05
        %v658 = vadd.f32 %v656, 1e-05
        %v659 = vrsqrt.pop %v657
        %v660 = vrsqrt.pop %v658
        %v661 = vmul.f32 %v645, %v659
        %v662 = vmul.f32 %v646, %v660
        %v663 = vlaneseq
        %v664 = vshrl.u32 %v663, 7
        %v665 = vsub.s32 0, %v664
        %v666 = vrot.slane %v610, %v665
        %v667 = vmul.f32 %v661, %v666
        %v668 = vmul.f32 %v662, %v666
        %v669 = vlaneseq
        %v670 = vshrl.u32 %v669, 7
        %v671 = vsub.s32 1, %v670
        %v672 = vrot.slane %v610, %v671
        %v673 = vadd.f32 %v667, %v672
        %v674 = vadd.f32 %v668, %v672
        %v675 = vpack.c.bf16 %v674, %v673
        %v680 = vunpack.c.l.b16 %v611
        %v681 = vunpack.c.l.b16 %v612
        %v682 = vunpack.c.l.b16 %v613
        %v683 = vunpack.c.l.b16 %v614
        %v684 = vpack.c.b16 %v681, %v680
        %v685 = vpack.c.b16 %v683, %v682
        %v689 = vsel %vm635, %v675, 0
        %691 = vmatprep.subr.bf16.mxu0 0
        %692 = vmatpush1.bf16.msra.mxu0 %v684
        %693 = vmatprep.subr.bf16.mxu0 0
        %694 = vmatpush1.bf16.msra.mxu0 %v685
        %695 = vmatprep.subr.bf16.mxu0 0
        %696 = vmatpush1.bf16.msra.mxu0 0
        %697 = vmatprep.subr.bf16.mxu0 0
        %698 = vmatpush1.bf16.msra.mxu0 0
        %699 = vmatprep.subr.bf16.mxu0 0
        %700 = vmatpush1.bf16.msra.mxu0 0
        %701 = vmatprep.subr.bf16.mxu0 0
        %702 = vmatpush1.bf16.msra.mxu0 0
        %703 = vmatprep.subr.bf16.mxu0 0
        %704 = vmatpush1.bf16.msra.mxu0 0
        %705 = vmatprep.subr.bf16.mxu0 0
        %706 = vmatpush1.bf16.msra.mxu0 0
        %707 = vmatprep.subr.bf16.mxu0 0
        %708 = vmatpush1.bf16.msra.mxu0 0
        %709 = vmatprep.subr.bf16.mxu0 0
        %710 = vmatpush1.bf16.msra.mxu0 0
        %711 = vmatprep.subr.bf16.mxu0 0
        %712 = vmatpush1.bf16.msra.mxu0 0
        %713 = vmatprep.subr.bf16.mxu0 0
        %714 = vmatpush1.bf16.msra.mxu0 0
        %715 = vmatprep.subr.bf16.mxu0 0
        %716 = vmatpush1.bf16.msra.mxu0 0
        %717 = vmatprep.subr.bf16.mxu0 0
        %718 = vmatpush1.bf16.msra.mxu0 0
        %719 = vmatprep.subr.bf16.mxu0 0
        %720 = vmatpush1.bf16.msra.mxu0 0
        %721 = vmatprep.subr.bf16.mxu0 0
        %722 = vmatpush1.bf16.msra.mxu0 0
        %723 = vmatprep.mubr.bf16.mxu0 0
        %724 = vmatmul.mubr.bf16.gmra.mrb[0].mxu0 %v689
        %v725 = vpop.f32.mrb[0].mxu0
        %v726 = vadd.f32 0.0, %v725
        %v727 = vpop.f32.mrb[0].mxu0
        %v728 = vpop.f32.mrb[0].mxu0
        %v729 = vadd.f32 0.0, %v728
        %v730 = vpop.f32.mrb[0].mxu0
        %731 = vdwg.mxu0
        %v732 = vpack.c.bf16 %v729, %v726
        %v733 = vlaneseq
        %v734 = vshrl.u32 %v733, 7
        %v735 = vsub.s32 3, %v734
        %v736 = vrot.slane %v615, %v735
        %v737 = vmul.f32 %v726, %v736
        %v738 = vmul.f32 %v729, %v736
        %v739 = vlaneseq
        %v740 = vshrl.u32 %v739, 7
        %v741 = vsub.s32 0, %v740
        %v742 = vrot.slane %v616, %v741
        %v743 = vadd.f32 %v737, %v742
        %v744 = vadd.f32 %v738, %v742
        %v747 = vunpack.c.l.b16 %v602
        %v748 = vunpack.c.l.b16 %v603
        %v749 = vpack.c.b16 %v748, %v747
        %vm750 = vcmask 130048
        %v752 = vsel %vm750, %v749, 0
        %754 = vmatprep.subr.bf16.mxu0 0
        %755 = vmatpush1.bf16.msra.mxu0 %v732
        %756 = vmatprep.subr.bf16.mxu0 0
        %757 = vmatpush1.bf16.msra.mxu0 0
        %758 = vmatprep.subr.bf16.mxu0 0
        %759 = vmatpush1.bf16.msra.mxu0 0
        %760 = vmatprep.subr.bf16.mxu0 0
        %761 = vmatpush1.bf16.msra.mxu0 0
        %762 = vmatprep.subr.bf16.mxu0 0
        %763 = vmatpush1.bf16.msra.mxu0 0
        %764 = vmatprep.subr.bf16.mxu0 0
        %765 = vmatpush1.bf16.msra.mxu0 0
        %766 = vmatprep.subr.bf16.mxu0 0
        %767 = vmatpush1.bf16.msra.mxu0 0
        %768 = vmatprep.subr.bf16.mxu0 0
        %769 = vmatpush1.bf16.msra.mxu0 0
        %770 = vmatprep.subr.bf16.mxu0 0
        %771 = vmatpush1.bf16.msra.mxu0 0
        %772 = vmatprep.subr.bf16.mxu0 0
        %773 = vmatpush1.bf16.msra.mxu0 0
        %774 = vmatprep.subr.bf16.mxu0 0
        %775 = vmatpush1.bf16.msra.mxu0 0
        %776 = vmatprep.subr.bf16.mxu0 0
        %777 = vmatpush1.bf16.msra.mxu0 0
        %778 = vmatprep.subr.bf16.mxu0 0
        %779 = vmatpush1.bf16.msra.mxu0 0
        %780 = vmatprep.subr.bf16.mxu0 0
        %781 = vmatpush1.bf16.msra.mxu0 0
        %782 = vmatprep.subr.bf16.mxu0 0
        %783 = vmatpush1.bf16.msra.mxu0 0
        %784 = vmatprep.subr.bf16.mxu0 0
        %785 = vmatpush1.bf16.msra.mxu0 0
        %786 = vmatprep.mubr.bf16.mxu0 0
        %787 = vmatmul.mubr.bf16.gmra.mrb[0].mxu0 %v752
        %v788 = vpop.f32.mrb[0].mxu0
        %v789 = vadd.f32 0.0, %v788
        %v790 = vpop.f32.mrb[0].mxu0
        %v791 = vpop.f32.mrb[0].mxu0
        %v792 = vadd.f32 0.0, %v791
        %v793 = vpop.f32.mrb[0].mxu0
        %794 = vdwg.mxu0
        %v795 = vlaneseq
        %v796 = vshrl.u32 %v795, 7
        %v797 = vsub.s32 0, %v796
        %v798 = vrot.slane %v615, %v797
        %v799 = vmul.f32 %v789, %v798
        %v800 = vmul.f32 %v792, %v798
        %v801 = vadd.f32 %v743, %v799
        %v802 = vadd.f32 %v744, %v800
        %v805 = vunpack.c.l.b16 %v604
        %v806 = vunpack.c.l.b16 %v605
        %v807 = vpack.c.b16 %v806, %v805
        %v809 = vsel %vm750, %v807, 0
        %811 = vmatprep.subr.bf16.mxu0 0
        %812 = vmatpush1.bf16.msra.mxu0 %v732
        %813 = vmatprep.subr.bf16.mxu0 0
        %814 = vmatpush1.bf16.msra.mxu0 0
        %815 = vmatprep.subr.bf16.mxu0 0
        %816 = vmatpush1.bf16.msra.mxu0 0
        %817 = vmatprep.subr.bf16.mxu0 0
        %818 = vmatpush1.bf16.msra.mxu0 0
        %819 = vmatprep.subr.bf16.mxu0 0
        %820 = vmatpush1.bf16.msra.mxu0 0
        %821 = vmatprep.subr.bf16.mxu0 0
        %822 = vmatpush1.bf16.msra.mxu0 0
        %823 = vmatprep.subr.bf16.mxu0 0
        %824 = vmatpush1.bf16.msra.mxu0 0
        %825 = vmatprep.subr.bf16.mxu0 0
        %826 = vmatpush1.bf16.msra.mxu0 0
        %827 = vmatprep.subr.bf16.mxu0 0
        %828 = vmatpush1.bf16.msra.mxu0 0
        %829 = vmatprep.subr.bf16.mxu0 0
        %830 = vmatpush1.bf16.msra.mxu0 0
        %831 = vmatprep.subr.bf16.mxu0 0
        %832 = vmatpush1.bf16.msra.mxu0 0
        %833 = vmatprep.subr.bf16.mxu0 0
        %834 = vmatpush1.bf16.msra.mxu0 0
        %835 = vmatprep.subr.bf16.mxu0 0
        %836 = vmatpush1.bf16.msra.mxu0 0
        %837 = vmatprep.subr.bf16.mxu0 0
        %838 = vmatpush1.bf16.msra.mxu0 0
        %839 = vmatprep.subr.bf16.mxu0 0
        %840 = vmatpush1.bf16.msra.mxu0 0
        %841 = vmatprep.subr.bf16.mxu0 0
        %842 = vmatpush1.bf16.msra.mxu0 0
        %843 = vmatprep.mubr.bf16.mxu0 0
        %844 = vmatmul.mubr.bf16.gmra.mrb[0].mxu0 %v809
        %v845 = vpop.f32.mrb[0].mxu0
        %v846 = vadd.f32 0.0, %v845
        %v847 = vpop.f32.mrb[0].mxu0
        %v848 = vpop.f32.mrb[0].mxu0
        %v849 = vadd.f32 0.0, %v848
        %v850 = vpop.f32.mrb[0].mxu0
        %851 = vdwg.mxu0
        %v852 = vlaneseq
        %v853 = vshrl.u32 %v852, 7
        %v854 = vsub.s32 1, %v853
        %v855 = vrot.slane %v615, %v854
        %v856 = vmul.f32 %v846, %v855
        %v857 = vmul.f32 %v849, %v855
        %v858 = vadd.f32 %v801, %v856
        %v859 = vadd.f32 %v802, %v857
        %v862 = vunpack.c.l.b16 %v606
        %v863 = vunpack.c.l.b16 %v607
        %v864 = vpack.c.b16 %v863, %v862
        %v866 = vsel %vm750, %v864, 0
        %868 = vmatprep.subr.bf16.mxu0 0
        %869 = vmatpush1.bf16.msra.mxu0 %v732
        %870 = vmatprep.subr.bf16.mxu0 0
        %871 = vmatpush1.bf16.msra.mxu0 0
        %872 = vmatprep.subr.bf16.mxu0 0
        %873 = vmatpush1.bf16.msra.mxu0 0
        %874 = vmatprep.subr.bf16.mxu0 0
        %875 = vmatpush1.bf16.msra.mxu0 0
        %876 = vmatprep.subr.bf16.mxu0 0
        %877 = vmatpush1.bf16.msra.mxu0 0
        %878 = vmatprep.subr.bf16.mxu0 0
        %879 = vmatpush1.bf16.msra.mxu0 0
        %880 = vmatprep.subr.bf16.mxu0 0
        %881 = vmatpush1.bf16.msra.mxu0 0
        %882 = vmatprep.subr.bf16.mxu0 0
        %883 = vmatpush1.bf16.msra.mxu0 0
        %884 = vmatprep.subr.bf16.mxu0 0
        %885 = vmatpush1.bf16.msra.mxu0 0
        %886 = vmatprep.subr.bf16.mxu0 0
        %887 = vmatpush1.bf16.msra.mxu0 0
        %888 = vmatprep.subr.bf16.mxu0 0
        %889 = vmatpush1.bf16.msra.mxu0 0
        %890 = vmatprep.subr.bf16.mxu0 0
        %891 = vmatpush1.bf16.msra.mxu0 0
        %892 = vmatprep.subr.bf16.mxu0 0
        %893 = vmatpush1.bf16.msra.mxu0 0
        %894 = vmatprep.subr.bf16.mxu0 0
        %895 = vmatpush1.bf16.msra.mxu0 0
        %896 = vmatprep.subr.bf16.mxu0 0
        %897 = vmatpush1.bf16.msra.mxu0 0
        %898 = vmatprep.subr.bf16.mxu0 0
        %899 = vmatpush1.bf16.msra.mxu0 0
        %900 = vmatprep.mubr.bf16.mxu0 0
        %901 = vmatmul.mubr.bf16.gmra.mrb[0].mxu0 %v866
        %v902 = vpop.f32.mrb[0].mxu0
        %v903 = vadd.f32 0.0, %v902
        %v904 = vpop.f32.mrb[0].mxu0
        %v905 = vpop.f32.mrb[0].mxu0
        %v906 = vadd.f32 0.0, %v905
        %v907 = vpop.f32.mrb[0].mxu0
        %908 = vdwg.mxu0
        %v909 = vlaneseq
        %v910 = vshrl.u32 %v909, 7
        %v911 = vsub.s32 2, %v910
        %v912 = vrot.slane %v615, %v911
        %v913 = vmul.f32 %v903, %v912
        %v914 = vmul.f32 %v906, %v912
        %v915 = vadd.f32 %v858, %v913
        %v916 = vadd.f32 %v859, %v914
        %v917 = vxor.u32 %v915, 2147483648
        %v918 = vxor.u32 %v916, 2147483648
        %v919 = vmul.f32 %v917, 1.442695
        %v920 = vpow.pop %v919
        %v921 = vmul.f32 %v918, 1.442695
        %v922 = vpow.pop %v921
        %v923 = vadd.f32 %v920, 1.0
        %v924 = vadd.f32 %v922, 1.0
        %v925 = vrcp.pop %v923
        %v926 = vmul.f32 1.0, %v925
        %v927 = vrcp.pop %v924
        %v928 = vmul.f32 1.0, %v927
        %v929 = vmul.f32 %v915, %v926
        %v930 = vmul.f32 %v916, %v928
        %v931 = vpack.c.bf16 %v930, %v929
        %v940 = vunpack.c.l.b16 %v617
        %v941 = vunpack.c.l.b16 %v618
        %v942 = vunpack.c.l.b16 %v619
        %v943 = vunpack.c.l.b16 %v620
        %v944 = vunpack.c.l.b16 %v621
        %v945 = vunpack.c.l.b16 %v622
        %v946 = vunpack.c.l.b16 %v623
        %v947 = vunpack.c.l.b16 %v624
        %v948 = vpack.c.b16 %v941, %v940
        %v949 = vpack.c.b16 %v943, %v942
        %v950 = vpack.c.b16 %v945, %v944
        %v951 = vpack.c.b16 %v947, %v946
        %vm956 = vcmask 523264
        %v958 = vsel %vm956, %v931, 0
        %960 = vmatprep.subr.bf16.mxu0 0
        %961 = vmatpush1.bf16.msra.mxu0 %v948
        %962 = vmatprep.subr.bf16.mxu0 0
        %963 = vmatpush1.bf16.msra.mxu0 %v949
        %964 = vmatprep.subr.bf16.mxu0 0
        %965 = vmatpush1.bf16.msra.mxu0 %v950
        %966 = vmatprep.subr.bf16.mxu0 0
        %967 = vmatpush1.bf16.msra.mxu0 %v951
        %968 = vmatprep.subr.bf16.mxu0 0
        %969 = vmatpush1.bf16.msra.mxu0 0
        %970 = vmatprep.subr.bf16.mxu0 0
        %971 = vmatpush1.bf16.msra.mxu0 0
        %972 = vmatprep.subr.bf16.mxu0 0
        %973 = vmatpush1.bf16.msra.mxu0 0
        %974 = vmatprep.subr.bf16.mxu0 0
        %975 = vmatpush1.bf16.msra.mxu0 0
        %976 = vmatprep.subr.bf16.mxu0 0
        %977 = vmatpush1.bf16.msra.mxu0 0
        %978 = vmatprep.subr.bf16.mxu0 0
        %979 = vmatpush1.bf16.msra.mxu0 0
        %980 = vmatprep.subr.bf16.mxu0 0
        %981 = vmatpush1.bf16.msra.mxu0 0
        %982 = vmatprep.subr.bf16.mxu0 0
        %983 = vmatpush1.bf16.msra.mxu0 0
        %984 = vmatprep.subr.bf16.mxu0 0
        %985 = vmatpush1.bf16.msra.mxu0 0
        %986 = vmatprep.subr.bf16.mxu0 0
        %987 = vmatpush1.bf16.msra.mxu0 0
        %988 = vmatprep.subr.bf16.mxu0 0
        %989 = vmatpush1.bf16.msra.mxu0 0
        %990 = vmatprep.subr.bf16.mxu0 0
        %991 = vmatpush1.bf16.msra.mxu0 0
        %992 = vmatprep.mubr.bf16.mxu0 0
        %993 = vmatmul.mubr.bf16.gmra.mrb[0].mxu0 %v958
        %v994 = vpop.f32.mrb[0].mxu0
        %v995 = vadd.f32 0.0, %v994
        %v996 = vpop.f32.mrb[0].mxu0
        %v997 = vpop.f32.mrb[0].mxu0
        %v998 = vadd.f32 0.0, %v997
        %v999 = vpop.f32.mrb[0].mxu0
        %1000 = vdwg.mxu0
        %v1001 = vlaneseq
        %v1002 = vshrl.u32 %v1001, 7
        %v1003 = vsub.s32 1, %v1002
        %v1004 = vrot.slane %v616, %v1003
        %v1005 = vadd.f32 %v995, %v1004
        %v1006 = vadd.f32 %v998, %v1004
        %v1007 = vmax.f32 %v1005, 0.0
        %v1008 = vmax.f32 %v1006, 0.0
        %vm1009 = vcmp.ne.f32.partialorder %v1005, %v1005
        %vm1010 = vcmp.ne.f32.partialorder %v1006, %v1006
        %v1011 = vadd.f32 %v1005, 0.0
        %v1012 = vadd.f32 %v1006, 0.0
        %v1013 = vand.u32 2147483647, %v1005
        %v1014 = vand.u32 2147483647, %v1006
        %v1015 = vsub.f32 0.0, %v1013
        %v1016 = vsub.f32 0.0, %v1014
        %v1017 = vmul.f32 %v1015, 1.442695
        %v1018 = vpow.pop %v1017
        %v1019 = vmul.f32 %v1016, 1.442695
        %v1020 = vpow.pop %v1019
        %v1021 = vadd.f32 %v1018, 1.0
        %v1022 = vlog2.pop %v1021
        %v1023 = vmul.f32 %v1022, 0.6931472
        %v1024 = vmul.f32 -0.5, %v1018
        %v1025 = vadd.f32 %v1024, 1.0
        %v1026 = vmul.f32 %v1025, %v1018
        %v1027 = vand.u32 2147483647, %v1018
        %vm1028 = vcmp.lt.f32.partialorder %v1027, 0.0004427343
        %v1029 = vsel %vm1028, %v1026, %v1023
        %v1030 = vadd.f32 %v1020, 1.0
        %v1031 = vlog2.pop %v1030
        %v1032 = vmul.f32 %v1031, 0.6931472
        %v1033 = vmul.f32 -0.5, %v1020
        %v1034 = vadd.f32 %v1033, 1.0
        %v1035 = vmul.f32 %v1034, %v1020
        %v1036 = vand.u32 2147483647, %v1020
        %vm1037 = vcmp.lt.f32.partialorder %v1036, 0.0004427343
        %v1038 = vsel %vm1037, %v1035, %v1032
        %v1039 = vadd.f32 %v1007, %v1029
        %v1040 = vadd.f32 %v1008, %v1038
        %v1041 = vsel %vm1009, %v1011, %v1039
        %v1042 = vsel %vm1010, %v1012, %v1040
        %v1043 = vmul.f32 %v1041, %v929
        %v1044 = vmul.f32 %v1042, %v930
        %v1047 = vunpack.c.l.s4 1966171168
        %v1048 = vunpack.c.0.s8 %v1047
        %v1049 = vlaneseq
        %v1050 = vshrl.u32 %v1049, 7
        %v1051 = vsub.s32 %v1048, %v1050
        %v1052 = vrot.slane %v1041, %v1051
        %v1053 = vcombine.high %v1052, %v1052
        %v1055 = vunpack.c.l.s4 1966171168
        %v1056 = vunpack.c.0.s8 %v1055
        %v1057 = vlaneseq
        %v1058 = vshrl.u32 %v1057, 7
        %v1059 = vsub.s32 %v1056, %v1058
        %v1060 = vrot.slane %v1052, %v1059
        %v1062 = vunpack.c.l.s4 1966171168
        %v1063 = vunpack.c.0.s8 %v1062
        %v1064 = vlaneseq
        %v1065 = vshrl.u32 %v1064, 7
        %v1066 = vsub.s32 %v1063, %v1065
        %v1067 = vrot.slane %v1053, %v1066
        %v1068 = vlaneseq
        %v1069 = vshrl.u32 %v1068, 7
        %v1070 = vsub.s32 0, %v1069
        %v1071 = vrot.slane %v1060, %v1070
        %v1072 = vlaneseq
        %v1073 = vshrl.u32 %v1072, 7
        %v1074 = vsub.s32 0, %v1073
        %v1075 = vrot.slane %v1067, %v1074
        %v1078 = vmul.f32 %v1071, %v625
        %v1079 = vmul.f32 %v1071, %v626
        %v1080 = vmul.f32 %v1075, %v625
        %v1081 = vmul.f32 %v1075, %v626
        %v1082 = vmul.f32 %v1078, 1.442695
        %v1083 = vpow.pop %v1082
        %v1084 = vmul.f32 %v1079, 1.442695
        %v1085 = vpow.pop %v1084
        %v1086 = vmul.f32 %v1080, 1.442695
        %v1087 = vpow.pop %v1086
        %v1088 = vmul.f32 %v1081, 1.442695
        %v1089 = vpow.pop %v1088
        %v1090 = vmul.f32 %v1083, 0.0
        %v1091 = vmul.f32 %v1085, 0.0
        %v1092 = vmul.f32 %v1087, 0.0
        %v1093 = vmul.f32 %v1089, 0.0
        %v1096 = vunpack.c.l.s4 1966171168
        %v1097 = vunpack.c.0.s8 %v1096
        %v1098 = vlaneseq
        %v1099 = vshrl.u32 %v1098, 7
        %v1100 = vsub.s32 %v1097, %v1099
        %v1101 = vrot.slane %v1043, %v1100
        %v1102 = vcombine.high %v1101, %v1101
        %v1104 = vunpack.c.l.s4 1966171168
        %v1105 = vunpack.c.0.s8 %v1104
        %v1106 = vlaneseq
        %v1107 = vshrl.u32 %v1106, 7
        %v1108 = vsub.s32 %v1105, %v1107
        %v1109 = vrot.slane %v1101, %v1108
        %v1111 = vunpack.c.l.s4 1966171168
        %v1112 = vunpack.c.0.s8 %v1111
        %v1113 = vlaneseq
        %v1114 = vshrl.u32 %v1113, 7
        %v1115 = vsub.s32 %v1112, %v1114
        %v1116 = vrot.slane %v1102, %v1115
        %v1117 = vlaneseq
        %v1118 = vshrl.u32 %v1117, 7
        %v1119 = vsub.s32 0, %v1118
        %v1120 = vrot.slane %v995, %v1119
        %s1122 = sor.u32 256, 64
        %1123 = vbcast.lane.b32.xlu0 %v1120, %s1122
        %v1124 = vpop.permute.xlu0 %1123
        %s1126 = sor.u32 256, 72
        %1127 = vbcast.lane.b32.xlu0 %v1120, %s1126
        %v1128 = vpop.permute.xlu0 %1127
        %v1129 = vlaneseq
        %v1130 = vshrl.u32 %v1129, 7
        %v1131 = vsub.s32 1, %v1130
        %v1132 = vrot.slane %v995, %v1131
        %s1134 = sor.u32 256, 64
        %1135 = vbcast.lane.b32.xlu0 %v1132, %s1134
        %v1136 = vpop.permute.xlu0 %1135
        %s1138 = sor.u32 256, 72
        %1139 = vbcast.lane.b32.xlu0 %v1132, %s1138
        %v1140 = vpop.permute.xlu0 %1139
        %v1141 = vlaneseq
        %v1142 = vshrl.u32 %v1141, 7
        %v1143 = vsub.s32 0, %v1142
        %v1144 = vrot.slane %v1109, %v1143
        %v1145 = vlaneseq
        %v1146 = vshrl.u32 %v1145, 7
        %v1147 = vsub.s32 0, %v1146
        %v1148 = vrot.slane %v1116, %v1147
        %v1151 = vmul.f32 %v1144, %v1124
        %v1152 = vmul.f32 %v1144, %v1128
        %v1153 = vmul.f32 %v1148, %v1136
        %v1154 = vmul.f32 %v1148, %v1140
        %v1155 = vadd.f32 %v1090, %v1151
        %v1156 = vadd.f32 %v1091, %v1152
        %v1157 = vadd.f32 %v1092, %v1153
        %v1158 = vadd.f32 %v1093, %v1154
        %s1160 = sor.u32 256, 80
        %1161 = vbcast.lane.b32.xlu0 %v1120, %s1160
        %v1162 = vpop.permute.xlu0 %1161
        %s1164 = sor.u32 256, 88
        %1165 = vbcast.lane.b32.xlu0 %v1120, %s1164
        %v1166 = vpop.permute.xlu0 %1165
        %s1168 = sor.u32 256, 80
        %1169 = vbcast.lane.b32.xlu0 %v1132, %s1168
        %v1170 = vpop.permute.xlu0 %1169
        %s1172 = sor.u32 256, 88
        %1173 = vbcast.lane.b32.xlu0 %v1132, %s1172
        %v1174 = vpop.permute.xlu0 %1173
        %v1175 = vmul.f32 %v1155, %v1162
        %v1176 = vmul.f32 %v1156, %v1166
        %v1177 = vmul.f32 %v1157, %v1170
        %v1178 = vmul.f32 %v1158, %v1174
        %v1179 = vsel %vm956, %v1175, 0.0
        %v1180 = vsel %vm956, %v1176, 0.0
        %v1181 = vadd.f32 %v1179, %v1180
        %v1182 = vrot.slane %v1181, 4
        %v1183 = vadd.f32 %v1181, %v1182
        %v1184 = vrot.slane %v1183, 2
        %v1185 = vadd.f32 %v1183, %v1184
        %v1186 = vrot.slane %v1185, 1
        %v1187 = vadd.f32 %v1185, %v1186
        %v1188 = vsel %vm956, %v1177, 0.0
        %v1189 = vsel %vm956, %v1178, 0.0
        %v1190 = vadd.f32 %v1188, %v1189
        %v1191 = vrot.slane %v1190, 4
        %v1192 = vadd.f32 %v1190, %v1191
        %v1193 = vrot.slane %v1192, 2
        %v1194 = vadd.f32 %v1192, %v1193
        %v1195 = vrot.slane %v1194, 1
        %v1196 = vadd.f32 %v1194, %v1195
        %v1197 = vcombine.high %v1060, %v1060
        %v1198 = vcombine.high %v1067, %v1067
        %v1199 = vlaneseq
        %v1200 = vshrl.u32 %v1199, 7
        %v1201 = vsub.s32 0, %v1200
        %v1202 = vrot.slane %v1197, %v1201
        %v1203 = vlaneseq
        %v1204 = vshrl.u32 %v1203, 7
        %v1205 = vsub.s32 0, %v1204
        %v1206 = vrot.slane %v1198, %v1205
        %v1209 = vmul.f32 %v1202, %v625
        %v1210 = vmul.f32 %v1202, %v626
        %v1211 = vmul.f32 %v1206, %v625
        %v1212 = vmul.f32 %v1206, %v626
        %v1213 = vmul.f32 %v1209, 1.442695
        %v1214 = vpow.pop %v1213
        %v1215 = vmul.f32 %v1210, 1.442695
        %v1216 = vpow.pop %v1215
        %v1217 = vmul.f32 %v1211, 1.442695
        %v1218 = vpow.pop %v1217
        %v1219 = vmul.f32 %v1212, 1.442695
        %v1220 = vpow.pop %v1219
        %v1221 = vmul.f32 %v1214, %v1155
        %v1222 = vmul.f32 %v1216, %v1156
        %v1223 = vmul.f32 %v1218, %v1157
        %v1224 = vmul.f32 %v1220, %v1158
        %v1225 = vcombine.high %v1109, %v1109
        %v1226 = vcombine.high %v1116, %v1116
        %v1227 = vlaneseq
        %v1228 = vshrl.u32 %v1227, 7
        %v1229 = vsub.s32 2, %v1228
        %v1230 = vrot.slane %v995, %v1229
        %s1232 = sor.u32 256, 64
        %1233 = vbcast.lane.b32.xlu0 %v1230, %s1232
        %v1234 = vpop.permute.xlu0 %1233
        %s1236 = sor.u32 256, 72
        %1237 = vbcast.lane.b32.xlu0 %v1230, %s1236
        %v1238 = vpop.permute.xlu0 %1237
        %v1239 = vlaneseq
        %v1240 = vshrl.u32 %v1239, 7
        %v1241 = vsub.s32 3, %v1240
        %v1242 = vrot.slane %v995, %v1241
        %s1244 = sor.u32 256, 64
        %1245 = vbcast.lane.b32.xlu0 %v1242, %s1244
        %v1246 = vpop.permute.xlu0 %1245
        %s1248 = sor.u32 256, 72
        %1249 = vbcast.lane.b32.xlu0 %v1242, %s1248
        %v1250 = vpop.permute.xlu0 %1249
        %v1251 = vlaneseq
        %v1252 = vshrl.u32 %v1251, 7
        %v1253 = vsub.s32 0, %v1252
        %v1254 = vrot.slane %v1225, %v1253
        %v1255 = vlaneseq
        %v1256 = vshrl.u32 %v1255, 7
        %v1257 = vsub.s32 0, %v1256
        %v1258 = vrot.slane %v1226, %v1257
        %v1261 = vmul.f32 %v1254, %v1234
        %v1262 = vmul.f32 %v1254, %v1238
        %v1263 = vmul.f32 %v1258, %v1246
        %v1264 = vmul.f32 %v1258, %v1250
        %v1265 = vadd.f32 %v1221, %v1261
        %v1266 = vadd.f32 %v1222, %v1262
        %v1267 = vadd.f32 %v1223, %v1263
        %v1268 = vadd.f32 %v1224, %v1264
        %s1270 = sor.u32 256, 80
        %1271 = vbcast.lane.b32.xlu0 %v1230, %s1270
        %v1272 = vpop.permute.xlu0 %1271
        %s1274 = sor.u32 256, 88
        %1275 = vbcast.lane.b32.xlu0 %v1230, %s1274
        %v1276 = vpop.permute.xlu0 %1275
        %s1278 = sor.u32 256, 80
        %1279 = vbcast.lane.b32.xlu0 %v1242, %s1278
        %v1280 = vpop.permute.xlu0 %1279
        %s1282 = sor.u32 256, 88
        %1283 = vbcast.lane.b32.xlu0 %v1242, %s1282
        %v1284 = vpop.permute.xlu0 %1283
        %v1285 = vmul.f32 %v1265, %v1272
        %v1286 = vmul.f32 %v1266, %v1276
        %v1287 = vmul.f32 %v1267, %v1280
        %v1288 = vmul.f32 %v1268, %v1284
        %v1289 = vsel %vm956, %v1285, 0.0
        %v1290 = vsel %vm956, %v1286, 0.0
        %v1291 = vadd.f32 %v1289, %v1290
        %v1292 = vrot.slane %v1291, 4
        %v1293 = vadd.f32 %v1291, %v1292
        %v1294 = vrot.slane %v1293, 2
        %v1295 = vadd.f32 %v1293, %v1294
        %v1296 = vrot.slane %v1295, 1
        %v1297 = vadd.f32 %v1295, %v1296
        %v1298 = vsel %vm956, %v1287, 0.0
        %v1299 = vsel %vm956, %v1288, 0.0
        %v1300 = vadd.f32 %v1298, %v1299
        %v1301 = vrot.slane %v1300, 4
        %v1302 = vadd.f32 %v1300, %v1301
        %v1303 = vrot.slane %v1302, 2
        %v1304 = vadd.f32 %v1302, %v1303
        %v1305 = vrot.slane %v1304, 1
        %v1306 = vadd.f32 %v1304, %v1305
        %v1307 = vcombine.high %v1041, %v1041
        %v1309 = vunpack.c.l.s4 1966171168
        %v1310 = vunpack.c.0.s8 %v1309
        %v1311 = vlaneseq
        %v1312 = vshrl.u32 %v1311, 7
        %v1313 = vsub.s32 %v1310, %v1312
        %v1314 = vrot.slane %v1307, %v1313
        %v1315 = vcombine.high %v1314, %v1314
        %v1317 = vunpack.c.l.s4 1966171168
        %v1318 = vunpack.c.0.s8 %v1317
        %v1319 = vlaneseq
        %v1320 = vshrl.u32 %v1319, 7
        %v1321 = vsub.s32 %v1318, %v1320
        %v1322 = vrot.slane %v1314, %v1321
        %v1324 = vunpack.c.l.s4 1966171168
        %v1325 = vunpack.c.0.s8 %v1324
        %v1326 = vlaneseq
        %v1327 = vshrl.u32 %v1326, 7
        %v1328 = vsub.s32 %v1325, %v1327
        %v1329 = vrot.slane %v1315, %v1328
        %v1330 = vlaneseq
        %v1331 = vshrl.u32 %v1330, 7
        %v1332 = vsub.s32 0, %v1331
        %v1333 = vrot.slane %v1322, %v1332
        %v1334 = vlaneseq
        %v1335 = vshrl.u32 %v1334, 7
        %v1336 = vsub.s32 0, %v1335
        %v1337 = vrot.slane %v1329, %v1336
        %v1340 = vmul.f32 %v1333, %v625
        %v1341 = vmul.f32 %v1333, %v626
        %v1342 = vmul.f32 %v1337, %v625
        %v1343 = vmul.f32 %v1337, %v626
        %v1344 = vmul.f32 %v1340, 1.442695
        %v1345 = vpow.pop %v1344
        %v1346 = vmul.f32 %v1341, 1.442695
        %v1347 = vpow.pop %v1346
        %v1348 = vmul.f32 %v1342, 1.442695
        %v1349 = vpow.pop %v1348
        %v1350 = vmul.f32 %v1343, 1.442695
        %v1351 = vpow.pop %v1350
        %v1352 = vmul.f32 %v1345, %v1265
        %v1353 = vmul.f32 %v1347, %v1266
        %v1354 = vmul.f32 %v1349, %v1267
        %v1355 = vmul.f32 %v1351, %v1268
        %v1356 = vcombine.high %v1043, %v1043
        %v1358 = vunpack.c.l.s4 1966171168
        %v1359 = vunpack.c.0.s8 %v1358
        %v1360 = vlaneseq
        %v1361 = vshrl.u32 %v1360, 7
        %v1362 = vsub.s32 %v1359, %v1361
        %v1363 = vrot.slane %v1356, %v1362
        %v1364 = vcombine.high %v1363, %v1363
        %v1366 = vunpack.c.l.s4 1966171168
        %v1367 = vunpack.c.0.s8 %v1366
        %v1368 = vlaneseq
        %v1369 = vshrl.u32 %v1368, 7
        %v1370 = vsub.s32 %v1367, %v1369
        %v1371 = vrot.slane %v1363, %v1370
        %v1373 = vunpack.c.l.s4 1966171168
        %v1374 = vunpack.c.0.s8 %v1373
        %v1375 = vlaneseq
        %v1376 = vshrl.u32 %v1375, 7
        %v1377 = vsub.s32 %v1374, %v1376
        %v1378 = vrot.slane %v1364, %v1377
        %v1379 = vlaneseq
        %v1380 = vshrl.u32 %v1379, 7
        %v1381 = vsub.s32 4, %v1380
        %v1382 = vrot.slane %v995, %v1381
        %s1384 = sor.u32 256, 64
        %1385 = vbcast.lane.b32.xlu0 %v1382, %s1384
        %v1386 = vpop.permute.xlu0 %1385
        %s1388 = sor.u32 256, 72
        %1389 = vbcast.lane.b32.xlu0 %v1382, %s1388
        %v1390 = vpop.permute.xlu0 %1389
        %v1391 = vlaneseq
        %v1392 = vshrl.u32 %v1391, 7
        %v1393 = vsub.s32 5, %v1392
        %v1394 = vrot.slane %v995, %v1393
        %s1396 = sor.u32 256, 64
        %1397 = vbcast.lane.b32.xlu0 %v1394, %s1396
        %v1398 = vpop.permute.xlu0 %1397
        %s1400 = sor.u32 256, 72
        %1401 = vbcast.lane.b32.xlu0 %v1394, %s1400
        %v1402 = vpop.permute.xlu0 %1401
        %v1403 = vlaneseq
        %v1404 = vshrl.u32 %v1403, 7
        %v1405 = vsub.s32 0, %v1404
        %v1406 = vrot.slane %v1371, %v1405
        %v1407 = vlaneseq
        %v1408 = vshrl.u32 %v1407, 7
        %v1409 = vsub.s32 0, %v1408
        %v1410 = vrot.slane %v1378, %v1409
        %v1413 = vmul.f32 %v1406, %v1386
        %v1414 = vmul.f32 %v1406, %v1390
        %v1415 = vmul.f32 %v1410, %v1398
        %v1416 = vmul.f32 %v1410, %v1402
        %v1417 = vadd.f32 %v1352, %v1413
        %v1418 = vadd.f32 %v1353, %v1414
        %v1419 = vadd.f32 %v1354, %v1415
        %v1420 = vadd.f32 %v1355, %v1416
        %s1422 = sor.u32 256, 80
        %1423 = vbcast.lane.b32.xlu0 %v1382, %s1422
        %v1424 = vpop.permute.xlu0 %1423
        %s1426 = sor.u32 256, 88
        %1427 = vbcast.lane.b32.xlu0 %v1382, %s1426
        %v1428 = vpop.permute.xlu0 %1427
        %s1430 = sor.u32 256, 80
        %1431 = vbcast.lane.b32.xlu0 %v1394, %s1430
        %v1432 = vpop.permute.xlu0 %1431
        %s1434 = sor.u32 256, 88
        %1435 = vbcast.lane.b32.xlu0 %v1394, %s1434
        %v1436 = vpop.permute.xlu0 %1435
        %v1437 = vmul.f32 %v1417, %v1424
        %v1438 = vmul.f32 %v1418, %v1428
        %v1439 = vmul.f32 %v1419, %v1432
        %v1440 = vmul.f32 %v1420, %v1436
        %v1441 = vsel %vm956, %v1437, 0.0
        %v1442 = vsel %vm956, %v1438, 0.0
        %v1443 = vadd.f32 %v1441, %v1442
        %v1444 = vrot.slane %v1443, 4
        %v1445 = vadd.f32 %v1443, %v1444
        %v1446 = vrot.slane %v1445, 2
        %v1447 = vadd.f32 %v1445, %v1446
        %v1448 = vrot.slane %v1447, 1
        %v1449 = vadd.f32 %v1447, %v1448
        %v1450 = vsel %vm956, %v1439, 0.0
        %v1451 = vsel %vm956, %v1440, 0.0
        %v1452 = vadd.f32 %v1450, %v1451
        %v1453 = vrot.slane %v1452, 4
        %v1454 = vadd.f32 %v1452, %v1453
        %v1455 = vrot.slane %v1454, 2
        %v1456 = vadd.f32 %v1454, %v1455
        %v1457 = vrot.slane %v1456, 1
        %v1458 = vadd.f32 %v1456, %v1457
        %v1459 = vcombine.high %v1322, %v1322
        %v1460 = vcombine.high %v1329, %v1329
        %v1461 = vlaneseq
        %v1462 = vshrl.u32 %v1461, 7
        %v1463 = vsub.s32 0, %v1462
        %v1464 = vrot.slane %v1459, %v1463
        %v1465 = vlaneseq
        %v1466 = vshrl.u32 %v1465, 7
        %v1467 = vsub.s32 0, %v1466
        %v1468 = vrot.slane %v1460, %v1467
        %v1471 = vmul.f32 %v1464, %v625
        %v1472 = vmul.f32 %v1464, %v626
        %v1473 = vmul.f32 %v1468, %v625
        %v1474 = vmul.f32 %v1468, %v626
        %v1475 = vmul.f32 %v1471, 1.442695
        %v1476 = vpow.pop %v1475
        %v1477 = vmul.f32 %v1472, 1.442695
        %v1478 = vpow.pop %v1477
        %v1479 = vmul.f32 %v1473, 1.442695
        %v1480 = vpow.pop %v1479
        %v1481 = vmul.f32 %v1474, 1.442695
        %v1482 = vpow.pop %v1481
        %v1483 = vmul.f32 %v1476, %v1417
        %v1484 = vmul.f32 %v1478, %v1418
        %v1485 = vmul.f32 %v1480, %v1419
        %v1486 = vmul.f32 %v1482, %v1420
        %v1487 = vcombine.high %v1371, %v1371
        %v1488 = vcombine.high %v1378, %v1378
        %v1489 = vlaneseq
        %v1490 = vshrl.u32 %v1489, 7
        %v1491 = vsub.s32 6, %v1490
        %v1492 = vrot.slane %v995, %v1491
        %s1494 = sor.u32 256, 64
        %1495 = vbcast.lane.b32.xlu0 %v1492, %s1494
        %v1496 = vpop.permute.xlu0 %1495
        %s1498 = sor.u32 256, 72
        %1499 = vbcast.lane.b32.xlu0 %v1492, %s1498
        %v1500 = vpop.permute.xlu0 %1499
        %v1501 = vlaneseq
        %v1502 = vshrl.u32 %v1501, 7
        %v1503 = vsub.s32 7, %v1502
        %v1504 = vrot.slane %v995, %v1503
        %s1506 = sor.u32 256, 64
        %1507 = vbcast.lane.b32.xlu0 %v1504, %s1506
        %v1508 = vpop.permute.xlu0 %1507
        %s1510 = sor.u32 256, 72
        %1511 = vbcast.lane.b32.xlu0 %v1504, %s1510
        %v1512 = vpop.permute.xlu0 %1511
        %v1513 = vlaneseq
        %v1514 = vshrl.u32 %v1513, 7
        %v1515 = vsub.s32 0, %v1514
        %v1516 = vrot.slane %v1487, %v1515
        %v1517 = vlaneseq
        %v1518 = vshrl.u32 %v1517, 7
        %v1519 = vsub.s32 0, %v1518
        %v1520 = vrot.slane %v1488, %v1519
        %v1523 = vmul.f32 %v1516, %v1496
        %v1524 = vmul.f32 %v1516, %v1500
        %v1525 = vmul.f32 %v1520, %v1508
        %v1526 = vmul.f32 %v1520, %v1512
        %v1527 = vadd.f32 %v1483, %v1523
        %v1528 = vadd.f32 %v1484, %v1524
        %v1529 = vadd.f32 %v1485, %v1525
        %v1530 = vadd.f32 %v1486, %v1526
        %s1532 = sor.u32 256, 80
        %1533 = vbcast.lane.b32.xlu0 %v1492, %s1532
        %v1534 = vpop.permute.xlu0 %1533
        %s1536 = sor.u32 256, 88
        %1537 = vbcast.lane.b32.xlu0 %v1492, %s1536
        %v1538 = vpop.permute.xlu0 %1537
        %s1540 = sor.u32 256, 80
        %1541 = vbcast.lane.b32.xlu0 %v1504, %s1540
        %v1542 = vpop.permute.xlu0 %1541
        %s1544 = sor.u32 256, 88
        %1545 = vbcast.lane.b32.xlu0 %v1504, %s1544
        %v1546 = vpop.permute.xlu0 %1545
        %v1547 = vmul.f32 %v1527, %v1534
        %v1548 = vmul.f32 %v1528, %v1538
        %v1549 = vmul.f32 %v1529, %v1542
        %v1550 = vmul.f32 %v1530, %v1546
        %v1551 = vsel %vm956, %v1547, 0.0
        %v1552 = vsel %vm956, %v1548, 0.0
        %v1553 = vadd.f32 %v1551, %v1552
        %v1554 = vrot.slane %v1553, 4
        %v1555 = vadd.f32 %v1553, %v1554
        %v1556 = vrot.slane %v1555, 2
        %v1557 = vadd.f32 %v1555, %v1556
        %v1558 = vrot.slane %v1557, 1
        %v1559 = vadd.f32 %v1557, %v1558
        %v1560 = vsel %vm956, %v1549, 0.0
        %v1561 = vsel %vm956, %v1550, 0.0
        %v1562 = vadd.f32 %v1560, %v1561
        %v1563 = vrot.slane %v1562, 4
        %v1564 = vadd.f32 %v1562, %v1563
        %v1565 = vrot.slane %v1564, 2
        %v1566 = vadd.f32 %v1564, %v1565
        %v1567 = vrot.slane %v1566, 1
        %v1568 = vadd.f32 %v1566, %v1567
        %v1571 = vunpack.c.l.s4 1966171168
        %v1572 = vunpack.c.0.s8 %v1571
        %v1573 = vlaneseq
        %v1574 = vshrl.u32 %v1573, 7
        %v1575 = vsub.s32 %v1572, %v1574
        %v1576 = vrot.slane %v1042, %v1575
        %v1577 = vcombine.high %v1576, %v1576
        %v1579 = vunpack.c.l.s4 1966171168
        %v1580 = vunpack.c.0.s8 %v1579
        %v1581 = vlaneseq
        %v1582 = vshrl.u32 %v1581, 7
        %v1583 = vsub.s32 %v1580, %v1582
        %v1584 = vrot.slane %v1576, %v1583
        %v1586 = vunpack.c.l.s4 1966171168
        %v1587 = vunpack.c.0.s8 %v1586
        %v1588 = vlaneseq
        %v1589 = vshrl.u32 %v1588, 7
        %v1590 = vsub.s32 %v1587, %v1589
        %v1591 = vrot.slane %v1577, %v1590
        %v1592 = vlaneseq
        %v1593 = vshrl.u32 %v1592, 7
        %v1594 = vsub.s32 0, %v1593
        %v1595 = vrot.slane %v1584, %v1594
        %v1596 = vlaneseq
        %v1597 = vshrl.u32 %v1596, 7
        %v1598 = vsub.s32 0, %v1597
        %v1599 = vrot.slane %v1591, %v1598
        %v1602 = vmul.f32 %v1595, %v625
        %v1603 = vmul.f32 %v1595, %v626
        %v1604 = vmul.f32 %v1599, %v625
        %v1605 = vmul.f32 %v1599, %v626
        %v1606 = vmul.f32 %v1602, 1.442695
        %v1607 = vpow.pop %v1606
        %v1608 = vmul.f32 %v1603, 1.442695
        %v1609 = vpow.pop %v1608
        %v1610 = vmul.f32 %v1604, 1.442695
        %v1611 = vpow.pop %v1610
        %v1612 = vmul.f32 %v1605, 1.442695
        %v1613 = vpow.pop %v1612
        %v1614 = vmul.f32 %v1607, %v1527
        %v1615 = vmul.f32 %v1609, %v1528
        %v1616 = vmul.f32 %v1611, %v1529
        %v1617 = vmul.f32 %v1613, %v1530
        %v1620 = vunpack.c.l.s4 1966171168
        %v1621 = vunpack.c.0.s8 %v1620
        %v1622 = vlaneseq
        %v1623 = vshrl.u32 %v1622, 7
        %v1624 = vsub.s32 %v1621, %v1623
        %v1625 = vrot.slane %v1044, %v1624
        %v1626 = vcombine.high %v1625, %v1625
        %v1628 = vunpack.c.l.s4 1966171168
        %v1629 = vunpack.c.0.s8 %v1628
        %v1630 = vlaneseq
        %v1631 = vshrl.u32 %v1630, 7
        %v1632 = vsub.s32 %v1629, %v1631
        %v1633 = vrot.slane %v1625, %v1632
        %v1635 = vunpack.c.l.s4 1966171168
        %v1636 = vunpack.c.0.s8 %v1635
        %v1637 = vlaneseq
        %v1638 = vshrl.u32 %v1637, 7
        %v1639 = vsub.s32 %v1636, %v1638
        %v1640 = vrot.slane %v1626, %v1639
        %v1641 = vlaneseq
        %v1642 = vshrl.u32 %v1641, 7
        %v1643 = vsub.s32 0, %v1642
        %v1644 = vrot.slane %v998, %v1643
        %s1646 = sor.u32 256, 64
        %1647 = vbcast.lane.b32.xlu0 %v1644, %s1646
        %v1648 = vpop.permute.xlu0 %1647
        %s1650 = sor.u32 256, 72
        %1651 = vbcast.lane.b32.xlu0 %v1644, %s1650
        %v1652 = vpop.permute.xlu0 %1651
        %v1653 = vlaneseq
        %v1654 = vshrl.u32 %v1653, 7
        %v1655 = vsub.s32 1, %v1654
        %v1656 = vrot.slane %v998, %v1655
        %s1658 = sor.u32 256, 64
        %1659 = vbcast.lane.b32.xlu0 %v1656, %s1658
        %v1660 = vpop.permute.xlu0 %1659
        %s1662 = sor.u32 256, 72
        %1663 = vbcast.lane.b32.xlu0 %v1656, %s1662
        %v1664 = vpop.permute.xlu0 %1663
        %v1665 = vlaneseq
        %v1666 = vshrl.u32 %v1665, 7
        %v1667 = vsub.s32 0, %v1666
        %v1668 = vrot.slane %v1633, %v1667
        %v1669 = vlaneseq
        %v1670 = vshrl.u32 %v1669, 7
        %v1671 = vsub.s32 0, %v1670
        %v1672 = vrot.slane %v1640, %v1671
        %v1675 = vmul.f32 %v1668, %v1648
        %v1676 = vmul.f32 %v1668, %v1652
        %v1677 = vmul.f32 %v1672, %v1660
        %v1678 = vmul.f32 %v1672, %v1664
        %v1679 = vadd.f32 %v1614, %v1675
        %v1680 = vadd.f32 %v1615, %v1676
        %v1681 = vadd.f32 %v1616, %v1677
        %v1682 = vadd.f32 %v1617, %v1678
        %s1684 = sor.u32 256, 80
        %1685 = vbcast.lane.b32.xlu0 %v1644, %s1684
        %v1686 = vpop.permute.xlu0 %1685
        %s1688 = sor.u32 256, 88
        %1689 = vbcast.lane.b32.xlu0 %v1644, %s1688
        %v1690 = vpop.permute.xlu0 %1689
        %s1692 = sor.u32 256, 80
        %1693 = vbcast.lane.b32.xlu0 %v1656, %s1692
        %v1694 = vpop.permute.xlu0 %1693
        %s1696 = sor.u32 256, 88
        %1697 = vbcast.lane.b32.xlu0 %v1656, %s1696
        %v1698 = vpop.permute.xlu0 %1697
        %v1699 = vmul.f32 %v1679, %v1686
        %v1700 = vmul.f32 %v1680, %v1690
        %v1701 = vmul.f32 %v1681, %v1694
        %v1702 = vmul.f32 %v1682, %v1698
        %v1703 = vsel %vm956, %v1699, 0.0
        %v1704 = vsel %vm956, %v1700, 0.0
        %v1705 = vadd.f32 %v1703, %v1704
        %v1706 = vrot.slane %v1705, 4
        %v1707 = vadd.f32 %v1705, %v1706
        %v1708 = vrot.slane %v1707, 2
        %v1709 = vadd.f32 %v1707, %v1708
        %v1710 = vrot.slane %v1709, 1
        %v1711 = vadd.f32 %v1709, %v1710
        %v1712 = vsel %vm956, %v1701, 0.0
        %v1713 = vsel %vm956, %v1702, 0.0
        %v1714 = vadd.f32 %v1712, %v1713
        %v1715 = vrot.slane %v1714, 4
        %v1716 = vadd.f32 %v1714, %v1715
        %v1717 = vrot.slane %v1716, 2
        %v1718 = vadd.f32 %v1716, %v1717
        %v1719 = vrot.slane %v1718, 1
        %v1720 = vadd.f32 %v1718, %v1719
        %v1721 = vcombine.high %v1584, %v1584
        %v1722 = vcombine.high %v1591, %v1591
        %v1723 = vlaneseq
        %v1724 = vshrl.u32 %v1723, 7
        %v1725 = vsub.s32 0, %v1724
        %v1726 = vrot.slane %v1721, %v1725
        %v1727 = vlaneseq
        %v1728 = vshrl.u32 %v1727, 7
        %v1729 = vsub.s32 0, %v1728
        %v1730 = vrot.slane %v1722, %v1729
        %v1733 = vmul.f32 %v1726, %v625
        %v1734 = vmul.f32 %v1726, %v626
        %v1735 = vmul.f32 %v1730, %v625
        %v1736 = vmul.f32 %v1730, %v626
        %v1737 = vmul.f32 %v1733, 1.442695
        %v1738 = vpow.pop %v1737
        %v1739 = vmul.f32 %v1734, 1.442695
        %v1740 = vpow.pop %v1739
        %v1741 = vmul.f32 %v1735, 1.442695
        %v1742 = vpow.pop %v1741
        %v1743 = vmul.f32 %v1736, 1.442695
        %v1744 = vpow.pop %v1743
        %v1745 = vmul.f32 %v1738, %v1679
        %v1746 = vmul.f32 %v1740, %v1680
        %v1747 = vmul.f32 %v1742, %v1681
        %v1748 = vmul.f32 %v1744, %v1682
        %v1749 = vcombine.high %v1633, %v1633
        %v1750 = vcombine.high %v1640, %v1640
        %v1751 = vlaneseq
        %v1752 = vshrl.u32 %v1751, 7
        %v1753 = vsub.s32 2, %v1752
        %v1754 = vrot.slane %v998, %v1753
        %s1756 = sor.u32 256, 64
        %1757 = vbcast.lane.b32.xlu0 %v1754, %s1756
        %v1758 = vpop.permute.xlu0 %1757
        %s1760 = sor.u32 256, 72
        %1761 = vbcast.lane.b32.xlu0 %v1754, %s1760
        %v1762 = vpop.permute.xlu0 %1761
        %v1763 = vlaneseq
        %v1764 = vshrl.u32 %v1763, 7
        %v1765 = vsub.s32 3, %v1764
        %v1766 = vrot.slane %v998, %v1765
        %s1768 = sor.u32 256, 64
        %1769 = vbcast.lane.b32.xlu0 %v1766, %s1768
        %v1770 = vpop.permute.xlu0 %1769
        %s1772 = sor.u32 256, 72
        %1773 = vbcast.lane.b32.xlu0 %v1766, %s1772
        %v1774 = vpop.permute.xlu0 %1773
        %v1775 = vlaneseq
        %v1776 = vshrl.u32 %v1775, 7
        %v1777 = vsub.s32 0, %v1776
        %v1778 = vrot.slane %v1749, %v1777
        %v1779 = vlaneseq
        %v1780 = vshrl.u32 %v1779, 7
        %v1781 = vsub.s32 0, %v1780
        %v1782 = vrot.slane %v1750, %v1781
        %v1785 = vmul.f32 %v1778, %v1758
        %v1786 = vmul.f32 %v1778, %v1762
        %v1787 = vmul.f32 %v1782, %v1770
        %v1788 = vmul.f32 %v1782, %v1774
        %v1789 = vadd.f32 %v1745, %v1785
        %v1790 = vadd.f32 %v1746, %v1786
        %v1791 = vadd.f32 %v1747, %v1787
        %v1792 = vadd.f32 %v1748, %v1788
        %s1794 = sor.u32 256, 80
        %1795 = vbcast.lane.b32.xlu0 %v1754, %s1794
        %v1796 = vpop.permute.xlu0 %1795
        %s1798 = sor.u32 256, 88
        %1799 = vbcast.lane.b32.xlu0 %v1754, %s1798
        %v1800 = vpop.permute.xlu0 %1799
        %s1802 = sor.u32 256, 80
        %1803 = vbcast.lane.b32.xlu0 %v1766, %s1802
        %v1804 = vpop.permute.xlu0 %1803
        %s1806 = sor.u32 256, 88
        %1807 = vbcast.lane.b32.xlu0 %v1766, %s1806
        %v1808 = vpop.permute.xlu0 %1807
        %v1809 = vmul.f32 %v1789, %v1796
        %v1810 = vmul.f32 %v1790, %v1800
        %v1811 = vmul.f32 %v1791, %v1804
        %v1812 = vmul.f32 %v1792, %v1808
        %v1813 = vsel %vm956, %v1809, 0.0
        %v1814 = vsel %vm956, %v1810, 0.0
        %v1815 = vadd.f32 %v1813, %v1814
        %v1816 = vrot.slane %v1815, 4
        %v1817 = vadd.f32 %v1815, %v1816
        %v1818 = vrot.slane %v1817, 2
        %v1819 = vadd.f32 %v1817, %v1818
        %v1820 = vrot.slane %v1819, 1
        %v1821 = vadd.f32 %v1819, %v1820
        %v1822 = vsel %vm956, %v1811, 0.0
        %v1823 = vsel %vm956, %v1812, 0.0
        %v1824 = vadd.f32 %v1822, %v1823
        %v1825 = vrot.slane %v1824, 4
        %v1826 = vadd.f32 %v1824, %v1825
        %v1827 = vrot.slane %v1826, 2
        %v1828 = vadd.f32 %v1826, %v1827
        %v1829 = vrot.slane %v1828, 1
        %v1830 = vadd.f32 %v1828, %v1829
        %v1831 = vcombine.high %v1042, %v1042
        %v1833 = vunpack.c.l.s4 1966171168
        %v1834 = vunpack.c.0.s8 %v1833
        %v1835 = vlaneseq
        %v1836 = vshrl.u32 %v1835, 7
        %v1837 = vsub.s32 %v1834, %v1836
        %v1838 = vrot.slane %v1831, %v1837
        %v1839 = vcombine.high %v1838, %v1838
        %v1841 = vunpack.c.l.s4 1966171168
        %v1842 = vunpack.c.0.s8 %v1841
        %v1843 = vlaneseq
        %v1844 = vshrl.u32 %v1843, 7
        %v1845 = vsub.s32 %v1842, %v1844
        %v1846 = vrot.slane %v1838, %v1845
        %v1848 = vunpack.c.l.s4 1966171168
        %v1849 = vunpack.c.0.s8 %v1848
        %v1850 = vlaneseq
        %v1851 = vshrl.u32 %v1850, 7
        %v1852 = vsub.s32 %v1849, %v1851
        %v1853 = vrot.slane %v1839, %v1852
        %v1854 = vlaneseq
        %v1855 = vshrl.u32 %v1854, 7
        %v1856 = vsub.s32 0, %v1855
        %v1857 = vrot.slane %v1846, %v1856
        %v1858 = vlaneseq
        %v1859 = vshrl.u32 %v1858, 7
        %v1860 = vsub.s32 0, %v1859
        %v1861 = vrot.slane %v1853, %v1860
        %v1864 = vmul.f32 %v1857, %v625
        %v1865 = vmul.f32 %v1857, %v626
        %v1866 = vmul.f32 %v1861, %v625
        %v1867 = vmul.f32 %v1861, %v626
        %v1868 = vmul.f32 %v1864, 1.442695
        %v1869 = vpow.pop %v1868
        %v1870 = vmul.f32 %v1865, 1.442695
        %v1871 = vpow.pop %v1870
        %v1872 = vmul.f32 %v1866, 1.442695
        %v1873 = vpow.pop %v1872
        %v1874 = vmul.f32 %v1867, 1.442695
        %v1875 = vpow.pop %v1874
        %v1876 = vmul.f32 %v1869, %v1789
        %v1877 = vmul.f32 %v1871, %v1790
        %v1878 = vmul.f32 %v1873, %v1791
        %v1879 = vmul.f32 %v1875, %v1792
        %v1880 = vcombine.high %v1044, %v1044
        %v1882 = vunpack.c.l.s4 1966171168
        %v1883 = vunpack.c.0.s8 %v1882
        %v1884 = vlaneseq
        %v1885 = vshrl.u32 %v1884, 7
        %v1886 = vsub.s32 %v1883, %v1885
        %v1887 = vrot.slane %v1880, %v1886
        %v1888 = vcombine.high %v1887, %v1887
        %v1890 = vunpack.c.l.s4 1966171168
        %v1891 = vunpack.c.0.s8 %v1890
        %v1892 = vlaneseq
        %v1893 = vshrl.u32 %v1892, 7
        %v1894 = vsub.s32 %v1891, %v1893
        %v1895 = vrot.slane %v1887, %v1894
        %v1897 = vunpack.c.l.s4 1966171168
        %v1898 = vunpack.c.0.s8 %v1897
        %v1899 = vlaneseq
        %v1900 = vshrl.u32 %v1899, 7
        %v1901 = vsub.s32 %v1898, %v1900
        %v1902 = vrot.slane %v1888, %v1901
        %v1903 = vlaneseq
        %v1904 = vshrl.u32 %v1903, 7
        %v1905 = vsub.s32 4, %v1904
        %v1906 = vrot.slane %v998, %v1905
        %s1908 = sor.u32 256, 64
        %1909 = vbcast.lane.b32.xlu0 %v1906, %s1908
        %v1910 = vpop.permute.xlu0 %1909
        %s1912 = sor.u32 256, 72
        %1913 = vbcast.lane.b32.xlu0 %v1906, %s1912
        %v1914 = vpop.permute.xlu0 %1913
        %v1915 = vlaneseq
        %v1916 = vshrl.u32 %v1915, 7
        %v1917 = vsub.s32 5, %v1916
        %v1918 = vrot.slane %v998, %v1917
        %s1920 = sor.u32 256, 64
        %1921 = vbcast.lane.b32.xlu0 %v1918, %s1920
        %v1922 = vpop.permute.xlu0 %1921
        %s1924 = sor.u32 256, 72
        %1925 = vbcast.lane.b32.xlu0 %v1918, %s1924
        %v1926 = vpop.permute.xlu0 %1925
        %v1927 = vlaneseq
        %v1928 = vshrl.u32 %v1927, 7
        %v1929 = vsub.s32 0, %v1928
        %v1930 = vrot.slane %v1895, %v1929
        %v1931 = vlaneseq
        %v1932 = vshrl.u32 %v1931, 7
        %v1933 = vsub.s32 0, %v1932
        %v1934 = vrot.slane %v1902, %v1933
        %v1937 = vmul.f32 %v1930, %v1910
        %v1938 = vmul.f32 %v1930, %v1914
        %v1939 = vmul.f32 %v1934, %v1922
        %v1940 = vmul.f32 %v1934, %v1926
        %v1941 = vadd.f32 %v1876, %v1937
        %v1942 = vadd.f32 %v1877, %v1938
        %v1943 = vadd.f32 %v1878, %v1939
        %v1944 = vadd.f32 %v1879, %v1940
        %s1946 = sor.u32 256, 80
        %1947 = vbcast.lane.b32.xlu0 %v1906, %s1946
        %v1948 = vpop.permute.xlu0 %1947
        %s1950 = sor.u32 256, 88
        %1951 = vbcast.lane.b32.xlu0 %v1906, %s1950
        %v1952 = vpop.permute.xlu0 %1951
        %s1954 = sor.u32 256, 80
        %1955 = vbcast.lane.b32.xlu0 %v1918, %s1954
        %v1956 = vpop.permute.xlu0 %1955
        %s1958 = sor.u32 256, 88
        %1959 = vbcast.lane.b32.xlu0 %v1918, %s1958
        %v1960 = vpop.permute.xlu0 %1959
        %v1961 = vmul.f32 %v1941, %v1948
        %v1962 = vmul.f32 %v1942, %v1952
        %v1963 = vmul.f32 %v1943, %v1956
        %v1964 = vmul.f32 %v1944, %v1960
        %v1965 = vsel %vm956, %v1961, 0.0
        %v1966 = vsel %vm956, %v1962, 0.0
        %v1967 = vadd.f32 %v1965, %v1966
        %v1968 = vrot.slane %v1967, 4
        %v1969 = vadd.f32 %v1967, %v1968
        %v1970 = vrot.slane %v1969, 2
        %v1971 = vadd.f32 %v1969, %v1970
        %v1972 = vrot.slane %v1971, 1
        %v1973 = vadd.f32 %v1971, %v1972
        %v1974 = vsel %vm956, %v1963, 0.0
        %v1975 = vsel %vm956, %v1964, 0.0
        %v1976 = vadd.f32 %v1974, %v1975
        %v1977 = vrot.slane %v1976, 4
        %v1978 = vadd.f32 %v1976, %v1977
        %v1979 = vrot.slane %v1978, 2
        %v1980 = vadd.f32 %v1978, %v1979
        %v1981 = vrot.slane %v1980, 1
        %v1982 = vadd.f32 %v1980, %v1981
        %v1983 = vcombine.high %v1846, %v1846
        %v1984 = vcombine.high %v1853, %v1853
        %v1985 = vlaneseq
        %v1986 = vshrl.u32 %v1985, 7
        %v1987 = vsub.s32 0, %v1986
        %v1988 = vrot.slane %v1983, %v1987
        %v1989 = vlaneseq
        %v1990 = vshrl.u32 %v1989, 7
        %v1991 = vsub.s32 0, %v1990
        %v1992 = vrot.slane %v1984, %v1991
        %v1995 = vmul.f32 %v1988, %v625
        %v1996 = vmul.f32 %v1988, %v626
        %v1997 = vmul.f32 %v1992, %v625
        %v1998 = vmul.f32 %v1992, %v626
        %v1999 = vmul.f32 %v1995, 1.442695
        %v2000 = vpow.pop %v1999
        %v2001 = vmul.f32 %v1996, 1.442695
        %v2002 = vpow.pop %v2001
        %v2003 = vmul.f32 %v1997, 1.442695
        %v2004 = vpow.pop %v2003
        %v2005 = vmul.f32 %v1998, 1.442695
        %v2006 = vpow.pop %v2005
        %v2007 = vmul.f32 %v2000, %v1941
        %v2008 = vmul.f32 %v2002, %v1942
        %v2009 = vmul.f32 %v2004, %v1943
        %v2010 = vmul.f32 %v2006, %v1944
        %v2011 = vcombine.high %v1895, %v1895
        %v2012 = vcombine.high %v1902, %v1902
        %v2013 = vlaneseq
        %v2014 = vshrl.u32 %v2013, 7
        %v2015 = vsub.s32 6, %v2014
        %v2016 = vrot.slane %v998, %v2015
        %s2018 = sor.u32 256, 64
        %2019 = vbcast.lane.b32.xlu0 %v2016, %s2018
        %v2020 = vpop.permute.xlu0 %2019
        %s2022 = sor.u32 256, 72
        %2023 = vbcast.lane.b32.xlu0 %v2016, %s2022
        %v2024 = vpop.permute.xlu0 %2023
        %v2025 = vlaneseq
        %v2026 = vshrl.u32 %v2025, 7
        %v2027 = vsub.s32 7, %v2026
        %v2028 = vrot.slane %v998, %v2027
        %s2030 = sor.u32 256, 64
        %2031 = vbcast.lane.b32.xlu0 %v2028, %s2030
        %v2032 = vpop.permute.xlu0 %2031
        %s2034 = sor.u32 256, 72
        %2035 = vbcast.lane.b32.xlu0 %v2028, %s2034
        %v2036 = vpop.permute.xlu0 %2035
        %v2037 = vlaneseq
        %v2038 = vshrl.u32 %v2037, 7
        %v2039 = vsub.s32 0, %v2038
        %v2040 = vrot.slane %v2011, %v2039
        %v2041 = vlaneseq
        %v2042 = vshrl.u32 %v2041, 7
        %v2043 = vsub.s32 0, %v2042
        %v2044 = vrot.slane %v2012, %v2043
        %v2047 = vmul.f32 %v2040, %v2020
        %v2048 = vmul.f32 %v2040, %v2024
        %v2049 = vmul.f32 %v2044, %v2032
        %v2050 = vmul.f32 %v2044, %v2036
        %v2051 = vadd.f32 %v2007, %v2047
        %v2052 = vadd.f32 %v2008, %v2048
        %v2053 = vadd.f32 %v2009, %v2049
        %v2054 = vadd.f32 %v2010, %v2050
        %s2056 = sor.u32 256, 80
        %2057 = vbcast.lane.b32.xlu0 %v2016, %s2056
        %v2058 = vpop.permute.xlu0 %2057
        %s2060 = sor.u32 256, 88
        %2061 = vbcast.lane.b32.xlu0 %v2016, %s2060
        %v2062 = vpop.permute.xlu0 %2061
        %s2064 = sor.u32 256, 80
        %2065 = vbcast.lane.b32.xlu0 %v2028, %s2064
        %v2066 = vpop.permute.xlu0 %2065
        %s2068 = sor.u32 256, 88
        %2069 = vbcast.lane.b32.xlu0 %v2028, %s2068
        %v2070 = vpop.permute.xlu0 %2069
        %v2071 = vmul.f32 %v2051, %v2058
        %v2072 = vmul.f32 %v2052, %v2062
        %v2073 = vmul.f32 %v2053, %v2066
        %v2074 = vmul.f32 %v2054, %v2070
        %v2075 = vsel %vm956, %v2071, 0.0
        %v2076 = vsel %vm956, %v2072, 0.0
        %v2077 = vadd.f32 %v2075, %v2076
        %v2078 = vrot.slane %v2077, 4
        %v2079 = vadd.f32 %v2077, %v2078
        %v2080 = vrot.slane %v2079, 2
        %v2081 = vadd.f32 %v2079, %v2080
        %v2082 = vrot.slane %v2081, 1
        %v2083 = vadd.f32 %v2081, %v2082
        %v2084 = vsel %vm956, %v2073, 0.0
        %v2085 = vsel %vm956, %v2074, 0.0
        %v2086 = vadd.f32 %v2084, %v2085
        %v2087 = vrot.slane %v2086, 4
        %v2088 = vadd.f32 %v2086, %v2087
        %v2089 = vrot.slane %v2088, 2
        %v2090 = vadd.f32 %v2088, %v2089
        %v2091 = vrot.slane %v2090, 1
        %v2092 = vadd.f32 %v2090, %v2091
        %vm2095 = vcmask 1041409
        %v2096 = vsel %vm2095, %v1196, %v1187
        %vm2100 = vcmask 1043459
        %v2101 = vsel %vm2100, %v1306, %v1297
        %vm2105 = vcmask 1045509
        %v2106 = vsel %vm2105, %v1458, %v1449
        %vm2110 = vcmask 1047559
        %v2111 = vsel %vm2110, %v1568, %v1559
        %v2115 = vsel %vm2095, %v1720, %v1711
        %v2119 = vsel %vm2100, %v1830, %v1821
        %v2123 = vsel %vm2105, %v1982, %v1973
        %v2127 = vsel %vm2110, %v2092, %v2083
        %vm2129 = vcmask 1041408
        %v2130 = vsel %vm2129, %v2096, %v2101
        %vm2131 = vcmask 1043456
        %v2132 = vsel %vm2131, %v2130, %v2106
        %vm2133 = vcmask 1045504
        %v2134 = vsel %vm2133, %v2132, %v2111
        %v2135 = vsel %vm2129, %v2115, %v2119
        %v2136 = vsel %vm2131, %v2135, %v2123
        %v2137 = vsel %vm2133, %v2136, %v2127
        %v2138 = vlaneseq
        %v2139 = vshrl.u32 %v2138, 7
        %v2140 = vsub.s32 2, %v2139
        %v2141 = vrot.slane %v616, %v2140
        %v2142 = vmul.f32 %v929, %v2141
        %v2143 = vmul.f32 %v930, %v2141
        %v2144 = vadd.f32 %v2134, %v2142
        %v2145 = vadd.f32 %v2137, %v2143
        %v2146 = vxor.u32 %v726, 2147483648
        %v2147 = vxor.u32 %v729, 2147483648
        %v2148 = vmul.f32 %v2146, 1.442695
        %v2149 = vpow.pop %v2148
        %v2150 = vmul.f32 %v2147, 1.442695
        %v2151 = vpow.pop %v2150
        %v2152 = vadd.f32 %v2149, 1.0
        %v2153 = vadd.f32 %v2151, 1.0
        %v2154 = vrcp.pop %v2152
        %v2155 = vmul.f32 1.0, %v2154
        %v2156 = vrcp.pop %v2153
        %v2157 = vmul.f32 1.0, %v2156
        %v2158 = vmul.f32 %v726, %v2155
        %v2159 = vmul.f32 %v729, %v2157
        %2162 = vrot.lane.b32.xlu0 %v2158, 64
        %v2163 = vpop.permute.xlu0 %2162
        %2164 = vrot.lane.b32.xlu0 %v2159, 64
        %v2165 = vpop.permute.xlu0 %2164
        %v2168 = vmul.f32 %v2144, %v2163
        %v2169 = vmul.f32 %v2145, %v2165
        %v2170 = vpack.c.bf16 %v2169, %v2168
        %v2179 = vunpack.c.l.b16 %v627
        %v2180 = vunpack.c.l.b16 %v628
        %v2181 = vunpack.c.l.b16 %v629
        %v2182 = vunpack.c.l.b16 %v630
        %v2183 = vunpack.c.l.b16 %v631
        %v2184 = vunpack.c.l.b16 %v632
        %v2185 = vunpack.c.l.b16 %v633
        %v2186 = vunpack.c.l.b16 %v634
        %v2187 = vpack.c.b16 %v2180, %v2179
        %v2188 = vpack.c.b16 %v2182, %v2181
        %v2189 = vpack.c.b16 %v2184, %v2183
        %v2190 = vpack.c.b16 %v2186, %v2185
        %v2196 = vsel %vm956, %v2170, 0
        %2198 = vmatprep.subr.bf16.mxu0 0
        %2199 = vmatpush1.bf16.msra.mxu0 %v2187
        %2200 = vmatprep.subr.bf16.mxu0 0
        %2201 = vmatpush1.bf16.msra.mxu0 %v2188
        %2202 = vmatprep.subr.bf16.mxu0 0
        %2203 = vmatpush1.bf16.msra.mxu0 %v2189
        %2204 = vmatprep.subr.bf16.mxu0 0
        %2205 = vmatpush1.bf16.msra.mxu0 %v2190
        %2206 = vmatprep.subr.bf16.mxu0 0
        %2207 = vmatpush1.bf16.msra.mxu0 0
        %2208 = vmatprep.subr.bf16.mxu0 0
        %2209 = vmatpush1.bf16.msra.mxu0 0
        %2210 = vmatprep.subr.bf16.mxu0 0
        %2211 = vmatpush1.bf16.msra.mxu0 0
        %2212 = vmatprep.subr.bf16.mxu0 0
        %2213 = vmatpush1.bf16.msra.mxu0 0
        %2214 = vmatprep.subr.bf16.mxu0 0
        %2215 = vmatpush1.bf16.msra.mxu0 0
        %2216 = vmatprep.subr.bf16.mxu0 0
        %2217 = vmatpush1.bf16.msra.mxu0 0
        %2218 = vmatprep.subr.bf16.mxu0 0
        %2219 = vmatpush1.bf16.msra.mxu0 0
        %2220 = vmatprep.subr.bf16.mxu0 0
        %2221 = vmatpush1.bf16.msra.mxu0 0
        %2222 = vmatprep.subr.bf16.mxu0 0
        %2223 = vmatpush1.bf16.msra.mxu0 0
        %2224 = vmatprep.subr.bf16.mxu0 0
        %2225 = vmatpush1.bf16.msra.mxu0 0
        %2226 = vmatprep.subr.bf16.mxu0 0
        %2227 = vmatpush1.bf16.msra.mxu0 0
        %2228 = vmatprep.subr.bf16.mxu0 0
        %2229 = vmatpush1.bf16.msra.mxu0 0
        %2230 = vmatprep.mubr.bf16.mxu0 0
        %2231 = vmatmul.mubr.bf16.gmra.mrb[0].mxu0 %v2196
        %v2232 = vpop.f32.mrb[0].mxu0
        %v2233 = vadd.f32 0.0, %v2232
        %v2234 = vpop.f32.mrb[0].mxu0
        %v2235 = vpop.f32.mrb[0].mxu0
        %v2236 = vadd.f32 0.0, %v2235
        %v2237 = vpop.f32.mrb[0].mxu0
        %2238 = vdwg.mxu0
        %2239 = vst [vmem:[%s581] sm:$0xff] %v2233
        %2240 = vst [vmem:[%s581 + $0x8] sm:$0xff] %v2236
        %s2241 = scalar_lea.vmem %s467, 16 [#allocation2]
        %v2242 = vld [vmem:[%s2241] sm:$0xff]
        %v2243 = vld [vmem:[%s2241 + $0x8] sm:$0xff]
        %s2244 = scalar_lea.vmem %s476, 2 [#allocation5]
        %v2245 = vld [vmem:[%s2244] sm:$0x3]
        %s2246 = scalar_lea.vmem %s485, 16 [#allocation7]
        %v2247 = vld [vmem:[%s2246] sm:$0xf]
        %v2248 = vld [vmem:[%s2246 + $0x4] sm:$0xf]
        %v2249 = vld [vmem:[%s2246 + $0x8] sm:$0xf]
        %v2250 = vld [vmem:[%s2246 + $0xc] sm:$0xf]
        %s2251 = scalar_lea.vmem %s589, 4
        %v2252 = vld [vmem:[%s2251] sm:$0xf]
        %s2253 = scalar_lea.vmem %s595, 4
        %v2254 = vld [vmem:[%s2253] sm:$0x7]
        %s2255 = scalar_lea.vmem %s494, 32 [#allocation8]
        %v2256 = vld [vmem:[%s2255] sm:$0xf]
        %v2257 = vld [vmem:[%s2255 + $0x4] sm:$0xf]
        %v2258 = vld [vmem:[%s2255 + $0x8] sm:$0xf]
        %v2259 = vld [vmem:[%s2255 + $0xc] sm:$0xf]
        %v2260 = vld [vmem:[%s2255 + $0x10] sm:$0xf]
        %v2261 = vld [vmem:[%s2255 + $0x14] sm:$0xf]
        %v2262 = vld [vmem:[%s2255 + $0x18] sm:$0xf]
        %v2263 = vld [vmem:[%s2255 + $0x1c] sm:$0xf]
        %s2264 = scalar_lea.vmem %s503, 16 [#allocation10]
        %v2265 = vld [vmem:[%s2264] sm:$0xff]
        %v2266 = vld [vmem:[%s2264 + $0x8] sm:$0xff]
        %s2267 = scalar_lea.vmem %s512, 32 [#allocation11]
        %v2268 = vld [vmem:[%s2267] sm:$0xf]
        %v2269 = vld [vmem:[%s2267 + $0x4] sm:$0xf]
        %v2270 = vld [vmem:[%s2267 + $0x8] sm:$0xf]
        %v2271 = vld [vmem:[%s2267 + $0xc] sm:$0xf]
        %v2272 = vld [vmem:[%s2267 + $0x10] sm:$0xf]
        %v2273 = vld [vmem:[%s2267 + $0x14] sm:$0xf]
        %v2274 = vld [vmem:[%s2267 + $0x18] sm:$0xf]
        %v2275 = vld [vmem:[%s2267 + $0x1c] sm:$0xf]
        %v2276 = vsel %vm635, %v2242, 0.0
        %2277 = vadd.xlane.f32.xlu0 %v2276
        %v2278 = vpop.xlane.xlu0 %2277
        %v2279 = vsel %vm635, %v2243, 0.0
        %2280 = vadd.xlane.f32.xlu0 %v2279
        %v2281 = vpop.xlane.xlu0 %2280
        %v2282 = vmul.f32 %v2278, %v642
        %v2283 = vmul.f32 %v2281, %v642
        %v2284 = vsub.f32 %v2242, %v2282
        %v2285 = vsub.f32 %v2243, %v2283
        %v2286 = vmul.f32 %v2284, %v2284
        %v2287 = vmul.f32 %v2285, %v2285
        %v2288 = vsel %vm635, %v2286, 0.0
        %2289 = vadd.xlane.f32.xlu0 %v2288
        %v2290 = vpop.xlane.xlu0 %2289
        %v2291 = vsel %vm635, %v2287, 0.0
        %2292 = vadd.xlane.f32.xlu0 %v2291
        %v2293 = vpop.xlane.xlu0 %2292
        %v2294 = vmul.f32 %v2290, %v642
        %v2295 = vmul.f32 %v2293, %v642
        %v2296 = vadd.f32 %v2294, 1e-05
        %v2297 = vadd.f32 %v2295, 1e-05
        %v2298 = vrsqrt.pop %v2296
        %v2299 = vrsqrt.pop %v2297
        %v2300 = vmul.f32 %v2284, %v2298
        %v2301 = vmul.f32 %v2285, %v2299
        %v2302 = vlaneseq
        %v2303 = vshrl.u32 %v2302, 7
        %v2304 = vsub.s32 0, %v2303
        %v2305 = vrot.slane %v2245, %v2304
        %v2306 = vmul.f32 %v2300, %v2305
        %v2307 = vmul.f32 %v2301, %v2305
        %v2308 = vlaneseq
        %v2309 = vshrl.u32 %v2308, 7
        %v2310 = vsub.s32 1, %v2309
        %v2311 = vrot.slane %v2245, %v2310
        %v2312 = vadd.f32 %v2306, %v2311
        %v2313 = vadd.f32 %v2307, %v2311
        %v2314 = vpack.c.bf16 %v2313, %v2312
        %v2319 = vunpack.c.l.b16 %v2247
        %v2320 = vunpack.c.l.b16 %v2248
        %v2321 = vunpack.c.l.b16 %v2249
        %v2322 = vunpack.c.l.b16 %v2250
        %v2323 = vpack.c.b16 %v2320, %v2319
        %v2324 = vpack.c.b16 %v2322, %v2321
        %v2328 = vsel %vm635, %v2314, 0
        %2330 = vmatprep.subr.bf16.mxu0 0
        %2331 = vmatpush1.bf16.msra.mxu0 %v2323
        %2332 = vmatprep.subr.bf16.mxu0 0
        %2333 = vmatpush1.bf16.msra.mxu0 %v2324
        %2334 = vmatprep.subr.bf16.mxu0 0
        %2335 = vmatpush1.bf16.msra.mxu0 0
        %2336 = vmatprep.subr.bf16.mxu0 0
        %2337 = vmatpush1.bf16.msra.mxu0 0
        %2338 = vmatprep.subr.bf16.mxu0 0
        %2339 = vmatpush1.bf16.msra.mxu0 0
        %2340 = vmatprep.subr.bf16.mxu0 0
        %2341 = vmatpush1.bf16.msra.mxu0 0
        %2342 = vmatprep.subr.bf16.mxu0 0
        %2343 = vmatpush1.bf16.msra.mxu0 0
        %2344 = vmatprep.subr.bf16.mxu0 0
        %2345 = vmatpush1.bf16.msra.mxu0 0
        %2346 = vmatprep.subr.bf16.mxu0 0
        %2347 = vmatpush1.bf16.msra.mxu0 0
        %2348 = vmatprep.subr.bf16.mxu0 0
        %2349 = vmatpush1.bf16.msra.mxu0 0
        %2350 = vmatprep.subr.bf16.mxu0 0
        %2351 = vmatpush1.bf16.msra.mxu0 0
        %2352 = vmatprep.subr.bf16.mxu0 0
        %2353 = vmatpush1.bf16.msra.mxu0 0
        %2354 = vmatprep.subr.bf16.mxu0 0
        %2355 = vmatpush1.bf16.msra.mxu0 0
        %2356 = vmatprep.subr.bf16.mxu0 0
        %2357 = vmatpush1.bf16.msra.mxu0 0
        %2358 = vmatprep.subr.bf16.mxu0 0
        %2359 = vmatpush1.bf16.msra.mxu0 0
        %2360 = vmatprep.subr.bf16.mxu0 0
        %2361 = vmatpush1.bf16.msra.mxu0 0
        %2362 = vmatprep.mubr.bf16.mxu0 0
        %2363 = vmatmul.mubr.bf16.gmra.mrb[0].mxu0 %v2328
        %v2364 = vpop.f32.mrb[0].mxu0
        %v2365 = vadd.f32 0.0, %v2364
        %v2366 = vpop.f32.mrb[0].mxu0
        %v2367 = vpop.f32.mrb[0].mxu0
        %v2368 = vadd.f32 0.0, %v2367
        %v2369 = vpop.f32.mrb[0].mxu0
        %2370 = vdwg.mxu0
        %v2371 = vpack.c.bf16 %v2368, %v2365
        %v2372 = vlaneseq
        %v2373 = vshrl.u32 %v2372, 7
        %v2374 = vsub.s32 3, %v2373
        %v2375 = vrot.slane %v2252, %v2374
        %v2376 = vmul.f32 %v2365, %v2375
        %v2377 = vmul.f32 %v2368, %v2375
        %v2378 = vlaneseq
        %v2379 = vshrl.u32 %v2378, 7
        %v2380 = vsub.s32 0, %v2379
        %v2381 = vrot.slane %v2254, %v2380
        %v2382 = vadd.f32 %v2376, %v2381
        %v2383 = vadd.f32 %v2377, %v2381
        %2384 = vmatprep.subr.bf16.mxu0 0
        %2385 = vmatpush1.bf16.msra.mxu0 %v2371
        %2386 = vmatprep.subr.bf16.mxu0 0
        %2387 = vmatpush1.bf16.msra.mxu0 0
        %2388 = vmatprep.subr.bf16.mxu0 0
        %2389 = vmatpush1.bf16.msra.mxu0 0
        %2390 = vmatprep.subr.bf16.mxu0 0
        %2391 = vmatpush1.bf16.msra.mxu0 0
        %2392 = vmatprep.subr.bf16.mxu0 0
        %2393 = vmatpush1.bf16.msra.mxu0 0
        %2394 = vmatprep.subr.bf16.mxu0 0
        %2395 = vmatpush1.bf16.msra.mxu0 0
        %2396 = vmatprep.subr.bf16.mxu0 0
        %2397 = vmatpush1.bf16.msra.mxu0 0
        %2398 = vmatprep.subr.bf16.mxu0 0
        %2399 = vmatpush1.bf16.msra.mxu0 0
        %2400 = vmatprep.subr.bf16.mxu0 0
        %2401 = vmatpush1.bf16.msra.mxu0 0
        %2402 = vmatprep.subr.bf16.mxu0 0
        %2403 = vmatpush1.bf16.msra.mxu0 0
        %2404 = vmatprep.subr.bf16.mxu0 0
        %2405 = vmatpush1.bf16.msra.mxu0 0
        %2406 = vmatprep.subr.bf16.mxu0 0
        %2407 = vmatpush1.bf16.msra.mxu0 0
        %2408 = vmatprep.subr.bf16.mxu0 0
        %2409 = vmatpush1.bf16.msra.mxu0 0
        %2410 = vmatprep.subr.bf16.mxu0 0
        %2411 = vmatpush1.bf16.msra.mxu0 0
        %2412 = vmatprep.subr.bf16.mxu0 0
        %2413 = vmatpush1.bf16.msra.mxu0 0
        %2414 = vmatprep.subr.bf16.mxu0 0
        %2415 = vmatpush1.bf16.msra.mxu0 0
        %2416 = vmatprep.mubr.bf16.mxu0 0
        %2417 = vmatmul.mubr.bf16.gmra.mrb[0].mxu0 %v752
        %v2418 = vpop.f32.mrb[0].mxu0
        %v2419 = vadd.f32 0.0, %v2418
        %v2420 = vpop.f32.mrb[0].mxu0
        %v2421 = vpop.f32.mrb[0].mxu0
        %v2422 = vadd.f32 0.0, %v2421
        %v2423 = vpop.f32.mrb[0].mxu0
        %2424 = vdwg.mxu0
        %v2425 = vlaneseq
        %v2426 = vshrl.u32 %v2425, 7
        %v2427 = vsub.s32 0, %v2426
        %v2428 = vrot.slane %v2252, %v2427
        %v2429 = vmul.f32 %v2419, %v2428
        %v2430 = vmul.f32 %v2422, %v2428
        %v2431 = vadd.f32 %v2382, %v2429
        %v2432 = vadd.f32 %v2383, %v2430
        %2433 = vmatprep.subr.bf16.mxu0 0
        %2434 = vmatpush1.bf16.msra.mxu0 %v2371
        %2435 = vmatprep.subr.bf16.mxu0 0
        %2436 = vmatpush1.bf16.msra.mxu0 0
        %2437 = vmatprep.subr.bf16.mxu0 0
        %2438 = vmatpush1.bf16.msra.mxu0 0
        %2439 = vmatprep.subr.bf16.mxu0 0
        %2440 = vmatpush1.bf16.msra.mxu0 0
        %2441 = vmatprep.subr.bf16.mxu0 0
        %2442 = vmatpush1.bf16.msra.mxu0 0
        %2443 = vmatprep.subr.bf16.mxu0 0
        %2444 = vmatpush1.bf16.msra.mxu0 0
        %2445 = vmatprep.subr.bf16.mxu0 0
        %2446 = vmatpush1.bf16.msra.mxu0 0
        %2447 = vmatprep.subr.bf16.mxu0 0
        %2448 = vmatpush1.bf16.msra.mxu0 0
        %2449 = vmatprep.subr.bf16.mxu0 0
        %2450 = vmatpush1.bf16.msra.mxu0 0
        %2451 = vmatprep.subr.bf16.mxu0 0
        %2452 = vmatpush1.bf16.msra.mxu0 0
        %2453 = vmatprep.subr.bf16.mxu0 0
        %2454 = vmatpush1.bf16.msra.mxu0 0
        %2455 = vmatprep.subr.bf16.mxu0 0
        %2456 = vmatpush1.bf16.msra.mxu0 0
        %2457 = vmatprep.subr.bf16.mxu0 0
        %2458 = vmatpush1.bf16.msra.mxu0 0
        %2459 = vmatprep.subr.bf16.mxu0 0
        %2460 = vmatpush1.bf16.msra.mxu0 0
        %2461 = vmatprep.subr.bf16.mxu0 0
        %2462 = vmatpush1.bf16.msra.mxu0 0
        %2463 = vmatprep.subr.bf16.mxu0 0
        %2464 = vmatpush1.bf16.msra.mxu0 0
        %2465 = vmatprep.mubr.bf16.mxu0 0
        %2466 = vmatmul.mubr.bf16.gmra.mrb[0].mxu0 %v809
        %v2467 = vpop.f32.mrb[0].mxu0
        %v2468 = vadd.f32 0.0, %v2467
        %v2469 = vpop.f32.mrb[0].mxu0
        %v2470 = vpop.f32.mrb[0].mxu0
        %v2471 = vadd.f32 0.0, %v2470
        %v2472 = vpop.f32.mrb[0].mxu0
        %2473 = vdwg.mxu0
        %v2474 = vlaneseq
        %v2475 = vshrl.u32 %v2474, 7
        %v2476 = vsub.s32 1, %v2475
        %v2477 = vrot.slane %v2252, %v2476
        %v2478 = vmul.f32 %v2468, %v2477
        %v2479 = vmul.f32 %v2471, %v2477
        %v2480 = vadd.f32 %v2431, %v2478
        %v2481 = vadd.f32 %v2432, %v2479
        %2482 = vmatprep.subr.bf16.mxu0 0
        %2483 = vmatpush1.bf16.msra.mxu0 %v2371
        %2484 = vmatprep.subr.bf16.mxu0 0
        %2485 = vmatpush1.bf16.msra.mxu0 0
        %2486 = vmatprep.subr.bf16.mxu0 0
        %2487 = vmatpush1.bf16.msra.mxu0 0
        %2488 = vmatprep.subr.bf16.mxu0 0
        %2489 = vmatpush1.bf16.msra.mxu0 0
        %2490 = vmatprep.subr.bf16.mxu0 0
        %2491 = vmatpush1.bf16.msra.mxu0 0
        %2492 = vmatprep.subr.bf16.mxu0 0
        %2493 = vmatpush1.bf16.msra.mxu0 0
        %2494 = vmatprep.subr.bf16.mxu0 0
        %2495 = vmatpush1.bf16.msra.mxu0 0
        %2496 = vmatprep.subr.bf16.mxu0 0
        %2497 = vmatpush1.bf16.msra.mxu0 0
        %2498 = vmatprep.subr.bf16.mxu0 0
        %2499 = vmatpush1.bf16.msra.mxu0 0
        %2500 = vmatprep.subr.bf16.mxu0 0
        %2501 = vmatpush1.bf16.msra.mxu0 0
        %2502 = vmatprep.subr.bf16.mxu0 0
        %2503 = vmatpush1.bf16.msra.mxu0 0
        %2504 = vmatprep.subr.bf16.mxu0 0
        %2505 = vmatpush1.bf16.msra.mxu0 0
        %2506 = vmatprep.subr.bf16.mxu0 0
        %2507 = vmatpush1.bf16.msra.mxu0 0
        %2508 = vmatprep.subr.bf16.mxu0 0
        %2509 = vmatpush1.bf16.msra.mxu0 0
        %2510 = vmatprep.subr.bf16.mxu0 0
        %2511 = vmatpush1.bf16.msra.mxu0 0
        %2512 = vmatprep.subr.bf16.mxu0 0
        %2513 = vmatpush1.bf16.msra.mxu0 0
        %2514 = vmatprep.mubr.bf16.mxu0 0
        %2515 = vmatmul.mubr.bf16.gmra.mrb[0].mxu0 %v866
        %v2516 = vpop.f32.mrb[0].mxu0
        %v2517 = vadd.f32 0.0, %v2516
        %v2518 = vpop.f32.mrb[0].mxu0
        %v2519 = vpop.f32.mrb[0].mxu0
        %v2520 = vadd.f32 0.0, %v2519
        %v2521 = vpop.f32.mrb[0].mxu0
        %2522 = vdwg.mxu0
        %v2523 = vlaneseq
        %v2524 = vshrl.u32 %v2523, 7
        %v2525 = vsub.s32 2, %v2524
        %v2526 = vrot.slane %v2252, %v2525
        %v2527 = vmul.f32 %v2517, %v2526
        %v2528 = vmul.f32 %v2520, %v2526
        %v2529 = vadd.f32 %v2480, %v2527
        %v2530 = vadd.f32 %v2481, %v2528
        %v2531 = vxor.u32 %v2529, 2147483648
        %v2532 = vxor.u32 %v2530, 2147483648
        %v2533 = vmul.f32 %v2531, 1.442695
        %v2534 = vpow.pop %v2533
        %v2535 = vmul.f32 %v2532, 1.442695
        %v2536 = vpow.pop %v2535
        %v2537 = vadd.f32 %v2534, 1.0
        %v2538 = vadd.f32 %v2536, 1.0
        %v2539 = vrcp.pop %v2537
        %v2540 = vmul.f32 1.0, %v2539
        %v2541 = vrcp.pop %v2538
        %v2542 = vmul.f32 1.0, %v2541
        %v2543 = vmul.f32 %v2529, %v2540
        %v2544 = vmul.f32 %v2530, %v2542
        %v2545 = vpack.c.bf16 %v2544, %v2543
        %v2554 = vunpack.c.l.b16 %v2256
        %v2555 = vunpack.c.l.b16 %v2257
        %v2556 = vunpack.c.l.b16 %v2258
        %v2557 = vunpack.c.l.b16 %v2259
        %v2558 = vunpack.c.l.b16 %v2260
        %v2559 = vunpack.c.l.b16 %v2261
        %v2560 = vunpack.c.l.b16 %v2262
        %v2561 = vunpack.c.l.b16 %v2263
        %v2562 = vpack.c.b16 %v2555, %v2554
        %v2563 = vpack.c.b16 %v2557, %v2556
        %v2564 = vpack.c.b16 %v2559, %v2558
        %v2565 = vpack.c.b16 %v2561, %v2560
        %v2571 = vsel %vm956, %v2545, 0
        %2573 = vmatprep.subr.bf16.mxu0 0
        %2574 = vmatpush1.bf16.msra.mxu0 %v2562
        %2575 = vmatprep.subr.bf16.mxu0 0
        %2576 = vmatpush1.bf16.msra.mxu0 %v2563
        %2577 = vmatprep.subr.bf16.mxu0 0
        %2578 = vmatpush1.bf16.msra.mxu0 %v2564
        %2579 = vmatprep.subr.bf16.mxu0 0
        %2580 = vmatpush1.bf16.msra.mxu0 %v2565
        %2581 = vmatprep.subr.bf16.mxu0 0
        %2582 = vmatpush1.bf16.msra.mxu0 0
        %2583 = vmatprep.subr.bf16.mxu0 0
        %2584 = vmatpush1.bf16.msra.mxu0 0
        %2585 = vmatprep.subr.bf16.mxu0 0
        %2586 = vmatpush1.bf16.msra.mxu0 0
        %2587 = vmatprep.subr.bf16.mxu0 0
        %2588 = vmatpush1.bf16.msra.mxu0 0
        %2589 = vmatprep.subr.bf16.mxu0 0
        %2590 = vmatpush1.bf16.msra.mxu0 0
        %2591 = vmatprep.subr.bf16.mxu0 0
        %2592 = vmatpush1.bf16.msra.mxu0 0
        %2593 = vmatprep.subr.bf16.mxu0 0
        %2594 = vmatpush1.bf16.msra.mxu0 0
        %2595 = vmatprep.subr.bf16.mxu0 0
        %2596 = vmatpush1.bf16.msra.mxu0 0
        %2597 = vmatprep.subr.bf16.mxu0 0
        %2598 = vmatpush1.bf16.msra.mxu0 0
        %2599 = vmatprep.subr.bf16.mxu0 0
        %2600 = vmatpush1.bf16.msra.mxu0 0
        %2601 = vmatprep.subr.bf16.mxu0 0
        %2602 = vmatpush1.bf16.msra.mxu0 0
        %2603 = vmatprep.subr.bf16.mxu0 0
        %2604 = vmatpush1.bf16.msra.mxu0 0
        %2605 = vmatprep.mubr.bf16.mxu0 0
        %2606 = vmatmul.mubr.bf16.gmra.mrb[0].mxu0 %v2571
        %v2607 = vpop.f32.mrb[0].mxu0
        %v2608 = vadd.f32 0.0, %v2607
        %v2609 = vpop.f32.mrb[0].mxu0
        %v2610 = vpop.f32.mrb[0].mxu0
        %v2611 = vadd.f32 0.0, %v2610
        %v2612 = vpop.f32.mrb[0].mxu0
        %2613 = vdwg.mxu0
        %v2614 = vlaneseq
        %v2615 = vshrl.u32 %v2614, 7
        %v2616 = vsub.s32 1, %v2615
        %v2617 = vrot.slane %v2254, %v2616
        %v2618 = vadd.f32 %v2608, %v2617
        %v2619 = vadd.f32 %v2611, %v2617
        %v2620 = vmax.f32 %v2618, 0.0
        %v2621 = vmax.f32 %v2619, 0.0
        %vm2622 = vcmp.ne.f32.partialorder %v2618, %v2618
        %vm2623 = vcmp.ne.f32.partialorder %v2619, %v2619
        %v2624 = vadd.f32 %v2618, 0.0
        %v2625 = vadd.f32 %v2619, 0.0
        %v2626 = vand.u32 2147483647, %v2618
        %v2627 = vand.u32 2147483647, %v2619
        %v2628 = vsub.f32 0.0, %v2626
        %v2629 = vsub.f32 0.0, %v2627
        %v2630 = vmul.f32 %v2628, 1.442695
        %v2631 = vpow.pop %v2630
        %v2632 = vmul.f32 %v2629, 1.442695
        %v2633 = vpow.pop %v2632
        %v2634 = vadd.f32 %v2631, 1.0
        %v2635 = vlog2.pop %v2634
        %v2636 = vmul.f32 %v2635, 0.6931472
        %v2637 = vmul.f32 -0.5, %v2631
        %v2638 = vadd.f32 %v2637, 1.0
        %v2639 = vmul.f32 %v2638, %v2631
        %v2640 = vand.u32 2147483647, %v2631
        %vm2641 = vcmp.lt.f32.partialorder %v2640, 0.0004427343
        %v2642 = vsel %vm2641, %v2639, %v2636
        %v2643 = vadd.f32 %v2633, 1.0
        %v2644 = vlog2.pop %v2643
        %v2645 = vmul.f32 %v2644, 0.6931472
        %v2646 = vmul.f32 -0.5, %v2633
        %v2647 = vadd.f32 %v2646, 1.0
        %v2648 = vmul.f32 %v2647, %v2633
        %v2649 = vand.u32 2147483647, %v2633
        %vm2650 = vcmp.lt.f32.partialorder %v2649, 0.0004427343
        %v2651 = vsel %vm2650, %v2648, %v2645
        %v2652 = vadd.f32 %v2620, %v2642
        %v2653 = vadd.f32 %v2621, %v2651
        %v2654 = vsel %vm2622, %v2624, %v2652
        %v2655 = vsel %vm2623, %v2625, %v2653
        %v2656 = vmul.f32 %v2654, %v2543
        %v2657 = vmul.f32 %v2655, %v2544
        %v2660 = vunpack.c.l.s4 1966171168
        %v2661 = vunpack.c.0.s8 %v2660
        %v2662 = vlaneseq
        %v2663 = vshrl.u32 %v2662, 7
        %v2664 = vsub.s32 %v2661, %v2663
        %v2665 = vrot.slane %v2654, %v2664
        %v2666 = vcombine.high %v2665, %v2665
        %v2668 = vunpack.c.l.s4 1966171168
        %v2669 = vunpack.c.0.s8 %v2668
        %v2670 = vlaneseq
        %v2671 = vshrl.u32 %v2670, 7
        %v2672 = vsub.s32 %v2669, %v2671
        %v2673 = vrot.slane %v2665, %v2672
        %v2675 = vunpack.c.l.s4 1966171168
        %v2676 = vunpack.c.0.s8 %v2675
        %v2677 = vlaneseq
        %v2678 = vshrl.u32 %v2677, 7
        %v2679 = vsub.s32 %v2676, %v2678
        %v2680 = vrot.slane %v2666, %v2679
        %v2681 = vlaneseq
        %v2682 = vshrl.u32 %v2681, 7
        %v2683 = vsub.s32 0, %v2682
        %v2684 = vrot.slane %v2673, %v2683
        %v2685 = vlaneseq
        %v2686 = vshrl.u32 %v2685, 7
        %v2687 = vsub.s32 0, %v2686
        %v2688 = vrot.slane %v2680, %v2687
        %v2691 = vmul.f32 %v2684, %v2265
        %v2692 = vmul.f32 %v2684, %v2266
        %v2693 = vmul.f32 %v2688, %v2265
        %v2694 = vmul.f32 %v2688, %v2266
        %v2695 = vmul.f32 %v2691, 1.442695
        %v2696 = vpow.pop %v2695
        %v2697 = vmul.f32 %v2692, 1.442695
        %v2698 = vpow.pop %v2697
        %v2699 = vmul.f32 %v2693, 1.442695
        %v2700 = vpow.pop %v2699
        %v2701 = vmul.f32 %v2694, 1.442695
        %v2702 = vpow.pop %v2701
        %v2703 = vmul.f32 %v2696, 0.0
        %v2704 = vmul.f32 %v2698, 0.0
        %v2705 = vmul.f32 %v2700, 0.0
        %v2706 = vmul.f32 %v2702, 0.0
        %v2709 = vunpack.c.l.s4 1966171168
        %v2710 = vunpack.c.0.s8 %v2709
        %v2711 = vlaneseq
        %v2712 = vshrl.u32 %v2711, 7
        %v2713 = vsub.s32 %v2710, %v2712
        %v2714 = vrot.slane %v2656, %v2713
        %v2715 = vcombine.high %v2714, %v2714
        %v2717 = vunpack.c.l.s4 1966171168
        %v2718 = vunpack.c.0.s8 %v2717
        %v2719 = vlaneseq
        %v2720 = vshrl.u32 %v2719, 7
        %v2721 = vsub.s32 %v2718, %v2720
        %v2722 = vrot.slane %v2714, %v2721
        %v2724 = vunpack.c.l.s4 1966171168
        %v2725 = vunpack.c.0.s8 %v2724
        %v2726 = vlaneseq
        %v2727 = vshrl.u32 %v2726, 7
        %v2728 = vsub.s32 %v2725, %v2727
        %v2729 = vrot.slane %v2715, %v2728
        %v2730 = vlaneseq
        %v2731 = vshrl.u32 %v2730, 7
        %v2732 = vsub.s32 0, %v2731
        %v2733 = vrot.slane %v2608, %v2732
        %s2735 = sor.u32 256, 64
        %2736 = vbcast.lane.b32.xlu0 %v2733, %s2735
        %v2737 = vpop.permute.xlu0 %2736
        %s2739 = sor.u32 256, 72
        %2740 = vbcast.lane.b32.xlu0 %v2733, %s2739
        %v2741 = vpop.permute.xlu0 %2740
        %v2742 = vlaneseq
        %v2743 = vshrl.u32 %v2742, 7
        %v2744 = vsub.s32 1, %v2743
        %v2745 = vrot.slane %v2608, %v2744
        %s2747 = sor.u32 256, 64
        %2748 = vbcast.lane.b32.xlu0 %v2745, %s2747
        %v2749 = vpop.permute.xlu0 %2748
        %s2751 = sor.u32 256, 72
        %2752 = vbcast.lane.b32.xlu0 %v2745, %s2751
        %v2753 = vpop.permute.xlu0 %2752
        %v2754 = vlaneseq
        %v2755 = vshrl.u32 %v2754, 7
        %v2756 = vsub.s32 0, %v2755
        %v2757 = vrot.slane %v2722, %v2756
        %v2758 = vlaneseq
        %v2759 = vshrl.u32 %v2758, 7
        %v2760 = vsub.s32 0, %v2759
        %v2761 = vrot.slane %v2729, %v2760
        %v2764 = vmul.f32 %v2757, %v2737
        %v2765 = vmul.f32 %v2757, %v2741
        %v2766 = vmul.f32 %v2761, %v2749
        %v2767 = vmul.f32 %v2761, %v2753
        %v2768 = vadd.f32 %v2703, %v2764
        %v2769 = vadd.f32 %v2704, %v2765
        %v2770 = vadd.f32 %v2705, %v2766
        %v2771 = vadd.f32 %v2706, %v2767
        %s2773 = sor.u32 256, 80
        %2774 = vbcast.lane.b32.xlu0 %v2733, %s2773
        %v2775 = vpop.permute.xlu0 %2774
        %s2777 = sor.u32 256, 88
        %2778 = vbcast.lane.b32.xlu0 %v2733, %s2777
        %v2779 = vpop.permute.xlu0 %2778
        %s2781 = sor.u32 256, 80
        %2782 = vbcast.lane.b32.xlu0 %v2745, %s2781
        %v2783 = vpop.permute.xlu0 %2782
        %s2785 = sor.u32 256, 88
        %2786 = vbcast.lane.b32.xlu0 %v2745, %s2785
        %v2787 = vpop.permute.xlu0 %2786
        %v2788 = vmul.f32 %v2768, %v2775
        %v2789 = vmul.f32 %v2769, %v2779
        %v2790 = vmul.f32 %v2770, %v2783
        %v2791 = vmul.f32 %v2771, %v2787
        %v2792 = vsel %vm956, %v2788, 0.0
        %v2793 = vsel %vm956, %v2789, 0.0
        %v2794 = vadd.f32 %v2792, %v2793
        %v2795 = vrot.slane %v2794, 4
        %v2796 = vadd.f32 %v2794, %v2795
        %v2797 = vrot.slane %v2796, 2
        %v2798 = vadd.f32 %v2796, %v2797
        %v2799 = vrot.slane %v2798, 1
        %v2800 = vadd.f32 %v2798, %v2799
        %v2801 = vsel %vm956, %v2790, 0.0
        %v2802 = vsel %vm956, %v2791, 0.0
        %v2803 = vadd.f32 %v2801, %v2802
        %v2804 = vrot.slane %v2803, 4
        %v2805 = vadd.f32 %v2803, %v2804
        %v2806 = vrot.slane %v2805, 2
        %v2807 = vadd.f32 %v2805, %v2806
        %v2808 = vrot.slane %v2807, 1
        %v2809 = vadd.f32 %v2807, %v2808
        %v2810 = vcombine.high %v2673, %v2673
        %v2811 = vcombine.high %v2680, %v2680
        %v2812 = vlaneseq
        %v2813 = vshrl.u32 %v2812, 7
        %v2814 = vsub.s32 0, %v2813
        %v2815 = vrot.slane %v2810, %v2814
        %v2816 = vlaneseq
        %v2817 = vshrl.u32 %v2816, 7
        %v2818 = vsub.s32 0, %v2817
        %v2819 = vrot.slane %v2811, %v2818
        %v2822 = vmul.f32 %v2815, %v2265
        %v2823 = vmul.f32 %v2815, %v2266
        %v2824 = vmul.f32 %v2819, %v2265
        %v2825 = vmul.f32 %v2819, %v2266
        %v2826 = vmul.f32 %v2822, 1.442695
        %v2827 = vpow.pop %v2826
        %v2828 = vmul.f32 %v2823, 1.442695
        %v2829 = vpow.pop %v2828
        %v2830 = vmul.f32 %v2824, 1.442695
        %v2831 = vpow.pop %v2830
        %v2832 = vmul.f32 %v2825, 1.442695
        %v2833 = vpow.pop %v2832
        %v2834 = vmul.f32 %v2827, %v2768
        %v2835 = vmul.f32 %v2829, %v2769
        %v2836 = vmul.f32 %v2831, %v2770
        %v2837 = vmul.f32 %v2833, %v2771
        %v2838 = vcombine.high %v2722, %v2722
        %v2839 = vcombine.high %v2729, %v2729
        %v2840 = vlaneseq
        %v2841 = vshrl.u32 %v2840, 7
        %v2842 = vsub.s32 2, %v2841
        %v2843 = vrot.slane %v2608, %v2842
        %s2845 = sor.u32 256, 64
        %2846 = vbcast.lane.b32.xlu0 %v2843, %s2845
        %v2847 = vpop.permute.xlu0 %2846
        %s2849 = sor.u32 256, 72
        %2850 = vbcast.lane.b32.xlu0 %v2843, %s2849
        %v2851 = vpop.permute.xlu0 %2850
        %v2852 = vlaneseq
        %v2853 = vshrl.u32 %v2852, 7
        %v2854 = vsub.s32 3, %v2853
        %v2855 = vrot.slane %v2608, %v2854
        %s2857 = sor.u32 256, 64
        %2858 = vbcast.lane.b32.xlu0 %v2855, %s2857
        %v2859 = vpop.permute.xlu0 %2858
        %s2861 = sor.u32 256, 72
        %2862 = vbcast.lane.b32.xlu0 %v2855, %s2861
        %v2863 = vpop.permute.xlu0 %2862
        %v2864 = vlaneseq
        %v2865 = vshrl.u32 %v2864, 7
        %v2866 = vsub.s32 0, %v2865
        %v2867 = vrot.slane %v2838, %v2866
        %v2868 = vlaneseq
        %v2869 = vshrl.u32 %v2868, 7
        %v2870 = vsub.s32 0, %v2869
        %v2871 = vrot.slane %v2839, %v2870
        %v2874 = vmul.f32 %v2867, %v2847
        %v2875 = vmul.f32 %v2867, %v2851
        %v2876 = vmul.f32 %v2871, %v2859
        %v2877 = vmul.f32 %v2871, %v2863
        %v2878 = vadd.f32 %v2834, %v2874
        %v2879 = vadd.f32 %v2835, %v2875
        %v2880 = vadd.f32 %v2836, %v2876
        %v2881 = vadd.f32 %v2837, %v2877
        %s2883 = sor.u32 256, 80
        %2884 = vbcast.lane.b32.xlu0 %v2843, %s2883
        %v2885 = vpop.permute.xlu0 %2884
        %s2887 = sor.u32 256, 88
        %2888 = vbcast.lane.b32.xlu0 %v2843, %s2887
        %v2889 = vpop.permute.xlu0 %2888
        %s2891 = sor.u32 256, 80
        %2892 = vbcast.lane.b32.xlu0 %v2855, %s2891
        %v2893 = vpop.permute.xlu0 %2892
        %s2895 = sor.u32 256, 88
        %2896 = vbcast.lane.b32.xlu0 %v2855, %s2895
        %v2897 = vpop.permute.xlu0 %2896
        %v2898 = vmul.f32 %v2878, %v2885
        %v2899 = vmul.f32 %v2879, %v2889
        %v2900 = vmul.f32 %v2880, %v2893
        %v2901 = vmul.f32 %v2881, %v2897
        %v2902 = vsel %vm956, %v2898, 0.0
        %v2903 = vsel %vm956, %v2899, 0.0
        %v2904 = vadd.f32 %v2902, %v2903
        %v2905 = vrot.slane %v2904, 4
        %v2906 = vadd.f32 %v2904, %v2905
        %v2907 = vrot.slane %v2906, 2
        %v2908 = vadd.f32 %v2906, %v2907
        %v2909 = vrot.slane %v2908, 1
        %v2910 = vadd.f32 %v2908, %v2909
        %v2911 = vsel %vm956, %v2900, 0.0
        %v2912 = vsel %vm956, %v2901, 0.0
        %v2913 = vadd.f32 %v2911, %v2912
        %v2914 = vrot.slane %v2913, 4
        %v2915 = vadd.f32 %v2913, %v2914
        %v2916 = vrot.slane %v2915, 2
        %v2917 = vadd.f32 %v2915, %v2916
        %v2918 = vrot.slane %v2917, 1
        %v2919 = vadd.f32 %v2917, %v2918
        %v2920 = vcombine.high %v2654, %v2654
        %v2922 = vunpack.c.l.s4 1966171168
        %v2923 = vunpack.c.0.s8 %v2922
        %v2924 = vlaneseq
        %v2925 = vshrl.u32 %v2924, 7
        %v2926 = vsub.s32 %v2923, %v2925
        %v2927 = vrot.slane %v2920, %v2926
        %v2928 = vcombine.high %v2927, %v2927
        %v2930 = vunpack.c.l.s4 1966171168
        %v2931 = vunpack.c.0.s8 %v2930
        %v2932 = vlaneseq
        %v2933 = vshrl.u32 %v2932, 7
        %v2934 = vsub.s32 %v2931, %v2933
        %v2935 = vrot.slane %v2927, %v2934
        %v2937 = vunpack.c.l.s4 1966171168
        %v2938 = vunpack.c.0.s8 %v2937
        %v2939 = vlaneseq
        %v2940 = vshrl.u32 %v2939, 7
        %v2941 = vsub.s32 %v2938, %v2940
        %v2942 = vrot.slane %v2928, %v2941
        %v2943 = vlaneseq
        %v2944 = vshrl.u32 %v2943, 7
        %v2945 = vsub.s32 0, %v2944
        %v2946 = vrot.slane %v2935, %v2945
        %v2947 = vlaneseq
        %v2948 = vshrl.u32 %v2947, 7
        %v2949 = vsub.s32 0, %v2948
        %v2950 = vrot.slane %v2942, %v2949
        %v2953 = vmul.f32 %v2946, %v2265
        %v2954 = vmul.f32 %v2946, %v2266
        %v2955 = vmul.f32 %v2950, %v2265
        %v2956 = vmul.f32 %v2950, %v2266
        %v2957 = vmul.f32 %v2953, 1.442695
        %v2958 = vpow.pop %v2957
        %v2959 = vmul.f32 %v2954, 1.442695
        %v2960 = vpow.pop %v2959
        %v2961 = vmul.f32 %v2955, 1.442695
        %v2962 = vpow.pop %v2961
        %v2963 = vmul.f32 %v2956, 1.442695
        %v2964 = vpow.pop %v2963
        %v2965 = vmul.f32 %v2958, %v2878
        %v2966 = vmul.f32 %v2960, %v2879
        %v2967 = vmul.f32 %v2962, %v2880
        %v2968 = vmul.f32 %v2964, %v2881
        %v2969 = vcombine.high %v2656, %v2656
        %v2971 = vunpack.c.l.s4 1966171168
        %v2972 = vunpack.c.0.s8 %v2971
        %v2973 = vlaneseq
        %v2974 = vshrl.u32 %v2973, 7
        %v2975 = vsub.s32 %v2972, %v2974
        %v2976 = vrot.slane %v2969, %v2975
        %v2977 = vcombine.high %v2976, %v2976
        %v2979 = vunpack.c.l.s4 1966171168
        %v2980 = vunpack.c.0.s8 %v2979
        %v2981 = vlaneseq
        %v2982 = vshrl.u32 %v2981, 7
        %v2983 = vsub.s32 %v2980, %v2982
        %v2984 = vrot.slane %v2976, %v2983
        %v2986 = vunpack.c.l.s4 1966171168
        %v2987 = vunpack.c.0.s8 %v2986
        %v2988 = vlaneseq
        %v2989 = vshrl.u32 %v2988, 7
        %v2990 = vsub.s32 %v2987, %v2989
        %v2991 = vrot.slane %v2977, %v2990
        %v2992 = vlaneseq
        %v2993 = vshrl.u32 %v2992, 7
        %v2994 = vsub.s32 4, %v2993
        %v2995 = vrot.slane %v2608, %v2994
        %s2997 = sor.u32 256, 64
        %2998 = vbcast.lane.b32.xlu0 %v2995, %s2997
        %v2999 = vpop.permute.xlu0 %2998
        %s3001 = sor.u32 256, 72
        %3002 = vbcast.lane.b32.xlu0 %v2995, %s3001
        %v3003 = vpop.permute.xlu0 %3002
        %v3004 = vlaneseq
        %v3005 = vshrl.u32 %v3004, 7
        %v3006 = vsub.s32 5, %v3005
        %v3007 = vrot.slane %v2608, %v3006
        %s3009 = sor.u32 256, 64
        %3010 = vbcast.lane.b32.xlu0 %v3007, %s3009
        %v3011 = vpop.permute.xlu0 %3010
        %s3013 = sor.u32 256, 72
        %3014 = vbcast.lane.b32.xlu0 %v3007, %s3013
        %v3015 = vpop.permute.xlu0 %3014
        %v3016 = vlaneseq
        %v3017 = vshrl.u32 %v3016, 7
        %v3018 = vsub.s32 0, %v3017
        %v3019 = vrot.slane %v2984, %v3018
        %v3020 = vlaneseq
        %v3021 = vshrl.u32 %v3020, 7
        %v3022 = vsub.s32 0, %v3021
        %v3023 = vrot.slane %v2991, %v3022
        %v3026 = vmul.f32 %v3019, %v2999
        %v3027 = vmul.f32 %v3019, %v3003
        %v3028 = vmul.f32 %v3023, %v3011
        %v3029 = vmul.f32 %v3023, %v3015
        %v3030 = vadd.f32 %v2965, %v3026
        %v3031 = vadd.f32 %v2966, %v3027
        %v3032 = vadd.f32 %v2967, %v3028
        %v3033 = vadd.f32 %v2968, %v3029
        %s3035 = sor.u32 256, 80
        %3036 = vbcast.lane.b32.xlu0 %v2995, %s3035
        %v3037 = vpop.permute.xlu0 %3036
        %s3039 = sor.u32 256, 88
        %3040 = vbcast.lane.b32.xlu0 %v2995, %s3039
        %v3041 = vpop.permute.xlu0 %3040
        %s3043 = sor.u32 256, 80
        %3044 = vbcast.lane.b32.xlu0 %v3007, %s3043
        %v3045 = vpop.permute.xlu0 %3044
        %s3047 = sor.u32 256, 88
        %3048 = vbcast.lane.b32.xlu0 %v3007, %s3047
        %v3049 = vpop.permute.xlu0 %3048
        %v3050 = vmul.f32 %v3030, %v3037
        %v3051 = vmul.f32 %v3031, %v3041
        %v3052 = vmul.f32 %v3032, %v3045
        %v3053 = vmul.f32 %v3033, %v3049
        %v3054 = vsel %vm956, %v3050, 0.0
        %v3055 = vsel %vm956, %v3051, 0.0
        %v3056 = vadd.f32 %v3054, %v3055
        %v3057 = vrot.slane %v3056, 4
        %v3058 = vadd.f32 %v3056, %v3057
        %v3059 = vrot.slane %v3058, 2
        %v3060 = vadd.f32 %v3058, %v3059
        %v3061 = vrot.slane %v3060, 1
        %v3062 = vadd.f32 %v3060, %v3061
        %v3063 = vsel %vm956, %v3052, 0.0
        %v3064 = vsel %vm956, %v3053, 0.0
        %v3065 = vadd.f32 %v3063, %v3064
        %v3066 = vrot.slane %v3065, 4
        %v3067 = vadd.f32 %v3065, %v3066
        %v3068 = vrot.slane %v3067, 2
        %v3069 = vadd.f32 %v3067, %v3068
        %v3070 = vrot.slane %v3069, 1
        %v3071 = vadd.f32 %v3069, %v3070
        %v3072 = vcombine.high %v2935, %v2935
        %v3073 = vcombine.high %v2942, %v2942
        %v3074 = vlaneseq
        %v3075 = vshrl.u32 %v3074, 7
        %v3076 = vsub.s32 0, %v3075
        %v3077 = vrot.slane %v3072, %v3076
        %v3078 = vlaneseq
        %v3079 = vshrl.u32 %v3078, 7
        %v3080 = vsub.s32 0, %v3079
        %v3081 = vrot.slane %v3073, %v3080
        %v3084 = vmul.f32 %v3077, %v2265
        %v3085 = vmul.f32 %v3077, %v2266
        %v3086 = vmul.f32 %v3081, %v2265
        %v3087 = vmul.f32 %v3081, %v2266
        %v3088 = vmul.f32 %v3084, 1.442695
        %v3089 = vpow.pop %v3088
        %v3090 = vmul.f32 %v3085, 1.442695
        %v3091 = vpow.pop %v3090
        %v3092 = vmul.f32 %v3086, 1.442695
        %v3093 = vpow.pop %v3092
        %v3094 = vmul.f32 %v3087, 1.442695
        %v3095 = vpow.pop %v3094
        %v3096 = vmul.f32 %v3089, %v3030
        %v3097 = vmul.f32 %v3091, %v3031
        %v3098 = vmul.f32 %v3093, %v3032
        %v3099 = vmul.f32 %v3095, %v3033
        %v3100 = vcombine.high %v2984, %v2984
        %v3101 = vcombine.high %v2991, %v2991
        %v3102 = vlaneseq
        %v3103 = vshrl.u32 %v3102, 7
        %v3104 = vsub.s32 6, %v3103
        %v3105 = vrot.slane %v2608, %v3104
        %s3107 = sor.u32 256, 64
        %3108 = vbcast.lane.b32.xlu0 %v3105, %s3107
        %v3109 = vpop.permute.xlu0 %3108
        %s3111 = sor.u32 256, 72
        %3112 = vbcast.lane.b32.xlu0 %v3105, %s3111
        %v3113 = vpop.permute.xlu0 %3112
        %v3114 = vlaneseq
        %v3115 = vshrl.u32 %v3114, 7
        %v3116 = vsub.s32 7, %v3115
        %v3117 = vrot.slane %v2608, %v3116
        %s3119 = sor.u32 256, 64
        %3120 = vbcast.lane.b32.xlu0 %v3117, %s3119
        %v3121 = vpop.permute.xlu0 %3120
        %s3123 = sor.u32 256, 72
        %3124 = vbcast.lane.b32.xlu0 %v3117, %s3123
        %v3125 = vpop.permute.xlu0 %3124
        %v3126 = vlaneseq
        %v3127 = vshrl.u32 %v3126, 7
        %v3128 = vsub.s32 0, %v3127
        %v3129 = vrot.slane %v3100, %v3128
        %v3130 = vlaneseq
        %v3131 = vshrl.u32 %v3130, 7
        %v3132 = vsub.s32 0, %v3131
        %v3133 = vrot.slane %v3101, %v3132
        %v3136 = vmul.f32 %v3129, %v3109
        %v3137 = vmul.f32 %v3129, %v3113
        %v3138 = vmul.f32 %v3133, %v3121
        %v3139 = vmul.f32 %v3133, %v3125
        %v3140 = vadd.f32 %v3096, %v3136
        %v3141 = vadd.f32 %v3097, %v3137
        %v3142 = vadd.f32 %v3098, %v3138
        %v3143 = vadd.f32 %v3099, %v3139
        %s3145 = sor.u32 256, 80
        %3146 = vbcast.lane.b32.xlu0 %v3105, %s3145
        %v3147 = vpop.permute.xlu0 %3146
        %s3149 = sor.u32 256, 88
        %3150 = vbcast.lane.b32.xlu0 %v3105, %s3149
        %v3151 = vpop.permute.xlu0 %3150
        %s3153 = sor.u32 256, 80
        %3154 = vbcast.lane.b32.xlu0 %v3117, %s3153
        %v3155 = vpop.permute.xlu0 %3154
        %s3157 = sor.u32 256, 88
        %3158 = vbcast.lane.b32.xlu0 %v3117, %s3157
        %v3159 = vpop.permute.xlu0 %3158
        %v3160 = vmul.f32 %v3140, %v3147
        %v3161 = vmul.f32 %v3141, %v3151
        %v3162 = vmul.f32 %v3142, %v3155
        %v3163 = vmul.f32 %v3143, %v3159
        %v3164 = vsel %vm956, %v3160, 0.0
        %v3165 = vsel %vm956, %v3161, 0.0
        %v3166 = vadd.f32 %v3164, %v3165
        %v3167 = vrot.slane %v3166, 4
        %v3168 = vadd.f32 %v3166, %v3167
        %v3169 = vrot.slane %v3168, 2
        %v3170 = vadd.f32 %v3168, %v3169
        %v3171 = vrot.slane %v3170, 1
        %v3172 = vadd.f32 %v3170, %v3171
        %v3173 = vsel %vm956, %v3162, 0.0
        %v3174 = vsel %vm956, %v3163, 0.0
        %v3175 = vadd.f32 %v3173, %v3174
        %v3176 = vrot.slane %v3175, 4
        %v3177 = vadd.f32 %v3175, %v3176
        %v3178 = vrot.slane %v3177, 2
        %v3179 = vadd.f32 %v3177, %v3178
        %v3180 = vrot.slane %v3179, 1
        %v3181 = vadd.f32 %v3179, %v3180
        %v3184 = vunpack.c.l.s4 1966171168
        %v3185 = vunpack.c.0.s8 %v3184
        %v3186 = vlaneseq
        %v3187 = vshrl.u32 %v3186, 7
        %v3188 = vsub.s32 %v3185, %v3187
        %v3189 = vrot.slane %v2655, %v3188
        %v3190 = vcombine.high %v3189, %v3189
        %v3192 = vunpack.c.l.s4 1966171168
        %v3193 = vunpack.c.0.s8 %v3192
        %v3194 = vlaneseq
        %v3195 = vshrl.u32 %v3194, 7
        %v3196 = vsub.s32 %v3193, %v3195
        %v3197 = vrot.slane %v3189, %v3196
        %v3199 = vunpack.c.l.s4 1966171168
        %v3200 = vunpack.c.0.s8 %v3199
        %v3201 = vlaneseq
        %v3202 = vshrl.u32 %v3201, 7
        %v3203 = vsub.s32 %v3200, %v3202
        %v3204 = vrot.slane %v3190, %v3203
        %v3205 = vlaneseq
        %v3206 = vshrl.u32 %v3205, 7
        %v3207 = vsub.s32 0, %v3206
        %v3208 = vrot.slane %v3197, %v3207
        %v3209 = vlaneseq
        %v3210 = vshrl.u32 %v3209, 7
        %v3211 = vsub.s32 0, %v3210
        %v3212 = vrot.slane %v3204, %v3211
        %v3215 = vmul.f32 %v3208, %v2265
        %v3216 = vmul.f32 %v3208, %v2266
        %v3217 = vmul.f32 %v3212, %v2265
        %v3218 = vmul.f32 %v3212, %v2266
        %v3219 = vmul.f32 %v3215, 1.442695
        %v3220 = vpow.pop %v3219
        %v3221 = vmul.f32 %v3216, 1.442695
        %v3222 = vpow.pop %v3221
        %v3223 = vmul.f32 %v3217, 1.442695
        %v3224 = vpow.pop %v3223
        %v3225 = vmul.f32 %v3218, 1.442695
        %v3226 = vpow.pop %v3225
        %v3227 = vmul.f32 %v3220, %v3140
        %v3228 = vmul.f32 %v3222, %v3141
        %v3229 = vmul.f32 %v3224, %v3142
        %v3230 = vmul.f32 %v3226, %v3143
        %v3233 = vunpack.c.l.s4 1966171168
        %v3234 = vunpack.c.0.s8 %v3233
        %v3235 = vlaneseq
        %v3236 = vshrl.u32 %v3235, 7
        %v3237 = vsub.s32 %v3234, %v3236
        %v3238 = vrot.slane %v2657, %v3237
        %v3239 = vcombine.high %v3238, %v3238
        %v3241 = vunpack.c.l.s4 1966171168
        %v3242 = vunpack.c.0.s8 %v3241
        %v3243 = vlaneseq
        %v3244 = vshrl.u32 %v3243, 7
        %v3245 = vsub.s32 %v3242, %v3244
        %v3246 = vrot.slane %v3238, %v3245
        %v3248 = vunpack.c.l.s4 1966171168
        %v3249 = vunpack.c.0.s8 %v3248
        %v3250 = vlaneseq
        %v3251 = vshrl.u32 %v3250, 7
        %v3252 = vsub.s32 %v3249, %v3251
        %v3253 = vrot.slane %v3239, %v3252
        %v3254 = vlaneseq
        %v3255 = vshrl.u32 %v3254, 7
        %v3256 = vsub.s32 0, %v3255
        %v3257 = vrot.slane %v2611, %v3256
        %s3259 = sor.u32 256, 64
        %3260 = vbcast.lane.b32.xlu0 %v3257, %s3259
        %v3261 = vpop.permute.xlu0 %3260
        %s3263 = sor.u32 256, 72
        %3264 = vbcast.lane.b32.xlu0 %v3257, %s3263
        %v3265 = vpop.permute.xlu0 %3264
        %v3266 = vlaneseq
        %v3267 = vshrl.u32 %v3266, 7
        %v3268 = vsub.s32 1, %v3267
        %v3269 = vrot.slane %v2611, %v3268
        %s3271 = sor.u32 256, 64
        %3272 = vbcast.lane.b32.xlu0 %v3269, %s3271
        %v3273 = vpop.permute.xlu0 %3272
        %s3275 = sor.u32 256, 72
        %3276 = vbcast.lane.b32.xlu0 %v3269, %s3275
        %v3277 = vpop.permute.xlu0 %3276
        %v3278 = vlaneseq
        %v3279 = vshrl.u32 %v3278, 7
        %v3280 = vsub.s32 0, %v3279
        %v3281 = vrot.slane %v3246, %v3280
        %v3282 = vlaneseq
        %v3283 = vshrl.u32 %v3282, 7
        %v3284 = vsub.s32 0, %v3283
        %v3285 = vrot.slane %v3253, %v3284
        %v3288 = vmul.f32 %v3281, %v3261
        %v3289 = vmul.f32 %v3281, %v3265
        %v3290 = vmul.f32 %v3285, %v3273
        %v3291 = vmul.f32 %v3285, %v3277
        %v3292 = vadd.f32 %v3227, %v3288
        %v3293 = vadd.f32 %v3228, %v3289
        %v3294 = vadd.f32 %v3229, %v3290
        %v3295 = vadd.f32 %v3230, %v3291
        %s3297 = sor.u32 256, 80
        %3298 = vbcast.lane.b32.xlu0 %v3257, %s3297
        %v3299 = vpop.permute.xlu0 %3298
        %s3301 = sor.u32 256, 88
        %3302 = vbcast.lane.b32.xlu0 %v3257, %s3301
        %v3303 = vpop.permute.xlu0 %3302
        %s3305 = sor.u32 256, 80
        %3306 = vbcast.lane.b32.xlu0 %v3269, %s3305
        %v3307 = vpop.permute.xlu0 %3306
        %s3309 = sor.u32 256, 88
        %3310 = vbcast.lane.b32.xlu0 %v3269, %s3309
        %v3311 = vpop.permute.xlu0 %3310
        %v3312 = vmul.f32 %v3292, %v3299
        %v3313 = vmul.f32 %v3293, %v3303
        %v3314 = vmul.f32 %v3294, %v3307
        %v3315 = vmul.f32 %v3295, %v3311
        %v3316 = vsel %vm956, %v3312, 0.0
        %v3317 = vsel %vm956, %v3313, 0.0
        %v3318 = vadd.f32 %v3316, %v3317
        %v3319 = vrot.slane %v3318, 4
        %v3320 = vadd.f32 %v3318, %v3319
        %v3321 = vrot.slane %v3320, 2
        %v3322 = vadd.f32 %v3320, %v3321
        %v3323 = vrot.slane %v3322, 1
        %v3324 = vadd.f32 %v3322, %v3323
        %v3325 = vsel %vm956, %v3314, 0.0
        %v3326 = vsel %vm956, %v3315, 0.0
        %v3327 = vadd.f32 %v3325, %v3326
        %v3328 = vrot.slane %v3327, 4
        %v3329 = vadd.f32 %v3327, %v3328
        %v3330 = vrot.slane %v3329, 2
        %v3331 = vadd.f32 %v3329, %v3330
        %v3332 = vrot.slane %v3331, 1
        %v3333 = vadd.f32 %v3331, %v3332
        %v3334 = vcombine.high %v3197, %v3197
        %v3335 = vcombine.high %v3204, %v3204
        %v3336 = vlaneseq
        %v3337 = vshrl.u32 %v3336, 7
        %v3338 = vsub.s32 0, %v3337
        %v3339 = vrot.slane %v3334, %v3338
        %v3340 = vlaneseq
        %v3341 = vshrl.u32 %v3340, 7
        %v3342 = vsub.s32 0, %v3341
        %v3343 = vrot.slane %v3335, %v3342
        %v3346 = vmul.f32 %v3339, %v2265
        %v3347 = vmul.f32 %v3339, %v2266
        %v3348 = vmul.f32 %v3343, %v2265
        %v3349 = vmul.f32 %v3343, %v2266
        %v3350 = vmul.f32 %v3346, 1.442695
        %v3351 = vpow.pop %v3350
        %v3352 = vmul.f32 %v3347, 1.442695
        %v3353 = vpow.pop %v3352
        %v3354 = vmul.f32 %v3348, 1.442695
        %v3355 = vpow.pop %v3354
        %v3356 = vmul.f32 %v3349, 1.442695
        %v3357 = vpow.pop %v3356
        %v3358 = vmul.f32 %v3351, %v3292
        %v3359 = vmul.f32 %v3353, %v3293
        %v3360 = vmul.f32 %v3355, %v3294
        %v3361 = vmul.f32 %v3357, %v3295
        %v3362 = vcombine.high %v3246, %v3246
        %v3363 = vcombine.high %v3253, %v3253
        %v3364 = vlaneseq
        %v3365 = vshrl.u32 %v3364, 7
        %v3366 = vsub.s32 2, %v3365
        %v3367 = vrot.slane %v2611, %v3366
        %s3369 = sor.u32 256, 64
        %3370 = vbcast.lane.b32.xlu0 %v3367, %s3369
        %v3371 = vpop.permute.xlu0 %3370
        %s3373 = sor.u32 256, 72
        %3374 = vbcast.lane.b32.xlu0 %v3367, %s3373
        %v3375 = vpop.permute.xlu0 %3374
        %v3376 = vlaneseq
        %v3377 = vshrl.u32 %v3376, 7
        %v3378 = vsub.s32 3, %v3377
        %v3379 = vrot.slane %v2611, %v3378
        %s3381 = sor.u32 256, 64
        %3382 = vbcast.lane.b32.xlu0 %v3379, %s3381
        %v3383 = vpop.permute.xlu0 %3382
        %s3385 = sor.u32 256, 72
        %3386 = vbcast.lane.b32.xlu0 %v3379, %s3385
        %v3387 = vpop.permute.xlu0 %3386
        %v3388 = vlaneseq
        %v3389 = vshrl.u32 %v3388, 7
        %v3390 = vsub.s32 0, %v3389
        %v3391 = vrot.slane %v3362, %v3390
        %v3392 = vlaneseq
        %v3393 = vshrl.u32 %v3392, 7
        %v3394 = vsub.s32 0, %v3393
        %v3395 = vrot.slane %v3363, %v3394
        %v3398 = vmul.f32 %v3391, %v3371
        %v3399 = vmul.f32 %v3391, %v3375
        %v3400 = vmul.f32 %v3395, %v3383
        %v3401 = vmul.f32 %v3395, %v3387
        %v3402 = vadd.f32 %v3358, %v3398
        %v3403 = vadd.f32 %v3359, %v3399
        %v3404 = vadd.f32 %v3360, %v3400
        %v3405 = vadd.f32 %v3361, %v3401
        %s3407 = sor.u32 256, 80
        %3408 = vbcast.lane.b32.xlu0 %v3367, %s3407
        %v3409 = vpop.permute.xlu0 %3408
        %s3411 = sor.u32 256, 88
        %3412 = vbcast.lane.b32.xlu0 %v3367, %s3411
        %v3413 = vpop.permute.xlu0 %3412
        %s3415 = sor.u32 256, 80
        %3416 = vbcast.lane.b32.xlu0 %v3379, %s3415
        %v3417 = vpop.permute.xlu0 %3416
        %s3419 = sor.u32 256, 88
        %3420 = vbcast.lane.b32.xlu0 %v3379, %s3419
        %v3421 = vpop.permute.xlu0 %3420
        %v3422 = vmul.f32 %v3402, %v3409
        %v3423 = vmul.f32 %v3403, %v3413
        %v3424 = vmul.f32 %v3404, %v3417
        %v3425 = vmul.f32 %v3405, %v3421
        %v3426 = vsel %vm956, %v3422, 0.0
        %v3427 = vsel %vm956, %v3423, 0.0
        %v3428 = vadd.f32 %v3426, %v3427
        %v3429 = vrot.slane %v3428, 4
        %v3430 = vadd.f32 %v3428, %v3429
        %v3431 = vrot.slane %v3430, 2
        %v3432 = vadd.f32 %v3430, %v3431
        %v3433 = vrot.slane %v3432, 1
        %v3434 = vadd.f32 %v3432, %v3433
        %v3435 = vsel %vm956, %v3424, 0.0
        %v3436 = vsel %vm956, %v3425, 0.0
        %v3437 = vadd.f32 %v3435, %v3436
        %v3438 = vrot.slane %v3437, 4
        %v3439 = vadd.f32 %v3437, %v3438
        %v3440 = vrot.slane %v3439, 2
        %v3441 = vadd.f32 %v3439, %v3440
        %v3442 = vrot.slane %v3441, 1
        %v3443 = vadd.f32 %v3441, %v3442
        %v3444 = vcombine.high %v2655, %v2655
        %v3446 = vunpack.c.l.s4 1966171168
        %v3447 = vunpack.c.0.s8 %v3446
        %v3448 = vlaneseq
        %v3449 = vshrl.u32 %v3448, 7
        %v3450 = vsub.s32 %v3447, %v3449
        %v3451 = vrot.slane %v3444, %v3450
        %v3452 = vcombine.high %v3451, %v3451
        %v3454 = vunpack.c.l.s4 1966171168
        %v3455 = vunpack.c.0.s8 %v3454
        %v3456 = vlaneseq
        %v3457 = vshrl.u32 %v3456, 7
        %v3458 = vsub.s32 %v3455, %v3457
        %v3459 = vrot.slane %v3451, %v3458
        %v3461 = vunpack.c.l.s4 1966171168
        %v3462 = vunpack.c.0.s8 %v3461
        %v3463 = vlaneseq
        %v3464 = vshrl.u32 %v3463, 7
        %v3465 = vsub.s32 %v3462, %v3464
        %v3466 = vrot.slane %v3452, %v3465
        %v3467 = vlaneseq
        %v3468 = vshrl.u32 %v3467, 7
        %v3469 = vsub.s32 0, %v3468
        %v3470 = vrot.slane %v3459, %v3469
        %v3471 = vlaneseq
        %v3472 = vshrl.u32 %v3471, 7
        %v3473 = vsub.s32 0, %v3472
        %v3474 = vrot.slane %v3466, %v3473
        %v3477 = vmul.f32 %v3470, %v2265
        %v3478 = vmul.f32 %v3470, %v2266
        %v3479 = vmul.f32 %v3474, %v2265
        %v3480 = vmul.f32 %v3474, %v2266
        %v3481 = vmul.f32 %v3477, 1.442695
        %v3482 = vpow.pop %v3481
        %v3483 = vmul.f32 %v3478, 1.442695
        %v3484 = vpow.pop %v3483
        %v3485 = vmul.f32 %v3479, 1.442695
        %v3486 = vpow.pop %v3485
        %v3487 = vmul.f32 %v3480, 1.442695
        %v3488 = vpow.pop %v3487
        %v3489 = vmul.f32 %v3482, %v3402
        %v3490 = vmul.f32 %v3484, %v3403
        %v3491 = vmul.f32 %v3486, %v3404
        %v3492 = vmul.f32 %v3488, %v3405
        %v3493 = vcombine.high %v2657, %v2657
        %v3495 = vunpack.c.l.s4 1966171168
        %v3496 = vunpack.c.0.s8 %v3495
        %v3497 = vlaneseq
        %v3498 = vshrl.u32 %v3497, 7
        %v3499 = vsub.s32 %v3496, %v3498
        %v3500 = vrot.slane %v3493, %v3499
        %v3501 = vcombine.high %v3500, %v3500
        %v3503 = vunpack.c.l.s4 1966171168
        %v3504 = vunpack.c.0.s8 %v3503
        %v3505 = vlaneseq
        %v3506 = vshrl.u32 %v3505, 7
        %v3507 = vsub.s32 %v3504, %v3506
        %v3508 = vrot.slane %v3500, %v3507
        %v3510 = vunpack.c.l.s4 1966171168
        %v3511 = vunpack.c.0.s8 %v3510
        %v3512 = vlaneseq
        %v3513 = vshrl.u32 %v3512, 7
        %v3514 = vsub.s32 %v3511, %v3513
        %v3515 = vrot.slane %v3501, %v3514
        %v3516 = vlaneseq
        %v3517 = vshrl.u32 %v3516, 7
        %v3518 = vsub.s32 4, %v3517
        %v3519 = vrot.slane %v2611, %v3518
        %s3521 = sor.u32 256, 64
        %3522 = vbcast.lane.b32.xlu0 %v3519, %s3521
        %v3523 = vpop.permute.xlu0 %3522
        %s3525 = sor.u32 256, 72
        %3526 = vbcast.lane.b32.xlu0 %v3519, %s3525
        %v3527 = vpop.permute.xlu0 %3526
        %v3528 = vlaneseq
        %v3529 = vshrl.u32 %v3528, 7
        %v3530 = vsub.s32 5, %v3529
        %v3531 = vrot.slane %v2611, %v3530
        %s3533 = sor.u32 256, 64
        %3534 = vbcast.lane.b32.xlu0 %v3531, %s3533
        %v3535 = vpop.permute.xlu0 %3534
        %s3537 = sor.u32 256, 72
        %3538 = vbcast.lane.b32.xlu0 %v3531, %s3537
        %v3539 = vpop.permute.xlu0 %3538
        %v3540 = vlaneseq
        %v3541 = vshrl.u32 %v3540, 7
        %v3542 = vsub.s32 0, %v3541
        %v3543 = vrot.slane %v3508, %v3542
        %v3544 = vlaneseq
        %v3545 = vshrl.u32 %v3544, 7
        %v3546 = vsub.s32 0, %v3545
        %v3547 = vrot.slane %v3515, %v3546
        %v3550 = vmul.f32 %v3543, %v3523
        %v3551 = vmul.f32 %v3543, %v3527
        %v3552 = vmul.f32 %v3547, %v3535
        %v3553 = vmul.f32 %v3547, %v3539
        %v3554 = vadd.f32 %v3489, %v3550
        %v3555 = vadd.f32 %v3490, %v3551
        %v3556 = vadd.f32 %v3491, %v3552
        %v3557 = vadd.f32 %v3492, %v3553
        %s3559 = sor.u32 256, 80
        %3560 = vbcast.lane.b32.xlu0 %v3519, %s3559
        %v3561 = vpop.permute.xlu0 %3560
        %s3563 = sor.u32 256, 88
        %3564 = vbcast.lane.b32.xlu0 %v3519, %s3563
        %v3565 = vpop.permute.xlu0 %3564
        %s3567 = sor.u32 256, 80
        %3568 = vbcast.lane.b32.xlu0 %v3531, %s3567
        %v3569 = vpop.permute.xlu0 %3568
        %s3571 = sor.u32 256, 88
        %3572 = vbcast.lane.b32.xlu0 %v3531, %s3571
        %v3573 = vpop.permute.xlu0 %3572
        %v3574 = vmul.f32 %v3554, %v3561
        %v3575 = vmul.f32 %v3555, %v3565
        %v3576 = vmul.f32 %v3556, %v3569
        %v3577 = vmul.f32 %v3557, %v3573
        %v3578 = vsel %vm956, %v3574, 0.0
        %v3579 = vsel %vm956, %v3575, 0.0
        %v3580 = vadd.f32 %v3578, %v3579
        %v3581 = vrot.slane %v3580, 4
        %v3582 = vadd.f32 %v3580, %v3581
        %v3583 = vrot.slane %v3582, 2
        %v3584 = vadd.f32 %v3582, %v3583
        %v3585 = vrot.slane %v3584, 1
        %v3586 = vadd.f32 %v3584, %v3585
        %v3587 = vsel %vm956, %v3576, 0.0
        %v3588 = vsel %vm956, %v3577, 0.0
        %v3589 = vadd.f32 %v3587, %v3588
        %v3590 = vrot.slane %v3589, 4
        %v3591 = vadd.f32 %v3589, %v3590
        %v3592 = vrot.slane %v3591, 2
        %v3593 = vadd.f32 %v3591, %v3592
        %v3594 = vrot.slane %v3593, 1
        %v3595 = vadd.f32 %v3593, %v3594
        %v3596 = vcombine.high %v3459, %v3459
        %v3597 = vcombine.high %v3466, %v3466
        %v3598 = vlaneseq
        %v3599 = vshrl.u32 %v3598, 7
        %v3600 = vsub.s32 0, %v3599
        %v3601 = vrot.slane %v3596, %v3600
        %v3602 = vlaneseq
        %v3603 = vshrl.u32 %v3602, 7
        %v3604 = vsub.s32 0, %v3603
        %v3605 = vrot.slane %v3597, %v3604
        %v3608 = vmul.f32 %v3601, %v2265
        %v3609 = vmul.f32 %v3601, %v2266
        %v3610 = vmul.f32 %v3605, %v2265
        %v3611 = vmul.f32 %v3605, %v2266
        %v3612 = vmul.f32 %v3608, 1.442695
        %v3613 = vpow.pop %v3612
        %v3614 = vmul.f32 %v3609, 1.442695
        %v3615 = vpow.pop %v3614
        %v3616 = vmul.f32 %v3610, 1.442695
        %v3617 = vpow.pop %v3616
        %v3618 = vmul.f32 %v3611, 1.442695
        %v3619 = vpow.pop %v3618
        %v3620 = vmul.f32 %v3613, %v3554
        %v3621 = vmul.f32 %v3615, %v3555
        %v3622 = vmul.f32 %v3617, %v3556
        %v3623 = vmul.f32 %v3619, %v3557
        %v3624 = vcombine.high %v3508, %v3508
        %v3625 = vcombine.high %v3515, %v3515
        %v3626 = vlaneseq
        %v3627 = vshrl.u32 %v3626, 7
        %v3628 = vsub.s32 6, %v3627
        %v3629 = vrot.slane %v2611, %v3628
        %s3631 = sor.u32 256, 64
        %3632 = vbcast.lane.b32.xlu0 %v3629, %s3631
        %v3633 = vpop.permute.xlu0 %3632
        %s3635 = sor.u32 256, 72
        %3636 = vbcast.lane.b32.xlu0 %v3629, %s3635
        %v3637 = vpop.permute.xlu0 %3636
        %v3638 = vlaneseq
        %v3639 = vshrl.u32 %v3638, 7
        %v3640 = vsub.s32 7, %v3639
        %v3641 = vrot.slane %v2611, %v3640
        %s3643 = sor.u32 256, 64
        %3644 = vbcast.lane.b32.xlu0 %v3641, %s3643
        %v3645 = vpop.permute.xlu0 %3644
        %s3647 = sor.u32 256, 72
        %3648 = vbcast.lane.b32.xlu0 %v3641, %s3647
        %v3649 = vpop.permute.xlu0 %3648
        %v3650 = vlaneseq
        %v3651 = vshrl.u32 %v3650, 7
        %v3652 = vsub.s32 0, %v3651
        %v3653 = vrot.slane %v3624, %v3652
        %v3654 = vlaneseq
        %v3655 = vshrl.u32 %v3654, 7
        %v3656 = vsub.s32 0, %v3655
        %v3657 = vrot.slane %v3625, %v3656
        %v3660 = vmul.f32 %v3653, %v3633
        %v3661 = vmul.f32 %v3653, %v3637
        %v3662 = vmul.f32 %v3657, %v3645
        %v3663 = vmul.f32 %v3657, %v3649
        %v3664 = vadd.f32 %v3620, %v3660
        %v3665 = vadd.f32 %v3621, %v3661
        %v3666 = vadd.f32 %v3622, %v3662
        %v3667 = vadd.f32 %v3623, %v3663
        %s3669 = sor.u32 256, 80
        %3670 = vbcast.lane.b32.xlu0 %v3629, %s3669
        %v3671 = vpop.permute.xlu0 %3670
        %s3673 = sor.u32 256, 88
        %3674 = vbcast.lane.b32.xlu0 %v3629, %s3673
        %v3675 = vpop.permute.xlu0 %3674
        %s3677 = sor.u32 256, 80
        %3678 = vbcast.lane.b32.xlu0 %v3641, %s3677
        %v3679 = vpop.permute.xlu0 %3678
        %s3681 = sor.u32 256, 88
        %3682 = vbcast.lane.b32.xlu0 %v3641, %s3681
        %v3683 = vpop.permute.xlu0 %3682
        %v3684 = vmul.f32 %v3664, %v3671
        %v3685 = vmul.f32 %v3665, %v3675
        %v3686 = vmul.f32 %v3666, %v3679
        %v3687 = vmul.f32 %v3667, %v3683
        %v3688 = vsel %vm956, %v3684, 0.0
        %v3689 = vsel %vm956, %v3685, 0.0
        %v3690 = vadd.f32 %v3688, %v3689
        %v3691 = vrot.slane %v3690, 4
        %v3692 = vadd.f32 %v3690, %v3691
        %v3693 = vrot.slane %v3692, 2
        %v3694 = vadd.f32 %v3692, %v3693
        %v3695 = vrot.slane %v3694, 1
        %v3696 = vadd.f32 %v3694, %v3695
        %v3697 = vsel %vm956, %v3686, 0.0
        %v3698 = vsel %vm956, %v3687, 0.0
        %v3699 = vadd.f32 %v3697, %v3698
        %v3700 = vrot.slane %v3699, 4
        %v3701 = vadd.f32 %v3699, %v3700
        %v3702 = vrot.slane %v3701, 2
        %v3703 = vadd.f32 %v3701, %v3702
        %v3704 = vrot.slane %v3703, 1
        %v3705 = vadd.f32 %v3703, %v3704
        %v3708 = vsel %vm2095, %v2809, %v2800
        %v3712 = vsel %vm2100, %v2919, %v2910
        %v3716 = vsel %vm2105, %v3071, %v3062
        %v3720 = vsel %vm2110, %v3181, %v3172
        %v3724 = vsel %vm2095, %v3333, %v3324
        %v3728 = vsel %vm2100, %v3443, %v3434
        %v3732 = vsel %vm2105, %v3595, %v3586
        %v3736 = vsel %vm2110, %v3705, %v3696
        %v3738 = vsel %vm2129, %v3708, %v3712
        %v3739 = vsel %vm2131, %v3738, %v3716
        %v3740 = vsel %vm2133, %v3739, %v3720
        %v3741 = vsel %vm2129, %v3724, %v3728
        %v3742 = vsel %vm2131, %v3741, %v3732
        %v3743 = vsel %vm2133, %v3742, %v3736
        %v3744 = vlaneseq
        %v3745 = vshrl.u32 %v3744, 7
        %v3746 = vsub.s32 2, %v3745
        %v3747 = vrot.slane %v2254, %v3746
        %v3748 = vmul.f32 %v2543, %v3747
        %v3749 = vmul.f32 %v2544, %v3747
        %v3750 = vadd.f32 %v3740, %v3748
        %v3751 = vadd.f32 %v3743, %v3749
        %v3752 = vxor.u32 %v2365, 2147483648
        %v3753 = vxor.u32 %v2368, 2147483648
        %v3754 = vmul.f32 %v3752, 1.442695
        %v3755 = vpow.pop %v3754
        %v3756 = vmul.f32 %v3753, 1.442695
        %v3757 = vpow.pop %v3756
        %v3758 = vadd.f32 %v3755, 1.0
        %v3759 = vadd.f32 %v3757, 1.0
        %v3760 = vrcp.pop %v3758
        %v3761 = vmul.f32 1.0, %v3760
        %v3762 = vrcp.pop %v3759
        %v3763 = vmul.f32 1.0, %v3762
        %v3764 = vmul.f32 %v2365, %v3761
        %v3765 = vmul.f32 %v2368, %v3763
        %3768 = vrot.lane.b32.xlu0 %v3764, 64
        %v3769 = vpop.permute.xlu0 %3768
        %3770 = vrot.lane.b32.xlu0 %v3765, 64
        %v3771 = vpop.permute.xlu0 %3770
        %v3774 = vmul.f32 %v3750, %v3769
        %v3775 = vmul.f32 %v3751, %v3771
        %v3776 = vpack.c.bf16 %v3775, %v3774
        %v3785 = vunpack.c.l.b16 %v2268
        %v3786 = vunpack.c.l.b16 %v2269
        %v3787 = vunpack.c.l.b16 %v2270
        %v3788 = vunpack.c.l.b16 %v2271
        %v3789 = vunpack.c.l.b16 %v2272
        %v3790 = vunpack.c.l.b16 %v2273
        %v3791 = vunpack.c.l.b16 %v2274
        %v3792 = vunpack.c.l.b16 %v2275
        %v3793 = vpack.c.b16 %v3786, %v3785
        %v3794 = vpack.c.b16 %v3788, %v3787
        %v3795 = vpack.c.b16 %v3790, %v3789
        %v3796 = vpack.c.b16 %v3792, %v3791
        %v3802 = vsel %vm956, %v3776, 0
        %3804 = vmatprep.subr.bf16.mxu0 0
        %3805 = vmatpush1.bf16.msra.mxu0 %v3793
        %3806 = vmatprep.subr.bf16.mxu0 0
        %3807 = vmatpush1.bf16.msra.mxu0 %v3794
        %3808 = vmatprep.subr.bf16.mxu0 0
        %3809 = vmatpush1.bf16.msra.mxu0 %v3795
        %3810 = vmatprep.subr.bf16.mxu0 0
        %3811 = vmatpush1.bf16.msra.mxu0 %v3796
        %3812 = vmatprep.subr.bf16.mxu0 0
        %3813 = vmatpush1.bf16.msra.mxu0 0
        %3814 = vmatprep.subr.bf16.mxu0 0
        %3815 = vmatpush1.bf16.msra.mxu0 0
        %3816 = vmatprep.subr.bf16.mxu0 0
        %3817 = vmatpush1.bf16.msra.mxu0 0
        %3818 = vmatprep.subr.bf16.mxu0 0
        %3819 = vmatpush1.bf16.msra.mxu0 0
        %3820 = vmatprep.subr.bf16.mxu0 0
        %3821 = vmatpush1.bf16.msra.mxu0 0
        %3822 = vmatprep.subr.bf16.mxu0 0
        %3823 = vmatpush1.bf16.msra.mxu0 0
        %3824 = vmatprep.subr.bf16.mxu0 0
        %3825 = vmatpush1.bf16.msra.mxu0 0
        %3826 = vmatprep.subr.bf16.mxu0 0
        %3827 = vmatpush1.bf16.msra.mxu0 0
        %3828 = vmatprep.subr.bf16.mxu0 0
        %3829 = vmatpush1.bf16.msra.mxu0 0
        %3830 = vmatprep.subr.bf16.mxu0 0
        %3831 = vmatpush1.bf16.msra.mxu0 0
        %3832 = vmatprep.subr.bf16.mxu0 0
        %3833 = vmatpush1.bf16.msra.mxu0 0
        %3834 = vmatprep.subr.bf16.mxu0 0
        %3835 = vmatpush1.bf16.msra.mxu0 0
        %3836 = vmatprep.mubr.bf16.mxu0 0
        %3837 = vmatmul.mubr.bf16.gmra.mrb[0].mxu0 %v3802
        %v3838 = vpop.f32.mrb[0].mxu0
        %v3839 = vadd.f32 0.0, %v3838
        %v3840 = vpop.f32.mrb[0].mxu0
        %v3841 = vpop.f32.mrb[0].mxu0
        %v3842 = vadd.f32 0.0, %v3841
        %v3843 = vpop.f32.mrb[0].mxu0
        %3844 = vdwg.mxu0
        %s3845 = scalar_lea.vmem %s581, 16 [#allocation13]
        %3846 = vst [vmem:[%s3845] sm:$0xff] %v3839
        %3847 = vst [vmem:[%s3845 + $0x8] sm:$0xff] %v3842
        %s3848 = scalar_lea.vmem %s467, 32 [#allocation2]
        %v3849 = vld [vmem:[%s3848] sm:$0xff]
        %v3850 = vld [vmem:[%s3848 + $0x8] sm:$0xff]
        %s3851 = scalar_lea.vmem %s476, 4 [#allocation5]
        %v3852 = vld [vmem:[%s3851] sm:$0x3]
        %s3853 = scalar_lea.vmem %s485, 32 [#allocation7]
        %v3854 = vld [vmem:[%s3853] sm:$0xf]
        %v3855 = vld [vmem:[%s3853 + $0x4] sm:$0xf]
        %v3856 = vld [vmem:[%s3853 + $0x8] sm:$0xf]
        %v3857 = vld [vmem:[%s3853 + $0xc] sm:$0xf]
        %s3858 = scalar_lea.vmem %s589, 8
        %v3859 = vld [vmem:[%s3858] sm:$0xf]
        %s3860 = scalar_lea.vmem %s595, 8
        %v3861 = vld [vmem:[%s3860] sm:$0x7]
        %s3862 = scalar_lea.vmem %s494, 64 [#allocation8]
        %v3863 = vld [vmem:[%s3862] sm:$0xf]
        %v3864 = vld [vmem:[%s3862 + $0x4] sm:$0xf]
        %v3865 = vld [vmem:[%s3862 + $0x8] sm:$0xf]
        %v3866 = vld [vmem:[%s3862 + $0xc] sm:$0xf]
        %v3867 = vld [vmem:[%s3862 + $0x10] sm:$0xf]
        %v3868 = vld [vmem:[%s3862 + $0x14] sm:$0xf]
        %v3869 = vld [vmem:[%s3862 + $0x18] sm:$0xf]
        %v3870 = vld [vmem:[%s3862 + $0x1c] sm:$0xf]
        %s3871 = scalar_lea.vmem %s503, 32 [#allocation10]
        %v3872 = vld [vmem:[%s3871] sm:$0xff]
        %v3873 = vld [vmem:[%s3871 + $0x8] sm:$0xff]
        %s3874 = scalar_lea.vmem %s512, 64 [#allocation11]
        %v3875 = vld [vmem:[%s3874] sm:$0xf]
        %v3876 = vld [vmem:[%s3874 + $0x4] sm:$0xf]
        %v3877 = vld [vmem:[%s3874 + $0x8] sm:$0xf]
        %v3878 = vld [vmem:[%s3874 + $0xc] sm:$0xf]
        %v3879 = vld [vmem:[%s3874 + $0x10] sm:$0xf]
        %v3880 = vld [vmem:[%s3874 + $0x14] sm:$0xf]
        %v3881 = vld [vmem:[%s3874 + $0x18] sm:$0xf]
        %v3882 = vld [vmem:[%s3874 + $0x1c] sm:$0xf]
        %v3883 = vsel %vm635, %v3849, 0.0
        %3884 = vadd.xlane.f32.xlu0 %v3883
        %v3885 = vpop.xlane.xlu0 %3884
        %v3886 = vsel %vm635, %v3850, 0.0
        %3887 = vadd.xlane.f32.xlu0 %v3886
        %v3888 = vpop.xlane.xlu0 %3887
        %v3889 = vmul.f32 %v3885, %v642
        %v3890 = vmul.f32 %v3888, %v642
        %v3891 = vsub.f32 %v3849, %v3889
        %v3892 = vsub.f32 %v3850, %v3890
        %v3893 = vmul.f32 %v3891, %v3891
        %v3894 = vmul.f32 %v3892, %v3892
        %v3895 = vsel %vm635, %v3893, 0.0
        %3896 = vadd.xlane.f32.xlu0 %v3895
        %v3897 = vpop.xlane.xlu0 %3896
        %v3898 = vsel %vm635, %v3894, 0.0
        %3899 = vadd.xlane.f32.xlu0 %v3898
        %v3900 = vpop.xlane.xlu0 %3899
        %v3901 = vmul.f32 %v3897, %v642
        %v3902 = vmul.f32 %v3900, %v642
        %v3903 = vadd.f32 %v3901, 1e-05
        %v3904 = vadd.f32 %v3902, 1e-05
        %v3905 = vrsqrt.pop %v3903
        %v3906 = vrsqrt.pop %v3904
        %v3907 = vmul.f32 %v3891, %v3905
        %v3908 = vmul.f32 %v3892, %v3906
        %v3909 = vlaneseq
        %v3910 = vshrl.u32 %v3909, 7
        %v3911 = vsub.s32 0, %v3910
        %v3912 = vrot.slane %v3852, %v3911
        %v3913 = vmul.f32 %v3907, %v3912
        %v3914 = vmul.f32 %v3908, %v3912
        %v3915 = vlaneseq
        %v3916 = vshrl.u32 %v3915, 7
        %v3917 = vsub.s32 1, %v3916
        %v3918 = vrot.slane %v3852, %v3917
        %v3919 = vadd.f32 %v3913, %v3918
        %v3920 = vadd.f32 %v3914, %v3918
        %v3921 = vpack.c.bf16 %v3920, %v3919
        %v3926 = vunpack.c.l.b16 %v3854
        %v3927 = vunpack.c.l.b16 %v3855
        %v3928 = vunpack.c.l.b16 %v3856
        %v3929 = vunpack.c.l.b16 %v3857
        %v3930 = vpack.c.b16 %v3927, %v3926
        %v3931 = vpack.c.b16 %v3929, %v3928
        %v3935 = vsel %vm635, %v3921, 0
        %3937 = vmatprep.subr.bf16.mxu0 0
        %3938 = vmatpush1.bf16.msra.mxu0 %v3930
        %3939 = vmatprep.subr.bf16.mxu0 0
        %3940 = vmatpush1.bf16.msra.mxu0 %v3931
        %3941 = vmatprep.subr.bf16.mxu0 0
        %3942 = vmatpush1.bf16.msra.mxu0 0
        %3943 = vmatprep.subr.bf16.mxu0 0
        %3944 = vmatpush1.bf16.msra.mxu0 0
        %3945 = vmatprep.subr.bf16.mxu0 0
        %3946 = vmatpush1.bf16.msra.mxu0 0
        %3947 = vmatprep.subr.bf16.mxu0 0
        %3948 = vmatpush1.bf16.msra.mxu0 0
        %3949 = vmatprep.subr.bf16.mxu0 0
        %3950 = vmatpush1.bf16.msra.mxu0 0
        %3951 = vmatprep.subr.bf16.mxu0 0
        %3952 = vmatpush1.bf16.msra.mxu0 0
        %3953 = vmatprep.subr.bf16.mxu0 0
        %3954 = vmatpush1.bf16.msra.mxu0 0
        %3955 = vmatprep.subr.bf16.mxu0 0
        %3956 = vmatpush1.bf16.msra.mxu0 0
        %3957 = vmatprep.subr.bf16.mxu0 0
        %3958 = vmatpush1.bf16.msra.mxu0 0
        %3959 = vmatprep.subr.bf16.mxu0 0
        %3960 = vmatpush1.bf16.msra.mxu0 0
        %3961 = vmatprep.subr.bf16.mxu0 0
        %3962 = vmatpush1.bf16.msra.mxu0 0
        %3963 = vmatprep.subr.bf16.mxu0 0
        %3964 = vmatpush1.bf16.msra.mxu0 0
        %3965 = vmatprep.subr.bf16.mxu0 0
        %3966 = vmatpush1.bf16.msra.mxu0 0
        %3967 = vmatprep.subr.bf16.mxu0 0
        %3968 = vmatpush1.bf16.msra.mxu0 0
        %3969 = vmatprep.mubr.bf16.mxu0 0
        %3970 = vmatmul.mubr.bf16.gmra.mrb[0].mxu0 %v3935
        %v3971 = vpop.f32.mrb[0].mxu0
        %v3972 = vadd.f32 0.0, %v3971
        %v3973 = vpop.f32.mrb[0].mxu0
        %v3974 = vpop.f32.mrb[0].mxu0
        %v3975 = vadd.f32 0.0, %v3974
        %v3976 = vpop.f32.mrb[0].mxu0
        %3977 = vdwg.mxu0
        %v3978 = vpack.c.bf16 %v3975, %v3972
        %v3979 = vlaneseq
        %v3980 = vshrl.u32 %v3979, 7
        %v3981 = vsub.s32 3, %v3980
        %v3982 = vrot.slane %v3859, %v3981
        %v3983 = vmul.f32 %v3972, %v3982
        %v3984 = vmul.f32 %v3975, %v3982
        %v3985 = vlaneseq
        %v3986 = vshrl.u32 %v3985, 7
        %v3987 = vsub.s32 0, %v3986
        %v3988 = vrot.slane %v3861, %v3987
        %v3989 = vadd.f32 %v3983, %v3988
        %v3990 = vadd.f32 %v3984, %v3988
        %3991 = vmatprep.subr.bf16.mxu0 0
        %3992 = vmatpush1.bf16.msra.mxu0 %v3978
        %3993 = vmatprep.subr.bf16.mxu0 0
        %3994 = vmatpush1.bf16.msra.mxu0 0
        %3995 = vmatprep.subr.bf16.mxu0 0
        %3996 = vmatpush1.bf16.msra.mxu0 0
        %3997 = vmatprep.subr.bf16.mxu0 0
        %3998 = vmatpush1.bf16.msra.mxu0 0
        %3999 = vmatprep.subr.bf16.mxu0 0
        %4000 = vmatpush1.bf16.msra.mxu0 0
        %4001 = vmatprep.subr.bf16.mxu0 0
        %4002 = vmatpush1.bf16.msra.mxu0 0
        %4003 = vmatprep.subr.bf16.mxu0 0
        %4004 = vmatpush1.bf16.msra.mxu0 0
        %4005 = vmatprep.subr.bf16.mxu0 0
        %4006 = vmatpush1.bf16.msra.mxu0 0
        %4007 = vmatprep.subr.bf16.mxu0 0
        %4008 = vmatpush1.bf16.msra.mxu0 0
        %4009 = vmatprep.subr.bf16.mxu0 0
        %4010 = vmatpush1.bf16.msra.mxu0 0
        %4011 = vmatprep.subr.bf16.mxu0 0
        %4012 = vmatpush1.bf16.msra.mxu0 0
        %4013 = vmatprep.subr.bf16.mxu0 0
        %4014 = vmatpush1.bf16.msra.mxu0 0
        %4015 = vmatprep.subr.bf16.mxu0 0
        %4016 = vmatpush1.bf16.msra.mxu0 0
        %4017 = vmatprep.subr.bf16.mxu0 0
        %4018 = vmatpush1.bf16.msra.mxu0 0
        %4019 = vmatprep.subr.bf16.mxu0 0
        %4020 = vmatpush1.bf16.msra.mxu0 0
        %4021 = vmatprep.subr.bf16.mxu0 0
        %4022 = vmatpush1.bf16.msra.mxu0 0
        %4023 = vmatprep.mubr.bf16.mxu0 0
        %4024 = vmatmul.mubr.bf16.gmra.mrb[0].mxu0 %v752
        %v4025 = vpop.f32.mrb[0].mxu0
        %v4026 = vadd.f32 0.0, %v4025
        %v4027 = vpop.f32.mrb[0].mxu0
        %v4028 = vpop.f32.mrb[0].mxu0
        %v4029 = vadd.f32 0.0, %v4028
        %v4030 = vpop.f32.mrb[0].mxu0
        %4031 = vdwg.mxu0
        %v4032 = vlaneseq
        %v4033 = vshrl.u32 %v4032, 7
        %v4034 = vsub.s32 0, %v4033
        %v4035 = vrot.slane %v3859, %v4034
        %v4036 = vmul.f32 %v4026, %v4035
        %v4037 = vmul.f32 %v4029, %v4035
        %v4038 = vadd.f32 %v3989, %v4036
        %v4039 = vadd.f32 %v3990, %v4037
        %4040 = vmatprep.subr.bf16.mxu0 0
        %4041 = vmatpush1.bf16.msra.mxu0 %v3978
        %4042 = vmatprep.subr.bf16.mxu0 0
        %4043 = vmatpush1.bf16.msra.mxu0 0
        %4044 = vmatprep.subr.bf16.mxu0 0
        %4045 = vmatpush1.bf16.msra.mxu0 0
        %4046 = vmatprep.subr.bf16.mxu0 0
        %4047 = vmatpush1.bf16.msra.mxu0 0
        %4048 = vmatprep.subr.bf16.mxu0 0
        %4049 = vmatpush1.bf16.msra.mxu0 0
        %4050 = vmatprep.subr.bf16.mxu0 0
        %4051 = vmatpush1.bf16.msra.mxu0 0
        %4052 = vmatprep.subr.bf16.mxu0 0
        %4053 = vmatpush1.bf16.msra.mxu0 0
        %4054 = vmatprep.subr.bf16.mxu0 0
        %4055 = vmatpush1.bf16.msra.mxu0 0
        %4056 = vmatprep.subr.bf16.mxu0 0
        %4057 = vmatpush1.bf16.msra.mxu0 0
        %4058 = vmatprep.subr.bf16.mxu0 0
        %4059 = vmatpush1.bf16.msra.mxu0 0
        %4060 = vmatprep.subr.bf16.mxu0 0
        %4061 = vmatpush1.bf16.msra.mxu0 0
        %4062 = vmatprep.subr.bf16.mxu0 0
        %4063 = vmatpush1.bf16.msra.mxu0 0
        %4064 = vmatprep.subr.bf16.mxu0 0
        %4065 = vmatpush1.bf16.msra.mxu0 0
        %4066 = vmatprep.subr.bf16.mxu0 0
        %4067 = vmatpush1.bf16.msra.mxu0 0
        %4068 = vmatprep.subr.bf16.mxu0 0
        %4069 = vmatpush1.bf16.msra.mxu0 0
        %4070 = vmatprep.subr.bf16.mxu0 0
        %4071 = vmatpush1.bf16.msra.mxu0 0
        %4072 = vmatprep.mubr.bf16.mxu0 0
        %4073 = vmatmul.mubr.bf16.gmra.mrb[0].mxu0 %v809
        %v4074 = vpop.f32.mrb[0].mxu0
        %v4075 = vadd.f32 0.0, %v4074
        %v4076 = vpop.f32.mrb[0].mxu0
        %v4077 = vpop.f32.mrb[0].mxu0
        %v4078 = vadd.f32 0.0, %v4077
        %v4079 = vpop.f32.mrb[0].mxu0
        %4080 = vdwg.mxu0
        %v4081 = vlaneseq
        %v4082 = vshrl.u32 %v4081, 7
        %v4083 = vsub.s32 1, %v4082
        %v4084 = vrot.slane %v3859, %v4083
        %v4085 = vmul.f32 %v4075, %v4084
        %v4086 = vmul.f32 %v4078, %v4084
        %v4087 = vadd.f32 %v4038, %v4085
        %v4088 = vadd.f32 %v4039, %v4086
        %4089 = vmatprep.subr.bf16.mxu0 0
        %4090 = vmatpush1.bf16.msra.mxu0 %v3978
        %4091 = vmatprep.subr.bf16.mxu0 0
        %4092 = vmatpush1.bf16.msra.mxu0 0
        %4093 = vmatprep.subr.bf16.mxu0 0
        %4094 = vmatpush1.bf16.msra.mxu0 0
        %4095 = vmatprep.subr.bf16.mxu0 0
        %4096 = vmatpush1.bf16.msra.mxu0 0
        %4097 = vmatprep.subr.bf16.mxu0 0
        %4098 = vmatpush1.bf16.msra.mxu0 0
        %4099 = vmatprep.subr.bf16.mxu0 0
        %4100 = vmatpush1.bf16.msra.mxu0 0
        %4101 = vmatprep.subr.bf16.mxu0 0
        %4102 = vmatpush1.bf16.msra.mxu0 0
        %4103 = vmatprep.subr.bf16.mxu0 0
        %4104 = vmatpush1.bf16.msra.mxu0 0
        %4105 = vmatprep.subr.bf16.mxu0 0
        %4106 = vmatpush1.bf16.msra.mxu0 0
        %4107 = vmatprep.subr.bf16.mxu0 0
        %4108 = vmatpush1.bf16.msra.mxu0 0
        %4109 = vmatprep.subr.bf16.mxu0 0
        %4110 = vmatpush1.bf16.msra.mxu0 0
        %4111 = vmatprep.subr.bf16.mxu0 0
        %4112 = vmatpush1.bf16.msra.mxu0 0
        %4113 = vmatprep.subr.bf16.mxu0 0
        %4114 = vmatpush1.bf16.msra.mxu0 0
        %4115 = vmatprep.subr.bf16.mxu0 0
        %4116 = vmatpush1.bf16.msra.mxu0 0
        %4117 = vmatprep.subr.bf16.mxu0 0
        %4118 = vmatpush1.bf16.msra.mxu0 0
        %4119 = vmatprep.subr.bf16.mxu0 0
        %4120 = vmatpush1.bf16.msra.mxu0 0
        %4121 = vmatprep.mubr.bf16.mxu0 0
        %4122 = vmatmul.mubr.bf16.gmra.mrb[0].mxu0 %v866
        %v4123 = vpop.f32.mrb[0].mxu0
        %v4124 = vadd.f32 0.0, %v4123
        %v4125 = vpop.f32.mrb[0].mxu0
        %v4126 = vpop.f32.mrb[0].mxu0
        %v4127 = vadd.f32 0.0, %v4126
        %v4128 = vpop.f32.mrb[0].mxu0
        %4129 = vdwg.mxu0
        %v4130 = vlaneseq
        %v4131 = vshrl.u32 %v4130, 7
        %v4132 = vsub.s32 2, %v4131
        %v4133 = vrot.slane %v3859, %v4132
        %v4134 = vmul.f32 %v4124, %v4133
        %v4135 = vmul.f32 %v4127, %v4133
        %v4136 = vadd.f32 %v4087, %v4134
        %v4137 = vadd.f32 %v4088, %v4135
        %v4138 = vxor.u32 %v4136, 2147483648
        %v4139 = vxor.u32 %v4137, 2147483648
        %v4140 = vmul.f32 %v4138, 1.442695
        %v4141 = vpow.pop %v4140
        %v4142 = vmul.f32 %v4139, 1.442695
        %v4143 = vpow.pop %v4142
        %v4144 = vadd.f32 %v4141, 1.0
        %v4145 = vadd.f32 %v4143, 1.0
        %v4146 = vrcp.pop %v4144
        %v4147 = vmul.f32 1.0, %v4146
        %v4148 = vrcp.pop %v4145
        %v4149 = vmul.f32 1.0, %v4148
        %v4150 = vmul.f32 %v4136, %v4147
        %v4151 = vmul.f32 %v4137, %v4149
        %v4152 = vpack.c.bf16 %v4151, %v4150
        %v4161 = vunpack.c.l.b16 %v3863
        %v4162 = vunpack.c.l.b16 %v3864
        %v4163 = vunpack.c.l.b16 %v3865
        %v4164 = vunpack.c.l.b16 %v3866
        %v4165 = vunpack.c.l.b16 %v3867
        %v4166 = vunpack.c.l.b16 %v3868
        %v4167 = vunpack.c.l.b16 %v3869
        %v4168 = vunpack.c.l.b16 %v3870
        %v4169 = vpack.c.b16 %v4162, %v4161
        %v4170 = vpack.c.b16 %v4164, %v4163
        %v4171 = vpack.c.b16 %v4166, %v4165
        %v4172 = vpack.c.b16 %v4168, %v4167
        %v4178 = vsel %vm956, %v4152, 0
        %4180 = vmatprep.subr.bf16.mxu0 0
        %4181 = vmatpush1.bf16.msra.mxu0 %v4169
        %4182 = vmatprep.subr.bf16.mxu0 0
        %4183 = vmatpush1.bf16.msra.mxu0 %v4170
        %4184 = vmatprep.subr.bf16.mxu0 0
        %4185 = vmatpush1.bf16.msra.mxu0 %v4171
        %4186 = vmatprep.subr.bf16.mxu0 0
        %4187 = vmatpush1.bf16.msra.mxu0 %v4172
        %4188 = vmatprep.subr.bf16.mxu0 0
        %4189 = vmatpush1.bf16.msra.mxu0 0
        %4190 = vmatprep.subr.bf16.mxu0 0
        %4191 = vmatpush1.bf16.msra.mxu0 0
        %4192 = vmatprep.subr.bf16.mxu0 0
        %4193 = vmatpush1.bf16.msra.mxu0 0
        %4194 = vmatprep.subr.bf16.mxu0 0
        %4195 = vmatpush1.bf16.msra.mxu0 0
        %4196 = vmatprep.subr.bf16.mxu0 0
        %4197 = vmatpush1.bf16.msra.mxu0 0
        %4198 = vmatprep.subr.bf16.mxu0 0
        %4199 = vmatpush1.bf16.msra.mxu0 0
        %4200 = vmatprep.subr.bf16.mxu0 0
        %4201 = vmatpush1.bf16.msra.mxu0 0
        %4202 = vmatprep.subr.bf16.mxu0 0
        %4203 = vmatpush1.bf16.msra.mxu0 0
        %4204 = vmatprep.subr.bf16.mxu0 0
        %4205 = vmatpush1.bf16.msra.mxu0 0
        %4206 = vmatprep.subr.bf16.mxu0 0
        %4207 = vmatpush1.bf16.msra.mxu0 0
        %4208 = vmatprep.subr.bf16.mxu0 0
        %4209 = vmatpush1.bf16.msra.mxu0 0
        %4210 = vmatprep.subr.bf16.mxu0 0
        %4211 = vmatpush1.bf16.msra.mxu0 0
        %4212 = vmatprep.mubr.bf16.mxu0 0
        %4213 = vmatmul.mubr.bf16.gmra.mrb[0].mxu0 %v4178
        %v4214 = vpop.f32.mrb[0].mxu0
        %v4215 = vadd.f32 0.0, %v4214
        %v4216 = vpop.f32.mrb[0].mxu0
        %v4217 = vpop.f32.mrb[0].mxu0
        %v4218 = vadd.f32 0.0, %v4217
        %v4219 = vpop.f32.mrb[0].mxu0
        %4220 = vdwg.mxu0
        %v4221 = vlaneseq
        %v4222 = vshrl.u32 %v4221, 7
        %v4223 = vsub.s32 1, %v4222
        %v4224 = vrot.slane %v3861, %v4223
        %v4225 = vadd.f32 %v4215, %v4224
        %v4226 = vadd.f32 %v4218, %v4224
        %v4227 = vmax.f32 %v4225, 0.0
        %v4228 = vmax.f32 %v4226, 0.0
        %vm4229 = vcmp.ne.f32.partialorder %v4225, %v4225
        %vm4230 = vcmp.ne.f32.partialorder %v4226, %v4226
        %v4231 = vadd.f32 %v4225, 0.0
        %v4232 = vadd.f32 %v4226, 0.0
        %v4233 = vand.u32 2147483647, %v4225
        %v4234 = vand.u32 2147483647, %v4226
        %v4235 = vsub.f32 0.0, %v4233
        %v4236 = vsub.f32 0.0, %v4234
        %v4237 = vmul.f32 %v4235, 1.442695
        %v4238 = vpow.pop %v4237
        %v4239 = vmul.f32 %v4236, 1.442695
        %v4240 = vpow.pop %v4239
        %v4241 = vadd.f32 %v4238, 1.0
        %v4242 = vlog2.pop %v4241
        %v4243 = vmul.f32 %v4242, 0.6931472
        %v4244 = vmul.f32 -0.5, %v4238
        %v4245 = vadd.f32 %v4244, 1.0
        %v4246 = vmul.f32 %v4245, %v4238
        %v4247 = vand.u32 2147483647, %v4238
        %vm4248 = vcmp.lt.f32.partialorder %v4247, 0.0004427343
        %v4249 = vsel %vm4248, %v4246, %v4243
        %v4250 = vadd.f32 %v4240, 1.0
        %v4251 = vlog2.pop %v4250
        %v4252 = vmul.f32 %v4251, 0.6931472
        %v4253 = vmul.f32 -0.5, %v4240
        %v4254 = vadd.f32 %v4253, 1.0
        %v4255 = vmul.f32 %v4254, %v4240
        %v4256 = vand.u32 2147483647, %v4240
        %vm4257 = vcmp.lt.f32.partialorder %v4256, 0.0004427343
        %v4258 = vsel %vm4257, %v4255, %v4252
        %v4259 = vadd.f32 %v4227, %v4249
        %v4260 = vadd.f32 %v4228, %v4258
        %v4261 = vsel %vm4229, %v4231, %v4259
        %v4262 = vsel %vm4230, %v4232, %v4260
        %v4263 = vmul.f32 %v4261, %v4150
        %v4264 = vmul.f32 %v4262, %v4151
        %v4267 = vunpack.c.l.s4 1966171168
        %v4268 = vunpack.c.0.s8 %v4267
        %v4269 = vlaneseq
        %v4270 = vshrl.u32 %v4269, 7
        %v4271 = vsub.s32 %v4268, %v4270
        %v4272 = vrot.slane %v4261, %v4271
        %v4273 = vcombine.high %v4272, %v4272
        %v4275 = vunpack.c.l.s4 1966171168
        %v4276 = vunpack.c.0.s8 %v4275
        %v4277 = vlaneseq
        %v4278 = vshrl.u32 %v4277, 7
        %v4279 = vsub.s32 %v4276, %v4278
        %v4280 = vrot.slane %v4272, %v4279
        %v4282 = vunpack.c.l.s4 1966171168
        %v4283 = vunpack.c.0.s8 %v4282
        %v4284 = vlaneseq
        %v4285 = vshrl.u32 %v4284, 7
        %v4286 = vsub.s32 %v4283, %v4285
        %v4287 = vrot.slane %v4273, %v4286
        %v4288 = vlaneseq
        %v4289 = vshrl.u32 %v4288, 7
        %v4290 = vsub.s32 0, %v4289
        %v4291 = vrot.slane %v4280, %v4290
        %v4292 = vlaneseq
        %v4293 = vshrl.u32 %v4292, 7
        %v4294 = vsub.s32 0, %v4293
        %v4295 = vrot.slane %v4287, %v4294
        %v4298 = vmul.f32 %v4291, %v3872
        %v4299 = vmul.f32 %v4291, %v3873
        %v4300 = vmul.f32 %v4295, %v3872
        %v4301 = vmul.f32 %v4295, %v3873
        %v4302 = vmul.f32 %v4298, 1.442695
        %v4303 = vpow.pop %v4302
        %v4304 = vmul.f32 %v4299, 1.442695
        %v4305 = vpow.pop %v4304
        %v4306 = vmul.f32 %v4300, 1.442695
        %v4307 = vpow.pop %v4306
        %v4308 = vmul.f32 %v4301, 1.442695
        %v4309 = vpow.pop %v4308
        %v4310 = vmul.f32 %v4303, 0.0
        %v4311 = vmul.f32 %v4305, 0.0
        %v4312 = vmul.f32 %v4307, 0.0
        %v4313 = vmul.f32 %v4309, 0.0
        %v4316 = vunpack.c.l.s4 1966171168
        %v4317 = vunpack.c.0.s8 %v4316
        %v4318 = vlaneseq
        %v4319 = vshrl.u32 %v4318, 7
        %v4320 = vsub.s32 %v4317, %v4319
        %v4321 = vrot.slane %v4263, %v4320
        %v4322 = vcombine.high %v4321, %v4321
        %v4324 = vunpack.c.l.s4 1966171168
        %v4325 = vunpack.c.0.s8 %v4324
        %v4326 = vlaneseq
        %v4327 = vshrl.u32 %v4326, 7
        %v4328 = vsub.s32 %v4325, %v4327
        %v4329 = vrot.slane %v4321, %v4328
        %v4331 = vunpack.c.l.s4 1966171168
        %v4332 = vunpack.c.0.s8 %v4331
        %v4333 = vlaneseq
        %v4334 = vshrl.u32 %v4333, 7
        %v4335 = vsub.s32 %v4332, %v4334
        %v4336 = vrot.slane %v4322, %v4335
        %v4337 = vlaneseq
        %v4338 = vshrl.u32 %v4337, 7
        %v4339 = vsub.s32 0, %v4338
        %v4340 = vrot.slane %v4215, %v4339
        %s4342 = sor.u32 256, 64
        %4343 = vbcast.lane.b32.xlu0 %v4340, %s4342
        %v4344 = vpop.permute.xlu0 %4343
        %s4346 = sor.u32 256, 72
        %4347 = vbcast.lane.b32.xlu0 %v4340, %s4346
        %v4348 = vpop.permute.xlu0 %4347
        %v4349 = vlaneseq
        %v4350 = vshrl.u32 %v4349, 7
        %v4351 = vsub.s32 1, %v4350
        %v4352 = vrot.slane %v4215, %v4351
        %s4354 = sor.u32 256, 64
        %4355 = vbcast.lane.b32.xlu0 %v4352, %s4354
        %v4356 = vpop.permute.xlu0 %4355
        %s4358 = sor.u32 256, 72
        %4359 = vbcast.lane.b32.xlu0 %v4352, %s4358
        %v4360 = vpop.permute.xlu0 %4359
        %v4361 = vlaneseq
        %v4362 = vshrl.u32 %v4361, 7
        %v4363 = vsub.s32 0, %v4362
        %v4364 = vrot.slane %v4329, %v4363
        %v4365 = vlaneseq
        %v4366 = vshrl.u32 %v4365, 7
        %v4367 = vsub.s32 0, %v4366
        %v4368 = vrot.slane %v4336, %v4367
        %v4371 = vmul.f32 %v4364, %v4344
        %v4372 = vmul.f32 %v4364, %v4348
        %v4373 = vmul.f32 %v4368, %v4356
        %v4374 = vmul.f32 %v4368, %v4360
        %v4375 = vadd.f32 %v4310, %v4371
        %v4376 = vadd.f32 %v4311, %v4372
        %v4377 = vadd.f32 %v4312, %v4373
        %v4378 = vadd.f32 %v4313, %v4374
        %s4380 = sor.u32 256, 80
        %4381 = vbcast.lane.b32.xlu0 %v4340, %s4380
        %v4382 = vpop.permute.xlu0 %4381
        %s4384 = sor.u32 256, 88
        %4385 = vbcast.lane.b32.xlu0 %v4340, %s4384
        %v4386 = vpop.permute.xlu0 %4385
        %s4388 = sor.u32 256, 80
        %4389 = vbcast.lane.b32.xlu0 %v4352, %s4388
        %v4390 = vpop.permute.xlu0 %4389
        %s4392 = sor.u32 256, 88
        %4393 = vbcast.lane.b32.xlu0 %v4352, %s4392
        %v4394 = vpop.permute.xlu0 %4393
        %v4395 = vmul.f32 %v4375, %v4382
        %v4396 = vmul.f32 %v4376, %v4386
        %v4397 = vmul.f32 %v4377, %v4390
        %v4398 = vmul.f32 %v4378, %v4394
        %v4399 = vsel %vm956, %v4395, 0.0
        %v4400 = vsel %vm956, %v4396, 0.0
        %v4401 = vadd.f32 %v4399, %v4400
        %v4402 = vrot.slane %v4401, 4
        %v4403 = vadd.f32 %v4401, %v4402
        %v4404 = vrot.slane %v4403, 2
        %v4405 = vadd.f32 %v4403, %v4404
        %v4406 = vrot.slane %v4405, 1
        %v4407 = vadd.f32 %v4405, %v4406
        %v4408 = vsel %vm956, %v4397, 0.0
        %v4409 = vsel %vm956, %v4398, 0.0
        %v4410 = vadd.f32 %v4408, %v4409
        %v4411 = vrot.slane %v4410, 4
        %v4412 = vadd.f32 %v4410, %v4411
        %v4413 = vrot.slane %v4412, 2
        %v4414 = vadd.f32 %v4412, %v4413
        %v4415 = vrot.slane %v4414, 1
        %v4416 = vadd.f32 %v4414, %v4415
        %v4417 = vcombine.high %v4280, %v4280
        %v4418 = vcombine.high %v4287, %v4287
        %v4419 = vlaneseq
        %v4420 = vshrl.u32 %v4419, 7
        %v4421 = vsub.s32 0, %v4420
        %v4422 = vrot.slane %v4417, %v4421
        %v4423 = vlaneseq
        %v4424 = vshrl.u32 %v4423, 7
        %v4425 = vsub.s32 0, %v4424
        %v4426 = vrot.slane %v4418, %v4425
        %v4429 = vmul.f32 %v4422, %v3872
        %v4430 = vmul.f32 %v4422, %v3873
        %v4431 = vmul.f32 %v4426, %v3872
        %v4432 = vmul.f32 %v4426, %v3873
        %v4433 = vmul.f32 %v4429, 1.442695
        %v4434 = vpow.pop %v4433
        %v4435 = vmul.f32 %v4430, 1.442695
        %v4436 = vpow.pop %v4435
        %v4437 = vmul.f32 %v4431, 1.442695
        %v4438 = vpow.pop %v4437
        %v4439 = vmul.f32 %v4432, 1.442695
        %v4440 = vpow.pop %v4439
        %v4441 = vmul.f32 %v4434, %v4375
        %v4442 = vmul.f32 %v4436, %v4376
        %v4443 = vmul.f32 %v4438, %v4377
        %v4444 = vmul.f32 %v4440, %v4378
        %v4445 = vcombine.high %v4329, %v4329
        %v4446 = vcombine.high %v4336, %v4336
        %v4447 = vlaneseq
        %v4448 = vshrl.u32 %v4447, 7
        %v4449 = vsub.s32 2, %v4448
        %v4450 = vrot.slane %v4215, %v4449
        %s4452 = sor.u32 256, 64
        %4453 = vbcast.lane.b32.xlu0 %v4450, %s4452
        %v4454 = vpop.permute.xlu0 %4453
        %s4456 = sor.u32 256, 72
        %4457 = vbcast.lane.b32.xlu0 %v4450, %s4456
        %v4458 = vpop.permute.xlu0 %4457
        %v4459 = vlaneseq
        %v4460 = vshrl.u32 %v4459, 7
        %v4461 = vsub.s32 3, %v4460
        %v4462 = vrot.slane %v4215, %v4461
        %s4464 = sor.u32 256, 64
        %4465 = vbcast.lane.b32.xlu0 %v4462, %s4464
        %v4466 = vpop.permute.xlu0 %4465
        %s4468 = sor.u32 256, 72
        %4469 = vbcast.lane.b32.xlu0 %v4462, %s4468
        %v4470 = vpop.permute.xlu0 %4469
        %v4471 = vlaneseq
        %v4472 = vshrl.u32 %v4471, 7
        %v4473 = vsub.s32 0, %v4472
        %v4474 = vrot.slane %v4445, %v4473
        %v4475 = vlaneseq
        %v4476 = vshrl.u32 %v4475, 7
        %v4477 = vsub.s32 0, %v4476
        %v4478 = vrot.slane %v4446, %v4477
        %v4481 = vmul.f32 %v4474, %v4454
        %v4482 = vmul.f32 %v4474, %v4458
        %v4483 = vmul.f32 %v4478, %v4466
        %v4484 = vmul.f32 %v4478, %v4470
        %v4485 = vadd.f32 %v4441, %v4481
        %v4486 = vadd.f32 %v4442, %v4482
        %v4487 = vadd.f32 %v4443, %v4483
        %v4488 = vadd.f32 %v4444, %v4484
        %s4490 = sor.u32 256, 80
        %4491 = vbcast.lane.b32.xlu0 %v4450, %s4490
        %v4492 = vpop.permute.xlu0 %4491
        %s4494 = sor.u32 256, 88
        %4495 = vbcast.lane.b32.xlu0 %v4450, %s4494
        %v4496 = vpop.permute.xlu0 %4495
        %s4498 = sor.u32 256, 80
        %4499 = vbcast.lane.b32.xlu0 %v4462, %s4498
        %v4500 = vpop.permute.xlu0 %4499
        %s4502 = sor.u32 256, 88
        %4503 = vbcast.lane.b32.xlu0 %v4462, %s4502
        %v4504 = vpop.permute.xlu0 %4503
        %v4505 = vmul.f32 %v4485, %v4492
        %v4506 = vmul.f32 %v4486, %v4496
        %v4507 = vmul.f32 %v4487, %v4500
        %v4508 = vmul.f32 %v4488, %v4504
        %v4509 = vsel %vm956, %v4505, 0.0
        %v4510 = vsel %vm956, %v4506, 0.0
        %v4511 = vadd.f32 %v4509, %v4510
        %v4512 = vrot.slane %v4511, 4
        %v4513 = vadd.f32 %v4511, %v4512
        %v4514 = vrot.slane %v4513, 2
        %v4515 = vadd.f32 %v4513, %v4514
        %v4516 = vrot.slane %v4515, 1
        %v4517 = vadd.f32 %v4515, %v4516
        %v4518 = vsel %vm956, %v4507, 0.0
        %v4519 = vsel %vm956, %v4508, 0.0
        %v4520 = vadd.f32 %v4518, %v4519
        %v4521 = vrot.slane %v4520, 4
        %v4522 = vadd.f32 %v4520, %v4521
        %v4523 = vrot.slane %v4522, 2
        %v4524 = vadd.f32 %v4522, %v4523
        %v4525 = vrot.slane %v4524, 1
        %v4526 = vadd.f32 %v4524, %v4525
        %v4527 = vcombine.high %v4261, %v4261
        %v4529 = vunpack.c.l.s4 1966171168
        %v4530 = vunpack.c.0.s8 %v4529
        %v4531 = vlaneseq
        %v4532 = vshrl.u32 %v4531, 7
        %v4533 = vsub.s32 %v4530, %v4532
        %v4534 = vrot.slane %v4527, %v4533
        %v4535 = vcombine.high %v4534, %v4534
        %v4537 = vunpack.c.l.s4 1966171168
        %v4538 = vunpack.c.0.s8 %v4537
        %v4539 = vlaneseq
        %v4540 = vshrl.u32 %v4539, 7
        %v4541 = vsub.s32 %v4538, %v4540
        %v4542 = vrot.slane %v4534, %v4541
        %v4544 = vunpack.c.l.s4 1966171168
        %v4545 = vunpack.c.0.s8 %v4544
        %v4546 = vlaneseq
        %v4547 = vshrl.u32 %v4546, 7
        %v4548 = vsub.s32 %v4545, %v4547
        %v4549 = vrot.slane %v4535, %v4548
        %v4550 = vlaneseq
        %v4551 = vshrl.u32 %v4550, 7
        %v4552 = vsub.s32 0, %v4551
        %v4553 = vrot.slane %v4542, %v4552
        %v4554 = vlaneseq
        %v4555 = vshrl.u32 %v4554, 7
        %v4556 = vsub.s32 0, %v4555
        %v4557 = vrot.slane %v4549, %v4556
        %v4560 = vmul.f32 %v4553, %v3872
        %v4561 = vmul.f32 %v4553, %v3873
        %v4562 = vmul.f32 %v4557, %v3872
        %v4563 = vmul.f32 %v4557, %v3873
        %v4564 = vmul.f32 %v4560, 1.442695
        %v4565 = vpow.pop %v4564
        %v4566 = vmul.f32 %v4561, 1.442695
        %v4567 = vpow.pop %v4566
        %v4568 = vmul.f32 %v4562, 1.442695
        %v4569 = vpow.pop %v4568
        %v4570 = vmul.f32 %v4563, 1.442695
        %v4571 = vpow.pop %v4570
        %v4572 = vmul.f32 %v4565, %v4485
        %v4573 = vmul.f32 %v4567, %v4486
        %v4574 = vmul.f32 %v4569, %v4487
        %v4575 = vmul.f32 %v4571, %v4488
        %v4576 = vcombine.high %v4263, %v4263
        %v4578 = vunpack.c.l.s4 1966171168
        %v4579 = vunpack.c.0.s8 %v4578
        %v4580 = vlaneseq
        %v4581 = vshrl.u32 %v4580, 7
        %v4582 = vsub.s32 %v4579, %v4581
        %v4583 = vrot.slane %v4576, %v4582
        %v4584 = vcombine.high %v4583, %v4583
        %v4586 = vunpack.c.l.s4 1966171168
        %v4587 = vunpack.c.0.s8 %v4586
        %v4588 = vlaneseq
        %v4589 = vshrl.u32 %v4588, 7
        %v4590 = vsub.s32 %v4587, %v4589
        %v4591 = vrot.slane %v4583, %v4590
        %v4593 = vunpack.c.l.s4 1966171168
        %v4594 = vunpack.c.0.s8 %v4593
        %v4595 = vlaneseq
        %v4596 = vshrl.u32 %v4595, 7
        %v4597 = vsub.s32 %v4594, %v4596
        %v4598 = vrot.slane %v4584, %v4597
        %v4599 = vlaneseq
        %v4600 = vshrl.u32 %v4599, 7
        %v4601 = vsub.s32 4, %v4600
        %v4602 = vrot.slane %v4215, %v4601
        %s4604 = sor.u32 256, 64
        %4605 = vbcast.lane.b32.xlu0 %v4602, %s4604
        %v4606 = vpop.permute.xlu0 %4605
        %s4608 = sor.u32 256, 72
        %4609 = vbcast.lane.b32.xlu0 %v4602, %s4608
        %v4610 = vpop.permute.xlu0 %4609
        %v4611 = vlaneseq
        %v4612 = vshrl.u32 %v4611, 7
        %v4613 = vsub.s32 5, %v4612
        %v4614 = vrot.slane %v4215, %v4613
        %s4616 = sor.u32 256, 64
        %4617 = vbcast.lane.b32.xlu0 %v4614, %s4616
        %v4618 = vpop.permute.xlu0 %4617
        %s4620 = sor.u32 256, 72
        %4621 = vbcast.lane.b32.xlu0 %v4614, %s4620
        %v4622 = vpop.permute.xlu0 %4621
        %v4623 = vlaneseq
        %v4624 = vshrl.u32 %v4623, 7
        %v4625 = vsub.s32 0, %v4624
        %v4626 = vrot.slane %v4591, %v4625
        %v4627 = vlaneseq
        %v4628 = vshrl.u32 %v4627, 7
        %v4629 = vsub.s32 0, %v4628
        %v4630 = vrot.slane %v4598, %v4629
        %v4633 = vmul.f32 %v4626, %v4606
        %v4634 = vmul.f32 %v4626, %v4610
        %v4635 = vmul.f32 %v4630, %v4618
        %v4636 = vmul.f32 %v4630, %v4622
        %v4637 = vadd.f32 %v4572, %v4633
        %v4638 = vadd.f32 %v4573, %v4634
        %v4639 = vadd.f32 %v4574, %v4635
        %v4640 = vadd.f32 %v4575, %v4636
        %s4642 = sor.u32 256, 80
        %4643 = vbcast.lane.b32.xlu0 %v4602, %s4642
        %v4644 = vpop.permute.xlu0 %4643
        %s4646 = sor.u32 256, 88
        %4647 = vbcast.lane.b32.xlu0 %v4602, %s4646
        %v4648 = vpop.permute.xlu0 %4647
        %s4650 = sor.u32 256, 80
        %4651 = vbcast.lane.b32.xlu0 %v4614, %s4650
        %v4652 = vpop.permute.xlu0 %4651
        %s4654 = sor.u32 256, 88
        %4655 = vbcast.lane.b32.xlu0 %v4614, %s4654
        %v4656 = vpop.permute.xlu0 %4655
        %v4657 = vmul.f32 %v4637, %v4644
        %v4658 = vmul.f32 %v4638, %v4648
        %v4659 = vmul.f32 %v4639, %v4652
        %v4660 = vmul.f32 %v4640, %v4656
        %v4661 = vsel %vm956, %v4657, 0.0
        %v4662 = vsel %vm956, %v4658, 0.0
        %v4663 = vadd.f32 %v4661, %v4662
        %v4664 = vrot.slane %v4663, 4
        %v4665 = vadd.f32 %v4663, %v4664
        %v4666 = vrot.slane %v4665, 2
        %v4667 = vadd.f32 %v4665, %v4666
        %v4668 = vrot.slane %v4667, 1
        %v4669 = vadd.f32 %v4667, %v4668
        %v4670 = vsel %vm956, %v4659, 0.0
        %v4671 = vsel %vm956, %v4660, 0.0
        %v4672 = vadd.f32 %v4670, %v4671
        %v4673 = vrot.slane %v4672, 4
        %v4674 = vadd.f32 %v4672, %v4673
        %v4675 = vrot.slane %v4674, 2
        %v4676 = vadd.f32 %v4674, %v4675
        %v4677 = vrot.slane %v4676, 1
        %v4678 = vadd.f32 %v4676, %v4677
        %v4679 = vcombine.high %v4542, %v4542
        %v4680 = vcombine.high %v4549, %v4549
        %v4681 = vlaneseq
        %v4682 = vshrl.u32 %v4681, 7
        %v4683 = vsub.s32 0, %v4682
        %v4684 = vrot.slane %v4679, %v4683
        %v4685 = vlaneseq
        %v4686 = vshrl.u32 %v4685, 7
        %v4687 = vsub.s32 0, %v4686
        %v4688 = vrot.slane %v4680, %v4687
        %v4691 = vmul.f32 %v4684, %v3872
        %v4692 = vmul.f32 %v4684, %v3873
        %v4693 = vmul.f32 %v4688, %v3872
        %v4694 = vmul.f32 %v4688, %v3873
        %v4695 = vmul.f32 %v4691, 1.442695
        %v4696 = vpow.pop %v4695
        %v4697 = vmul.f32 %v4692, 1.442695
        %v4698 = vpow.pop %v4697
        %v4699 = vmul.f32 %v4693, 1.442695
        %v4700 = vpow.pop %v4699
        %v4701 = vmul.f32 %v4694, 1.442695
        %v4702 = vpow.pop %v4701
        %v4703 = vmul.f32 %v4696, %v4637
        %v4704 = vmul.f32 %v4698, %v4638
        %v4705 = vmul.f32 %v4700, %v4639
        %v4706 = vmul.f32 %v4702, %v4640
        %v4707 = vcombine.high %v4591, %v4591
        %v4708 = vcombine.high %v4598, %v4598
        %v4709 = vlaneseq
        %v4710 = vshrl.u32 %v4709, 7
        %v4711 = vsub.s32 6, %v4710
        %v4712 = vrot.slane %v4215, %v4711
        %s4714 = sor.u32 256, 64
        %4715 = vbcast.lane.b32.xlu0 %v4712, %s4714
        %v4716 = vpop.permute.xlu0 %4715
        %s4718 = sor.u32 256, 72
        %4719 = vbcast.lane.b32.xlu0 %v4712, %s4718
        %v4720 = vpop.permute.xlu0 %4719
        %v4721 = vlaneseq
        %v4722 = vshrl.u32 %v4721, 7
        %v4723 = vsub.s32 7, %v4722
        %v4724 = vrot.slane %v4215, %v4723
        %s4726 = sor.u32 256, 64
        %4727 = vbcast.lane.b32.xlu0 %v4724, %s4726
        %v4728 = vpop.permute.xlu0 %4727
        %s4730 = sor.u32 256, 72
        %4731 = vbcast.lane.b32.xlu0 %v4724, %s4730
        %v4732 = vpop.permute.xlu0 %4731
        %v4733 = vlaneseq
        %v4734 = vshrl.u32 %v4733, 7
        %v4735 = vsub.s32 0, %v4734
        %v4736 = vrot.slane %v4707, %v4735
        %v4737 = vlaneseq
        %v4738 = vshrl.u32 %v4737, 7
        %v4739 = vsub.s32 0, %v4738
        %v4740 = vrot.slane %v4708, %v4739
        %v4743 = vmul.f32 %v4736, %v4716
        %v4744 = vmul.f32 %v4736, %v4720
        %v4745 = vmul.f32 %v4740, %v4728
        %v4746 = vmul.f32 %v4740, %v4732
        %v4747 = vadd.f32 %v4703, %v4743
        %v4748 = vadd.f32 %v4704, %v4744
        %v4749 = vadd.f32 %v4705, %v4745
        %v4750 = vadd.f32 %v4706, %v4746
        %s4752 = sor.u32 256, 80
        %4753 = vbcast.lane.b32.xlu0 %v4712, %s4752
        %v4754 = vpop.permute.xlu0 %4753
        %s4756 = sor.u32 256, 88
        %4757 = vbcast.lane.b32.xlu0 %v4712, %s4756
        %v4758 = vpop.permute.xlu0 %4757
        %s4760 = sor.u32 256, 80
        %4761 = vbcast.lane.b32.xlu0 %v4724, %s4760
        %v4762 = vpop.permute.xlu0 %4761
        %s4764 = sor.u32 256, 88
        %4765 = vbcast.lane.b32.xlu0 %v4724, %s4764
        %v4766 = vpop.permute.xlu0 %4765
        %v4767 = vmul.f32 %v4747, %v4754
        %v4768 = vmul.f32 %v4748, %v4758
        %v4769 = vmul.f32 %v4749, %v4762
        %v4770 = vmul.f32 %v4750, %v4766
        %v4771 = vsel %vm956, %v4767, 0.0
        %v4772 = vsel %vm956, %v4768, 0.0
        %v4773 = vadd.f32 %v4771, %v4772
        %v4774 = vrot.slane %v4773, 4
        %v4775 = vadd.f32 %v4773, %v4774
        %v4776 = vrot.slane %v4775, 2
        %v4777 = vadd.f32 %v4775, %v4776
        %v4778 = vrot.slane %v4777, 1
        %v4779 = vadd.f32 %v4777, %v4778
        %v4780 = vsel %vm956, %v4769, 0.0
        %v4781 = vsel %vm956, %v4770, 0.0
        %v4782 = vadd.f32 %v4780, %v4781
        %v4783 = vrot.slane %v4782, 4
        %v4784 = vadd.f32 %v4782, %v4783
        %v4785 = vrot.slane %v4784, 2
        %v4786 = vadd.f32 %v4784, %v4785
        %v4787 = vrot.slane %v4786, 1
        %v4788 = vadd.f32 %v4786, %v4787
        %v4791 = vunpack.c.l.s4 1966171168
        %v4792 = vunpack.c.0.s8 %v4791
        %v4793 = vlaneseq
        %v4794 = vshrl.u32 %v4793, 7
        %v4795 = vsub.s32 %v4792, %v4794
        %v4796 = vrot.slane %v4262, %v4795
        %v4797 = vcombine.high %v4796, %v4796
        %v4799 = vunpack.c.l.s4 1966171168
        %v4800 = vunpack.c.0.s8 %v4799
        %v4801 = vlaneseq
        %v4802 = vshrl.u32 %v4801, 7
        %v4803 = vsub.s32 %v4800, %v4802
        %v4804 = vrot.slane %v4796, %v4803
        %v4806 = vunpack.c.l.s4 1966171168
        %v4807 = vunpack.c.0.s8 %v4806
        %v4808 = vlaneseq
        %v4809 = vshrl.u32 %v4808, 7
        %v4810 = vsub.s32 %v4807, %v4809
        %v4811 = vrot.slane %v4797, %v4810
        %v4812 = vlaneseq
        %v4813 = vshrl.u32 %v4812, 7
        %v4814 = vsub.s32 0, %v4813
        %v4815 = vrot.slane %v4804, %v4814
        %v4816 = vlaneseq
        %v4817 = vshrl.u32 %v4816, 7
        %v4818 = vsub.s32 0, %v4817
        %v4819 = vrot.slane %v4811, %v4818
        %v4822 = vmul.f32 %v4815, %v3872
        %v4823 = vmul.f32 %v4815, %v3873
        %v4824 = vmul.f32 %v4819, %v3872
        %v4825 = vmul.f32 %v4819, %v3873
        %v4826 = vmul.f32 %v4822, 1.442695
        %v4827 = vpow.pop %v4826
        %v4828 = vmul.f32 %v4823, 1.442695
        %v4829 = vpow.pop %v4828
        %v4830 = vmul.f32 %v4824, 1.442695
        %v4831 = vpow.pop %v4830
        %v4832 = vmul.f32 %v4825, 1.442695
        %v4833 = vpow.pop %v4832
        %v4834 = vmul.f32 %v4827, %v4747
        %v4835 = vmul.f32 %v4829, %v4748
        %v4836 = vmul.f32 %v4831, %v4749
        %v4837 = vmul.f32 %v4833, %v4750
        %v4840 = vunpack.c.l.s4 1966171168
        %v4841 = vunpack.c.0.s8 %v4840
        %v4842 = vlaneseq
        %v4843 = vshrl.u32 %v4842, 7
        %v4844 = vsub.s32 %v4841, %v4843
        %v4845 = vrot.slane %v4264, %v4844
        %v4846 = vcombine.high %v4845, %v4845
        %v4848 = vunpack.c.l.s4 1966171168
        %v4849 = vunpack.c.0.s8 %v4848
        %v4850 = vlaneseq
        %v4851 = vshrl.u32 %v4850, 7
        %v4852 = vsub.s32 %v4849, %v4851
        %v4853 = vrot.slane %v4845, %v4852
        %v4855 = vunpack.c.l.s4 1966171168
        %v4856 = vunpack.c.0.s8 %v4855
        %v4857 = vlaneseq
        %v4858 = vshrl.u32 %v4857, 7
        %v4859 = vsub.s32 %v4856, %v4858
        %v4860 = vrot.slane %v4846, %v4859
        %v4861 = vlaneseq
        %v4862 = vshrl.u32 %v4861, 7
        %v4863 = vsub.s32 0, %v4862
        %v4864 = vrot.slane %v4218, %v4863
        %s4866 = sor.u32 256, 64
        %4867 = vbcast.lane.b32.xlu0 %v4864, %s4866
        %v4868 = vpop.permute.xlu0 %4867
        %s4870 = sor.u32 256, 72
        %4871 = vbcast.lane.b32.xlu0 %v4864, %s4870
        %v4872 = vpop.permute.xlu0 %4871
        %v4873 = vlaneseq
        %v4874 = vshrl.u32 %v4873, 7
        %v4875 = vsub.s32 1, %v4874
        %v4876 = vrot.slane %v4218, %v4875
        %s4878 = sor.u32 256, 64
        %4879 = vbcast.lane.b32.xlu0 %v4876, %s4878
        %v4880 = vpop.permute.xlu0 %4879
        %s4882 = sor.u32 256, 72
        %4883 = vbcast.lane.b32.xlu0 %v4876, %s4882
        %v4884 = vpop.permute.xlu0 %4883
        %v4885 = vlaneseq
        %v4886 = vshrl.u32 %v4885, 7
        %v4887 = vsub.s32 0, %v4886
        %v4888 = vrot.slane %v4853, %v4887
        %v4889 = vlaneseq
        %v4890 = vshrl.u32 %v4889, 7
        %v4891 = vsub.s32 0, %v4890
        %v4892 = vrot.slane %v4860, %v4891
        %v4895 = vmul.f32 %v4888, %v4868
        %v4896 = vmul.f32 %v4888, %v4872
        %v4897 = vmul.f32 %v4892, %v4880
        %v4898 = vmul.f32 %v4892, %v4884
        %v4899 = vadd.f32 %v4834, %v4895
        %v4900 = vadd.f32 %v4835, %v4896
        %v4901 = vadd.f32 %v4836, %v4897
        %v4902 = vadd.f32 %v4837, %v4898
        %s4904 = sor.u32 256, 80
        %4905 = vbcast.lane.b32.xlu0 %v4864, %s4904
        %v4906 = vpop.permute.xlu0 %4905
        %s4908 = sor.u32 256, 88
        %4909 = vbcast.lane.b32.xlu0 %v4864, %s4908
        %v4910 = vpop.permute.xlu0 %4909
        %s4912 = sor.u32 256, 80
        %4913 = vbcast.lane.b32.xlu0 %v4876, %s4912
        %v4914 = vpop.permute.xlu0 %4913
        %s4916 = sor.u32 256, 88
        %4917 = vbcast.lane.b32.xlu0 %v4876, %s4916
        %v4918 = vpop.permute.xlu0 %4917
        %v4919 = vmul.f32 %v4899, %v4906
        %v4920 = vmul.f32 %v4900, %v4910
        %v4921 = vmul.f32 %v4901, %v4914
        %v4922 = vmul.f32 %v4902, %v4918
        %v4923 = vsel %vm956, %v4919, 0.0
        %v4924 = vsel %vm956, %v4920, 0.0
        %v4925 = vadd.f32 %v4923, %v4924
        %v4926 = vrot.slane %v4925, 4
        %v4927 = vadd.f32 %v4925, %v4926
        %v4928 = vrot.slane %v4927, 2
        %v4929 = vadd.f32 %v4927, %v4928
        %v4930 = vrot.slane %v4929, 1
        %v4931 = vadd.f32 %v4929, %v4930
        %v4932 = vsel %vm956, %v4921, 0.0
        %v4933 = vsel %vm956, %v4922, 0.0
        %v4934 = vadd.f32 %v4932, %v4933
        %v4935 = vrot.slane %v4934, 4
        %v4936 = vadd.f32 %v4934, %v4935
        %v4937 = vrot.slane %v4936, 2
        %v4938 = vadd.f32 %v4936, %v4937
        %v4939 = vrot.slane %v4938, 1
        %v4940 = vadd.f32 %v4938, %v4939
        %v4941 = vcombine.high %v4804, %v4804
        %v4942 = vcombine.high %v4811, %v4811
        %v4943 = vlaneseq
        %v4944 = vshrl.u32 %v4943, 7
        %v4945 = vsub.s32 0, %v4944
        %v4946 = vrot.slane %v4941, %v4945
        %v4947 = vlaneseq
        %v4948 = vshrl.u32 %v4947, 7
        %v4949 = vsub.s32 0, %v4948
        %v4950 = vrot.slane %v4942, %v4949
        %v4953 = vmul.f32 %v4946, %v3872
        %v4954 = vmul.f32 %v4946, %v3873
        %v4955 = vmul.f32 %v4950, %v3872
        %v4956 = vmul.f32 %v4950, %v3873
        %v4957 = vmul.f32 %v4953, 1.442695
        %v4958 = vpow.pop %v4957
        %v4959 = vmul.f32 %v4954, 1.442695
        %v4960 = vpow.pop %v4959
        %v4961 = vmul.f32 %v4955, 1.442695
        %v4962 = vpow.pop %v4961
        %v4963 = vmul.f32 %v4956, 1.442695
        %v4964 = vpow.pop %v4963
        %v4965 = vmul.f32 %v4958, %v4899
        %v4966 = vmul.f32 %v4960, %v4900
        %v4967 = vmul.f32 %v4962, %v4901
        %v4968 = vmul.f32 %v4964, %v4902
        %v4969 = vcombine.high %v4853, %v4853
        %v4970 = vcombine.high %v4860, %v4860
        %v4971 = vlaneseq
        %v4972 = vshrl.u32 %v4971, 7
        %v4973 = vsub.s32 2, %v4972
        %v4974 = vrot.slane %v4218, %v4973
        %s4976 = sor.u32 256, 64
        %4977 = vbcast.lane.b32.xlu0 %v4974, %s4976
        %v4978 = vpop.permute.xlu0 %4977
        %s4980 = sor.u32 256, 72
        %4981 = vbcast.lane.b32.xlu0 %v4974, %s4980
        %v4982 = vpop.permute.xlu0 %4981
        %v4983 = vlaneseq
        %v4984 = vshrl.u32 %v4983, 7
        %v4985 = vsub.s32 3, %v4984
        %v4986 = vrot.slane %v4218, %v4985
        %s4988 = sor.u32 256, 64
        %4989 = vbcast.lane.b32.xlu0 %v4986, %s4988
        %v4990 = vpop.permute.xlu0 %4989
        %s4992 = sor.u32 256, 72
        %4993 = vbcast.lane.b32.xlu0 %v4986, %s4992
        %v4994 = vpop.permute.xlu0 %4993
        %v4995 = vlaneseq
        %v4996 = vshrl.u32 %v4995, 7
        %v4997 = vsub.s32 0, %v4996
        %v4998 = vrot.slane %v4969, %v4997
        %v4999 = vlaneseq
        %v5000 = vshrl.u32 %v4999, 7
        %v5001 = vsub.s32 0, %v5000
        %v5002 = vrot.slane %v4970, %v5001
        %v5005 = vmul.f32 %v4998, %v4978
        %v5006 = vmul.f32 %v4998, %v4982
        %v5007 = vmul.f32 %v5002, %v4990
        %v5008 = vmul.f32 %v5002, %v4994
        %v5009 = vadd.f32 %v4965, %v5005
        %v5010 = vadd.f32 %v4966, %v5006
        %v5011 = vadd.f32 %v4967, %v5007
        %v5012 = vadd.f32 %v4968, %v5008
        %s5014 = sor.u32 256, 80
        %5015 = vbcast.lane.b32.xlu0 %v4974, %s5014
        %v5016 = vpop.permute.xlu0 %5015
        %s5018 = sor.u32 256, 88
        %5019 = vbcast.lane.b32.xlu0 %v4974, %s5018
        %v5020 = vpop.permute.xlu0 %5019
        %s5022 = sor.u32 256, 80
        %5023 = vbcast.lane.b32.xlu0 %v4986, %s5022
        %v5024 = vpop.permute.xlu0 %5023
        %s5026 = sor.u32 256, 88
        %5027 = vbcast.lane.b32.xlu0 %v4986, %s5026
        %v5028 = vpop.permute.xlu0 %5027
        %v5029 = vmul.f32 %v5009, %v5016
        %v5030 = vmul.f32 %v5010, %v5020
        %v5031 = vmul.f32 %v5011, %v5024
        %v5032 = vmul.f32 %v5012, %v5028
        %v5033 = vsel %vm956, %v5029, 0.0
        %v5034 = vsel %vm956, %v5030, 0.0
        %v5035 = vadd.f32 %v5033, %v5034
        %v5036 = vrot.slane %v5035, 4
        %v5037 = vadd.f32 %v5035, %v5036
        %v5038 = vrot.slane %v5037, 2
        %v5039 = vadd.f32 %v5037, %v5038
        %v5040 = vrot.slane %v5039, 1
        %v5041 = vadd.f32 %v5039, %v5040
        %v5042 = vsel %vm956, %v5031, 0.0
        %v5043 = vsel %vm956, %v5032, 0.0
        %v5044 = vadd.f32 %v5042, %v5043
        %v5045 = vrot.slane %v5044, 4
        %v5046 = vadd.f32 %v5044, %v5045
        %v5047 = vrot.slane %v5046, 2
        %v5048 = vadd.f32 %v5046, %v5047
        %v5049 = vrot.slane %v5048, 1
        %v5050 = vadd.f32 %v5048, %v5049
        %v5051 = vcombine.high %v4262, %v4262
        %v5053 = vunpack.c.l.s4 1966171168
        %v5054 = vunpack.c.0.s8 %v5053
        %v5055 = vlaneseq
        %v5056 = vshrl.u32 %v5055, 7
        %v5057 = vsub.s32 %v5054, %v5056
        %v5058 = vrot.slane %v5051, %v5057
        %v5059 = vcombine.high %v5058, %v5058
        %v5061 = vunpack.c.l.s4 1966171168
        %v5062 = vunpack.c.0.s8 %v5061
        %v5063 = vlaneseq
        %v5064 = vshrl.u32 %v5063, 7
        %v5065 = vsub.s32 %v5062, %v5064
        %v5066 = vrot.slane %v5058, %v5065
        %v5068 = vunpack.c.l.s4 1966171168
        %v5069 = vunpack.c.0.s8 %v5068
        %v5070 = vlaneseq
        %v5071 = vshrl.u32 %v5070, 7
        %v5072 = vsub.s32 %v5069, %v5071
        %v5073 = vrot.slane %v5059, %v5072
        %v5074 = vlaneseq
        %v5075 = vshrl.u32 %v5074, 7
        %v5076 = vsub.s32 0, %v5075
        %v5077 = vrot.slane %v5066, %v5076
        %v5078 = vlaneseq
        %v5079 = vshrl.u32 %v5078, 7
        %v5080 = vsub.s32 0, %v5079
        %v5081 = vrot.slane %v5073, %v5080
        %v5084 = vmul.f32 %v5077, %v3872
        %v5085 = vmul.f32 %v5077, %v3873
        %v5086 = vmul.f32 %v5081, %v3872
        %v5087 = vmul.f32 %v5081, %v3873
        %v5088 = vmul.f32 %v5084, 1.442695
        %v5089 = vpow.pop %v5088
        %v5090 = vmul.f32 %v5085, 1.442695
        %v5091 = vpow.pop %v5090
        %v5092 = vmul.f32 %v5086, 1.442695
        %v5093 = vpow.pop %v5092
        %v5094 = vmul.f32 %v5087, 1.442695
        %v5095 = vpow.pop %v5094
        %v5096 = vmul.f32 %v5089, %v5009
        %v5097 = vmul.f32 %v5091, %v5010
        %v5098 = vmul.f32 %v5093, %v5011
        %v5099 = vmul.f32 %v5095, %v5012
        %v5100 = vcombine.high %v4264, %v4264
        %v5102 = vunpack.c.l.s4 1966171168
        %v5103 = vunpack.c.0.s8 %v5102
        %v5104 = vlaneseq
        %v5105 = vshrl.u32 %v5104, 7
        %v5106 = vsub.s32 %v5103, %v5105
        %v5107 = vrot.slane %v5100, %v5106
        %v5108 = vcombine.high %v5107, %v5107
        %v5110 = vunpack.c.l.s4 1966171168
        %v5111 = vunpack.c.0.s8 %v5110
        %v5112 = vlaneseq
        %v5113 = vshrl.u32 %v5112, 7
        %v5114 = vsub.s32 %v5111, %v5113
        %v5115 = vrot.slane %v5107, %v5114
        %v5117 = vunpack.c.l.s4 1966171168
        %v5118 = vunpack.c.0.s8 %v5117
        %v5119 = vlaneseq
        %v5120 = vshrl.u32 %v5119, 7
        %v5121 = vsub.s32 %v5118, %v5120
        %v5122 = vrot.slane %v5108, %v5121
        %v5123 = vlaneseq
        %v5124 = vshrl.u32 %v5123, 7
        %v5125 = vsub.s32 4, %v5124
        %v5126 = vrot.slane %v4218, %v5125
        %s5128 = sor.u32 256, 64
        %5129 = vbcast.lane.b32.xlu0 %v5126, %s5128
        %v5130 = vpop.permute.xlu0 %5129
        %s5132 = sor.u32 256, 72
        %5133 = vbcast.lane.b32.xlu0 %v5126, %s5132
        %v5134 = vpop.permute.xlu0 %5133
        %v5135 = vlaneseq
        %v5136 = vshrl.u32 %v5135, 7
        %v5137 = vsub.s32 5, %v5136
        %v5138 = vrot.slane %v4218, %v5137
        %s5140 = sor.u32 256, 64
        %5141 = vbcast.lane.b32.xlu0 %v5138, %s5140
        %v5142 = vpop.permute.xlu0 %5141
        %s5144 = sor.u32 256, 72
        %5145 = vbcast.lane.b32.xlu0 %v5138, %s5144
        %v5146 = vpop.permute.xlu0 %5145
        %v5147 = vlaneseq
        %v5148 = vshrl.u32 %v5147, 7
        %v5149 = vsub.s32 0, %v5148
        %v5150 = vrot.slane %v5115, %v5149
        %v5151 = vlaneseq
        %v5152 = vshrl.u32 %v5151, 7
        %v5153 = vsub.s32 0, %v5152
        %v5154 = vrot.slane %v5122, %v5153
        %v5157 = vmul.f32 %v5150, %v5130
        %v5158 = vmul.f32 %v5150, %v5134
        %v5159 = vmul.f32 %v5154, %v5142
        %v5160 = vmul.f32 %v5154, %v5146
        %v5161 = vadd.f32 %v5096, %v5157
        %v5162 = vadd.f32 %v5097, %v5158
        %v5163 = vadd.f32 %v5098, %v5159
        %v5164 = vadd.f32 %v5099, %v5160
        %s5166 = sor.u32 256, 80
        %5167 = vbcast.lane.b32.xlu0 %v5126, %s5166
        %v5168 = vpop.permute.xlu0 %5167
        %s5170 = sor.u32 256, 88
        %5171 = vbcast.lane.b32.xlu0 %v5126, %s5170
        %v5172 = vpop.permute.xlu0 %5171
        %s5174 = sor.u32 256, 80
        %5175 = vbcast.lane.b32.xlu0 %v5138, %s5174
        %v5176 = vpop.permute.xlu0 %5175
        %s5178 = sor.u32 256, 88
        %5179 = vbcast.lane.b32.xlu0 %v5138, %s5178
        %v5180 = vpop.permute.xlu0 %5179
        %v5181 = vmul.f32 %v5161, %v5168
        %v5182 = vmul.f32 %v5162, %v5172
        %v5183 = vmul.f32 %v5163, %v5176
        %v5184 = vmul.f32 %v5164, %v5180
        %v5185 = vsel %vm956, %v5181, 0.0
        %v5186 = vsel %vm956, %v5182, 0.0
        %v5187 = vadd.f32 %v5185, %v5186
        %v5188 = vrot.slane %v5187, 4
        %v5189 = vadd.f32 %v5187, %v5188
        %v5190 = vrot.slane %v5189, 2
        %v5191 = vadd.f32 %v5189, %v5190
        %v5192 = vrot.slane %v5191, 1
        %v5193 = vadd.f32 %v5191, %v5192
        %v5194 = vsel %vm956, %v5183, 0.0
        %v5195 = vsel %vm956, %v5184, 0.0
        %v5196 = vadd.f32 %v5194, %v5195
        %v5197 = vrot.slane %v5196, 4
        %v5198 = vadd.f32 %v5196, %v5197
        %v5199 = vrot.slane %v5198, 2
        %v5200 = vadd.f32 %v5198, %v5199
        %v5201 = vrot.slane %v5200, 1
        %v5202 = vadd.f32 %v5200, %v5201
        %v5203 = vcombine.high %v5066, %v5066
        %v5204 = vcombine.high %v5073, %v5073
        %v5205 = vlaneseq
        %v5206 = vshrl.u32 %v5205, 7
        %v5207 = vsub.s32 0, %v5206
        %v5208 = vrot.slane %v5203, %v5207
        %v5209 = vlaneseq
        %v5210 = vshrl.u32 %v5209, 7
        %v5211 = vsub.s32 0, %v5210
        %v5212 = vrot.slane %v5204, %v5211
        %v5215 = vmul.f32 %v5208, %v3872
        %v5216 = vmul.f32 %v5208, %v3873
        %v5217 = vmul.f32 %v5212, %v3872
        %v5218 = vmul.f32 %v5212, %v3873
        %v5219 = vmul.f32 %v5215, 1.442695
        %v5220 = vpow.pop %v5219
        %v5221 = vmul.f32 %v5216, 1.442695
        %v5222 = vpow.pop %v5221
        %v5223 = vmul.f32 %v5217, 1.442695
        %v5224 = vpow.pop %v5223
        %v5225 = vmul.f32 %v5218, 1.442695
        %v5226 = vpow.pop %v5225
        %v5227 = vmul.f32 %v5220, %v5161
        %v5228 = vmul.f32 %v5222, %v5162
        %v5229 = vmul.f32 %v5224, %v5163
        %v5230 = vmul.f32 %v5226, %v5164
        %v5231 = vcombine.high %v5115, %v5115
        %v5232 = vcombine.high %v5122, %v5122
        %v5233 = vlaneseq
        %v5234 = vshrl.u32 %v5233, 7
        %v5235 = vsub.s32 6, %v5234
        %v5236 = vrot.slane %v4218, %v5235
        %s5238 = sor.u32 256, 64
        %5239 = vbcast.lane.b32.xlu0 %v5236, %s5238
        %v5240 = vpop.permute.xlu0 %5239
        %s5242 = sor.u32 256, 72
        %5243 = vbcast.lane.b32.xlu0 %v5236, %s5242
        %v5244 = vpop.permute.xlu0 %5243
        %v5245 = vlaneseq
        %v5246 = vshrl.u32 %v5245, 7
        %v5247 = vsub.s32 7, %v5246
        %v5248 = vrot.slane %v4218, %v5247
        %s5250 = sor.u32 256, 64
        %5251 = vbcast.lane.b32.xlu0 %v5248, %s5250
        %v5252 = vpop.permute.xlu0 %5251
        %s5254 = sor.u32 256, 72
        %5255 = vbcast.lane.b32.xlu0 %v5248, %s5254
        %v5256 = vpop.permute.xlu0 %5255
        %v5257 = vlaneseq
        %v5258 = vshrl.u32 %v5257, 7
        %v5259 = vsub.s32 0, %v5258
        %v5260 = vrot.slane %v5231, %v5259
        %v5261 = vlaneseq
        %v5262 = vshrl.u32 %v5261, 7
        %v5263 = vsub.s32 0, %v5262
        %v5264 = vrot.slane %v5232, %v5263
        %v5267 = vmul.f32 %v5260, %v5240
        %v5268 = vmul.f32 %v5260, %v5244
        %v5269 = vmul.f32 %v5264, %v5252
        %v5270 = vmul.f32 %v5264, %v5256
        %v5271 = vadd.f32 %v5227, %v5267
        %v5272 = vadd.f32 %v5228, %v5268
        %v5273 = vadd.f32 %v5229, %v5269
        %v5274 = vadd.f32 %v5230, %v5270
        %s5276 = sor.u32 256, 80
        %5277 = vbcast.lane.b32.xlu0 %v5236, %s5276
        %v5278 = vpop.permute.xlu0 %5277
        %s5280 = sor.u32 256, 88
        %5281 = vbcast.lane.b32.xlu0 %v5236, %s5280
        %v5282 = vpop.permute.xlu0 %5281
        %s5284 = sor.u32 256, 80
        %5285 = vbcast.lane.b32.xlu0 %v5248, %s5284
        %v5286 = vpop.permute.xlu0 %5285
        %s5288 = sor.u32 256, 88
        %5289 = vbcast.lane.b32.xlu0 %v5248, %s5288
        %v5290 = vpop.permute.xlu0 %5289
        %v5291 = vmul.f32 %v5271, %v5278
        %v5292 = vmul.f32 %v5272, %v5282
        %v5293 = vmul.f32 %v5273, %v5286
        %v5294 = vmul.f32 %v5274, %v5290
        %v5295 = vsel %vm956, %v5291, 0.0
        %v5296 = vsel %vm956, %v5292, 0.0
        %v5297 = vadd.f32 %v5295, %v5296
        %v5298 = vrot.slane %v5297, 4
        %v5299 = vadd.f32 %v5297, %v5298
        %v5300 = vrot.slane %v5299, 2
        %v5301 = vadd.f32 %v5299, %v5300
        %v5302 = vrot.slane %v5301, 1
        %v5303 = vadd.f32 %v5301, %v5302
        %v5304 = vsel %vm956, %v5293, 0.0
        %v5305 = vsel %vm956, %v5294, 0.0
        %v5306 = vadd.f32 %v5304, %v5305
        %v5307 = vrot.slane %v5306, 4
        %v5308 = vadd.f32 %v5306, %v5307
        %v5309 = vrot.slane %v5308, 2
        %v5310 = vadd.f32 %v5308, %v5309
        %v5311 = vrot.slane %v5310, 1
        %v5312 = vadd.f32 %v5310, %v5311
        %v5315 = vsel %vm2095, %v4416, %v4407
        %v5319 = vsel %vm2100, %v4526, %v4517
        %v5323 = vsel %vm2105, %v4678, %v4669
        %v5327 = vsel %vm2110, %v4788, %v4779
        %v5331 = vsel %vm2095, %v4940, %v4931
        %v5335 = vsel %vm2100, %v5050, %v5041
        %v5339 = vsel %vm2105, %v5202, %v5193
        %v5343 = vsel %vm2110, %v5312, %v5303
        %v5345 = vsel %vm2129, %v5315, %v5319
        %v5346 = vsel %vm2131, %v5345, %v5323
        %v5347 = vsel %vm2133, %v5346, %v5327
        %v5348 = vsel %vm2129, %v5331, %v5335
        %v5349 = vsel %vm2131, %v5348, %v5339
        %v5350 = vsel %vm2133, %v5349, %v5343
        %v5351 = vlaneseq
        %v5352 = vshrl.u32 %v5351, 7
        %v5353 = vsub.s32 2, %v5352
        %v5354 = vrot.slane %v3861, %v5353
        %v5355 = vmul.f32 %v4150, %v5354
        %v5356 = vmul.f32 %v4151, %v5354
        %v5357 = vadd.f32 %v5347, %v5355
        %v5358 = vadd.f32 %v5350, %v5356
        %v5359 = vxor.u32 %v3972, 2147483648
        %v5360 = vxor.u32 %v3975, 2147483648
        %v5361 = vmul.f32 %v5359, 1.442695
        %v5362 = vpow.pop %v5361
        %v5363 = vmul.f32 %v5360, 1.442695
        %v5364 = vpow.pop %v5363
        %v5365 = vadd.f32 %v5362, 1.0
        %v5366 = vadd.f32 %v5364, 1.0
        %v5367 = vrcp.pop %v5365
        %v5368 = vmul.f32 1.0, %v5367
        %v5369 = vrcp.pop %v5366
        %v5370 = vmul.f32 1.0, %v5369
        %v5371 = vmul.f32 %v3972, %v5368
        %v5372 = vmul.f32 %v3975, %v5370
        %5375 = vrot.lane.b32.xlu0 %v5371, 64
        %v5376 = vpop.permute.xlu0 %5375
        %5377 = vrot.lane.b32.xlu0 %v5372, 64
        %v5378 = vpop.permute.xlu0 %5377
        %v5381 = vmul.f32 %v5357, %v5376
        %v5382 = vmul.f32 %v5358, %v5378
        %v5383 = vpack.c.bf16 %v5382, %v5381
        %v5392 = vunpack.c.l.b16 %v3875
        %v5393 = vunpack.c.l.b16 %v3876
        %v5394 = vunpack.c.l.b16 %v3877
        %v5395 = vunpack.c.l.b16 %v3878
        %v5396 = vunpack.c.l.b16 %v3879
        %v5397 = vunpack.c.l.b16 %v3880
        %v5398 = vunpack.c.l.b16 %v3881
        %v5399 = vunpack.c.l.b16 %v3882
        %v5400 = vpack.c.b16 %v5393, %v5392
        %v5401 = vpack.c.b16 %v5395, %v5394
        %v5402 = vpack.c.b16 %v5397, %v5396
        %v5403 = vpack.c.b16 %v5399, %v5398
        %v5409 = vsel %vm956, %v5383, 0
        %5411 = vmatprep.subr.bf16.mxu0 0
        %5412 = vmatpush1.bf16.msra.mxu0 %v5400
        %5413 = vmatprep.subr.bf16.mxu0 0
        %5414 = vmatpush1.bf16.msra.mxu0 %v5401
        %5415 = vmatprep.subr.bf16.mxu0 0
        %5416 = vmatpush1.bf16.msra.mxu0 %v5402
        %5417 = vmatprep.subr.bf16.mxu0 0
        %5418 = vmatpush1.bf16.msra.mxu0 %v5403
        %5419 = vmatprep.subr.bf16.mxu0 0
        %5420 = vmatpush1.bf16.msra.mxu0 0
        %5421 = vmatprep.subr.bf16.mxu0 0
        %5422 = vmatpush1.bf16.msra.mxu0 0
        %5423 = vmatprep.subr.bf16.mxu0 0
        %5424 = vmatpush1.bf16.msra.mxu0 0
        %5425 = vmatprep.subr.bf16.mxu0 0
        %5426 = vmatpush1.bf16.msra.mxu0 0
        %5427 = vmatprep.subr.bf16.mxu0 0
        %5428 = vmatpush1.bf16.msra.mxu0 0
        %5429 = vmatprep.subr.bf16.mxu0 0
        %5430 = vmatpush1.bf16.msra.mxu0 0
        %5431 = vmatprep.subr.bf16.mxu0 0
        %5432 = vmatpush1.bf16.msra.mxu0 0
        %5433 = vmatprep.subr.bf16.mxu0 0
        %5434 = vmatpush1.bf16.msra.mxu0 0
        %5435 = vmatprep.subr.bf16.mxu0 0
        %5436 = vmatpush1.bf16.msra.mxu0 0
        %5437 = vmatprep.subr.bf16.mxu0 0
        %5438 = vmatpush1.bf16.msra.mxu0 0
        %5439 = vmatprep.subr.bf16.mxu0 0
        %5440 = vmatpush1.bf16.msra.mxu0 0
        %5441 = vmatprep.subr.bf16.mxu0 0
        %5442 = vmatpush1.bf16.msra.mxu0 0
        %5443 = vmatprep.mubr.bf16.mxu0 0
        %5444 = vmatmul.mubr.bf16.gmra.mrb[0].mxu0 %v5409
        %v5445 = vpop.f32.mrb[0].mxu0
        %v5446 = vadd.f32 0.0, %v5445
        %v5447 = vpop.f32.mrb[0].mxu0
        %v5448 = vpop.f32.mrb[0].mxu0
        %v5449 = vadd.f32 0.0, %v5448
        %v5450 = vpop.f32.mrb[0].mxu0
        %5451 = vdwg.mxu0
        %s5452 = scalar_lea.vmem %s581, 32 [#allocation13]
        %5453 = vst [vmem:[%s5452] sm:$0xff] %v5446
        %5454 = vst [vmem:[%s5452 + $0x8] sm:$0xff] %v5449
        %s5455 = scalar_lea.vmem %s467, 48 [#allocation2]
        %v5456 = vld [vmem:[%s5455] sm:$0xff]
        %v5457 = vld [vmem:[%s5455 + $0x8] sm:$0xff]
        %s5458 = scalar_lea.vmem %s476, 6 [#allocation5]
        %v5459 = vld [vmem:[%s5458] sm:$0x3]
        %s5460 = scalar_lea.vmem %s485, 48 [#allocation7]
        %v5461 = vld [vmem:[%s5460] sm:$0xf]
        %v5462 = vld [vmem:[%s5460 + $0x4] sm:$0xf]
        %v5463 = vld [vmem:[%s5460 + $0x8] sm:$0xf]
        %v5464 = vld [vmem:[%s5460 + $0xc] sm:$0xf]
        %s5465 = scalar_lea.vmem %s589, 12
        %v5466 = vld [vmem:[%s5465] sm:$0xf]
        %s5467 = scalar_lea.vmem %s595, 12
        %v5468 = vld [vmem:[%s5467] sm:$0x7]
        %s5469 = scalar_lea.vmem %s494, 96 [#allocation8]
        %v5470 = vld [vmem:[%s5469] sm:$0xf]
        %v5471 = vld [vmem:[%s5469 + $0x4] sm:$0xf]
        %v5472 = vld [vmem:[%s5469 + $0x8] sm:$0xf]
        %v5473 = vld [vmem:[%s5469 + $0xc] sm:$0xf]
        %v5474 = vld [vmem:[%s5469 + $0x10] sm:$0xf]
        %v5475 = vld [vmem:[%s5469 + $0x14] sm:$0xf]
        %v5476 = vld [vmem:[%s5469 + $0x18] sm:$0xf]
        %v5477 = vld [vmem:[%s5469 + $0x1c] sm:$0xf]
        %s5478 = scalar_lea.vmem %s503, 48 [#allocation10]
        %v5479 = vld [vmem:[%s5478] sm:$0xff]
        %v5480 = vld [vmem:[%s5478 + $0x8] sm:$0xff]
        %s5481 = scalar_lea.vmem %s512, 96 [#allocation11]
        %v5482 = vld [vmem:[%s5481] sm:$0xf]
        %v5483 = vld [vmem:[%s5481 + $0x4] sm:$0xf]
        %v5484 = vld [vmem:[%s5481 + $0x8] sm:$0xf]
        %v5485 = vld [vmem:[%s5481 + $0xc] sm:$0xf]
        %v5486 = vld [vmem:[%s5481 + $0x10] sm:$0xf]
        %v5487 = vld [vmem:[%s5481 + $0x14] sm:$0xf]
        %v5488 = vld [vmem:[%s5481 + $0x18] sm:$0xf]
        %v5489 = vld [vmem:[%s5481 + $0x1c] sm:$0xf]
        %v5490 = vsel %vm635, %v5456, 0.0
        %5491 = vadd.xlane.f32.xlu0 %v5490
        %v5492 = vpop.xlane.xlu0 %5491
        %v5493 = vsel %vm635, %v5457, 0.0
        %5494 = vadd.xlane.f32.xlu0 %v5493
        %v5495 = vpop.xlane.xlu0 %5494
        %v5496 = vmul.f32 %v5492, %v642
        %v5497 = vmul.f32 %v5495, %v642
        %v5498 = vsub.f32 %v5456, %v5496
        %v5499 = vsub.f32 %v5457, %v5497
        %v5500 = vmul.f32 %v5498, %v5498
        %v5501 = vmul.f32 %v5499, %v5499
        %v5502 = vsel %vm635, %v5500, 0.0
        %5503 = vadd.xlane.f32.xlu0 %v5502
        %v5504 = vpop.xlane.xlu0 %5503
        %v5505 = vsel %vm635, %v5501, 0.0
        %5506 = vadd.xlane.f32.xlu0 %v5505
        %v5507 = vpop.xlane.xlu0 %5506
        %v5508 = vmul.f32 %v5504, %v642
        %v5509 = vmul.f32 %v5507, %v642
        %v5510 = vadd.f32 %v5508, 1e-05
        %v5511 = vadd.f32 %v5509, 1e-05
        %v5512 = vrsqrt.pop %v5510
        %v5513 = vrsqrt.pop %v5511
        %v5514 = vmul.f32 %v5498, %v5512
        %v5515 = vmul.f32 %v5499, %v5513
        %v5516 = vlaneseq
        %v5517 = vshrl.u32 %v5516, 7
        %v5518 = vsub.s32 0, %v5517
        %v5519 = vrot.slane %v5459, %v5518
        %v5520 = vmul.f32 %v5514, %v5519
        %v5521 = vmul.f32 %v5515, %v5519
        %v5522 = vlaneseq
        %v5523 = vshrl.u32 %v5522, 7
        %v5524 = vsub.s32 1, %v5523
        %v5525 = vrot.slane %v5459, %v5524
        %v5526 = vadd.f32 %v5520, %v5525
        %v5527 = vadd.f32 %v5521, %v5525
        %v5528 = vpack.c.bf16 %v5527, %v5526
        %v5533 = vunpack.c.l.b16 %v5461
        %v5534 = vunpack.c.l.b16 %v5462
        %v5535 = vunpack.c.l.b16 %v5463
        %v5536 = vunpack.c.l.b16 %v5464
        %v5537 = vpack.c.b16 %v5534, %v5533
        %v5538 = vpack.c.b16 %v5536, %v5535
        %v5542 = vsel %vm635, %v5528, 0
        %5544 = vmatprep.subr.bf16.mxu0 0
        %5545 = vmatpush1.bf16.msra.mxu0 %v5537
        %5546 = vmatprep.subr.bf16.mxu0 0
        %5547 = vmatpush1.bf16.msra.mxu0 %v5538
        %5548 = vmatprep.subr.bf16.mxu0 0
        %5549 = vmatpush1.bf16.msra.mxu0 0
        %5550 = vmatprep.subr.bf16.mxu0 0
        %5551 = vmatpush1.bf16.msra.mxu0 0
        %5552 = vmatprep.subr.bf16.mxu0 0
        %5553 = vmatpush1.bf16.msra.mxu0 0
        %5554 = vmatprep.subr.bf16.mxu0 0
        %5555 = vmatpush1.bf16.msra.mxu0 0
        %5556 = vmatprep.subr.bf16.mxu0 0
        %5557 = vmatpush1.bf16.msra.mxu0 0
        %5558 = vmatprep.subr.bf16.mxu0 0
        %5559 = vmatpush1.bf16.msra.mxu0 0
        %5560 = vmatprep.subr.bf16.mxu0 0
        %5561 = vmatpush1.bf16.msra.mxu0 0
        %5562 = vmatprep.subr.bf16.mxu0 0
        %5563 = vmatpush1.bf16.msra.mxu0 0
        %5564 = vmatprep.subr.bf16.mxu0 0
        %5565 = vmatpush1.bf16.msra.mxu0 0
        %5566 = vmatprep.subr.bf16.mxu0 0
        %5567 = vmatpush1.bf16.msra.mxu0 0
        %5568 = vmatprep.subr.bf16.mxu0 0
        %5569 = vmatpush1.bf16.msra.mxu0 0
        %5570 = vmatprep.subr.bf16.mxu0 0
        %5571 = vmatpush1.bf16.msra.mxu0 0
        %5572 = vmatprep.subr.bf16.mxu0 0
        %5573 = vmatpush1.bf16.msra.mxu0 0
        %5574 = vmatprep.subr.bf16.mxu0 0
        %5575 = vmatpush1.bf16.msra.mxu0 0
        %5576 = vmatprep.mubr.bf16.mxu0 0
        %5577 = vmatmul.mubr.bf16.gmra.mrb[0].mxu0 %v5542
        %v5578 = vpop.f32.mrb[0].mxu0
        %v5579 = vadd.f32 0.0, %v5578
        %v5580 = vpop.f32.mrb[0].mxu0
        %v5581 = vpop.f32.mrb[0].mxu0
        %v5582 = vadd.f32 0.0, %v5581
        %v5583 = vpop.f32.mrb[0].mxu0
        %5584 = vdwg.mxu0
        %v5585 = vpack.c.bf16 %v5582, %v5579
        %v5586 = vlaneseq
        %v5587 = vshrl.u32 %v5586, 7
        %v5588 = vsub.s32 3, %v5587
        %v5589 = vrot.slane %v5466, %v5588
        %v5590 = vmul.f32 %v5579, %v5589
        %v5591 = vmul.f32 %v5582, %v5589
        %v5592 = vlaneseq
        %v5593 = vshrl.u32 %v5592, 7
        %v5594 = vsub.s32 0, %v5593
        %v5595 = vrot.slane %v5468, %v5594
        %v5596 = vadd.f32 %v5590, %v5595
        %v5597 = vadd.f32 %v5591, %v5595
        %5598 = vmatprep.subr.bf16.mxu0 0
        %5599 = vmatpush1.bf16.msra.mxu0 %v5585
        %5600 = vmatprep.subr.bf16.mxu0 0
        %5601 = vmatpush1.bf16.msra.mxu0 0
        %5602 = vmatprep.subr.bf16.mxu0 0
        %5603 = vmatpush1.bf16.msra.mxu0 0
        %5604 = vmatprep.subr.bf16.mxu0 0
        %5605 = vmatpush1.bf16.msra.mxu0 0
        %5606 = vmatprep.subr.bf16.mxu0 0
        %5607 = vmatpush1.bf16.msra.mxu0 0
        %5608 = vmatprep.subr.bf16.mxu0 0
        %5609 = vmatpush1.bf16.msra.mxu0 0
        %5610 = vmatprep.subr.bf16.mxu0 0
        %5611 = vmatpush1.bf16.msra.mxu0 0
        %5612 = vmatprep.subr.bf16.mxu0 0
        %5613 = vmatpush1.bf16.msra.mxu0 0
        %5614 = vmatprep.subr.bf16.mxu0 0
        %5615 = vmatpush1.bf16.msra.mxu0 0
        %5616 = vmatprep.subr.bf16.mxu0 0
        %5617 = vmatpush1.bf16.msra.mxu0 0
        %5618 = vmatprep.subr.bf16.mxu0 0
        %5619 = vmatpush1.bf16.msra.mxu0 0
        %5620 = vmatprep.subr.bf16.mxu0 0
        %5621 = vmatpush1.bf16.msra.mxu0 0
        %5622 = vmatprep.subr.bf16.mxu0 0
        %5623 = vmatpush1.bf16.msra.mxu0 0
        %5624 = vmatprep.subr.bf16.mxu0 0
        %5625 = vmatpush1.bf16.msra.mxu0 0
        %5626 = vmatprep.subr.bf16.mxu0 0
        %5627 = vmatpush1.bf16.msra.mxu0 0
        %5628 = vmatprep.subr.bf16.mxu0 0
        %5629 = vmatpush1.bf16.msra.mxu0 0
        %5630 = vmatprep.mubr.bf16.mxu0 0
        %5631 = vmatmul.mubr.bf16.gmra.mrb[0].mxu0 %v752
        %v5632 = vpop.f32.mrb[0].mxu0
        %v5633 = vadd.f32 0.0, %v5632
        %v5634 = vpop.f32.mrb[0].mxu0
        %v5635 = vpop.f32.mrb[0].mxu0
        %v5636 = vadd.f32 0.0, %v5635
        %v5637 = vpop.f32.mrb[0].mxu0
        %5638 = vdwg.mxu0
        %v5639 = vlaneseq
        %v5640 = vshrl.u32 %v5639, 7
        %v5641 = vsub.s32 0, %v5640
        %v5642 = vrot.slane %v5466, %v5641
        %v5643 = vmul.f32 %v5633, %v5642
        %v5644 = vmul.f32 %v5636, %v5642
        %v5645 = vadd.f32 %v5596, %v5643
        %v5646 = vadd.f32 %v5597, %v5644
        %5647 = vmatprep.subr.bf16.mxu0 0
        %5648 = vmatpush1.bf16.msra.mxu0 %v5585
        %5649 = vmatprep.subr.bf16.mxu0 0
        %5650 = vmatpush1.bf16.msra.mxu0 0
        %5651 = vmatprep.subr.bf16.mxu0 0
        %5652 = vmatpush1.bf16.msra.mxu0 0
        %5653 = vmatprep.subr.bf16.mxu0 0
        %5654 = vmatpush1.bf16.msra.mxu0 0
        %5655 = vmatprep.subr.bf16.mxu0 0
        %5656 = vmatpush1.bf16.msra.mxu0 0
        %5657 = vmatprep.subr.bf16.mxu0 0
        %5658 = vmatpush1.bf16.msra.mxu0 0
        %5659 = vmatprep.subr.bf16.mxu0 0
        %5660 = vmatpush1.bf16.msra.mxu0 0
        %5661 = vmatprep.subr.bf16.mxu0 0
        %5662 = vmatpush1.bf16.msra.mxu0 0
        %5663 = vmatprep.subr.bf16.mxu0 0
        %5664 = vmatpush1.bf16.msra.mxu0 0
        %5665 = vmatprep.subr.bf16.mxu0 0
        %5666 = vmatpush1.bf16.msra.mxu0 0
        %5667 = vmatprep.subr.bf16.mxu0 0
        %5668 = vmatpush1.bf16.msra.mxu0 0
        %5669 = vmatprep.subr.bf16.mxu0 0
        %5670 = vmatpush1.bf16.msra.mxu0 0
        %5671 = vmatprep.subr.bf16.mxu0 0
        %5672 = vmatpush1.bf16.msra.mxu0 0
        %5673 = vmatprep.subr.bf16.mxu0 0
        %5674 = vmatpush1.bf16.msra.mxu0 0
        %5675 = vmatprep.subr.bf16.mxu0 0
        %5676 = vmatpush1.bf16.msra.mxu0 0
        %5677 = vmatprep.subr.bf16.mxu0 0
        %5678 = vmatpush1.bf16.msra.mxu0 0
        %5679 = vmatprep.mubr.bf16.mxu0 0
        %5680 = vmatmul.mubr.bf16.gmra.mrb[0].mxu0 %v809
        %v5681 = vpop.f32.mrb[0].mxu0
        %v5682 = vadd.f32 0.0, %v5681
        %v5683 = vpop.f32.mrb[0].mxu0
        %v5684 = vpop.f32.mrb[0].mxu0
        %v5685 = vadd.f32 0.0, %v5684
        %v5686 = vpop.f32.mrb[0].mxu0
        %5687 = vdwg.mxu0
        %v5688 = vlaneseq
        %v5689 = vshrl.u32 %v5688, 7
        %v5690 = vsub.s32 1, %v5689
        %v5691 = vrot.slane %v5466, %v5690
        %v5692 = vmul.f32 %v5682, %v5691
        %v5693 = vmul.f32 %v5685, %v5691
        %v5694 = vadd.f32 %v5645, %v5692
        %v5695 = vadd.f32 %v5646, %v5693
        %5696 = vmatprep.subr.bf16.mxu0 0
        %5697 = vmatpush1.bf16.msra.mxu0 %v5585
        %5698 = vmatprep.subr.bf16.mxu0 0
        %5699 = vmatpush1.bf16.msra.mxu0 0
        %5700 = vmatprep.subr.bf16.mxu0 0
        %5701 = vmatpush1.bf16.msra.mxu0 0
        %5702 = vmatprep.subr.bf16.mxu0 0
        %5703 = vmatpush1.bf16.msra.mxu0 0
        %5704 = vmatprep.subr.bf16.mxu0 0
        %5705 = vmatpush1.bf16.msra.mxu0 0
        %5706 = vmatprep.subr.bf16.mxu0 0
        %5707 = vmatpush1.bf16.msra.mxu0 0
        %5708 = vmatprep.subr.bf16.mxu0 0
        %5709 = vmatpush1.bf16.msra.mxu0 0
        %5710 = vmatprep.subr.bf16.mxu0 0
        %5711 = vmatpush1.bf16.msra.mxu0 0
        %5712 = vmatprep.subr.bf16.mxu0 0
        %5713 = vmatpush1.bf16.msra.mxu0 0
        %5714 = vmatprep.subr.bf16.mxu0 0
        %5715 = vmatpush1.bf16.msra.mxu0 0
        %5716 = vmatprep.subr.bf16.mxu0 0
        %5717 = vmatpush1.bf16.msra.mxu0 0
        %5718 = vmatprep.subr.bf16.mxu0 0
        %5719 = vmatpush1.bf16.msra.mxu0 0
        %5720 = vmatprep.subr.bf16.mxu0 0
        %5721 = vmatpush1.bf16.msra.mxu0 0
        %5722 = vmatprep.subr.bf16.mxu0 0
        %5723 = vmatpush1.bf16.msra.mxu0 0
        %5724 = vmatprep.subr.bf16.mxu0 0
        %5725 = vmatpush1.bf16.msra.mxu0 0
        %5726 = vmatprep.subr.bf16.mxu0 0
        %5727 = vmatpush1.bf16.msra.mxu0 0
        %5728 = vmatprep.mubr.bf16.mxu0 0
        %5729 = vmatmul.mubr.bf16.gmra.mrb[0].mxu0 %v866
        %v5730 = vpop.f32.mrb[0].mxu0
        %v5731 = vadd.f32 0.0, %v5730
        %v5732 = vpop.f32.mrb[0].mxu0
        %v5733 = vpop.f32.mrb[0].mxu0
        %v5734 = vadd.f32 0.0, %v5733
        %v5735 = vpop.f32.mrb[0].mxu0
        %5736 = vdwg.mxu0
        %v5737 = vlaneseq
        %v5738 = vshrl.u32 %v5737, 7
        %v5739 = vsub.s32 2, %v5738
        %v5740 = vrot.slane %v5466, %v5739
        %v5741 = vmul.f32 %v5731, %v5740
        %v5742 = vmul.f32 %v5734, %v5740
        %v5743 = vadd.f32 %v5694, %v5741
        %v5744 = vadd.f32 %v5695, %v5742
        %v5745 = vxor.u32 %v5743, 2147483648
        %v5746 = vxor.u32 %v5744, 2147483648
        %v5747 = vmul.f32 %v5745, 1.442695
        %v5748 = vpow.pop %v5747
        %v5749 = vmul.f32 %v5746, 1.442695
        %v5750 = vpow.pop %v5749
        %v5751 = vadd.f32 %v5748, 1.0
        %v5752 = vadd.f32 %v5750, 1.0
        %v5753 = vrcp.pop %v5751
        %v5754 = vmul.f32 1.0, %v5753
        %v5755 = vrcp.pop %v5752
        %v5756 = vmul.f32 1.0, %v5755
        %v5757 = vmul.f32 %v5743, %v5754
        %v5758 = vmul.f32 %v5744, %v5756
        %v5759 = vpack.c.bf16 %v5758, %v5757
        %v5768 = vunpack.c.l.b16 %v5470
        %v5769 = vunpack.c.l.b16 %v5471
        %v5770 = vunpack.c.l.b16 %v5472
        %v5771 = vunpack.c.l.b16 %v5473
        %v5772 = vunpack.c.l.b16 %v5474
        %v5773 = vunpack.c.l.b16 %v5475
        %v5774 = vunpack.c.l.b16 %v5476
        %v5775 = vunpack.c.l.b16 %v5477
        %v5776 = vpack.c.b16 %v5769, %v5768
        %v5777 = vpack.c.b16 %v5771, %v5770
        %v5778 = vpack.c.b16 %v5773, %v5772
        %v5779 = vpack.c.b16 %v5775, %v5774
        %v5785 = vsel %vm956, %v5759, 0
        %5787 = vmatprep.subr.bf16.mxu0 0
        %5788 = vmatpush1.bf16.msra.mxu0 %v5776
        %5789 = vmatprep.subr.bf16.mxu0 0
        %5790 = vmatpush1.bf16.msra.mxu0 %v5777
        %5791 = vmatprep.subr.bf16.mxu0 0
        %5792 = vmatpush1.bf16.msra.mxu0 %v5778
        %5793 = vmatprep.subr.bf16.mxu0 0
        %5794 = vmatpush1.bf16.msra.mxu0 %v5779
        %5795 = vmatprep.subr.bf16.mxu0 0
        %5796 = vmatpush1.bf16.msra.mxu0 0
        %5797 = vmatprep.subr.bf16.mxu0 0
        %5798 = vmatpush1.bf16.msra.mxu0 0
        %5799 = vmatprep.subr.bf16.mxu0 0
        %5800 = vmatpush1.bf16.msra.mxu0 0
        %5801 = vmatprep.subr.bf16.mxu0 0
        %5802 = vmatpush1.bf16.msra.mxu0 0
        %5803 = vmatprep.subr.bf16.mxu0 0
        %5804 = vmatpush1.bf16.msra.mxu0 0
        %5805 = vmatprep.subr.bf16.mxu0 0
        %5806 = vmatpush1.bf16.msra.mxu0 0
        %5807 = vmatprep.subr.bf16.mxu0 0
        %5808 = vmatpush1.bf16.msra.mxu0 0
        %5809 = vmatprep.subr.bf16.mxu0 0
        %5810 = vmatpush1.bf16.msra.mxu0 0
        %5811 = vmatprep.subr.bf16.mxu0 0
        %5812 = vmatpush1.bf16.msra.mxu0 0
        %5813 = vmatprep.subr.bf16.mxu0 0
        %5814 = vmatpush1.bf16.msra.mxu0 0
        %5815 = vmatprep.subr.bf16.mxu0 0
        %5816 = vmatpush1.bf16.msra.mxu0 0
        %5817 = vmatprep.subr.bf16.mxu0 0
        %5818 = vmatpush1.bf16.msra.mxu0 0
        %5819 = vmatprep.mubr.bf16.mxu0 0
        %5820 = vmatmul.mubr.bf16.gmra.mrb[0].mxu0 %v5785
        %v5821 = vpop.f32.mrb[0].mxu0
        %v5822 = vadd.f32 0.0, %v5821
        %v5823 = vpop.f32.mrb[0].mxu0
        %v5824 = vpop.f32.mrb[0].mxu0
        %v5825 = vadd.f32 0.0, %v5824
        %v5826 = vpop.f32.mrb[0].mxu0
        %5827 = vdwg.mxu0
        %v5828 = vlaneseq
        %v5829 = vshrl.u32 %v5828, 7
        %v5830 = vsub.s32 1, %v5829
        %v5831 = vrot.slane %v5468, %v5830
        %v5832 = vadd.f32 %v5822, %v5831
        %v5833 = vadd.f32 %v5825, %v5831
        %v5834 = vmax.f32 %v5832, 0.0
        %v5835 = vmax.f32 %v5833, 0.0
        %vm5836 = vcmp.ne.f32.partialorder %v5832, %v5832
        %vm5837 = vcmp.ne.f32.partialorder %v5833, %v5833
        %v5838 = vadd.f32 %v5832, 0.0
        %v5839 = vadd.f32 %v5833, 0.0
        %v5840 = vand.u32 2147483647, %v5832
        %v5841 = vand.u32 2147483647, %v5833
        %v5842 = vsub.f32 0.0, %v5840
        %v5843 = vsub.f32 0.0, %v5841
        %v5844 = vmul.f32 %v5842, 1.442695
        %v5845 = vpow.pop %v5844
        %v5846 = vmul.f32 %v5843, 1.442695
        %v5847 = vpow.pop %v5846
        %v5848 = vadd.f32 %v5845, 1.0
        %v5849 = vlog2.pop %v5848
        %v5850 = vmul.f32 %v5849, 0.6931472
        %v5851 = vmul.f32 -0.5, %v5845
        %v5852 = vadd.f32 %v5851, 1.0
        %v5853 = vmul.f32 %v5852, %v5845
        %v5854 = vand.u32 2147483647, %v5845
        %vm5855 = vcmp.lt.f32.partialorder %v5854, 0.0004427343
        %v5856 = vsel %vm5855, %v5853, %v5850
        %v5857 = vadd.f32 %v5847, 1.0
        %v5858 = vlog2.pop %v5857
        %v5859 = vmul.f32 %v5858, 0.6931472
        %v5860 = vmul.f32 -0.5, %v5847
        %v5861 = vadd.f32 %v5860, 1.0
        %v5862 = vmul.f32 %v5861, %v5847
        %v5863 = vand.u32 2147483647, %v5847
        %vm5864 = vcmp.lt.f32.partialorder %v5863, 0.0004427343
        %v5865 = vsel %vm5864, %v5862, %v5859
        %v5866 = vadd.f32 %v5834, %v5856
        %v5867 = vadd.f32 %v5835, %v5865
        %v5868 = vsel %vm5836, %v5838, %v5866
        %v5869 = vsel %vm5837, %v5839, %v5867
        %v5870 = vmul.f32 %v5868, %v5757
        %v5871 = vmul.f32 %v5869, %v5758
        %v5874 = vunpack.c.l.s4 1966171168
        %v5875 = vunpack.c.0.s8 %v5874
        %v5876 = vlaneseq
        %v5877 = vshrl.u32 %v5876, 7
        %v5878 = vsub.s32 %v5875, %v5877
        %v5879 = vrot.slane %v5868, %v5878
        %v5880 = vcombine.high %v5879, %v5879
        %v5882 = vunpack.c.l.s4 1966171168
        %v5883 = vunpack.c.0.s8 %v5882
        %v5884 = vlaneseq
        %v5885 = vshrl.u32 %v5884, 7
        %v5886 = vsub.s32 %v5883, %v5885
        %v5887 = vrot.slane %v5879, %v5886
        %v5889 = vunpack.c.l.s4 1966171168
        %v5890 = vunpack.c.0.s8 %v5889
        %v5891 = vlaneseq
        %v5892 = vshrl.u32 %v5891, 7
        %v5893 = vsub.s32 %v5890, %v5892
        %v5894 = vrot.slane %v5880, %v5893
        %v5895 = vlaneseq
        %v5896 = vshrl.u32 %v5895, 7
        %v5897 = vsub.s32 0, %v5896
        %v5898 = vrot.slane %v5887, %v5897
        %v5899 = vlaneseq
        %v5900 = vshrl.u32 %v5899, 7
        %v5901 = vsub.s32 0, %v5900
        %v5902 = vrot.slane %v5894, %v5901
        %v5905 = vmul.f32 %v5898, %v5479
        %v5906 = vmul.f32 %v5898, %v5480
        %v5907 = vmul.f32 %v5902, %v5479
        %v5908 = vmul.f32 %v5902, %v5480
        %v5909 = vmul.f32 %v5905, 1.442695
        %v5910 = vpow.pop %v5909
        %v5911 = vmul.f32 %v5906, 1.442695
        %v5912 = vpow.pop %v5911
        %v5913 = vmul.f32 %v5907, 1.442695
        %v5914 = vpow.pop %v5913
        %v5915 = vmul.f32 %v5908, 1.442695
        %v5916 = vpow.pop %v5915
        %v5917 = vmul.f32 %v5910, 0.0
        %v5918 = vmul.f32 %v5912, 0.0
        %v5919 = vmul.f32 %v5914, 0.0
        %v5920 = vmul.f32 %v5916, 0.0
        %v5923 = vunpack.c.l.s4 1966171168
        %v5924 = vunpack.c.0.s8 %v5923
        %v5925 = vlaneseq
        %v5926 = vshrl.u32 %v5925, 7
        %v5927 = vsub.s32 %v5924, %v5926
        %v5928 = vrot.slane %v5870, %v5927
        %v5929 = vcombine.high %v5928, %v5928
        %v5931 = vunpack.c.l.s4 1966171168
        %v5932 = vunpack.c.0.s8 %v5931
        %v5933 = vlaneseq
        %v5934 = vshrl.u32 %v5933, 7
        %v5935 = vsub.s32 %v5932, %v5934
        %v5936 = vrot.slane %v5928, %v5935
        %v5938 = vunpack.c.l.s4 1966171168
        %v5939 = vunpack.c.0.s8 %v5938
        %v5940 = vlaneseq
        %v5941 = vshrl.u32 %v5940, 7
        %v5942 = vsub.s32 %v5939, %v5941
        %v5943 = vrot.slane %v5929, %v5942
        %v5944 = vlaneseq
        %v5945 = vshrl.u32 %v5944, 7
        %v5946 = vsub.s32 0, %v5945
        %v5947 = vrot.slane %v5822, %v5946
        %s5949 = sor.u32 256, 64
        %5950 = vbcast.lane.b32.xlu0 %v5947, %s5949
        %v5951 = vpop.permute.xlu0 %5950
        %s5953 = sor.u32 256, 72
        %5954 = vbcast.lane.b32.xlu0 %v5947, %s5953
        %v5955 = vpop.permute.xlu0 %5954
        %v5956 = vlaneseq
        %v5957 = vshrl.u32 %v5956, 7
        %v5958 = vsub.s32 1, %v5957
        %v5959 = vrot.slane %v5822, %v5958
        %s5961 = sor.u32 256, 64
        %5962 = vbcast.lane.b32.xlu0 %v5959, %s5961
        %v5963 = vpop.permute.xlu0 %5962
        %s5965 = sor.u32 256, 72
        %5966 = vbcast.lane.b32.xlu0 %v5959, %s5965
        %v5967 = vpop.permute.xlu0 %5966
        %v5968 = vlaneseq
        %v5969 = vshrl.u32 %v5968, 7
        %v5970 = vsub.s32 0, %v5969
        %v5971 = vrot.slane %v5936, %v5970
        %v5972 = vlaneseq
        %v5973 = vshrl.u32 %v5972, 7
        %v5974 = vsub.s32 0, %v5973
        %v5975 = vrot.slane %v5943, %v5974
        %v5978 = vmul.f32 %v5971, %v5951
        %v5979 = vmul.f32 %v5971, %v5955
        %v5980 = vmul.f32 %v5975, %v5963
        %v5981 = vmul.f32 %v5975, %v5967
        %v5982 = vadd.f32 %v5917, %v5978
        %v5983 = vadd.f32 %v5918, %v5979
        %v5984 = vadd.f32 %v5919, %v5980
        %v5985 = vadd.f32 %v5920, %v5981
        %s5987 = sor.u32 256, 80
        %5988 = vbcast.lane.b32.xlu0 %v5947, %s5987
        %v5989 = vpop.permute.xlu0 %5988
        %s5991 = sor.u32 256, 88
        %5992 = vbcast.lane.b32.xlu0 %v5947, %s5991
        %v5993 = vpop.permute.xlu0 %5992
        %s5995 = sor.u32 256, 80
        %5996 = vbcast.lane.b32.xlu0 %v5959, %s5995
        %v5997 = vpop.permute.xlu0 %5996
        %s5999 = sor.u32 256, 88
        %6000 = vbcast.lane.b32.xlu0 %v5959, %s5999
        %v6001 = vpop.permute.xlu0 %6000
        %v6002 = vmul.f32 %v5982, %v5989
        %v6003 = vmul.f32 %v5983, %v5993
        %v6004 = vmul.f32 %v5984, %v5997
        %v6005 = vmul.f32 %v5985, %v6001
        %v6006 = vsel %vm956, %v6002, 0.0
        %v6007 = vsel %vm956, %v6003, 0.0
        %v6008 = vadd.f32 %v6006, %v6007
        %v6009 = vrot.slane %v6008, 4
        %v6010 = vadd.f32 %v6008, %v6009
        %v6011 = vrot.slane %v6010, 2
        %v6012 = vadd.f32 %v6010, %v6011
        %v6013 = vrot.slane %v6012, 1
        %v6014 = vadd.f32 %v6012, %v6013
        %v6015 = vsel %vm956, %v6004, 0.0
        %v6016 = vsel %vm956, %v6005, 0.0
        %v6017 = vadd.f32 %v6015, %v6016
        %v6018 = vrot.slane %v6017, 4
        %v6019 = vadd.f32 %v6017, %v6018
        %v6020 = vrot.slane %v6019, 2
        %v6021 = vadd.f32 %v6019, %v6020
        %v6022 = vrot.slane %v6021, 1
        %v6023 = vadd.f32 %v6021, %v6022
        %v6024 = vcombine.high %v5887, %v5887
        %v6025 = vcombine.high %v5894, %v5894
        %v6026 = vlaneseq
        %v6027 = vshrl.u32 %v6026, 7
        %v6028 = vsub.s32 0, %v6027
        %v6029 = vrot.slane %v6024, %v6028
        %v6030 = vlaneseq
        %v6031 = vshrl.u32 %v6030, 7
        %v6032 = vsub.s32 0, %v6031
        %v6033 = vrot.slane %v6025, %v6032
        %v6036 = vmul.f32 %v6029, %v5479
        %v6037 = vmul.f32 %v6029, %v5480
        %v6038 = vmul.f32 %v6033, %v5479
        %v6039 = vmul.f32 %v6033, %v5480
        %v6040 = vmul.f32 %v6036, 1.442695
        %v6041 = vpow.pop %v6040
        %v6042 = vmul.f32 %v6037, 1.442695
        %v6043 = vpow.pop %v6042
        %v6044 = vmul.f32 %v6038, 1.442695
        %v6045 = vpow.pop %v6044
        %v6046 = vmul.f32 %v6039, 1.442695
        %v6047 = vpow.pop %v6046
        %v6048 = vmul.f32 %v6041, %v5982
        %v6049 = vmul.f32 %v6043, %v5983
        %v6050 = vmul.f32 %v6045, %v5984
        %v6051 = vmul.f32 %v6047, %v5985
        %v6052 = vcombine.high %v5936, %v5936
        %v6053 = vcombine.high %v5943, %v5943
        %v6054 = vlaneseq
        %v6055 = vshrl.u32 %v6054, 7
        %v6056 = vsub.s32 2, %v6055
        %v6057 = vrot.slane %v5822, %v6056
        %s6059 = sor.u32 256, 64
        %6060 = vbcast.lane.b32.xlu0 %v6057, %s6059
        %v6061 = vpop.permute.xlu0 %6060
        %s6063 = sor.u32 256, 72
        %6064 = vbcast.lane.b32.xlu0 %v6057, %s6063
        %v6065 = vpop.permute.xlu0 %6064
        %v6066 = vlaneseq
        %v6067 = vshrl.u32 %v6066, 7
        %v6068 = vsub.s32 3, %v6067
        %v6069 = vrot.slane %v5822, %v6068
        %s6071 = sor.u32 256, 64
        %6072 = vbcast.lane.b32.xlu0 %v6069, %s6071
        %v6073 = vpop.permute.xlu0 %6072
        %s6075 = sor.u32 256, 72
        %6076 = vbcast.lane.b32.xlu0 %v6069, %s6075
        %v6077 = vpop.permute.xlu0 %6076
        %v6078 = vlaneseq
        %v6079 = vshrl.u32 %v6078, 7
        %v6080 = vsub.s32 0, %v6079
        %v6081 = vrot.slane %v6052, %v6080
        %v6082 = vlaneseq
        %v6083 = vshrl.u32 %v6082, 7
        %v6084 = vsub.s32 0, %v6083
        %v6085 = vrot.slane %v6053, %v6084
        %v6088 = vmul.f32 %v6081, %v6061
        %v6089 = vmul.f32 %v6081, %v6065
        %v6090 = vmul.f32 %v6085, %v6073
        %v6091 = vmul.f32 %v6085, %v6077
        %v6092 = vadd.f32 %v6048, %v6088
        %v6093 = vadd.f32 %v6049, %v6089
        %v6094 = vadd.f32 %v6050, %v6090
        %v6095 = vadd.f32 %v6051, %v6091
        %s6097 = sor.u32 256, 80
        %6098 = vbcast.lane.b32.xlu0 %v6057, %s6097
        %v6099 = vpop.permute.xlu0 %6098
        %s6101 = sor.u32 256, 88
        %6102 = vbcast.lane.b32.xlu0 %v6057, %s6101
        %v6103 = vpop.permute.xlu0 %6102
        %s6105 = sor.u32 256, 80
        %6106 = vbcast.lane.b32.xlu0 %v6069, %s6105
        %v6107 = vpop.permute.xlu0 %6106
        %s6109 = sor.u32 256, 88
        %6110 = vbcast.lane.b32.xlu0 %v6069, %s6109
        %v6111 = vpop.permute.xlu0 %6110
        %v6112 = vmul.f32 %v6092, %v6099
        %v6113 = vmul.f32 %v6093, %v6103
        %v6114 = vmul.f32 %v6094, %v6107
        %v6115 = vmul.f32 %v6095, %v6111
        %v6116 = vsel %vm956, %v6112, 0.0
        %v6117 = vsel %vm956, %v6113, 0.0
        %v6118 = vadd.f32 %v6116, %v6117
        %v6119 = vrot.slane %v6118, 4
        %v6120 = vadd.f32 %v6118, %v6119
        %v6121 = vrot.slane %v6120, 2
        %v6122 = vadd.f32 %v6120, %v6121
        %v6123 = vrot.slane %v6122, 1
        %v6124 = vadd.f32 %v6122, %v6123
        %v6125 = vsel %vm956, %v6114, 0.0
        %v6126 = vsel %vm956, %v6115, 0.0
        %v6127 = vadd.f32 %v6125, %v6126
        %v6128 = vrot.slane %v6127, 4
        %v6129 = vadd.f32 %v6127, %v6128
        %v6130 = vrot.slane %v6129, 2
        %v6131 = vadd.f32 %v6129, %v6130
        %v6132 = vrot.slane %v6131, 1
        %v6133 = vadd.f32 %v6131, %v6132
        %v6134 = vcombine.high %v5868, %v5868
        %v6136 = vunpack.c.l.s4 1966171168
        %v6137 = vunpack.c.0.s8 %v6136
        %v6138 = vlaneseq
        %v6139 = vshrl.u32 %v6138, 7
        %v6140 = vsub.s32 %v6137, %v6139
        %v6141 = vrot.slane %v6134, %v6140
        %v6142 = vcombine.high %v6141, %v6141
        %v6144 = vunpack.c.l.s4 1966171168
        %v6145 = vunpack.c.0.s8 %v6144
        %v6146 = vlaneseq
        %v6147 = vshrl.u32 %v6146, 7
        %v6148 = vsub.s32 %v6145, %v6147
        %v6149 = vrot.slane %v6141, %v6148
        %v6151 = vunpack.c.l.s4 1966171168
        %v6152 = vunpack.c.0.s8 %v6151
        %v6153 = vlaneseq
        %v6154 = vshrl.u32 %v6153, 7
        %v6155 = vsub.s32 %v6152, %v6154
        %v6156 = vrot.slane %v6142, %v6155
        %v6157 = vlaneseq
        %v6158 = vshrl.u32 %v6157, 7
        %v6159 = vsub.s32 0, %v6158
        %v6160 = vrot.slane %v6149, %v6159
        %v6161 = vlaneseq
        %v6162 = vshrl.u32 %v6161, 7
        %v6163 = vsub.s32 0, %v6162
        %v6164 = vrot.slane %v6156, %v6163
        %v6167 = vmul.f32 %v6160, %v5479
        %v6168 = vmul.f32 %v6160, %v5480
        %v6169 = vmul.f32 %v6164, %v5479
        %v6170 = vmul.f32 %v6164, %v5480
        %v6171 = vmul.f32 %v6167, 1.442695
        %v6172 = vpow.pop %v6171
        %v6173 = vmul.f32 %v6168, 1.442695
        %v6174 = vpow.pop %v6173
        %v6175 = vmul.f32 %v6169, 1.442695
        %v6176 = vpow.pop %v6175
        %v6177 = vmul.f32 %v6170, 1.442695
        %v6178 = vpow.pop %v6177
        %v6179 = vmul.f32 %v6172, %v6092
        %v6180 = vmul.f32 %v6174, %v6093
        %v6181 = vmul.f32 %v6176, %v6094
        %v6182 = vmul.f32 %v6178, %v6095
        %v6183 = vcombine.high %v5870, %v5870
        %v6185 = vunpack.c.l.s4 1966171168
        %v6186 = vunpack.c.0.s8 %v6185
        %v6187 = vlaneseq
        %v6188 = vshrl.u32 %v6187, 7
        %v6189 = vsub.s32 %v6186, %v6188
        %v6190 = vrot.slane %v6183, %v6189
        %v6191 = vcombine.high %v6190, %v6190
        %v6193 = vunpack.c.l.s4 1966171168
        %v6194 = vunpack.c.0.s8 %v6193
        %v6195 = vlaneseq
        %v6196 = vshrl.u32 %v6195, 7
        %v6197 = vsub.s32 %v6194, %v6196
        %v6198 = vrot.slane %v6190, %v6197
        %v6200 = vunpack.c.l.s4 1966171168
        %v6201 = vunpack.c.0.s8 %v6200
        %v6202 = vlaneseq
        %v6203 = vshrl.u32 %v6202, 7
        %v6204 = vsub.s32 %v6201, %v6203
        %v6205 = vrot.slane %v6191, %v6204
        %v6206 = vlaneseq
        %v6207 = vshrl.u32 %v6206, 7
        %v6208 = vsub.s32 4, %v6207
        %v6209 = vrot.slane %v5822, %v6208
        %s6211 = sor.u32 256, 64
        %6212 = vbcast.lane.b32.xlu0 %v6209, %s6211
        %v6213 = vpop.permute.xlu0 %6212
        %s6215 = sor.u32 256, 72
        %6216 = vbcast.lane.b32.xlu0 %v6209, %s6215
        %v6217 = vpop.permute.xlu0 %6216
        %v6218 = vlaneseq
        %v6219 = vshrl.u32 %v6218, 7
        %v6220 = vsub.s32 5, %v6219
        %v6221 = vrot.slane %v5822, %v6220
        %s6223 = sor.u32 256, 64
        %6224 = vbcast.lane.b32.xlu0 %v6221, %s6223
        %v6225 = vpop.permute.xlu0 %6224
        %s6227 = sor.u32 256, 72
        %6228 = vbcast.lane.b32.xlu0 %v6221, %s6227
        %v6229 = vpop.permute.xlu0 %6228
        %v6230 = vlaneseq
        %v6231 = vshrl.u32 %v6230, 7
        %v6232 = vsub.s32 0, %v6231
        %v6233 = vrot.slane %v6198, %v6232
        %v6234 = vlaneseq
        %v6235 = vshrl.u32 %v6234, 7
        %v6236 = vsub.s32 0, %v6235
        %v6237 = vrot.slane %v6205, %v6236
        %v6240 = vmul.f32 %v6233, %v6213
        %v6241 = vmul.f32 %v6233, %v6217
        %v6242 = vmul.f32 %v6237, %v6225
        %v6243 = vmul.f32 %v6237, %v6229
        %v6244 = vadd.f32 %v6179, %v6240
        %v6245 = vadd.f32 %v6180, %v6241
        %v6246 = vadd.f32 %v6181, %v6242
        %v6247 = vadd.f32 %v6182, %v6243
        %s6249 = sor.u32 256, 80
        %6250 = vbcast.lane.b32.xlu0 %v6209, %s6249
        %v6251 = vpop.permute.xlu0 %6250
        %s6253 = sor.u32 256, 88
        %6254 = vbcast.lane.b32.xlu0 %v6209, %s6253
        %v6255 = vpop.permute.xlu0 %6254
        %s6257 = sor.u32 256, 80
        %6258 = vbcast.lane.b32.xlu0 %v6221, %s6257
        %v6259 = vpop.permute.xlu0 %6258
        %s6261 = sor.u32 256, 88
        %6262 = vbcast.lane.b32.xlu0 %v6221, %s6261
        %v6263 = vpop.permute.xlu0 %6262
        %v6264 = vmul.f32 %v6244, %v6251
        %v6265 = vmul.f32 %v6245, %v6255
        %v6266 = vmul.f32 %v6246, %v6259
        %v6267 = vmul.f32 %v6247, %v6263
        %v6268 = vsel %vm956, %v6264, 0.0
        %v6269 = vsel %vm956, %v6265, 0.0
        %v6270 = vadd.f32 %v6268, %v6269
        %v6271 = vrot.slane %v6270, 4
        %v6272 = vadd.f32 %v6270, %v6271
        %v6273 = vrot.slane %v6272, 2
        %v6274 = vadd.f32 %v6272, %v6273
        %v6275 = vrot.slane %v6274, 1
        %v6276 = vadd.f32 %v6274, %v6275
        %v6277 = vsel %vm956, %v6266, 0.0
        %v6278 = vsel %vm956, %v6267, 0.0
        %v6279 = vadd.f32 %v6277, %v6278
        %v6280 = vrot.slane %v6279, 4
        %v6281 = vadd.f32 %v6279, %v6280
        %v6282 = vrot.slane %v6281, 2
        %v6283 = vadd.f32 %v6281, %v6282
        %v6284 = vrot.slane %v6283, 1
        %v6285 = vadd.f32 %v6283, %v6284
        %v6286 = vcombine.high %v6149, %v6149
        %v6287 = vcombine.high %v6156, %v6156
        %v6288 = vlaneseq
        %v6289 = vshrl.u32 %v6288, 7
        %v6290 = vsub.s32 0, %v6289
        %v6291 = vrot.slane %v6286, %v6290
        %v6292 = vlaneseq
        %v6293 = vshrl.u32 %v6292, 7
        %v6294 = vsub.s32 0, %v6293
        %v6295 = vrot.slane %v6287, %v6294
        %v6298 = vmul.f32 %v6291, %v5479
        %v6299 = vmul.f32 %v6291, %v5480
        %v6300 = vmul.f32 %v6295, %v5479
        %v6301 = vmul.f32 %v6295, %v5480
        %v6302 = vmul.f32 %v6298, 1.442695
        %v6303 = vpow.pop %v6302
        %v6304 = vmul.f32 %v6299, 1.442695
        %v6305 = vpow.pop %v6304
        %v6306 = vmul.f32 %v6300, 1.442695
        %v6307 = vpow.pop %v6306
        %v6308 = vmul.f32 %v6301, 1.442695
        %v6309 = vpow.pop %v6308
        %v6310 = vmul.f32 %v6303, %v6244
        %v6311 = vmul.f32 %v6305, %v6245
        %v6312 = vmul.f32 %v6307, %v6246
        %v6313 = vmul.f32 %v6309, %v6247
        %v6314 = vcombine.high %v6198, %v6198
        %v6315 = vcombine.high %v6205, %v6205
        %v6316 = vlaneseq
        %v6317 = vshrl.u32 %v6316, 7
        %v6318 = vsub.s32 6, %v6317
        %v6319 = vrot.slane %v5822, %v6318
        %s6321 = sor.u32 256, 64
        %6322 = vbcast.lane.b32.xlu0 %v6319, %s6321
        %v6323 = vpop.permute.xlu0 %6322
        %s6325 = sor.u32 256, 72
        %6326 = vbcast.lane.b32.xlu0 %v6319, %s6325
        %v6327 = vpop.permute.xlu0 %6326
        %v6328 = vlaneseq
        %v6329 = vshrl.u32 %v6328, 7
        %v6330 = vsub.s32 7, %v6329
        %v6331 = vrot.slane %v5822, %v6330
        %s6333 = sor.u32 256, 64
        %6334 = vbcast.lane.b32.xlu0 %v6331, %s6333
        %v6335 = vpop.permute.xlu0 %6334
        %s6337 = sor.u32 256, 72
        %6338 = vbcast.lane.b32.xlu0 %v6331, %s6337
        %v6339 = vpop.permute.xlu0 %6338
        %v6340 = vlaneseq
        %v6341 = vshrl.u32 %v6340, 7
        %v6342 = vsub.s32 0, %v6341
        %v6343 = vrot.slane %v6314, %v6342
        %v6344 = vlaneseq
        %v6345 = vshrl.u32 %v6344, 7
        %v6346 = vsub.s32 0, %v6345
        %v6347 = vrot.slane %v6315, %v6346
        %v6350 = vmul.f32 %v6343, %v6323
        %v6351 = vmul.f32 %v6343, %v6327
        %v6352 = vmul.f32 %v6347, %v6335
        %v6353 = vmul.f32 %v6347, %v6339
        %v6354 = vadd.f32 %v6310, %v6350
        %v6355 = vadd.f32 %v6311, %v6351
        %v6356 = vadd.f32 %v6312, %v6352
        %v6357 = vadd.f32 %v6313, %v6353
        %s6359 = sor.u32 256, 80
        %6360 = vbcast.lane.b32.xlu0 %v6319, %s6359
        %v6361 = vpop.permute.xlu0 %6360
        %s6363 = sor.u32 256, 88
        %6364 = vbcast.lane.b32.xlu0 %v6319, %s6363
        %v6365 = vpop.permute.xlu0 %6364
        %s6367 = sor.u32 256, 80
        %6368 = vbcast.lane.b32.xlu0 %v6331, %s6367
        %v6369 = vpop.permute.xlu0 %6368
        %s6371 = sor.u32 256, 88
        %6372 = vbcast.lane.b32.xlu0 %v6331, %s6371
        %v6373 = vpop.permute.xlu0 %6372
        %v6374 = vmul.f32 %v6354, %v6361
        %v6375 = vmul.f32 %v6355, %v6365
        %v6376 = vmul.f32 %v6356, %v6369
        %v6377 = vmul.f32 %v6357, %v6373
        %v6378 = vsel %vm956, %v6374, 0.0
        %v6379 = vsel %vm956, %v6375, 0.0
        %v6380 = vadd.f32 %v6378, %v6379
        %v6381 = vrot.slane %v6380, 4
        %v6382 = vadd.f32 %v6380, %v6381
        %v6383 = vrot.slane %v6382, 2
        %v6384 = vadd.f32 %v6382, %v6383
        %v6385 = vrot.slane %v6384, 1
        %v6386 = vadd.f32 %v6384, %v6385
        %v6387 = vsel %vm956, %v6376, 0.0
        %v6388 = vsel %vm956, %v6377, 0.0
        %v6389 = vadd.f32 %v6387, %v6388
        %v6390 = vrot.slane %v6389, 4
        %v6391 = vadd.f32 %v6389, %v6390
        %v6392 = vrot.slane %v6391, 2
        %v6393 = vadd.f32 %v6391, %v6392
        %v6394 = vrot.slane %v6393, 1
        %v6395 = vadd.f32 %v6393, %v6394
        %v6398 = vunpack.c.l.s4 1966171168
        %v6399 = vunpack.c.0.s8 %v6398
        %v6400 = vlaneseq
        %v6401 = vshrl.u32 %v6400, 7
        %v6402 = vsub.s32 %v6399, %v6401
        %v6403 = vrot.slane %v5869, %v6402
        %v6404 = vcombine.high %v6403, %v6403
        %v6406 = vunpack.c.l.s4 1966171168
        %v6407 = vunpack.c.0.s8 %v6406
        %v6408 = vlaneseq
        %v6409 = vshrl.u32 %v6408, 7
        %v6410 = vsub.s32 %v6407, %v6409
        %v6411 = vrot.slane %v6403, %v6410
        %v6413 = vunpack.c.l.s4 1966171168
        %v6414 = vunpack.c.0.s8 %v6413
        %v6415 = vlaneseq
        %v6416 = vshrl.u32 %v6415, 7
        %v6417 = vsub.s32 %v6414, %v6416
        %v6418 = vrot.slane %v6404, %v6417
        %v6419 = vlaneseq
        %v6420 = vshrl.u32 %v6419, 7
        %v6421 = vsub.s32 0, %v6420
        %v6422 = vrot.slane %v6411, %v6421
        %v6423 = vlaneseq
        %v6424 = vshrl.u32 %v6423, 7
        %v6425 = vsub.s32 0, %v6424
        %v6426 = vrot.slane %v6418, %v6425
        %v6429 = vmul.f32 %v6422, %v5479
        %v6430 = vmul.f32 %v6422, %v5480
        %v6431 = vmul.f32 %v6426, %v5479
        %v6432 = vmul.f32 %v6426, %v5480
        %v6433 = vmul.f32 %v6429, 1.442695
        %v6434 = vpow.pop %v6433
        %v6435 = vmul.f32 %v6430, 1.442695
        %v6436 = vpow.pop %v6435
        %v6437 = vmul.f32 %v6431, 1.442695
        %v6438 = vpow.pop %v6437
        %v6439 = vmul.f32 %v6432, 1.442695
        %v6440 = vpow.pop %v6439
        %v6441 = vmul.f32 %v6434, %v6354
        %v6442 = vmul.f32 %v6436, %v6355
        %v6443 = vmul.f32 %v6438, %v6356
        %v6444 = vmul.f32 %v6440, %v6357
        %v6447 = vunpack.c.l.s4 1966171168
        %v6448 = vunpack.c.0.s8 %v6447
        %v6449 = vlaneseq
        %v6450 = vshrl.u32 %v6449, 7
        %v6451 = vsub.s32 %v6448, %v6450
        %v6452 = vrot.slane %v5871, %v6451
        %v6453 = vcombine.high %v6452, %v6452
        %v6455 = vunpack.c.l.s4 1966171168
        %v6456 = vunpack.c.0.s8 %v6455
        %v6457 = vlaneseq
        %v6458 = vshrl.u32 %v6457, 7
        %v6459 = vsub.s32 %v6456, %v6458
        %v6460 = vrot.slane %v6452, %v6459
        %v6462 = vunpack.c.l.s4 1966171168
        %v6463 = vunpack.c.0.s8 %v6462
        %v6464 = vlaneseq
        %v6465 = vshrl.u32 %v6464, 7
        %v6466 = vsub.s32 %v6463, %v6465
        %v6467 = vrot.slane %v6453, %v6466
        %v6468 = vlaneseq
        %v6469 = vshrl.u32 %v6468, 7
        %v6470 = vsub.s32 0, %v6469
        %v6471 = vrot.slane %v5825, %v6470
        %s6473 = sor.u32 256, 64
        %6474 = vbcast.lane.b32.xlu0 %v6471, %s6473
        %v6475 = vpop.permute.xlu0 %6474
        %s6477 = sor.u32 256, 72
        %6478 = vbcast.lane.b32.xlu0 %v6471, %s6477
        %v6479 = vpop.permute.xlu0 %6478
        %v6480 = vlaneseq
        %v6481 = vshrl.u32 %v6480, 7
        %v6482 = vsub.s32 1, %v6481
        %v6483 = vrot.slane %v5825, %v6482
        %s6485 = sor.u32 256, 64
        %6486 = vbcast.lane.b32.xlu0 %v6483, %s6485
        %v6487 = vpop.permute.xlu0 %6486
        %s6489 = sor.u32 256, 72
        %6490 = vbcast.lane.b32.xlu0 %v6483, %s6489
        %v6491 = vpop.permute.xlu0 %6490
        %v6492 = vlaneseq
        %v6493 = vshrl.u32 %v6492, 7
        %v6494 = vsub.s32 0, %v6493
        %v6495 = vrot.slane %v6460, %v6494
        %v6496 = vlaneseq
        %v6497 = vshrl.u32 %v6496, 7
        %v6498 = vsub.s32 0, %v6497
        %v6499 = vrot.slane %v6467, %v6498
        %v6502 = vmul.f32 %v6495, %v6475
        %v6503 = vmul.f32 %v6495, %v6479
        %v6504 = vmul.f32 %v6499, %v6487
        %v6505 = vmul.f32 %v6499, %v6491
        %v6506 = vadd.f32 %v6441, %v6502
        %v6507 = vadd.f32 %v6442, %v6503
        %v6508 = vadd.f32 %v6443, %v6504
        %v6509 = vadd.f32 %v6444, %v6505
        %s6511 = sor.u32 256, 80
        %6512 = vbcast.lane.b32.xlu0 %v6471, %s6511
        %v6513 = vpop.permute.xlu0 %6512
        %s6515 = sor.u32 256, 88
        %6516 = vbcast.lane.b32.xlu0 %v6471, %s6515
        %v6517 = vpop.permute.xlu0 %6516
        %s6519 = sor.u32 256, 80
        %6520 = vbcast.lane.b32.xlu0 %v6483, %s6519
        %v6521 = vpop.permute.xlu0 %6520
        %s6523 = sor.u32 256, 88
        %6524 = vbcast.lane.b32.xlu0 %v6483, %s6523
        %v6525 = vpop.permute.xlu0 %6524
        %v6526 = vmul.f32 %v6506, %v6513
        %v6527 = vmul.f32 %v6507, %v6517
        %v6528 = vmul.f32 %v6508, %v6521
        %v6529 = vmul.f32 %v6509, %v6525
        %v6530 = vsel %vm956, %v6526, 0.0
        %v6531 = vsel %vm956, %v6527, 0.0
        %v6532 = vadd.f32 %v6530, %v6531
        %v6533 = vrot.slane %v6532, 4
        %v6534 = vadd.f32 %v6532, %v6533
        %v6535 = vrot.slane %v6534, 2
        %v6536 = vadd.f32 %v6534, %v6535
        %v6537 = vrot.slane %v6536, 1
        %v6538 = vadd.f32 %v6536, %v6537
        %v6539 = vsel %vm956, %v6528, 0.0
        %v6540 = vsel %vm956, %v6529, 0.0
        %v6541 = vadd.f32 %v6539, %v6540
        %v6542 = vrot.slane %v6541, 4
        %v6543 = vadd.f32 %v6541, %v6542
        %v6544 = vrot.slane %v6543, 2
        %v6545 = vadd.f32 %v6543, %v6544
        %v6546 = vrot.slane %v6545, 1
        %v6547 = vadd.f32 %v6545, %v6546
        %v6548 = vcombine.high %v6411, %v6411
        %v6549 = vcombine.high %v6418, %v6418
        %v6550 = vlaneseq
        %v6551 = vshrl.u32 %v6550, 7
        %v6552 = vsub.s32 0, %v6551
        %v6553 = vrot.slane %v6548, %v6552
        %v6554 = vlaneseq
        %v6555 = vshrl.u32 %v6554, 7
        %v6556 = vsub.s32 0, %v6555
        %v6557 = vrot.slane %v6549, %v6556
        %v6560 = vmul.f32 %v6553, %v5479
        %v6561 = vmul.f32 %v6553, %v5480
        %v6562 = vmul.f32 %v6557, %v5479
        %v6563 = vmul.f32 %v6557, %v5480
        %v6564 = vmul.f32 %v6560, 1.442695
        %v6565 = vpow.pop %v6564
        %v6566 = vmul.f32 %v6561, 1.442695
        %v6567 = vpow.pop %v6566
        %v6568 = vmul.f32 %v6562, 1.442695
        %v6569 = vpow.pop %v6568
        %v6570 = vmul.f32 %v6563, 1.442695
        %v6571 = vpow.pop %v6570
        %v6572 = vmul.f32 %v6565, %v6506
        %v6573 = vmul.f32 %v6567, %v6507
        %v6574 = vmul.f32 %v6569, %v6508
        %v6575 = vmul.f32 %v6571, %v6509
        %v6576 = vcombine.high %v6460, %v6460
        %v6577 = vcombine.high %v6467, %v6467
        %v6578 = vlaneseq
        %v6579 = vshrl.u32 %v6578, 7
        %v6580 = vsub.s32 2, %v6579
        %v6581 = vrot.slane %v5825, %v6580
        %s6583 = sor.u32 256, 64
        %6584 = vbcast.lane.b32.xlu0 %v6581, %s6583
        %v6585 = vpop.permute.xlu0 %6584
        %s6587 = sor.u32 256, 72
        %6588 = vbcast.lane.b32.xlu0 %v6581, %s6587
        %v6589 = vpop.permute.xlu0 %6588
        %v6590 = vlaneseq
        %v6591 = vshrl.u32 %v6590, 7
        %v6592 = vsub.s32 3, %v6591
        %v6593 = vrot.slane %v5825, %v6592
        %s6595 = sor.u32 256, 64
        %6596 = vbcast.lane.b32.xlu0 %v6593, %s6595
        %v6597 = vpop.permute.xlu0 %6596
        %s6599 = sor.u32 256, 72
        %6600 = vbcast.lane.b32.xlu0 %v6593, %s6599
        %v6601 = vpop.permute.xlu0 %6600
        %v6602 = vlaneseq
        %v6603 = vshrl.u32 %v6602, 7
        %v6604 = vsub.s32 0, %v6603
        %v6605 = vrot.slane %v6576, %v6604
        %v6606 = vlaneseq
        %v6607 = vshrl.u32 %v6606, 7
        %v6608 = vsub.s32 0, %v6607
        %v6609 = vrot.slane %v6577, %v6608
        %v6612 = vmul.f32 %v6605, %v6585
        %v6613 = vmul.f32 %v6605, %v6589
        %v6614 = vmul.f32 %v6609, %v6597
        %v6615 = vmul.f32 %v6609, %v6601
        %v6616 = vadd.f32 %v6572, %v6612
        %v6617 = vadd.f32 %v6573, %v6613
        %v6618 = vadd.f32 %v6574, %v6614
        %v6619 = vadd.f32 %v6575, %v6615
        %s6621 = sor.u32 256, 80
        %6622 = vbcast.lane.b32.xlu0 %v6581, %s6621
        %v6623 = vpop.permute.xlu0 %6622
        %s6625 = sor.u32 256, 88
        %6626 = vbcast.lane.b32.xlu0 %v6581, %s6625
        %v6627 = vpop.permute.xlu0 %6626
        %s6629 = sor.u32 256, 80
        %6630 = vbcast.lane.b32.xlu0 %v6593, %s6629
        %v6631 = vpop.permute.xlu0 %6630
        %s6633 = sor.u32 256, 88
        %6634 = vbcast.lane.b32.xlu0 %v6593, %s6633
        %v6635 = vpop.permute.xlu0 %6634
        %v6636 = vmul.f32 %v6616, %v6623
        %v6637 = vmul.f32 %v6617, %v6627
        %v6638 = vmul.f32 %v6618, %v6631
        %v6639 = vmul.f32 %v6619, %v6635
        %v6640 = vsel %vm956, %v6636, 0.0
        %v6641 = vsel %vm956, %v6637, 0.0
        %v6642 = vadd.f32 %v6640, %v6641
        %v6643 = vrot.slane %v6642, 4
        %v6644 = vadd.f32 %v6642, %v6643
        %v6645 = vrot.slane %v6644, 2
        %v6646 = vadd.f32 %v6644, %v6645
        %v6647 = vrot.slane %v6646, 1
        %v6648 = vadd.f32 %v6646, %v6647
        %v6649 = vsel %vm956, %v6638, 0.0
        %v6650 = vsel %vm956, %v6639, 0.0
        %v6651 = vadd.f32 %v6649, %v6650
        %v6652 = vrot.slane %v6651, 4
        %v6653 = vadd.f32 %v6651, %v6652
        %v6654 = vrot.slane %v6653, 2
        %v6655 = vadd.f32 %v6653, %v6654
        %v6656 = vrot.slane %v6655, 1
        %v6657 = vadd.f32 %v6655, %v6656
        %v6658 = vcombine.high %v5869, %v5869
        %v6660 = vunpack.c.l.s4 1966171168
        %v6661 = vunpack.c.0.s8 %v6660
        %v6662 = vlaneseq
        %v6663 = vshrl.u32 %v6662, 7
        %v6664 = vsub.s32 %v6661, %v6663
        %v6665 = vrot.slane %v6658, %v6664
        %v6666 = vcombine.high %v6665, %v6665
        %v6668 = vunpack.c.l.s4 1966171168
        %v6669 = vunpack.c.0.s8 %v6668
        %v6670 = vlaneseq
        %v6671 = vshrl.u32 %v6670, 7
        %v6672 = vsub.s32 %v6669, %v6671
        %v6673 = vrot.slane %v6665, %v6672
        %v6675 = vunpack.c.l.s4 1966171168
        %v6676 = vunpack.c.0.s8 %v6675
        %v6677 = vlaneseq
        %v6678 = vshrl.u32 %v6677, 7
        %v6679 = vsub.s32 %v6676, %v6678
        %v6680 = vrot.slane %v6666, %v6679
        %v6681 = vlaneseq
        %v6682 = vshrl.u32 %v6681, 7
        %v6683 = vsub.s32 0, %v6682
        %v6684 = vrot.slane %v6673, %v6683
        %v6685 = vlaneseq
        %v6686 = vshrl.u32 %v6685, 7
        %v6687 = vsub.s32 0, %v6686
        %v6688 = vrot.slane %v6680, %v6687
        %v6691 = vmul.f32 %v6684, %v5479
        %v6692 = vmul.f32 %v6684, %v5480
        %v6693 = vmul.f32 %v6688, %v5479
        %v6694 = vmul.f32 %v6688, %v5480
        %v6695 = vmul.f32 %v6691, 1.442695
        %v6696 = vpow.pop %v6695
        %v6697 = vmul.f32 %v6692, 1.442695
        %v6698 = vpow.pop %v6697
        %v6699 = vmul.f32 %v6693, 1.442695
        %v6700 = vpow.pop %v6699
        %v6701 = vmul.f32 %v6694, 1.442695
        %v6702 = vpow.pop %v6701
        %v6703 = vmul.f32 %v6696, %v6616
        %v6704 = vmul.f32 %v6698, %v6617
        %v6705 = vmul.f32 %v6700, %v6618
        %v6706 = vmul.f32 %v6702, %v6619
        %v6707 = vcombine.high %v5871, %v5871
        %v6709 = vunpack.c.l.s4 1966171168
        %v6710 = vunpack.c.0.s8 %v6709
        %v6711 = vlaneseq
        %v6712 = vshrl.u32 %v6711, 7
        %v6713 = vsub.s32 %v6710, %v6712
        %v6714 = vrot.slane %v6707, %v6713
        %v6715 = vcombine.high %v6714, %v6714
        %v6717 = vunpack.c.l.s4 1966171168
        %v6718 = vunpack.c.0.s8 %v6717
        %v6719 = vlaneseq
        %v6720 = vshrl.u32 %v6719, 7
        %v6721 = vsub.s32 %v6718, %v6720
        %v6722 = vrot.slane %v6714, %v6721
        %v6724 = vunpack.c.l.s4 1966171168
        %v6725 = vunpack.c.0.s8 %v6724
        %v6726 = vlaneseq
        %v6727 = vshrl.u32 %v6726, 7
        %v6728 = vsub.s32 %v6725, %v6727
        %v6729 = vrot.slane %v6715, %v6728
        %v6730 = vlaneseq
        %v6731 = vshrl.u32 %v6730, 7
        %v6732 = vsub.s32 4, %v6731
        %v6733 = vrot.slane %v5825, %v6732
        %s6735 = sor.u32 256, 64
        %6736 = vbcast.lane.b32.xlu0 %v6733, %s6735
        %v6737 = vpop.permute.xlu0 %6736
        %s6739 = sor.u32 256, 72
        %6740 = vbcast.lane.b32.xlu0 %v6733, %s6739
        %v6741 = vpop.permute.xlu0 %6740
        %v6742 = vlaneseq
        %v6743 = vshrl.u32 %v6742, 7
        %v6744 = vsub.s32 5, %v6743
        %v6745 = vrot.slane %v5825, %v6744
        %s6747 = sor.u32 256, 64
        %6748 = vbcast.lane.b32.xlu0 %v6745, %s6747
        %v6749 = vpop.permute.xlu0 %6748
        %s6751 = sor.u32 256, 72
        %6752 = vbcast.lane.b32.xlu0 %v6745, %s6751
        %v6753 = vpop.permute.xlu0 %6752
        %v6754 = vlaneseq
        %v6755 = vshrl.u32 %v6754, 7
        %v6756 = vsub.s32 0, %v6755
        %v6757 = vrot.slane %v6722, %v6756
        %v6758 = vlaneseq
        %v6759 = vshrl.u32 %v6758, 7
        %v6760 = vsub.s32 0, %v6759
        %v6761 = vrot.slane %v6729, %v6760
        %v6764 = vmul.f32 %v6757, %v6737
        %v6765 = vmul.f32 %v6757, %v6741
        %v6766 = vmul.f32 %v6761, %v6749
        %v6767 = vmul.f32 %v6761, %v6753
        %v6768 = vadd.f32 %v6703, %v6764
        %v6769 = vadd.f32 %v6704, %v6765
        %v6770 = vadd.f32 %v6705, %v6766
        %v6771 = vadd.f32 %v6706, %v6767
        %s6773 = sor.u32 256, 80
        %6774 = vbcast.lane.b32.xlu0 %v6733, %s6773
        %v6775 = vpop.permute.xlu0 %6774
        %s6777 = sor.u32 256, 88
        %6778 = vbcast.lane.b32.xlu0 %v6733, %s6777
        %v6779 = vpop.permute.xlu0 %6778
        %s6781 = sor.u32 256, 80
        %6782 = vbcast.lane.b32.xlu0 %v6745, %s6781
        %v6783 = vpop.permute.xlu0 %6782
        %s6785 = sor.u32 256, 88
        %6786 = vbcast.lane.b32.xlu0 %v6745, %s6785
        %v6787 = vpop.permute.xlu0 %6786
        %v6788 = vmul.f32 %v6768, %v6775
        %v6789 = vmul.f32 %v6769, %v6779
        %v6790 = vmul.f32 %v6770, %v6783
        %v6791 = vmul.f32 %v6771, %v6787
        %v6792 = vsel %vm956, %v6788, 0.0
        %v6793 = vsel %vm956, %v6789, 0.0
        %v6794 = vadd.f32 %v6792, %v6793
        %v6795 = vrot.slane %v6794, 4
        %v6796 = vadd.f32 %v6794, %v6795
        %v6797 = vrot.slane %v6796, 2
        %v6798 = vadd.f32 %v6796, %v6797
        %v6799 = vrot.slane %v6798, 1
        %v6800 = vadd.f32 %v6798, %v6799
        %v6801 = vsel %vm956, %v6790, 0.0
        %v6802 = vsel %vm956, %v6791, 0.0
        %v6803 = vadd.f32 %v6801, %v6802
        %v6804 = vrot.slane %v6803, 4
        %v6805 = vadd.f32 %v6803, %v6804
        %v6806 = vrot.slane %v6805, 2
        %v6807 = vadd.f32 %v6805, %v6806
        %v6808 = vrot.slane %v6807, 1
        %v6809 = vadd.f32 %v6807, %v6808
        %v6810 = vcombine.high %v6673, %v6673
        %v6811 = vcombine.high %v6680, %v6680
        %v6812 = vlaneseq
        %v6813 = vshrl.u32 %v6812, 7
        %v6814 = vsub.s32 0, %v6813
        %v6815 = vrot.slane %v6810, %v6814
        %v6816 = vlaneseq
        %v6817 = vshrl.u32 %v6816, 7
        %v6818 = vsub.s32 0, %v6817
        %v6819 = vrot.slane %v6811, %v6818
        %v6822 = vmul.f32 %v6815, %v5479
        %v6823 = vmul.f32 %v6815, %v5480
        %v6824 = vmul.f32 %v6819, %v5479
        %v6825 = vmul.f32 %v6819, %v5480
        %v6826 = vmul.f32 %v6822, 1.442695
        %v6827 = vpow.pop %v6826
        %v6828 = vmul.f32 %v6823, 1.442695
        %v6829 = vpow.pop %v6828
        %v6830 = vmul.f32 %v6824, 1.442695
        %v6831 = vpow.pop %v6830
        %v6832 = vmul.f32 %v6825, 1.442695
        %v6833 = vpow.pop %v6832
        %v6834 = vmul.f32 %v6827, %v6768
        %v6835 = vmul.f32 %v6829, %v6769
        %v6836 = vmul.f32 %v6831, %v6770
        %v6837 = vmul.f32 %v6833, %v6771
        %v6838 = vcombine.high %v6722, %v6722
        %v6839 = vcombine.high %v6729, %v6729
        %v6840 = vlaneseq
        %v6841 = vshrl.u32 %v6840, 7
        %v6842 = vsub.s32 6, %v6841
        %v6843 = vrot.slane %v5825, %v6842
        %s6845 = sor.u32 256, 64
        %6846 = vbcast.lane.b32.xlu0 %v6843, %s6845
        %v6847 = vpop.permute.xlu0 %6846
        %s6849 = sor.u32 256, 72
        %6850 = vbcast.lane.b32.xlu0 %v6843, %s6849
        %v6851 = vpop.permute.xlu0 %6850
        %v6852 = vlaneseq
        %v6853 = vshrl.u32 %v6852, 7
        %v6854 = vsub.s32 7, %v6853
        %v6855 = vrot.slane %v5825, %v6854
        %s6857 = sor.u32 256, 64
        %6858 = vbcast.lane.b32.xlu0 %v6855, %s6857
        %v6859 = vpop.permute.xlu0 %6858
        %s6861 = sor.u32 256, 72
        %6862 = vbcast.lane.b32.xlu0 %v6855, %s6861
        %v6863 = vpop.permute.xlu0 %6862
        %v6864 = vlaneseq
        %v6865 = vshrl.u32 %v6864, 7
        %v6866 = vsub.s32 0, %v6865
        %v6867 = vrot.slane %v6838, %v6866
        %v6868 = vlaneseq
        %v6869 = vshrl.u32 %v6868, 7
        %v6870 = vsub.s32 0, %v6869
        %v6871 = vrot.slane %v6839, %v6870
        %v6874 = vmul.f32 %v6867, %v6847
        %v6875 = vmul.f32 %v6867, %v6851
        %v6876 = vmul.f32 %v6871, %v6859
        %v6877 = vmul.f32 %v6871, %v6863
        %v6878 = vadd.f32 %v6834, %v6874
        %v6879 = vadd.f32 %v6835, %v6875
        %v6880 = vadd.f32 %v6836, %v6876
        %v6881 = vadd.f32 %v6837, %v6877
        %s6883 = sor.u32 256, 80
        %6884 = vbcast.lane.b32.xlu0 %v6843, %s6883
        %v6885 = vpop.permute.xlu0 %6884
        %s6887 = sor.u32 256, 88
        %6888 = vbcast.lane.b32.xlu0 %v6843, %s6887
        %v6889 = vpop.permute.xlu0 %6888
        %s6891 = sor.u32 256, 80
        %6892 = vbcast.lane.b32.xlu0 %v6855, %s6891
        %v6893 = vpop.permute.xlu0 %6892
        %s6895 = sor.u32 256, 88
        %6896 = vbcast.lane.b32.xlu0 %v6855, %s6895
        %v6897 = vpop.permute.xlu0 %6896
        %v6898 = vmul.f32 %v6878, %v6885
        %v6899 = vmul.f32 %v6879, %v6889
        %v6900 = vmul.f32 %v6880, %v6893
        %v6901 = vmul.f32 %v6881, %v6897
        %v6902 = vsel %vm956, %v6898, 0.0
        %v6903 = vsel %vm956, %v6899, 0.0
        %v6904 = vadd.f32 %v6902, %v6903
        %v6905 = vrot.slane %v6904, 4
        %v6906 = vadd.f32 %v6904, %v6905
        %v6907 = vrot.slane %v6906, 2
        %v6908 = vadd.f32 %v6906, %v6907
        %v6909 = vrot.slane %v6908, 1
        %v6910 = vadd.f32 %v6908, %v6909
        %v6911 = vsel %vm956, %v6900, 0.0
        %v6912 = vsel %vm956, %v6901, 0.0
        %v6913 = vadd.f32 %v6911, %v6912
        %v6914 = vrot.slane %v6913, 4
        %v6915 = vadd.f32 %v6913, %v6914
        %v6916 = vrot.slane %v6915, 2
        %v6917 = vadd.f32 %v6915, %v6916
        %v6918 = vrot.slane %v6917, 1
        %v6919 = vadd.f32 %v6917, %v6918
        %v6922 = vsel %vm2095, %v6023, %v6014
        %v6926 = vsel %vm2100, %v6133, %v6124
        %v6930 = vsel %vm2105, %v6285, %v6276
        %v6934 = vsel %vm2110, %v6395, %v6386
        %v6938 = vsel %vm2095, %v6547, %v6538
        %v6942 = vsel %vm2100, %v6657, %v6648
        %v6946 = vsel %vm2105, %v6809, %v6800
        %v6950 = vsel %vm2110, %v6919, %v6910
        %v6952 = vsel %vm2129, %v6922, %v6926
        %v6953 = vsel %vm2131, %v6952, %v6930
        %v6954 = vsel %vm2133, %v6953, %v6934
        %v6955 = vsel %vm2129, %v6938, %v6942
        %v6956 = vsel %vm2131, %v6955, %v6946
        %v6957 = vsel %vm2133, %v6956, %v6950
        %v6958 = vlaneseq
        %v6959 = vshrl.u32 %v6958, 7
        %v6960 = vsub.s32 2, %v6959
        %v6961 = vrot.slane %v5468, %v6960
        %v6962 = vmul.f32 %v5757, %v6961
        %v6963 = vmul.f32 %v5758, %v6961
        %v6964 = vadd.f32 %v6954, %v6962
        %v6965 = vadd.f32 %v6957, %v6963
        %v6966 = vxor.u32 %v5579, 2147483648
        %v6967 = vxor.u32 %v5582, 2147483648
        %v6968 = vmul.f32 %v6966, 1.442695
        %v6969 = vpow.pop %v6968
        %v6970 = vmul.f32 %v6967, 1.442695
        %v6971 = vpow.pop %v6970
        %v6972 = vadd.f32 %v6969, 1.0
        %v6973 = vadd.f32 %v6971, 1.0
        %v6974 = vrcp.pop %v6972
        %v6975 = vmul.f32 1.0, %v6974
        %v6976 = vrcp.pop %v6973
        %v6977 = vmul.f32 1.0, %v6976
        %v6978 = vmul.f32 %v5579, %v6975
        %v6979 = vmul.f32 %v5582, %v6977
        %6982 = vrot.lane.b32.xlu0 %v6978, 64
        %v6983 = vpop.permute.xlu0 %6982
        %6984 = vrot.lane.b32.xlu0 %v6979, 64
        %v6985 = vpop.permute.xlu0 %6984
        %v6988 = vmul.f32 %v6964, %v6983
        %v6989 = vmul.f32 %v6965, %v6985
        %v6990 = vpack.c.bf16 %v6989, %v6988
        %v6999 = vunpack.c.l.b16 %v5482
        %v7000 = vunpack.c.l.b16 %v5483
        %v7001 = vunpack.c.l.b16 %v5484
        %v7002 = vunpack.c.l.b16 %v5485
        %v7003 = vunpack.c.l.b16 %v5486
        %v7004 = vunpack.c.l.b16 %v5487
        %v7005 = vunpack.c.l.b16 %v5488
        %v7006 = vunpack.c.l.b16 %v5489
        %v7007 = vpack.c.b16 %v7000, %v6999
        %v7008 = vpack.c.b16 %v7002, %v7001
        %v7009 = vpack.c.b16 %v7004, %v7003
        %v7010 = vpack.c.b16 %v7006, %v7005
        %v7016 = vsel %vm956, %v6990, 0
        %7018 = vmatprep.subr.bf16.mxu0 0
        %7019 = vmatpush1.bf16.msra.mxu0 %v7007
        %7020 = vmatprep.subr.bf16.mxu0 0
        %7021 = vmatpush1.bf16.msra.mxu0 %v7008
        %7022 = vmatprep.subr.bf16.mxu0 0
        %7023 = vmatpush1.bf16.msra.mxu0 %v7009
        %7024 = vmatprep.subr.bf16.mxu0 0
        %7025 = vmatpush1.bf16.msra.mxu0 %v7010
        %7026 = vmatprep.subr.bf16.mxu0 0
        %7027 = vmatpush1.bf16.msra.mxu0 0
        %7028 = vmatprep.subr.bf16.mxu0 0
        %7029 = vmatpush1.bf16.msra.mxu0 0
        %7030 = vmatprep.subr.bf16.mxu0 0
        %7031 = vmatpush1.bf16.msra.mxu0 0
        %7032 = vmatprep.subr.bf16.mxu0 0
        %7033 = vmatpush1.bf16.msra.mxu0 0
        %7034 = vmatprep.subr.bf16.mxu0 0
        %7035 = vmatpush1.bf16.msra.mxu0 0
        %7036 = vmatprep.subr.bf16.mxu0 0
        %7037 = vmatpush1.bf16.msra.mxu0 0
        %7038 = vmatprep.subr.bf16.mxu0 0
        %7039 = vmatpush1.bf16.msra.mxu0 0
        %7040 = vmatprep.subr.bf16.mxu0 0
        %7041 = vmatpush1.bf16.msra.mxu0 0
        %7042 = vmatprep.subr.bf16.mxu0 0
        %7043 = vmatpush1.bf16.msra.mxu0 0
        %7044 = vmatprep.subr.bf16.mxu0 0
        %7045 = vmatpush1.bf16.msra.mxu0 0
        %7046 = vmatprep.subr.bf16.mxu0 0
        %7047 = vmatpush1.bf16.msra.mxu0 0
        %7048 = vmatprep.subr.bf16.mxu0 0
        %7049 = vmatpush1.bf16.msra.mxu0 0
        %7050 = vmatprep.mubr.bf16.mxu0 0
        %7051 = vmatmul.mubr.bf16.gmra.mrb[0].mxu0 %v7016
        %v7052 = vpop.f32.mrb[0].mxu0
        %v7053 = vadd.f32 0.0, %v7052
        %v7054 = vpop.f32.mrb[0].mxu0
        %v7055 = vpop.f32.mrb[0].mxu0
        %v7056 = vadd.f32 0.0, %v7055
        %v7057 = vpop.f32.mrb[0].mxu0
        %7058 = vdwg.mxu0
        %s7059 = scalar_lea.vmem %s581, 48 [#allocation13]
        %7060 = vst [vmem:[%s7059] sm:$0xff] %v7053
        %7061 = vst [vmem:[%s7059 + $0x8] sm:$0xff] %v7056
        %s7062 = sand.u32 %s272, 1
        %s7063 = scalar_lea.sflag [#allocation4], %s7062
        %s7064 = sand.u32 %s272, 1
        %s7065 = smul.addr %s7064, 64
        %s7066 = scalar_lea.vmem [#allocation13], %s7065
        // Predicated region
        $region81: #{tpu_custom_call.1} parent=55 // pred_check
          %p7067 = pneg %p282
        $region82: #{tpu_custom_call.1} parent=55 // pred_check_branch
          %7069 = sbr.rel (%p7067) target = $region84
        $region83: #{tpu_custom_call.1} parent=55 // pred_region
          %s7070 = smul.u32 4, %s35
          %s7072 = ssub.s32 1024, 1024
          %7073 = vsyncadd %s7063, %s7072
          %s7074 = smul.addr %s7070, 2
          %s7075 = smul.addr %s7074, 128
          %s7076 = scalar_lea.hbm %s9, %s7075
          %s7077 = sshll.u32 %s7066, 4
          %s7078 = int_to_ptr.vmem [resolvable:$true] %s7077
          %7083 = dma.vmem_to_hbm [thread:$0]  %s7078, 1024, %s7076, %s7063, 128, 128, 8
        $region84: #{tpu_custom_call.1} parent=55 // pred_fallthru
          _
      $region56: #{tpu_custom_call.1} parent=5 // pred_fallthru
        _
      %p7084 = scmp.le.s32.totalorder 2, %s30
      // Predicated region
      $region85: #{tpu_custom_call.1} parent=5 // pred_check
        %p7085 = pneg %p7084
      $region86: #{tpu_custom_call.1} parent=5 // pred_check_branch
        %7087 = sbr.rel (%p7085) target = $region88
      $region87: #{tpu_custom_call.1} parent=5 // pred_region
        %s7088 = ssub.s32 %s30, 2
        // Predicated region
        $region89: #{tpu_custom_call.1} parent=87 // pred_check
          %p7089 = pneg %p288
        $region90: #{tpu_custom_call.1} parent=87 // pred_check_branch
          %7091 = sbr.rel (%p7089) target = $region92
        $region91: #{tpu_custom_call.1} parent=87 // pred_region
          %s7092 = sand.u32 %s273, 1
          %s7093 = scalar_lea.sflag [#allocation4], %s7092
          %s7094 = sand.u32 %s273, 1
          %s7095 = smul.addr %s7094, 64
          %s7096 = scalar_lea.vmem [#allocation13], %s7095
          %7097 = dma.done %s7093, 1024
        $region92: #{tpu_custom_call.1} parent=87 // pred_fallthru
          _
      $region88: #{tpu_custom_call.1} parent=5 // pred_fallthru
        _
    $region6: #{tpu_custom_call.1} parent=1 // loop_footer
      %s34 = sadd.s32 1, %s30
    $region7: #{tpu_custom_call.1} parent=1 // loop_footer_branch
      %29 = sbr.rel target = $region3
    $region8: #{tpu_custom_call.1} parent=1 // loop_exit
      _
    %7098 = vsyncpa [#allocation3], 1
    %s7099 = scalar_lea.sflag [#allocation3], 1
    %7100 = vsyncpa %s7099, 1
    %7101 = vsyncpa [#allocation6], 1
    %s7102 = scalar_lea.sflag [#allocation6], 1
    %7103 = vsyncpa %s7102, 1
    %7104 = vsyncpa [#allocation9], 1
    %s7105 = scalar_lea.sflag [#allocation9], 1
    %7106 = vsyncpa %s7105, 1
    %7107 = vsyncpa [#allocation12], 1
    %s7108 = scalar_lea.sflag [#allocation12], 1
    %7109 = vsyncpa %s7108, 1
    %7110 = vsyncpa [#allocation4], 1
    %s7111 = scalar_lea.sflag [#allocation4], 1
    %7112 = vsyncpa %s7111, 1

</llo_original>
